<compile_context>
chip_gen: v7x
topology: tpu7x:2x2x1
jax: 0.10.0
libtpu: 0.0.40
codegen_flags: <defaults>
</compile_context>

<pallas_src>
import functools

import jax
import jax.numpy as jnp
from jax.experimental import pallas as pl
from jax.experimental.pallas import tpu as pltpu


def _bn_relu_conv1x1_kernel(x_ref, gamma_ref, beta_ref, w_ref, o_ref, y_ref, *, m, eps):
    # Grid axis 0 walks output-channel tiles.  The BN + ReLU on the resident (Cin, M)
    # activation block is done once (first grid step) into a bf16 VMEM scratch and
    # reused by every output tile's matmul.
    @pl.when(pl.program_id(0) == 0)
    def _():
        x = x_ref[...]                                           # (Cin, M) f32, M = N*H*W
        inv_count = jnp.float32(1.0 / m)
        # Per-channel batch statistics (biased 1/m variance, as PyTorch BN in training).
        # Nothing is padded here, so no masking is needed.
        mean = jnp.sum(x, axis=1, keepdims=True) * inv_count     # (Cin, 1)
        centered = x - mean
        var = jnp.sum(centered * centered, axis=1, keepdims=True) * inv_count
        # Fold the BN affine into one scale/shift: y = relu(x * a + b).
        a = jax.lax.rsqrt(var + eps) * gamma_ref[...]            # (Cin, 1)
        b = beta_ref[...] - mean * a
        y_ref[...] = jnp.maximum(x * a + b, 0.0).astype(jnp.bfloat16)

    # 1x1 conv == channel matmul on the MXU: (TO, Cin) bf16 @ (Cin, M) bf16 -> f32.
    o_ref[...] = jnp.dot(w_ref[...], y_ref[...], preferred_element_type=jnp.float32)


def prepare_weight(weight):
    """One-time bf16 cast of the (Cout, Cin) 1x1-conv weight (hoisted out of hot path)."""
    return weight.astype(jnp.bfloat16)


def _cout_tile(cout, target=448):
    """Largest divisor of cout that is a multiple of 8 and <= target (448 -> 3 tiles at 1344)."""
    if cout % 8 != 0:
        return cout
    t = min(target - target % 8, cout)
    while t > 8 and cout % t != 0:
        t -= 8
    return t


@functools.partial(jax.jit, static_argnames=("eps",))
def bn_relu_conv1x1(x_nchw, gamma, beta, w_bf16, *, eps=1e-5):
    n, c, h, w = x_nchw.shape
    cout = w_bf16.shape[0]
    m = n * h * w

    # Natural layout: for N == 1, NCHW *is* (Cin, H*W) -- a free reshape, no data movement.
    if n == 1:
        x2d = x_nchw.reshape(c, m)
    else:
        # TODO(synk): for N > 1 a (N,C,HW)->(C,N*HW) transpose is needed; an N grid axis
        # with a Welford-style stats merge would avoid it.
        x2d = jnp.transpose(x_nchw, (1, 0, 2, 3)).reshape(c, m)
    g2d = gamma.astype(jnp.float32).reshape(c, 1)
    b2d = beta.astype(jnp.float32).reshape(c, 1)

    to = _cout_tile(cout)
    kernel = functools.partial(_bn_relu_conv1x1_kernel, m=m, eps=float(eps))

    out2d = pl.pallas_call(
        kernel,
        out_shape=jax.ShapeDtypeStruct((cout, m), jnp.float32),
        grid=(cout // to,),
        in_specs=[
            pl.BlockSpec((c, m), lambda j: (0, 0)),      # activations: resident (full block)
            pl.BlockSpec((c, 1), lambda j: (0, 0)),      # gamma: resident
            pl.BlockSpec((c, 1), lambda j: (0, 0)),      # beta: resident
            pl.BlockSpec((to, c), lambda j: (j, 0)),     # weight: streamed per Cout tile
        ],
        out_specs=pl.BlockSpec((to, m), lambda j: (j, 0)),
        scratch_shapes=[pltpu.VMEM((c, m), jnp.bfloat16)],   # normalized + ReLU'd x (bf16)
        compiler_params=pltpu.CompilerParams(
            # Sequential ("arbitrary"): the bf16 scratch is written only on grid step 0
            # and reused by all later output-channel tiles.
            dimension_semantics=("arbitrary",),
            vmem_limit_bytes=32 << 20,                   # ~10 MB actual use; fits v7x 64 MiB
        ),
    )(x2d, g2d, b2d, w_bf16)

    if n == 1:
        return out2d.reshape(1, cout, h, w)              # free reshape back to NCHW
    return jnp.transpose(out2d.reshape(cout, n, h, w), (1, 0, 2, 3))


def reference(x_nchw, gamma, beta, weight, eps=1e-5):
    mean = jnp.mean(x_nchw, axis=(0, 2, 3), keepdims=True)
    var = jnp.mean((x_nchw - mean) ** 2, axis=(0, 2, 3), keepdims=True)
    y = (x_nchw - mean) / jnp.sqrt(var + eps)
    y = y * gamma[None, :, None, None] + beta[None, :, None, None]
    y = jnp.maximum(y, 0.0)
    return jnp.einsum('nchw,oc->nohw', y, weight)


if __name__ == "__main__":
    # Shapes implied by the module: x in [1, 1344, 14, 14], Conv2d 1x1 1344 -> 1344.
    N, C, H, W = 1, 1344, 14, 14
    Cout = 1344

    key = jax.random.PRNGKey(0)
    kx, kg, kb, kw = jax.random.split(key, 4)
    x = jax.random.normal(kx, (N, C, H, W), dtype=jnp.float32)
    gamma = 1.0 + 0.1 * jax.random.normal(kg, (C,), dtype=jnp.float32)
    beta = 0.1 * jax.random.normal(kb, (C,), dtype=jnp.float32)
    weight = jax.random.normal(kw, (Cout, C), dtype=jnp.float32) / jnp.sqrt(C)

    w_bf16 = prepare_weight(weight)                  # one-time bf16 cast, out of hot path
    out = bn_relu_conv1x1(x, gamma, beta, w_bf16)
    out = jax.block_until_ready(out)

    ref = reference(x, gamma, beta, weight)
    assert out.shape == (N, Cout, H, W), out.shape
    max_err = float(jnp.max(jnp.abs(out - ref)))
    # bf16 matmul operands (f32 accumulation) -> looser tolerance than pure f32.
    assert jnp.allclose(out, ref, atol=5e-2, rtol=5e-2), max_err
    print("KERNEL_OK")
</pallas_src>

<mosaic_0001>
module attributes {stable_mosaic.version = 11 : i64} {
  func.func @_bn_relu_conv1x1_kernel(%arg0: i32, %arg1: memref<1344x196xf32, #tpu.memory_space<vmem>>, %arg2: memref<1344x1xf32, #tpu.memory_space<vmem>>, %arg3: memref<1344x1xf32, #tpu.memory_space<vmem>>, %arg4: memref<448x1344xbf16, #tpu.memory_space<vmem>>, %arg5: memref<448x196xf32, #tpu.memory_space<vmem>>, %arg6: memref<1344x196xbf16, #tpu.memory_space<vmem>>) attributes {dimension_semantics = [#tpu.dimension_semantics<arbitrary>], iteration_bounds = array<i64: 3>, scalar_prefetch = 0 : i64, scratch_operands = 1 : i64, tpu.core_type = #tpu.core_type<tc>, window_params = [{pipeline_mode = #tpu.pipeline_mode<synchronous>, transform_indices = @transform_0, window_bounds = array<i64: 1344, 196>}, {pipeline_mode = #tpu.pipeline_mode<synchronous>, transform_indices = @transform_1, window_bounds = array<i64: 1344, 1>}, {pipeline_mode = #tpu.pipeline_mode<synchronous>, transform_indices = @transform_2, window_bounds = array<i64: 1344, 1>}, {transform_indices = @transform_3, window_bounds = array<i64: 448, 1344>}, {transform_indices = @transform_4, window_bounds = array<i64: 448, 196>}]} {
    %c0_i32 = arith.constant 0 : i32
    %0 = arith.cmpi eq, %arg0, %c0_i32 : i32
    %1 = arith.extui %0 : i1 to i32
    %c0_i32_0 = arith.constant 0 : i32
    %2 = arith.cmpi ne, %1, %c0_i32_0 : i32
    scf.if %2 {
      %c0_6 = arith.constant 0 : index
      %c0_7 = arith.constant 0 : index
      %7 = vector.load %arg1[%c0_6, %c0_7] : memref<1344x196xf32, #tpu.memory_space<vmem>>, vector<1344x196xf32>
      %cst_8 = arith.constant dense<0.000000e+00> : vector<1344xf32>
      %8 = vector.multi_reduction <add>, %7, %cst_8 [1] : vector<1344x196xf32> to vector<1344xf32>
      %9 = vector.shape_cast %8 : vector<1344xf32> to vector<1344x1xf32>
      %cst_9 = arith.constant 0.00510204071 : f32
      %10 = vector.broadcast %cst_9 : f32 to vector<1344x1xf32>
      %11 = arith.mulf %9, %10 : vector<1344x1xf32>
      %12 = vector.broadcast %11 : vector<1344x1xf32> to vector<1344x196xf32>
      %13 = arith.subf %7, %12 : vector<1344x196xf32>
      %14 = arith.mulf %13, %13 : vector<1344x196xf32>
      %cst_10 = arith.constant dense<0.000000e+00> : vector<1344xf32>
      %15 = vector.multi_reduction <add>, %14, %cst_10 [1] : vector<1344x196xf32> to vector<1344xf32>
      %16 = vector.shape_cast %15 : vector<1344xf32> to vector<1344x1xf32>
      %cst_11 = arith.constant 0.00510204071 : f32
      %17 = vector.broadcast %cst_11 : f32 to vector<1344x1xf32>
      %18 = arith.mulf %16, %17 : vector<1344x1xf32>
      %cst_12 = arith.constant 9.99999974E-6 : f32
      %19 = vector.broadcast %cst_12 : f32 to vector<1344x1xf32>
      %20 = arith.addf %18, %19 : vector<1344x1xf32>
      %21 = math.rsqrt %20 : vector<1344x1xf32>
      %c0_13 = arith.constant 0 : index
      %c0_14 = arith.constant 0 : index
      %22 = vector.load %arg2[%c0_13, %c0_14] : memref<1344x1xf32, #tpu.memory_space<vmem>>, vector<1344x1xf32>
      %23 = arith.mulf %21, %22 : vector<1344x1xf32>
      %c0_15 = arith.constant 0 : index
      %c0_16 = arith.constant 0 : index
      %24 = vector.load %arg3[%c0_15, %c0_16] : memref<1344x1xf32, #tpu.memory_space<vmem>>, vector<1344x1xf32>
      %25 = arith.mulf %11, %23 : vector<1344x1xf32>
      %26 = arith.subf %24, %25 : vector<1344x1xf32>
      %27 = vector.broadcast %23 : vector<1344x1xf32> to vector<1344x196xf32>
      %28 = arith.mulf %7, %27 : vector<1344x196xf32>
      %29 = vector.broadcast %26 : vector<1344x1xf32> to vector<1344x196xf32>
      %30 = arith.addf %28, %29 : vector<1344x196xf32>
      %cst_17 = arith.constant 0.000000e+00 : f32
      %31 = vector.broadcast %cst_17 : f32 to vector<1344x196xf32>
      %32 = arith.maximumf %30, %31 : vector<1344x196xf32>
      %33 = arith.truncf %32 : vector<1344x196xf32> to vector<1344x196xbf16>
      %c0_18 = arith.constant 0 : index
      %c0_19 = arith.constant 0 : index
      %34 = vector.load %arg6[%c0_18, %c0_19] : memref<1344x196xbf16, #tpu.memory_space<vmem>>, vector<1344x196xbf16>
      tpu.vector_store %arg6[%c0_18, %c0_19], %33 {strides = array<i32>} : memref<1344x196xbf16, #tpu.memory_space<vmem>>, vector<1344x196xbf16>,
    } else {
    }
    %c0 = arith.constant 0 : index
    %c0_1 = arith.constant 0 : index
    %3 = vector.load %arg4[%c0, %c0_1] : memref<448x1344xbf16, #tpu.memory_space<vmem>>, vector<448x1344xbf16>
    %c0_2 = arith.constant 0 : index
    %c0_3 = arith.constant 0 : index
    %4 = vector.load %arg6[%c0_2, %c0_3] : memref<1344x196xbf16, #tpu.memory_space<vmem>>, vector<1344x196xbf16>
    %cst = arith.constant dense<0.000000e+00> : vector<448x196xf32>
    %5 = tpu.matmul %3, %4, %cst {dimension_numbers = #tpu.dot_dimension_numbers<[1], [0], [0], [1], [0, 0, 1, 1], [], []>} : vector<448x1344xbf16>, vector<1344x196xbf16>, vector<448x196xf32> -> vector<448x196xf32>
    %c0_4 = arith.constant 0 : index
    %c0_5 = arith.constant 0 : index
    %6 = vector.load %arg5[%c0_4, %c0_5] : memref<448x196xf32, #tpu.memory_space<vmem>>, vector<448x196xf32>
    tpu.vector_store %arg5[%c0_4, %c0_5], %5 {strides = array<i32>} : memref<448x196xf32, #tpu.memory_space<vmem>>, vector<448x196xf32>,
    return
  }
  func.func @transform_0(%arg0: i32) -> (i32, i32) {
    %c0_i32 = arith.constant 0 : i32
    %c0_i32_0 = arith.constant 0 : i32
    %c0_i32_1 = arith.constant 0 : i32
    return %c0_i32, %c0_i32_0 : i32, i32
  }
  func.func @transform_1(%arg0: i32) -> (i32, i32) {
    %c0_i32 = arith.constant 0 : i32
    %c0_i32_0 = arith.constant 0 : i32
    %c0_i32_1 = arith.constant 0 : i32
    return %c0_i32, %c0_i32_0 : i32, i32
  }
  func.func @transform_2(%arg0: i32) -> (i32, i32) {
    %c0_i32 = arith.constant 0 : i32
    %c0_i32_0 = arith.constant 0 : i32
    %c0_i32_1 = arith.constant 0 : i32
    return %c0_i32, %c0_i32_0 : i32, i32
  }
  func.func @transform_3(%arg0: i32) -> (i32, i32) {
    %c0_i32 = arith.constant 0 : i32
    %c0_i32_0 = arith.constant 0 : i32
    return %arg0, %c0_i32 : i32, i32
  }
  func.func @transform_4(%arg0: i32) -> (i32, i32) {
    %c0_i32 = arith.constant 0 : i32
    %c0_i32_0 = arith.constant 0 : i32
    return %arg0, %c0_i32 : i32, i32
  }
}

</mosaic_0001>

<llo_original>
// kernel: bn_relu_conv1x1.1
$region0: #{bn_relu_conv1x1.1}
  #allocation0 [shape = 'u32[]', space=smem, size = 0x4, offset = 0x4, fixed_abs, tag = 'smem constant byte address 0x4 - core index']
  #allocation1 [shape = 'u32[144,128]{1,0:T(1,128)}', space=vmem, size = 0x12000, scoped, tag = 'internal scratch']
  #allocation2 [shape = 'bf16[1344,196]{1,0:T(16,128)(2,1)}', space=vmem, size = 0xa8000, scoped, tag = 'scratch operand']
  %s0 = inlined_call_operand.vmem [shape: f32[1344,196], index: 0, kind: input, shape index: {}]
  %s1 = inlined_call_operand.vmem [shape: f32[1344,1], index: 1, kind: input, shape index: {}]
  %s2 = inlined_call_operand.vmem [shape: f32[1344,1], index: 2, kind: input, shape index: {}]
  %s3 = inlined_call_operand.vmem [shape: bf16[1344,1344], index: 3, kind: input, shape index: {}]
  %s4 = inlined_call_operand.vmem [shape: f32[1344,196], index: 4, kind: output, shape index: {}]
  %s5 = sld [smem:[#allocation0]]
  $region53: #{bn_relu_conv1x1.1} parent=0
    _
  %s7 = ssub.s32 1, %s5
  %s8 = scalar_select 0, %s7, %s5
  loop: start=0, step=1, limit=5
  $region2: #{bn_relu_conv1x1.1} parent=0 // loop_pre_header
    _
  $region3: #{bn_relu_conv1x1.1} parent=0 // loop_header
    %s10 = sphi 0, %s14
    %p11 = scmp.ge.s32.totalorder %s10, 5
    %s18 = sphi 0, %s18
    %s20 = sphi 0, %s18
    %s21 = sphi 0, %s20
    %s35 = sphi 0, %s21
    %s39 = sphi 0, %s39
    %s41 = sphi 0, %s39
    %s42 = sphi 0, %s41
    %s56 = sphi 0, %s42
    %s60 = sphi 0, %s60
    %s62 = sphi 0, %s60
    %s63 = sphi 0, %s62
    %s77 = sphi 0, %s63
    %s83 = sphi 0, %s85
    %s86 = sphi 0, %s83
    %s87 = sphi 0, %s86
    %s103 = sphi 0, %s87
    %s109 = sphi 0, %s111
    %s112 = sphi 0, %s109
    %s113 = sphi 0, %s112
    %s129 = sphi 0, %s113
  $region4: #{bn_relu_conv1x1.1} parent=0 // loop_header_branch
    %13 = sbr.rel (%p11) target = $region8
  $region5: #{bn_relu_conv1x1.1} parent=0 // loop_body
    %s15 = ssub.s32 %s10, 1
    %s16 = ssub.s32 %s10, 2
    %s17 = sadd.s32 %s10, 1
    %s19 = sadd.s32 %s18, 1
    %p22 = scmp.eq.s32.totalorder %s10, 2
    %p23 = scmp.ne.s32.totalorder %s18, %s20
    %p24 = scmp.eq.s32.totalorder %s10, 0
    %p25 = por %p23, %p24
    %p26 = scmp.ne.s32.totalorder %s18, %s20
    %p27 = scmp.eq.s32.totalorder %s15, 2
    %p28 = por %p26, %p27
    %p29 = scmp.ne.s32.totalorder %s20, %s21
    %p30 = scmp.eq.s32.totalorder %s15, 0
    %p31 = por %p29, %p30
    %p32 = scmp.ne.s32.totalorder %s20, %s21
    %p33 = scmp.eq.s32.totalorder %s16, 2
    %p34 = por %p32, %p33
    %p36 = scmp.ne.s32.totalorder %s21, %s35
    %p37 = scmp.eq.s32.totalorder %s16, 0
    %p38 = por %p36, %p37
    %s40 = sadd.s32 %s39, 1
    %p43 = scmp.eq.s32.totalorder %s10, 2
    %p44 = scmp.ne.s32.totalorder %s39, %s41
    %p45 = scmp.eq.s32.totalorder %s10, 0
    %p46 = por %p44, %p45
    %p47 = scmp.ne.s32.totalorder %s39, %s41
    %p48 = scmp.eq.s32.totalorder %s15, 2
    %p49 = por %p47, %p48
    %p50 = scmp.ne.s32.totalorder %s41, %s42
    %p51 = scmp.eq.s32.totalorder %s15, 0
    %p52 = por %p50, %p51
    %p53 = scmp.ne.s32.totalorder %s41, %s42
    %p54 = scmp.eq.s32.totalorder %s16, 2
    %p55 = por %p53, %p54
    %p57 = scmp.ne.s32.totalorder %s42, %s56
    %p58 = scmp.eq.s32.totalorder %s16, 0
    %p59 = por %p57, %p58
    %s61 = sadd.s32 %s60, 1
    %p64 = scmp.eq.s32.totalorder %s10, 2
    %p65 = scmp.ne.s32.totalorder %s60, %s62
    %p66 = scmp.eq.s32.totalorder %s10, 0
    %p67 = por %p65, %p66
    %p68 = scmp.ne.s32.totalorder %s60, %s62
    %p69 = scmp.eq.s32.totalorder %s15, 2
    %p70 = por %p68, %p69
    %p71 = scmp.ne.s32.totalorder %s62, %s63
    %p72 = scmp.eq.s32.totalorder %s15, 0
    %p73 = por %p71, %p72
    %p74 = scmp.ne.s32.totalorder %s62, %s63
    %p75 = scmp.eq.s32.totalorder %s16, 2
    %p76 = por %p74, %p75
    %p78 = scmp.ne.s32.totalorder %s63, %s77
    %p79 = scmp.eq.s32.totalorder %s16, 0
    %p80 = por %p78, %p79
    %s81 = ssub.s32 %s10, %s17
    %p82 = scmp.eq.s32.totalorder %s81, 0
    %s84 = sadd.s32 %s83, 1
    %s85 = scalar_select %p82, %s83, %s84
    %p88 = pneg %p82
    %p89 = scmp.eq.s32.totalorder %s10, 2
    %p90 = por %p88, %p89
    %p91 = scmp.ne.s32.totalorder %s83, %s86
    %p92 = scmp.eq.s32.totalorder %s10, 0
    %p93 = por %p91, %p92
    %p94 = scmp.ne.s32.totalorder %s83, %s86
    %p95 = scmp.eq.s32.totalorder %s15, 2
    %p96 = por %p94, %p95
    %p97 = scmp.ne.s32.totalorder %s86, %s87
    %p98 = scmp.eq.s32.totalorder %s15, 0
    %p99 = por %p97, %p98
    %p100 = scmp.ne.s32.totalorder %s86, %s87
    %p101 = scmp.eq.s32.totalorder %s16, 2
    %p102 = por %p100, %p101
    %p104 = scmp.ne.s32.totalorder %s87, %s103
    %p105 = scmp.eq.s32.totalorder %s16, 0
    %p106 = por %p104, %p105
    %s107 = ssub.s32 %s10, %s17
    %p108 = scmp.eq.s32.totalorder %s107, 0
    %s110 = sadd.s32 %s109, 1
    %s111 = scalar_select %p108, %s109, %s110
    %p114 = pneg %p108
    %p115 = scmp.eq.s32.totalorder %s10, 2
    %p116 = por %p114, %p115
    %p117 = scmp.ne.s32.totalorder %s109, %s112
    %p118 = scmp.eq.s32.totalorder %s10, 0
    %p119 = por %p117, %p118
    %p120 = scmp.ne.s32.totalorder %s109, %s112
    %p121 = scmp.eq.s32.totalorder %s15, 2
    %p122 = por %p120, %p121
    %p123 = scmp.ne.s32.totalorder %s112, %s113
    %p124 = scmp.eq.s32.totalorder %s15, 0
    %p125 = por %p123, %p124
    %p126 = scmp.ne.s32.totalorder %s112, %s113
    %p127 = scmp.eq.s32.totalorder %s16, 2
    %p128 = por %p126, %p127
    %p130 = scmp.ne.s32.totalorder %s113, %s129
    %p131 = scmp.eq.s32.totalorder %s16, 0
    %p132 = por %p130, %p131
    %p133 = scmp.le.s32.totalorder 1, %s10
    %p134 = scmp.lt.s32.totalorder %s10, 4
    %p135 = pnand %p133, %p134
    %p136 = pneg %p135
    // Predicated region
    $region9: #{bn_relu_conv1x1.1} parent=5 // pred_check
      _
    $region10: #{bn_relu_conv1x1.1} parent=5 // pred_check_branch
      %138 = sbr.rel (%p135) target = $region12
    $region11: #{bn_relu_conv1x1.1} parent=5 // pred_region
      %s139 = ssub.s32 %s10, 1
      // Predicated region
      $region13: #{bn_relu_conv1x1.1} parent=11 // pred_check
        %p140 = pneg %p31
      $region14: #{bn_relu_conv1x1.1} parent=11 // pred_check_branch
        %142 = sbr.rel (%p140) target = $region16
      $region15: #{bn_relu_conv1x1.1} parent=11 // pred_region
        _
      $region16: #{bn_relu_conv1x1.1} parent=11 // pred_fallthru
        _
      // Predicated region
      $region17: #{bn_relu_conv1x1.1} parent=11 // pred_check
        %p143 = pneg %p52
      $region18: #{bn_relu_conv1x1.1} parent=11 // pred_check_branch
        %145 = sbr.rel (%p143) target = $region20
      $region19: #{bn_relu_conv1x1.1} parent=11 // pred_region
        _
      $region20: #{bn_relu_conv1x1.1} parent=11 // pred_fallthru
        _
      // Predicated region
      $region21: #{bn_relu_conv1x1.1} parent=11 // pred_check
        %p146 = pneg %p73
      $region22: #{bn_relu_conv1x1.1} parent=11 // pred_check_branch
        %148 = sbr.rel (%p146) target = $region24
      $region23: #{bn_relu_conv1x1.1} parent=11 // pred_region
        _
      $region24: #{bn_relu_conv1x1.1} parent=11 // pred_fallthru
        _
    $region12: #{bn_relu_conv1x1.1} parent=5 // pred_fallthru
      _
    %p149 = scmp.lt.s32.totalorder %s10, 3
    // Predicated region
    $region25: #{bn_relu_conv1x1.1} parent=5 // pred_check
      %p150 = pneg %p149
    $region26: #{bn_relu_conv1x1.1} parent=5 // pred_check_branch
      %152 = sbr.rel (%p150) target = $region28
    $region27: #{bn_relu_conv1x1.1} parent=5 // pred_region
      // Predicated region
      $region29: #{bn_relu_conv1x1.1} parent=27 // pred_check
        %p153 = pneg %p93
      $region30: #{bn_relu_conv1x1.1} parent=27 // pred_check_branch
        %155 = sbr.rel (%p153) target = $region32
      $region31: #{bn_relu_conv1x1.1} parent=27 // pred_region
        %s156 = smul.u32 56, %s10
        %p157 = scmp.lt.s32.totalorder %s156, 167
        %s158 = scalar_select %p157, %s156, 167
        %s159 = smul.addr %s158, 11
        %s160 = smul.addr %s159, 4
        %s161 = scalar_lea.vmem %s3, %s160
        %s162 = smul.u32 56, %s10
      $region32: #{bn_relu_conv1x1.1} parent=27 // pred_fallthru
        _
    $region28: #{bn_relu_conv1x1.1} parent=5 // pred_fallthru
      _
    %p163 = scmp.le.s32.totalorder 1, %s10
    %p164 = scmp.lt.s32.totalorder %s10, 4
    %p165 = pnand %p163, %p164
    %p166 = pneg %p165
    // Predicated region
    $region33: #{bn_relu_conv1x1.1} parent=5 // pred_check
      _
    $region34: #{bn_relu_conv1x1.1} parent=5 // pred_check_branch
      %168 = sbr.rel (%p165) target = $region36
    $region35: #{bn_relu_conv1x1.1} parent=5 // pred_region
      %s169 = ssub.s32 %s10, 1
      %p170 = pneg %p31
      %p171 = pneg %p28
      %p172 = pneg %p52
      %p173 = pneg %p49
      %p174 = pneg %p73
      %p175 = pneg %p70
      %s176 = smul.u32 56, %s15
      %p177 = scmp.lt.s32.totalorder %s176, 167
      %s178 = scalar_select %p177, %s176, 167
      %s179 = smul.addr %s178, 11
      %s180 = smul.addr %s179, 4
      %s181 = scalar_lea.vmem %s3, %s180
      %p182 = pneg %p99
      %p183 = pneg %p96
      %p184 = pneg %p125
      %p185 = pneg %p122
      %s186 = smul.u32 56, %s15
      %p187 = scmp.lt.s32.totalorder %s186, 167
      %s188 = scalar_select %p187, %s186, 167
      %s189 = smul.addr %s188, 2
      %s190 = smul.addr %s189, 8
      %s191 = scalar_lea.vmem %s4, %s190
      %s192 = smul.u32 56, %s15
      %p193 = scmp.lt.s32.totalorder %s192, 167
      %s194 = scalar_select %p193, %s192, 167
      %s195 = smul.addr %s194, 11
      %s196 = smul.addr %s195, 4
      %s197 = scalar_lea.vmem %s3, %s196
      %s198 = smul.u32 56, %s15
      %s199 = smul.u32 56, %s15
      %p200 = scmp.lt.s32.totalorder %s199, 167
      %s201 = scalar_select %p200, %s199, 167
      %s202 = smul.addr %s201, 2
      %s203 = smul.addr %s202, 8
      %s204 = scalar_lea.vmem %s4, %s203
      %s205 = smul.u32 56, %s15
      %p207 = scmp.eq.s32.totalorder %s15, 0
      // Predicated region
      $region37: #{bn_relu_conv1x1.1} parent=35 // pred_check
        %p208 = pneg %p207
      $region38: #{bn_relu_conv1x1.1} parent=35 // pred_check_branch
        %210 = sbr.rel (%p208) target = $region40
      $region39: #{bn_relu_conv1x1.1} parent=35 // pred_region
        %v211 = vld [vmem:[%s0] sm:$0xff]
        %v212 = vld [vmem:[%s0 + $0x8] sm:$0xff]
        %v213 = vld [vmem:[%s0 + $0x10] sm:$0xff]
        %v214 = vld [vmem:[%s0 + $0x18] sm:$0xff]
        %v215 = vld [vmem:[%s0 + $0x20] sm:$0xff]
        %v216 = vld [vmem:[%s0 + $0x28] sm:$0xff]
        %v217 = vld [vmem:[%s0 + $0x30] sm:$0xff]
        %v218 = vld [vmem:[%s0 + $0x38] sm:$0xff]
        %v219 = vld [vmem:[%s0 + $0x40] sm:$0xff]
        %v220 = vld [vmem:[%s0 + $0x48] sm:$0xff]
        %v221 = vld [vmem:[%s0 + $0x50] sm:$0xff]
        %v222 = vld [vmem:[%s0 + $0x58] sm:$0xff]
        %v223 = vld [vmem:[%s0 + $0x60] sm:$0xff]
        %v224 = vld [vmem:[%s0 + $0x68] sm:$0xff]
        %v225 = vld [vmem:[%s0 + $0x70] sm:$0xff]
        %v226 = vld [vmem:[%s0 + $0x78] sm:$0xff]
        %v227 = vld [vmem:[%s0 + $0x80] sm:$0xff]
        %v228 = vld [vmem:[%s0 + $0x88] sm:$0xff]
        %v229 = vld [vmem:[%s0 + $0x90] sm:$0xff]
        %v230 = vld [vmem:[%s0 + $0x98] sm:$0xff]
        %v231 = vld [vmem:[%s0 + $0xa0] sm:$0xff]
        %v232 = vld [vmem:[%s0 + $0xa8] sm:$0xff]
        %v233 = vld [vmem:[%s0 + $0xb0] sm:$0xff]
        %v234 = vld [vmem:[%s0 + $0xb8] sm:$0xff]
        %v235 = vld [vmem:[%s0 + $0xc0] sm:$0xff]
        %v236 = vld [vmem:[%s0 + $0xc8] sm:$0xff]
        %v237 = vld [vmem:[%s0 + $0xd0] sm:$0xff]
        %v238 = vld [vmem:[%s0 + $0xd8] sm:$0xff]
        %v239 = vld [vmem:[%s0 + $0xe0] sm:$0xff]
        %v240 = vld [vmem:[%s0 + $0xe8] sm:$0xff]
        %v241 = vld [vmem:[%s0 + $0xf0] sm:$0xff]
        %v242 = vld [vmem:[%s0 + $0xf8] sm:$0xff]
        %v243 = vld [vmem:[%s0 + $0x100] sm:$0xff]
        %v244 = vld [vmem:[%s0 + $0x108] sm:$0xff]
        %v245 = vld [vmem:[%s0 + $0x110] sm:$0xff]
        %v246 = vld [vmem:[%s0 + $0x118] sm:$0xff]
        %v247 = vld [vmem:[%s0 + $0x120] sm:$0xff]
        %v248 = vld [vmem:[%s0 + $0x128] sm:$0xff]
        %v249 = vld [vmem:[%s0 + $0x130] sm:$0xff]
        %v250 = vld [vmem:[%s0 + $0x138] sm:$0xff]
        %v251 = vld [vmem:[%s0 + $0x140] sm:$0xff]
        %v252 = vld [vmem:[%s0 + $0x148] sm:$0xff]
        %v253 = vld [vmem:[%s0 + $0x150] sm:$0xff]
        %v254 = vld [vmem:[%s0 + $0x158] sm:$0xff]
        %v255 = vld [vmem:[%s0 + $0x160] sm:$0xff]
        %v256 = vld [vmem:[%s0 + $0x168] sm:$0xff]
        %v257 = vld [vmem:[%s0 + $0x170] sm:$0xff]
        %v258 = vld [vmem:[%s0 + $0x178] sm:$0xff]
        %v259 = vld [vmem:[%s0 + $0x180] sm:$0xff]
        %v260 = vld [vmem:[%s0 + $0x188] sm:$0xff]
        %v261 = vld [vmem:[%s0 + $0x190] sm:$0xff]
        %v262 = vld [vmem:[%s0 + $0x198] sm:$0xff]
        %v263 = vld [vmem:[%s0 + $0x1a0] sm:$0xff]
        %v264 = vld [vmem:[%s0 + $0x1a8] sm:$0xff]
        %v265 = vld [vmem:[%s0 + $0x1b0] sm:$0xff]
        %v266 = vld [vmem:[%s0 + $0x1b8] sm:$0xff]
        %v267 = vld [vmem:[%s0 + $0x1c0] sm:$0xff]
        %v268 = vld [vmem:[%s0 + $0x1c8] sm:$0xff]
        %v269 = vld [vmem:[%s0 + $0x1d0] sm:$0xff]
        %v270 = vld [vmem:[%s0 + $0x1d8] sm:$0xff]
        %v271 = vld [vmem:[%s0 + $0x1e0] sm:$0xff]
        %v272 = vld [vmem:[%s0 + $0x1e8] sm:$0xff]
        %v273 = vld [vmem:[%s0 + $0x1f0] sm:$0xff]
        %v274 = vld [vmem:[%s0 + $0x1f8] sm:$0xff]
        %v275 = vld [vmem:[%s0 + $0x200] sm:$0xff]
        %v276 = vld [vmem:[%s0 + $0x208] sm:$0xff]
        %v277 = vld [vmem:[%s0 + $0x210] sm:$0xff]
        %v278 = vld [vmem:[%s0 + $0x218] sm:$0xff]
        %v279 = vld [vmem:[%s0 + $0x220] sm:$0xff]
        %v280 = vld [vmem:[%s0 + $0x228] sm:$0xff]
        %v281 = vld [vmem:[%s0 + $0x230] sm:$0xff]
        %v282 = vld [vmem:[%s0 + $0x238] sm:$0xff]
        %v283 = vld [vmem:[%s0 + $0x240] sm:$0xff]
        %v284 = vld [vmem:[%s0 + $0x248] sm:$0xff]
        %v285 = vld [vmem:[%s0 + $0x250] sm:$0xff]
        %v286 = vld [vmem:[%s0 + $0x258] sm:$0xff]
        %v287 = vld [vmem:[%s0 + $0x260] sm:$0xff]
        %v288 = vld [vmem:[%s0 + $0x268] sm:$0xff]
        %v289 = vld [vmem:[%s0 + $0x270] sm:$0xff]
        %v290 = vld [vmem:[%s0 + $0x278] sm:$0xff]
        %v291 = vld [vmem:[%s0 + $0x280] sm:$0xff]
        %v292 = vld [vmem:[%s0 + $0x288] sm:$0xff]
        %v293 = vld [vmem:[%s0 + $0x290] sm:$0xff]
        %v294 = vld [vmem:[%s0 + $0x298] sm:$0xff]
        %v295 = vld [vmem:[%s0 + $0x2a0] sm:$0xff]
        %v296 = vld [vmem:[%s0 + $0x2a8] sm:$0xff]
        %v297 = vld [vmem:[%s0 + $0x2b0] sm:$0xff]
        %v298 = vld [vmem:[%s0 + $0x2b8] sm:$0xff]
        %v299 = vld [vmem:[%s0 + $0x2c0] sm:$0xff]
        %v300 = vld [vmem:[%s0 + $0x2c8] sm:$0xff]
        %v301 = vld [vmem:[%s0 + $0x2d0] sm:$0xff]
        %v302 = vld [vmem:[%s0 + $0x2d8] sm:$0xff]
        %v303 = vld [vmem:[%s0 + $0x2e0] sm:$0xff]
        %v304 = vld [vmem:[%s0 + $0x2e8] sm:$0xff]
        %v305 = vld [vmem:[%s0 + $0x2f0] sm:$0xff]
        %v306 = vld [vmem:[%s0 + $0x2f8] sm:$0xff]
        %v307 = vld [vmem:[%s0 + $0x300] sm:$0xff]
        %v308 = vld [vmem:[%s0 + $0x308] sm:$0xff]
        %v309 = vld [vmem:[%s0 + $0x310] sm:$0xff]
        %v310 = vld [vmem:[%s0 + $0x318] sm:$0xff]
        %v311 = vld [vmem:[%s0 + $0x320] sm:$0xff]
        %v312 = vld [vmem:[%s0 + $0x328] sm:$0xff]
        %v313 = vld [vmem:[%s0 + $0x330] sm:$0xff]
        %v314 = vld [vmem:[%s0 + $0x338] sm:$0xff]
        %v315 = vld [vmem:[%s0 + $0x340] sm:$0xff]
        %v316 = vld [vmem:[%s0 + $0x348] sm:$0xff]
        %v317 = vld [vmem:[%s0 + $0x350] sm:$0xff]
        %v318 = vld [vmem:[%s0 + $0x358] sm:$0xff]
        %v319 = vld [vmem:[%s0 + $0x360] sm:$0xff]
        %v320 = vld [vmem:[%s0 + $0x368] sm:$0xff]
        %v321 = vld [vmem:[%s0 + $0x370] sm:$0xff]
        %v322 = vld [vmem:[%s0 + $0x378] sm:$0xff]
        %v323 = vld [vmem:[%s0 + $0x380] sm:$0xff]
        %v324 = vld [vmem:[%s0 + $0x388] sm:$0xff]
        %v325 = vld [vmem:[%s0 + $0x390] sm:$0xff]
        %v326 = vld [vmem:[%s0 + $0x398] sm:$0xff]
        %v327 = vld [vmem:[%s0 + $0x3a0] sm:$0xff]
        %v328 = vld [vmem:[%s0 + $0x3a8] sm:$0xff]
        %v329 = vld [vmem:[%s0 + $0x3b0] sm:$0xff]
        %v330 = vld [vmem:[%s0 + $0x3b8] sm:$0xff]
        %v331 = vld [vmem:[%s0 + $0x3c0] sm:$0xff]
        %v332 = vld [vmem:[%s0 + $0x3c8] sm:$0xff]
        %v333 = vld [vmem:[%s0 + $0x3d0] sm:$0xff]
        %v334 = vld [vmem:[%s0 + $0x3d8] sm:$0xff]
        %v335 = vld [vmem:[%s0 + $0x3e0] sm:$0xff]
        %v336 = vld [vmem:[%s0 + $0x3e8] sm:$0xff]
        %v337 = vld [vmem:[%s0 + $0x3f0] sm:$0xff]
        %v338 = vld [vmem:[%s0 + $0x3f8] sm:$0xff]
        %v339 = vld [vmem:[%s0 + $0x400] sm:$0xff]
        %v340 = vld [vmem:[%s0 + $0x408] sm:$0xff]
        %v341 = vld [vmem:[%s0 + $0x410] sm:$0xff]
        %v342 = vld [vmem:[%s0 + $0x418] sm:$0xff]
        %v343 = vld [vmem:[%s0 + $0x420] sm:$0xff]
        %v344 = vld [vmem:[%s0 + $0x428] sm:$0xff]
        %v345 = vld [vmem:[%s0 + $0x430] sm:$0xff]
        %v346 = vld [vmem:[%s0 + $0x438] sm:$0xff]
        %v347 = vld [vmem:[%s0 + $0x440] sm:$0xff]
        %v348 = vld [vmem:[%s0 + $0x448] sm:$0xff]
        %v349 = vld [vmem:[%s0 + $0x450] sm:$0xff]
        %v350 = vld [vmem:[%s0 + $0x458] sm:$0xff]
        %v351 = vld [vmem:[%s0 + $0x460] sm:$0xff]
        %v352 = vld [vmem:[%s0 + $0x468] sm:$0xff]
        %v353 = vld [vmem:[%s0 + $0x470] sm:$0xff]
        %v354 = vld [vmem:[%s0 + $0x478] sm:$0xff]
        %v355 = vld [vmem:[%s0 + $0x480] sm:$0xff]
        %v356 = vld [vmem:[%s0 + $0x488] sm:$0xff]
        %v357 = vld [vmem:[%s0 + $0x490] sm:$0xff]
        %v358 = vld [vmem:[%s0 + $0x498] sm:$0xff]
        %v359 = vld [vmem:[%s0 + $0x4a0] sm:$0xff]
        %v360 = vld [vmem:[%s0 + $0x4a8] sm:$0xff]
        %v361 = vld [vmem:[%s0 + $0x4b0] sm:$0xff]
        %v362 = vld [vmem:[%s0 + $0x4b8] sm:$0xff]
        %v363 = vld [vmem:[%s0 + $0x4c0] sm:$0xff]
        %v364 = vld [vmem:[%s0 + $0x4c8] sm:$0xff]
        %v365 = vld [vmem:[%s0 + $0x4d0] sm:$0xff]
        %v366 = vld [vmem:[%s0 + $0x4d8] sm:$0xff]
        %v367 = vld [vmem:[%s0 + $0x4e0] sm:$0xff]
        %v368 = vld [vmem:[%s0 + $0x4e8] sm:$0xff]
        %v369 = vld [vmem:[%s0 + $0x4f0] sm:$0xff]
        %v370 = vld [vmem:[%s0 + $0x4f8] sm:$0xff]
        %v371 = vld [vmem:[%s0 + $0x500] sm:$0xff]
        %v372 = vld [vmem:[%s0 + $0x508] sm:$0xff]
        %v373 = vld [vmem:[%s0 + $0x510] sm:$0xff]
        %v374 = vld [vmem:[%s0 + $0x518] sm:$0xff]
        %v375 = vld [vmem:[%s0 + $0x520] sm:$0xff]
        %v376 = vld [vmem:[%s0 + $0x528] sm:$0xff]
        %v377 = vld [vmem:[%s0 + $0x530] sm:$0xff]
        %v378 = vld [vmem:[%s0 + $0x538] sm:$0xff]
        %v379 = vld [vmem:[%s0 + $0x540] sm:$0xff]
        %v380 = vld [vmem:[%s0 + $0x548] sm:$0xff]
        %v381 = vld [vmem:[%s0 + $0x550] sm:$0xff]
        %v382 = vld [vmem:[%s0 + $0x558] sm:$0xff]
        %v383 = vld [vmem:[%s0 + $0x560] sm:$0xff]
        %v384 = vld [vmem:[%s0 + $0x568] sm:$0xff]
        %v385 = vld [vmem:[%s0 + $0x570] sm:$0xff]
        %v386 = vld [vmem:[%s0 + $0x578] sm:$0xff]
        %v387 = vld [vmem:[%s0 + $0x580] sm:$0xff]
        %v388 = vld [vmem:[%s0 + $0x588] sm:$0xff]
        %v389 = vld [vmem:[%s0 + $0x590] sm:$0xff]
        %v390 = vld [vmem:[%s0 + $0x598] sm:$0xff]
        %v391 = vld [vmem:[%s0 + $0x5a0] sm:$0xff]
        %v392 = vld [vmem:[%s0 + $0x5a8] sm:$0xff]
        %v393 = vld [vmem:[%s0 + $0x5b0] sm:$0xff]
        %v394 = vld [vmem:[%s0 + $0x5b8] sm:$0xff]
        %v395 = vld [vmem:[%s0 + $0x5c0] sm:$0xff]
        %v396 = vld [vmem:[%s0 + $0x5c8] sm:$0xff]
        %v397 = vld [vmem:[%s0 + $0x5d0] sm:$0xff]
        %v398 = vld [vmem:[%s0 + $0x5d8] sm:$0xff]
        %v399 = vld [vmem:[%s0 + $0x5e0] sm:$0xff]
        %v400 = vld [vmem:[%s0 + $0x5e8] sm:$0xff]
        %v401 = vld [vmem:[%s0 + $0x5f0] sm:$0xff]
        %v402 = vld [vmem:[%s0 + $0x5f8] sm:$0xff]
        %v403 = vld [vmem:[%s0 + $0x600] sm:$0xff]
        %v404 = vld [vmem:[%s0 + $0x608] sm:$0xff]
        %v405 = vld [vmem:[%s0 + $0x610] sm:$0xff]
        %v406 = vld [vmem:[%s0 + $0x618] sm:$0xff]
        %v407 = vld [vmem:[%s0 + $0x620] sm:$0xff]
        %v408 = vld [vmem:[%s0 + $0x628] sm:$0xff]
        %v409 = vld [vmem:[%s0 + $0x630] sm:$0xff]
        %v410 = vld [vmem:[%s0 + $0x638] sm:$0xff]
        %v411 = vld [vmem:[%s0 + $0x640] sm:$0xff]
        %v412 = vld [vmem:[%s0 + $0x648] sm:$0xff]
        %v413 = vld [vmem:[%s0 + $0x650] sm:$0xff]
        %v414 = vld [vmem:[%s0 + $0x658] sm:$0xff]
        %v415 = vld [vmem:[%s0 + $0x660] sm:$0xff]
        %v416 = vld [vmem:[%s0 + $0x668] sm:$0xff]
        %v417 = vld [vmem:[%s0 + $0x670] sm:$0xff]
        %v418 = vld [vmem:[%s0 + $0x678] sm:$0xff]
        %v419 = vld [vmem:[%s0 + $0x680] sm:$0xff]
        %v420 = vld [vmem:[%s0 + $0x688] sm:$0xff]
        %v421 = vld [vmem:[%s0 + $0x690] sm:$0xff]
        %v422 = vld [vmem:[%s0 + $0x698] sm:$0xff]
        %v423 = vld [vmem:[%s0 + $0x6a0] sm:$0xff]
        %v424 = vld [vmem:[%s0 + $0x6a8] sm:$0xff]
        %v425 = vld [vmem:[%s0 + $0x6b0] sm:$0xff]
        %v426 = vld [vmem:[%s0 + $0x6b8] sm:$0xff]
        %v427 = vld [vmem:[%s0 + $0x6c0] sm:$0xff]
        %v428 = vld [vmem:[%s0 + $0x6c8] sm:$0xff]
        %v429 = vld [vmem:[%s0 + $0x6d0] sm:$0xff]
        %v430 = vld [vmem:[%s0 + $0x6d8] sm:$0xff]
        %v431 = vld [vmem:[%s0 + $0x6e0] sm:$0xff]
        %v432 = vld [vmem:[%s0 + $0x6e8] sm:$0xff]
        %v433 = vld [vmem:[%s0 + $0x6f0] sm:$0xff]
        %v434 = vld [vmem:[%s0 + $0x6f8] sm:$0xff]
        %v435 = vld [vmem:[%s0 + $0x700] sm:$0xff]
        %v436 = vld [vmem:[%s0 + $0x708] sm:$0xff]
        %v437 = vld [vmem:[%s0 + $0x710] sm:$0xff]
        %v438 = vld [vmem:[%s0 + $0x718] sm:$0xff]
        %v439 = vld [vmem:[%s0 + $0x720] sm:$0xff]
        %v440 = vld [vmem:[%s0 + $0x728] sm:$0xff]
        %v441 = vld [vmem:[%s0 + $0x730] sm:$0xff]
        %v442 = vld [vmem:[%s0 + $0x738] sm:$0xff]
        %v443 = vld [vmem:[%s0 + $0x740] sm:$0xff]
        %v444 = vld [vmem:[%s0 + $0x748] sm:$0xff]
        %v445 = vld [vmem:[%s0 + $0x750] sm:$0xff]
        %v446 = vld [vmem:[%s0 + $0x758] sm:$0xff]
        %v447 = vld [vmem:[%s0 + $0x760] sm:$0xff]
        %v448 = vld [vmem:[%s0 + $0x768] sm:$0xff]
        %v449 = vld [vmem:[%s0 + $0x770] sm:$0xff]
        %v450 = vld [vmem:[%s0 + $0x778] sm:$0xff]
        %v451 = vld [vmem:[%s0 + $0x780] sm:$0xff]
        %v452 = vld [vmem:[%s0 + $0x788] sm:$0xff]
        %v453 = vld [vmem:[%s0 + $0x790] sm:$0xff]
        %v454 = vld [vmem:[%s0 + $0x798] sm:$0xff]
        %v455 = vld [vmem:[%s0 + $0x7a0] sm:$0xff]
        %v456 = vld [vmem:[%s0 + $0x7a8] sm:$0xff]
        %v457 = vld [vmem:[%s0 + $0x7b0] sm:$0xff]
        %v458 = vld [vmem:[%s0 + $0x7b8] sm:$0xff]
        %v459 = vld [vmem:[%s0 + $0x7c0] sm:$0xff]
        %v460 = vld [vmem:[%s0 + $0x7c8] sm:$0xff]
        %v461 = vld [vmem:[%s0 + $0x7d0] sm:$0xff]
        %v462 = vld [vmem:[%s0 + $0x7d8] sm:$0xff]
        %v463 = vld [vmem:[%s0 + $0x7e0] sm:$0xff]
        %v464 = vld [vmem:[%s0 + $0x7e8] sm:$0xff]
        %v465 = vld [vmem:[%s0 + $0x7f0] sm:$0xff]
        %v466 = vld [vmem:[%s0 + $0x7f8] sm:$0xff]
        %v467 = vld [vmem:[%s0 + $0x800] sm:$0xff]
        %v468 = vld [vmem:[%s0 + $0x808] sm:$0xff]
        %v469 = vld [vmem:[%s0 + $0x810] sm:$0xff]
        %v470 = vld [vmem:[%s0 + $0x818] sm:$0xff]
        %v471 = vld [vmem:[%s0 + $0x820] sm:$0xff]
        %v472 = vld [vmem:[%s0 + $0x828] sm:$0xff]
        %v473 = vld [vmem:[%s0 + $0x830] sm:$0xff]
        %v474 = vld [vmem:[%s0 + $0x838] sm:$0xff]
        %v475 = vld [vmem:[%s0 + $0x840] sm:$0xff]
        %v476 = vld [vmem:[%s0 + $0x848] sm:$0xff]
        %v477 = vld [vmem:[%s0 + $0x850] sm:$0xff]
        %v478 = vld [vmem:[%s0 + $0x858] sm:$0xff]
        %v479 = vld [vmem:[%s0 + $0x860] sm:$0xff]
        %v480 = vld [vmem:[%s0 + $0x868] sm:$0xff]
        %v481 = vld [vmem:[%s0 + $0x870] sm:$0xff]
        %v482 = vld [vmem:[%s0 + $0x878] sm:$0xff]
        %v483 = vld [vmem:[%s0 + $0x880] sm:$0xff]
        %v484 = vld [vmem:[%s0 + $0x888] sm:$0xff]
        %v485 = vld [vmem:[%s0 + $0x890] sm:$0xff]
        %v486 = vld [vmem:[%s0 + $0x898] sm:$0xff]
        %v487 = vld [vmem:[%s0 + $0x8a0] sm:$0xff]
        %v488 = vld [vmem:[%s0 + $0x8a8] sm:$0xff]
        %v489 = vld [vmem:[%s0 + $0x8b0] sm:$0xff]
        %v490 = vld [vmem:[%s0 + $0x8b8] sm:$0xff]
        %v491 = vld [vmem:[%s0 + $0x8c0] sm:$0xff]
        %v492 = vld [vmem:[%s0 + $0x8c8] sm:$0xff]
        %v493 = vld [vmem:[%s0 + $0x8d0] sm:$0xff]
        %v494 = vld [vmem:[%s0 + $0x8d8] sm:$0xff]
        %v495 = vld [vmem:[%s0 + $0x8e0] sm:$0xff]
        %v496 = vld [vmem:[%s0 + $0x8e8] sm:$0xff]
        %v497 = vld [vmem:[%s0 + $0x8f0] sm:$0xff]
        %v498 = vld [vmem:[%s0 + $0x8f8] sm:$0xff]
        %v499 = vld [vmem:[%s0 + $0x900] sm:$0xff]
        %v500 = vld [vmem:[%s0 + $0x908] sm:$0xff]
        %v501 = vld [vmem:[%s0 + $0x910] sm:$0xff]
        %v502 = vld [vmem:[%s0 + $0x918] sm:$0xff]
        %v503 = vld [vmem:[%s0 + $0x920] sm:$0xff]
        %v504 = vld [vmem:[%s0 + $0x928] sm:$0xff]
        %v505 = vld [vmem:[%s0 + $0x930] sm:$0xff]
        %v506 = vld [vmem:[%s0 + $0x938] sm:$0xff]
        %v507 = vld [vmem:[%s0 + $0x940] sm:$0xff]
        %v508 = vld [vmem:[%s0 + $0x948] sm:$0xff]
        %v509 = vld [vmem:[%s0 + $0x950] sm:$0xff]
        %v510 = vld [vmem:[%s0 + $0x958] sm:$0xff]
        %v511 = vld [vmem:[%s0 + $0x960] sm:$0xff]
        %v512 = vld [vmem:[%s0 + $0x968] sm:$0xff]
        %v513 = vld [vmem:[%s0 + $0x970] sm:$0xff]
        %v514 = vld [vmem:[%s0 + $0x978] sm:$0xff]
        %v515 = vld [vmem:[%s0 + $0x980] sm:$0xff]
        %v516 = vld [vmem:[%s0 + $0x988] sm:$0xff]
        %v517 = vld [vmem:[%s0 + $0x990] sm:$0xff]
        %v518 = vld [vmem:[%s0 + $0x998] sm:$0xff]
        %v519 = vld [vmem:[%s0 + $0x9a0] sm:$0xff]
        %v520 = vld [vmem:[%s0 + $0x9a8] sm:$0xff]
        %v521 = vld [vmem:[%s0 + $0x9b0] sm:$0xff]
        %v522 = vld [vmem:[%s0 + $0x9b8] sm:$0xff]
        %v523 = vld [vmem:[%s0 + $0x9c0] sm:$0xff]
        %v524 = vld [vmem:[%s0 + $0x9c8] sm:$0xff]
        %v525 = vld [vmem:[%s0 + $0x9d0] sm:$0xff]
        %v526 = vld [vmem:[%s0 + $0x9d8] sm:$0xff]
        %v527 = vld [vmem:[%s0 + $0x9e0] sm:$0xff]
        %v528 = vld [vmem:[%s0 + $0x9e8] sm:$0xff]
        %v529 = vld [vmem:[%s0 + $0x9f0] sm:$0xff]
        %v530 = vld [vmem:[%s0 + $0x9f8] sm:$0xff]
        %v531 = vld [vmem:[%s0 + $0xa00] sm:$0xff]
        %v532 = vld [vmem:[%s0 + $0xa08] sm:$0xff]
        %v533 = vld [vmem:[%s0 + $0xa10] sm:$0xff]
        %v534 = vld [vmem:[%s0 + $0xa18] sm:$0xff]
        %v535 = vld [vmem:[%s0 + $0xa20] sm:$0xff]
        %v536 = vld [vmem:[%s0 + $0xa28] sm:$0xff]
        %v537 = vld [vmem:[%s0 + $0xa30] sm:$0xff]
        %v538 = vld [vmem:[%s0 + $0xa38] sm:$0xff]
        %v539 = vld [vmem:[%s0 + $0xa40] sm:$0xff]
        %v540 = vld [vmem:[%s0 + $0xa48] sm:$0xff]
        %v541 = vld [vmem:[%s0 + $0xa50] sm:$0xff]
        %v542 = vld [vmem:[%s0 + $0xa58] sm:$0xff]
        %v543 = vld [vmem:[%s0 + $0xa60] sm:$0xff]
        %v544 = vld [vmem:[%s0 + $0xa68] sm:$0xff]
        %v545 = vld [vmem:[%s0 + $0xa70] sm:$0xff]
        %v546 = vld [vmem:[%s0 + $0xa78] sm:$0xff]
        %vm547 = vcmask 556032
        %v548 = vsel %vm547, %v212, 0.0
        %v549 = vadd.f32 %v211, %v548
        %550 = vadd.xlane.f32.xlu0 %v549
        %v551 = vpop.xlane.xlu0 %550
        %v552 = vsel %vm547, %v214, 0.0
        %v553 = vadd.f32 %v213, %v552
        %554 = vadd.xlane.f32.xlu0 %v553
        %v555 = vpop.xlane.xlu0 %554
        %v556 = vsel %vm547, %v216, 0.0
        %v557 = vadd.f32 %v215, %v556
        %558 = vadd.xlane.f32.xlu0 %v557
        %v559 = vpop.xlane.xlu0 %558
        %v560 = vsel %vm547, %v218, 0.0
        %v561 = vadd.f32 %v217, %v560
        %562 = vadd.xlane.f32.xlu0 %v561
        %v563 = vpop.xlane.xlu0 %562
        %v564 = vsel %vm547, %v220, 0.0
        %v565 = vadd.f32 %v219, %v564
        %566 = vadd.xlane.f32.xlu0 %v565
        %v567 = vpop.xlane.xlu0 %566
        %v568 = vsel %vm547, %v222, 0.0
        %v569 = vadd.f32 %v221, %v568
        %570 = vadd.xlane.f32.xlu0 %v569
        %v571 = vpop.xlane.xlu0 %570
        %v572 = vsel %vm547, %v224, 0.0
        %v573 = vadd.f32 %v223, %v572
        %574 = vadd.xlane.f32.xlu0 %v573
        %v575 = vpop.xlane.xlu0 %574
        %v576 = vsel %vm547, %v226, 0.0
        %v577 = vadd.f32 %v225, %v576
        %578 = vadd.xlane.f32.xlu0 %v577
        %v579 = vpop.xlane.xlu0 %578
        %v580 = vsel %vm547, %v228, 0.0
        %v581 = vadd.f32 %v227, %v580
        %582 = vadd.xlane.f32.xlu0 %v581
        %v583 = vpop.xlane.xlu0 %582
        %v584 = vsel %vm547, %v230, 0.0
        %v585 = vadd.f32 %v229, %v584
        %586 = vadd.xlane.f32.xlu0 %v585
        %v587 = vpop.xlane.xlu0 %586
        %v588 = vsel %vm547, %v232, 0.0
        %v589 = vadd.f32 %v231, %v588
        %590 = vadd.xlane.f32.xlu0 %v589
        %v591 = vpop.xlane.xlu0 %590
        %v592 = vsel %vm547, %v234, 0.0
        %v593 = vadd.f32 %v233, %v592
        %594 = vadd.xlane.f32.xlu0 %v593
        %v595 = vpop.xlane.xlu0 %594
        %v596 = vsel %vm547, %v236, 0.0
        %v597 = vadd.f32 %v235, %v596
        %598 = vadd.xlane.f32.xlu0 %v597
        %v599 = vpop.xlane.xlu0 %598
        %v600 = vsel %vm547, %v238, 0.0
        %v601 = vadd.f32 %v237, %v600
        %602 = vadd.xlane.f32.xlu0 %v601
        %v603 = vpop.xlane.xlu0 %602
        %v604 = vsel %vm547, %v240, 0.0
        %v605 = vadd.f32 %v239, %v604
        %606 = vadd.xlane.f32.xlu0 %v605
        %v607 = vpop.xlane.xlu0 %606
        %v608 = vsel %vm547, %v242, 0.0
        %v609 = vadd.f32 %v241, %v608
        %610 = vadd.xlane.f32.xlu0 %v609
        %v611 = vpop.xlane.xlu0 %610
        %v612 = vsel %vm547, %v244, 0.0
        %v613 = vadd.f32 %v243, %v612
        %614 = vadd.xlane.f32.xlu0 %v613
        %v615 = vpop.xlane.xlu0 %614
        %v616 = vsel %vm547, %v246, 0.0
        %v617 = vadd.f32 %v245, %v616
        %618 = vadd.xlane.f32.xlu0 %v617
        %v619 = vpop.xlane.xlu0 %618
        %v620 = vsel %vm547, %v248, 0.0
        %v621 = vadd.f32 %v247, %v620
        %622 = vadd.xlane.f32.xlu0 %v621
        %v623 = vpop.xlane.xlu0 %622
        %v624 = vsel %vm547, %v250, 0.0
        %v625 = vadd.f32 %v249, %v624
        %626 = vadd.xlane.f32.xlu0 %v625
        %v627 = vpop.xlane.xlu0 %626
        %v628 = vsel %vm547, %v252, 0.0
        %v629 = vadd.f32 %v251, %v628
        %630 = vadd.xlane.f32.xlu0 %v629
        %v631 = vpop.xlane.xlu0 %630
        %v632 = vsel %vm547, %v254, 0.0
        %v633 = vadd.f32 %v253, %v632
        %634 = vadd.xlane.f32.xlu0 %v633
        %v635 = vpop.xlane.xlu0 %634
        %v636 = vsel %vm547, %v256, 0.0
        %v637 = vadd.f32 %v255, %v636
        %638 = vadd.xlane.f32.xlu0 %v637
        %v639 = vpop.xlane.xlu0 %638
        %v640 = vsel %vm547, %v258, 0.0
        %v641 = vadd.f32 %v257, %v640
        %642 = vadd.xlane.f32.xlu0 %v641
        %v643 = vpop.xlane.xlu0 %642
        %v644 = vsel %vm547, %v260, 0.0
        %v645 = vadd.f32 %v259, %v644
        %646 = vadd.xlane.f32.xlu0 %v645
        %v647 = vpop.xlane.xlu0 %646
        %v648 = vsel %vm547, %v262, 0.0
        %v649 = vadd.f32 %v261, %v648
        %650 = vadd.xlane.f32.xlu0 %v649
        %v651 = vpop.xlane.xlu0 %650
        %v652 = vsel %vm547, %v264, 0.0
        %v653 = vadd.f32 %v263, %v652
        %654 = vadd.xlane.f32.xlu0 %v653
        %v655 = vpop.xlane.xlu0 %654
        %v656 = vsel %vm547, %v266, 0.0
        %v657 = vadd.f32 %v265, %v656
        %658 = vadd.xlane.f32.xlu0 %v657
        %v659 = vpop.xlane.xlu0 %658
        %v660 = vsel %vm547, %v268, 0.0
        %v661 = vadd.f32 %v267, %v660
        %662 = vadd.xlane.f32.xlu0 %v661
        %v663 = vpop.xlane.xlu0 %662
        %v664 = vsel %vm547, %v270, 0.0
        %v665 = vadd.f32 %v269, %v664
        %666 = vadd.xlane.f32.xlu0 %v665
        %v667 = vpop.xlane.xlu0 %666
        %v668 = vsel %vm547, %v272, 0.0
        %v669 = vadd.f32 %v271, %v668
        %670 = vadd.xlane.f32.xlu0 %v669
        %v671 = vpop.xlane.xlu0 %670
        %v672 = vsel %vm547, %v274, 0.0
        %v673 = vadd.f32 %v273, %v672
        %674 = vadd.xlane.f32.xlu0 %v673
        %v675 = vpop.xlane.xlu0 %674
        %v676 = vsel %vm547, %v276, 0.0
        %v677 = vadd.f32 %v275, %v676
        %678 = vadd.xlane.f32.xlu0 %v677
        %v679 = vpop.xlane.xlu0 %678
        %v680 = vsel %vm547, %v278, 0.0
        %v681 = vadd.f32 %v277, %v680
        %682 = vadd.xlane.f32.xlu0 %v681
        %v683 = vpop.xlane.xlu0 %682
        %v684 = vsel %vm547, %v280, 0.0
        %v685 = vadd.f32 %v279, %v684
        %686 = vadd.xlane.f32.xlu0 %v685
        %v687 = vpop.xlane.xlu0 %686
        %v688 = vsel %vm547, %v282, 0.0
        %v689 = vadd.f32 %v281, %v688
        %690 = vadd.xlane.f32.xlu0 %v689
        %v691 = vpop.xlane.xlu0 %690
        %v692 = vsel %vm547, %v284, 0.0
        %v693 = vadd.f32 %v283, %v692
        %694 = vadd.xlane.f32.xlu0 %v693
        %v695 = vpop.xlane.xlu0 %694
        %v696 = vsel %vm547, %v286, 0.0
        %v697 = vadd.f32 %v285, %v696
        %698 = vadd.xlane.f32.xlu0 %v697
        %v699 = vpop.xlane.xlu0 %698
        %v700 = vsel %vm547, %v288, 0.0
        %v701 = vadd.f32 %v287, %v700
        %702 = vadd.xlane.f32.xlu0 %v701
        %v703 = vpop.xlane.xlu0 %702
        %v704 = vsel %vm547, %v290, 0.0
        %v705 = vadd.f32 %v289, %v704
        %706 = vadd.xlane.f32.xlu0 %v705
        %v707 = vpop.xlane.xlu0 %706
        %v708 = vsel %vm547, %v292, 0.0
        %v709 = vadd.f32 %v291, %v708
        %710 = vadd.xlane.f32.xlu0 %v709
        %v711 = vpop.xlane.xlu0 %710
        %v712 = vsel %vm547, %v294, 0.0
        %v713 = vadd.f32 %v293, %v712
        %714 = vadd.xlane.f32.xlu0 %v713
        %v715 = vpop.xlane.xlu0 %714
        %v716 = vsel %vm547, %v296, 0.0
        %v717 = vadd.f32 %v295, %v716
        %718 = vadd.xlane.f32.xlu0 %v717
        %v719 = vpop.xlane.xlu0 %718
        %v720 = vsel %vm547, %v298, 0.0
        %v721 = vadd.f32 %v297, %v720
        %722 = vadd.xlane.f32.xlu0 %v721
        %v723 = vpop.xlane.xlu0 %722
        %v724 = vsel %vm547, %v300, 0.0
        %v725 = vadd.f32 %v299, %v724
        %726 = vadd.xlane.f32.xlu0 %v725
        %v727 = vpop.xlane.xlu0 %726
        %v728 = vsel %vm547, %v302, 0.0
        %v729 = vadd.f32 %v301, %v728
        %730 = vadd.xlane.f32.xlu0 %v729
        %v731 = vpop.xlane.xlu0 %730
        %v732 = vsel %vm547, %v304, 0.0
        %v733 = vadd.f32 %v303, %v732
        %734 = vadd.xlane.f32.xlu0 %v733
        %v735 = vpop.xlane.xlu0 %734
        %v736 = vsel %vm547, %v306, 0.0
        %v737 = vadd.f32 %v305, %v736
        %738 = vadd.xlane.f32.xlu0 %v737
        %v739 = vpop.xlane.xlu0 %738
        %v740 = vsel %vm547, %v308, 0.0
        %v741 = vadd.f32 %v307, %v740
        %742 = vadd.xlane.f32.xlu0 %v741
        %v743 = vpop.xlane.xlu0 %742
        %v744 = vsel %vm547, %v310, 0.0
        %v745 = vadd.f32 %v309, %v744
        %746 = vadd.xlane.f32.xlu0 %v745
        %v747 = vpop.xlane.xlu0 %746
        %v748 = vsel %vm547, %v312, 0.0
        %v749 = vadd.f32 %v311, %v748
        %750 = vadd.xlane.f32.xlu0 %v749
        %v751 = vpop.xlane.xlu0 %750
        %v752 = vsel %vm547, %v314, 0.0
        %v753 = vadd.f32 %v313, %v752
        %754 = vadd.xlane.f32.xlu0 %v753
        %v755 = vpop.xlane.xlu0 %754
        %v756 = vsel %vm547, %v316, 0.0
        %v757 = vadd.f32 %v315, %v756
        %758 = vadd.xlane.f32.xlu0 %v757
        %v759 = vpop.xlane.xlu0 %758
        %v760 = vsel %vm547, %v318, 0.0
        %v761 = vadd.f32 %v317, %v760
        %762 = vadd.xlane.f32.xlu0 %v761
        %v763 = vpop.xlane.xlu0 %762
        %v764 = vsel %vm547, %v320, 0.0
        %v765 = vadd.f32 %v319, %v764
        %766 = vadd.xlane.f32.xlu0 %v765
        %v767 = vpop.xlane.xlu0 %766
        %v768 = vsel %vm547, %v322, 0.0
        %v769 = vadd.f32 %v321, %v768
        %770 = vadd.xlane.f32.xlu0 %v769
        %v771 = vpop.xlane.xlu0 %770
        %v772 = vsel %vm547, %v324, 0.0
        %v773 = vadd.f32 %v323, %v772
        %774 = vadd.xlane.f32.xlu0 %v773
        %v775 = vpop.xlane.xlu0 %774
        %v776 = vsel %vm547, %v326, 0.0
        %v777 = vadd.f32 %v325, %v776
        %778 = vadd.xlane.f32.xlu0 %v777
        %v779 = vpop.xlane.xlu0 %778
        %v780 = vsel %vm547, %v328, 0.0
        %v781 = vadd.f32 %v327, %v780
        %782 = vadd.xlane.f32.xlu0 %v781
        %v783 = vpop.xlane.xlu0 %782
        %v784 = vsel %vm547, %v330, 0.0
        %v785 = vadd.f32 %v329, %v784
        %786 = vadd.xlane.f32.xlu0 %v785
        %v787 = vpop.xlane.xlu0 %786
        %v788 = vsel %vm547, %v332, 0.0
        %v789 = vadd.f32 %v331, %v788
        %790 = vadd.xlane.f32.xlu0 %v789
        %v791 = vpop.xlane.xlu0 %790
        %v792 = vsel %vm547, %v334, 0.0
        %v793 = vadd.f32 %v333, %v792
        %794 = vadd.xlane.f32.xlu0 %v793
        %v795 = vpop.xlane.xlu0 %794
        %v796 = vsel %vm547, %v336, 0.0
        %v797 = vadd.f32 %v335, %v796
        %798 = vadd.xlane.f32.xlu0 %v797
        %v799 = vpop.xlane.xlu0 %798
        %v800 = vsel %vm547, %v338, 0.0
        %v801 = vadd.f32 %v337, %v800
        %802 = vadd.xlane.f32.xlu0 %v801
        %v803 = vpop.xlane.xlu0 %802
        %v804 = vsel %vm547, %v340, 0.0
        %v805 = vadd.f32 %v339, %v804
        %806 = vadd.xlane.f32.xlu0 %v805
        %v807 = vpop.xlane.xlu0 %806
        %v808 = vsel %vm547, %v342, 0.0
        %v809 = vadd.f32 %v341, %v808
        %810 = vadd.xlane.f32.xlu0 %v809
        %v811 = vpop.xlane.xlu0 %810
        %v812 = vsel %vm547, %v344, 0.0
        %v813 = vadd.f32 %v343, %v812
        %814 = vadd.xlane.f32.xlu0 %v813
        %v815 = vpop.xlane.xlu0 %814
        %v816 = vsel %vm547, %v346, 0.0
        %v817 = vadd.f32 %v345, %v816
        %818 = vadd.xlane.f32.xlu0 %v817
        %v819 = vpop.xlane.xlu0 %818
        %v820 = vsel %vm547, %v348, 0.0
        %v821 = vadd.f32 %v347, %v820
        %822 = vadd.xlane.f32.xlu0 %v821
        %v823 = vpop.xlane.xlu0 %822
        %v824 = vsel %vm547, %v350, 0.0
        %v825 = vadd.f32 %v349, %v824
        %826 = vadd.xlane.f32.xlu0 %v825
        %v827 = vpop.xlane.xlu0 %826
        %v828 = vsel %vm547, %v352, 0.0
        %v829 = vadd.f32 %v351, %v828
        %830 = vadd.xlane.f32.xlu0 %v829
        %v831 = vpop.xlane.xlu0 %830
        %v832 = vsel %vm547, %v354, 0.0
        %v833 = vadd.f32 %v353, %v832
        %834 = vadd.xlane.f32.xlu0 %v833
        %v835 = vpop.xlane.xlu0 %834
        %v836 = vsel %vm547, %v356, 0.0
        %v837 = vadd.f32 %v355, %v836
        %838 = vadd.xlane.f32.xlu0 %v837
        %v839 = vpop.xlane.xlu0 %838
        %v840 = vsel %vm547, %v358, 0.0
        %v841 = vadd.f32 %v357, %v840
        %842 = vadd.xlane.f32.xlu0 %v841
        %v843 = vpop.xlane.xlu0 %842
        %v844 = vsel %vm547, %v360, 0.0
        %v845 = vadd.f32 %v359, %v844
        %846 = vadd.xlane.f32.xlu0 %v845
        %v847 = vpop.xlane.xlu0 %846
        %v848 = vsel %vm547, %v362, 0.0
        %v849 = vadd.f32 %v361, %v848
        %850 = vadd.xlane.f32.xlu0 %v849
        %v851 = vpop.xlane.xlu0 %850
        %v852 = vsel %vm547, %v364, 0.0
        %v853 = vadd.f32 %v363, %v852
        %854 = vadd.xlane.f32.xlu0 %v853
        %v855 = vpop.xlane.xlu0 %854
        %v856 = vsel %vm547, %v366, 0.0
        %v857 = vadd.f32 %v365, %v856
        %858 = vadd.xlane.f32.xlu0 %v857
        %v859 = vpop.xlane.xlu0 %858
        %v860 = vsel %vm547, %v368, 0.0
        %v861 = vadd.f32 %v367, %v860
        %862 = vadd.xlane.f32.xlu0 %v861
        %v863 = vpop.xlane.xlu0 %862
        %v864 = vsel %vm547, %v370, 0.0
        %v865 = vadd.f32 %v369, %v864
        %866 = vadd.xlane.f32.xlu0 %v865
        %v867 = vpop.xlane.xlu0 %866
        %v868 = vsel %vm547, %v372, 0.0
        %v869 = vadd.f32 %v371, %v868
        %870 = vadd.xlane.f32.xlu0 %v869
        %v871 = vpop.xlane.xlu0 %870
        %v872 = vsel %vm547, %v374, 0.0
        %v873 = vadd.f32 %v373, %v872
        %874 = vadd.xlane.f32.xlu0 %v873
        %v875 = vpop.xlane.xlu0 %874
        %v876 = vsel %vm547, %v376, 0.0
        %v877 = vadd.f32 %v375, %v876
        %878 = vadd.xlane.f32.xlu0 %v877
        %v879 = vpop.xlane.xlu0 %878
        %v880 = vsel %vm547, %v378, 0.0
        %v881 = vadd.f32 %v377, %v880
        %882 = vadd.xlane.f32.xlu0 %v881
        %v883 = vpop.xlane.xlu0 %882
        %v884 = vsel %vm547, %v380, 0.0
        %v885 = vadd.f32 %v379, %v884
        %886 = vadd.xlane.f32.xlu0 %v885
        %v887 = vpop.xlane.xlu0 %886
        %v888 = vsel %vm547, %v382, 0.0
        %v889 = vadd.f32 %v381, %v888
        %890 = vadd.xlane.f32.xlu0 %v889
        %v891 = vpop.xlane.xlu0 %890
        %v892 = vsel %vm547, %v384, 0.0
        %v893 = vadd.f32 %v383, %v892
        %894 = vadd.xlane.f32.xlu0 %v893
        %v895 = vpop.xlane.xlu0 %894
        %v896 = vsel %vm547, %v386, 0.0
        %v897 = vadd.f32 %v385, %v896
        %898 = vadd.xlane.f32.xlu0 %v897
        %v899 = vpop.xlane.xlu0 %898
        %v900 = vsel %vm547, %v388, 0.0
        %v901 = vadd.f32 %v387, %v900
        %902 = vadd.xlane.f32.xlu0 %v901
        %v903 = vpop.xlane.xlu0 %902
        %v904 = vsel %vm547, %v390, 0.0
        %v905 = vadd.f32 %v389, %v904
        %906 = vadd.xlane.f32.xlu0 %v905
        %v907 = vpop.xlane.xlu0 %906
        %v908 = vsel %vm547, %v392, 0.0
        %v909 = vadd.f32 %v391, %v908
        %910 = vadd.xlane.f32.xlu0 %v909
        %v911 = vpop.xlane.xlu0 %910
        %v912 = vsel %vm547, %v394, 0.0
        %v913 = vadd.f32 %v393, %v912
        %914 = vadd.xlane.f32.xlu0 %v913
        %v915 = vpop.xlane.xlu0 %914
        %v916 = vsel %vm547, %v396, 0.0
        %v917 = vadd.f32 %v395, %v916
        %918 = vadd.xlane.f32.xlu0 %v917
        %v919 = vpop.xlane.xlu0 %918
        %v920 = vsel %vm547, %v398, 0.0
        %v921 = vadd.f32 %v397, %v920
        %922 = vadd.xlane.f32.xlu0 %v921
        %v923 = vpop.xlane.xlu0 %922
        %v924 = vsel %vm547, %v400, 0.0
        %v925 = vadd.f32 %v399, %v924
        %926 = vadd.xlane.f32.xlu0 %v925
        %v927 = vpop.xlane.xlu0 %926
        %v928 = vsel %vm547, %v402, 0.0
        %v929 = vadd.f32 %v401, %v928
        %930 = vadd.xlane.f32.xlu0 %v929
        %v931 = vpop.xlane.xlu0 %930
        %v932 = vsel %vm547, %v404, 0.0
        %v933 = vadd.f32 %v403, %v932
        %934 = vadd.xlane.f32.xlu0 %v933
        %v935 = vpop.xlane.xlu0 %934
        %v936 = vsel %vm547, %v406, 0.0
        %v937 = vadd.f32 %v405, %v936
        %938 = vadd.xlane.f32.xlu0 %v937
        %v939 = vpop.xlane.xlu0 %938
        %v940 = vsel %vm547, %v408, 0.0
        %v941 = vadd.f32 %v407, %v940
        %942 = vadd.xlane.f32.xlu0 %v941
        %v943 = vpop.xlane.xlu0 %942
        %v944 = vsel %vm547, %v410, 0.0
        %v945 = vadd.f32 %v409, %v944
        %946 = vadd.xlane.f32.xlu0 %v945
        %v947 = vpop.xlane.xlu0 %946
        %v948 = vsel %vm547, %v412, 0.0
        %v949 = vadd.f32 %v411, %v948
        %950 = vadd.xlane.f32.xlu0 %v949
        %v951 = vpop.xlane.xlu0 %950
        %v952 = vsel %vm547, %v414, 0.0
        %v953 = vadd.f32 %v413, %v952
        %954 = vadd.xlane.f32.xlu0 %v953
        %v955 = vpop.xlane.xlu0 %954
        %v956 = vsel %vm547, %v416, 0.0
        %v957 = vadd.f32 %v415, %v956
        %958 = vadd.xlane.f32.xlu0 %v957
        %v959 = vpop.xlane.xlu0 %958
        %v960 = vsel %vm547, %v418, 0.0
        %v961 = vadd.f32 %v417, %v960
        %962 = vadd.xlane.f32.xlu0 %v961
        %v963 = vpop.xlane.xlu0 %962
        %v964 = vsel %vm547, %v420, 0.0
        %v965 = vadd.f32 %v419, %v964
        %966 = vadd.xlane.f32.xlu0 %v965
        %v967 = vpop.xlane.xlu0 %966
        %v968 = vsel %vm547, %v422, 0.0
        %v969 = vadd.f32 %v421, %v968
        %970 = vadd.xlane.f32.xlu0 %v969
        %v971 = vpop.xlane.xlu0 %970
        %v972 = vsel %vm547, %v424, 0.0
        %v973 = vadd.f32 %v423, %v972
        %974 = vadd.xlane.f32.xlu0 %v973
        %v975 = vpop.xlane.xlu0 %974
        %v976 = vsel %vm547, %v426, 0.0
        %v977 = vadd.f32 %v425, %v976
        %978 = vadd.xlane.f32.xlu0 %v977
        %v979 = vpop.xlane.xlu0 %978
        %v980 = vsel %vm547, %v428, 0.0
        %v981 = vadd.f32 %v427, %v980
        %982 = vadd.xlane.f32.xlu0 %v981
        %v983 = vpop.xlane.xlu0 %982
        %v984 = vsel %vm547, %v430, 0.0
        %v985 = vadd.f32 %v429, %v984
        %986 = vadd.xlane.f32.xlu0 %v985
        %v987 = vpop.xlane.xlu0 %986
        %v988 = vsel %vm547, %v432, 0.0
        %v989 = vadd.f32 %v431, %v988
        %990 = vadd.xlane.f32.xlu0 %v989
        %v991 = vpop.xlane.xlu0 %990
        %v992 = vsel %vm547, %v434, 0.0
        %v993 = vadd.f32 %v433, %v992
        %994 = vadd.xlane.f32.xlu0 %v993
        %v995 = vpop.xlane.xlu0 %994
        %v996 = vsel %vm547, %v436, 0.0
        %v997 = vadd.f32 %v435, %v996
        %998 = vadd.xlane.f32.xlu0 %v997
        %v999 = vpop.xlane.xlu0 %998
        %v1000 = vsel %vm547, %v438, 0.0
        %v1001 = vadd.f32 %v437, %v1000
        %1002 = vadd.xlane.f32.xlu0 %v1001
        %v1003 = vpop.xlane.xlu0 %1002
        %v1004 = vsel %vm547, %v440, 0.0
        %v1005 = vadd.f32 %v439, %v1004
        %1006 = vadd.xlane.f32.xlu0 %v1005
        %v1007 = vpop.xlane.xlu0 %1006
        %v1008 = vsel %vm547, %v442, 0.0
        %v1009 = vadd.f32 %v441, %v1008
        %1010 = vadd.xlane.f32.xlu0 %v1009
        %v1011 = vpop.xlane.xlu0 %1010
        %v1012 = vsel %vm547, %v444, 0.0
        %v1013 = vadd.f32 %v443, %v1012
        %1014 = vadd.xlane.f32.xlu0 %v1013
        %v1015 = vpop.xlane.xlu0 %1014
        %v1016 = vsel %vm547, %v446, 0.0
        %v1017 = vadd.f32 %v445, %v1016
        %1018 = vadd.xlane.f32.xlu0 %v1017
        %v1019 = vpop.xlane.xlu0 %1018
        %v1020 = vsel %vm547, %v448, 0.0
        %v1021 = vadd.f32 %v447, %v1020
        %1022 = vadd.xlane.f32.xlu0 %v1021
        %v1023 = vpop.xlane.xlu0 %1022
        %v1024 = vsel %vm547, %v450, 0.0
        %v1025 = vadd.f32 %v449, %v1024
        %1026 = vadd.xlane.f32.xlu0 %v1025
        %v1027 = vpop.xlane.xlu0 %1026
        %v1028 = vsel %vm547, %v452, 0.0
        %v1029 = vadd.f32 %v451, %v1028
        %1030 = vadd.xlane.f32.xlu0 %v1029
        %v1031 = vpop.xlane.xlu0 %1030
        %v1032 = vsel %vm547, %v454, 0.0
        %v1033 = vadd.f32 %v453, %v1032
        %1034 = vadd.xlane.f32.xlu0 %v1033
        %v1035 = vpop.xlane.xlu0 %1034
        %v1036 = vsel %vm547, %v456, 0.0
        %v1037 = vadd.f32 %v455, %v1036
        %1038 = vadd.xlane.f32.xlu0 %v1037
        %v1039 = vpop.xlane.xlu0 %1038
        %v1040 = vsel %vm547, %v458, 0.0
        %v1041 = vadd.f32 %v457, %v1040
        %1042 = vadd.xlane.f32.xlu0 %v1041
        %v1043 = vpop.xlane.xlu0 %1042
        %v1044 = vsel %vm547, %v460, 0.0
        %v1045 = vadd.f32 %v459, %v1044
        %1046 = vadd.xlane.f32.xlu0 %v1045
        %v1047 = vpop.xlane.xlu0 %1046
        %v1048 = vsel %vm547, %v462, 0.0
        %v1049 = vadd.f32 %v461, %v1048
        %1050 = vadd.xlane.f32.xlu0 %v1049
        %v1051 = vpop.xlane.xlu0 %1050
        %v1052 = vsel %vm547, %v464, 0.0
        %v1053 = vadd.f32 %v463, %v1052
        %1054 = vadd.xlane.f32.xlu0 %v1053
        %v1055 = vpop.xlane.xlu0 %1054
        %v1056 = vsel %vm547, %v466, 0.0
        %v1057 = vadd.f32 %v465, %v1056
        %1058 = vadd.xlane.f32.xlu0 %v1057
        %v1059 = vpop.xlane.xlu0 %1058
        %v1060 = vsel %vm547, %v468, 0.0
        %v1061 = vadd.f32 %v467, %v1060
        %1062 = vadd.xlane.f32.xlu0 %v1061
        %v1063 = vpop.xlane.xlu0 %1062
        %v1064 = vsel %vm547, %v470, 0.0
        %v1065 = vadd.f32 %v469, %v1064
        %1066 = vadd.xlane.f32.xlu0 %v1065
        %v1067 = vpop.xlane.xlu0 %1066
        %v1068 = vsel %vm547, %v472, 0.0
        %v1069 = vadd.f32 %v471, %v1068
        %1070 = vadd.xlane.f32.xlu0 %v1069
        %v1071 = vpop.xlane.xlu0 %1070
        %v1072 = vsel %vm547, %v474, 0.0
        %v1073 = vadd.f32 %v473, %v1072
        %1074 = vadd.xlane.f32.xlu0 %v1073
        %v1075 = vpop.xlane.xlu0 %1074
        %v1076 = vsel %vm547, %v476, 0.0
        %v1077 = vadd.f32 %v475, %v1076
        %1078 = vadd.xlane.f32.xlu0 %v1077
        %v1079 = vpop.xlane.xlu0 %1078
        %v1080 = vsel %vm547, %v478, 0.0
        %v1081 = vadd.f32 %v477, %v1080
        %1082 = vadd.xlane.f32.xlu0 %v1081
        %v1083 = vpop.xlane.xlu0 %1082
        %v1084 = vsel %vm547, %v480, 0.0
        %v1085 = vadd.f32 %v479, %v1084
        %1086 = vadd.xlane.f32.xlu0 %v1085
        %v1087 = vpop.xlane.xlu0 %1086
        %v1088 = vsel %vm547, %v482, 0.0
        %v1089 = vadd.f32 %v481, %v1088
        %1090 = vadd.xlane.f32.xlu0 %v1089
        %v1091 = vpop.xlane.xlu0 %1090
        %v1092 = vsel %vm547, %v484, 0.0
        %v1093 = vadd.f32 %v483, %v1092
        %1094 = vadd.xlane.f32.xlu0 %v1093
        %v1095 = vpop.xlane.xlu0 %1094
        %v1096 = vsel %vm547, %v486, 0.0
        %v1097 = vadd.f32 %v485, %v1096
        %1098 = vadd.xlane.f32.xlu0 %v1097
        %v1099 = vpop.xlane.xlu0 %1098
        %v1100 = vsel %vm547, %v488, 0.0
        %v1101 = vadd.f32 %v487, %v1100
        %1102 = vadd.xlane.f32.xlu0 %v1101
        %v1103 = vpop.xlane.xlu0 %1102
        %v1104 = vsel %vm547, %v490, 0.0
        %v1105 = vadd.f32 %v489, %v1104
        %1106 = vadd.xlane.f32.xlu0 %v1105
        %v1107 = vpop.xlane.xlu0 %1106
        %v1108 = vsel %vm547, %v492, 0.0
        %v1109 = vadd.f32 %v491, %v1108
        %1110 = vadd.xlane.f32.xlu0 %v1109
        %v1111 = vpop.xlane.xlu0 %1110
        %v1112 = vsel %vm547, %v494, 0.0
        %v1113 = vadd.f32 %v493, %v1112
        %1114 = vadd.xlane.f32.xlu0 %v1113
        %v1115 = vpop.xlane.xlu0 %1114
        %v1116 = vsel %vm547, %v496, 0.0
        %v1117 = vadd.f32 %v495, %v1116
        %1118 = vadd.xlane.f32.xlu0 %v1117
        %v1119 = vpop.xlane.xlu0 %1118
        %v1120 = vsel %vm547, %v498, 0.0
        %v1121 = vadd.f32 %v497, %v1120
        %1122 = vadd.xlane.f32.xlu0 %v1121
        %v1123 = vpop.xlane.xlu0 %1122
        %v1124 = vsel %vm547, %v500, 0.0
        %v1125 = vadd.f32 %v499, %v1124
        %1126 = vadd.xlane.f32.xlu0 %v1125
        %v1127 = vpop.xlane.xlu0 %1126
        %v1128 = vsel %vm547, %v502, 0.0
        %v1129 = vadd.f32 %v501, %v1128
        %1130 = vadd.xlane.f32.xlu0 %v1129
        %v1131 = vpop.xlane.xlu0 %1130
        %v1132 = vsel %vm547, %v504, 0.0
        %v1133 = vadd.f32 %v503, %v1132
        %1134 = vadd.xlane.f32.xlu0 %v1133
        %v1135 = vpop.xlane.xlu0 %1134
        %v1136 = vsel %vm547, %v506, 0.0
        %v1137 = vadd.f32 %v505, %v1136
        %1138 = vadd.xlane.f32.xlu0 %v1137
        %v1139 = vpop.xlane.xlu0 %1138
        %v1140 = vsel %vm547, %v508, 0.0
        %v1141 = vadd.f32 %v507, %v1140
        %1142 = vadd.xlane.f32.xlu0 %v1141
        %v1143 = vpop.xlane.xlu0 %1142
        %v1144 = vsel %vm547, %v510, 0.0
        %v1145 = vadd.f32 %v509, %v1144
        %1146 = vadd.xlane.f32.xlu0 %v1145
        %v1147 = vpop.xlane.xlu0 %1146
        %v1148 = vsel %vm547, %v512, 0.0
        %v1149 = vadd.f32 %v511, %v1148
        %1150 = vadd.xlane.f32.xlu0 %v1149
        %v1151 = vpop.xlane.xlu0 %1150
        %v1152 = vsel %vm547, %v514, 0.0
        %v1153 = vadd.f32 %v513, %v1152
        %1154 = vadd.xlane.f32.xlu0 %v1153
        %v1155 = vpop.xlane.xlu0 %1154
        %v1156 = vsel %vm547, %v516, 0.0
        %v1157 = vadd.f32 %v515, %v1156
        %1158 = vadd.xlane.f32.xlu0 %v1157
        %v1159 = vpop.xlane.xlu0 %1158
        %v1160 = vsel %vm547, %v518, 0.0
        %v1161 = vadd.f32 %v517, %v1160
        %1162 = vadd.xlane.f32.xlu0 %v1161
        %v1163 = vpop.xlane.xlu0 %1162
        %v1164 = vsel %vm547, %v520, 0.0
        %v1165 = vadd.f32 %v519, %v1164
        %1166 = vadd.xlane.f32.xlu0 %v1165
        %v1167 = vpop.xlane.xlu0 %1166
        %v1168 = vsel %vm547, %v522, 0.0
        %v1169 = vadd.f32 %v521, %v1168
        %1170 = vadd.xlane.f32.xlu0 %v1169
        %v1171 = vpop.xlane.xlu0 %1170
        %v1172 = vsel %vm547, %v524, 0.0
        %v1173 = vadd.f32 %v523, %v1172
        %1174 = vadd.xlane.f32.xlu0 %v1173
        %v1175 = vpop.xlane.xlu0 %1174
        %v1176 = vsel %vm547, %v526, 0.0
        %v1177 = vadd.f32 %v525, %v1176
        %1178 = vadd.xlane.f32.xlu0 %v1177
        %v1179 = vpop.xlane.xlu0 %1178
        %v1180 = vsel %vm547, %v528, 0.0
        %v1181 = vadd.f32 %v527, %v1180
        %1182 = vadd.xlane.f32.xlu0 %v1181
        %v1183 = vpop.xlane.xlu0 %1182
        %v1184 = vsel %vm547, %v530, 0.0
        %v1185 = vadd.f32 %v529, %v1184
        %1186 = vadd.xlane.f32.xlu0 %v1185
        %v1187 = vpop.xlane.xlu0 %1186
        %v1188 = vsel %vm547, %v532, 0.0
        %v1189 = vadd.f32 %v531, %v1188
        %1190 = vadd.xlane.f32.xlu0 %v1189
        %v1191 = vpop.xlane.xlu0 %1190
        %v1192 = vsel %vm547, %v534, 0.0
        %v1193 = vadd.f32 %v533, %v1192
        %1194 = vadd.xlane.f32.xlu0 %v1193
        %v1195 = vpop.xlane.xlu0 %1194
        %v1196 = vsel %vm547, %v536, 0.0
        %v1197 = vadd.f32 %v535, %v1196
        %1198 = vadd.xlane.f32.xlu0 %v1197
        %v1199 = vpop.xlane.xlu0 %1198
        %v1200 = vsel %vm547, %v538, 0.0
        %v1201 = vadd.f32 %v537, %v1200
        %1202 = vadd.xlane.f32.xlu0 %v1201
        %v1203 = vpop.xlane.xlu0 %1202
        %v1204 = vsel %vm547, %v540, 0.0
        %v1205 = vadd.f32 %v539, %v1204
        %1206 = vadd.xlane.f32.xlu0 %v1205
        %v1207 = vpop.xlane.xlu0 %1206
        %v1208 = vsel %vm547, %v542, 0.0
        %v1209 = vadd.f32 %v541, %v1208
        %1210 = vadd.xlane.f32.xlu0 %v1209
        %v1211 = vpop.xlane.xlu0 %1210
        %v1212 = vsel %vm547, %v544, 0.0
        %v1213 = vadd.f32 %v543, %v1212
        %1214 = vadd.xlane.f32.xlu0 %v1213
        %v1215 = vpop.xlane.xlu0 %1214
        %v1216 = vsel %vm547, %v546, 0.0
        %v1217 = vadd.f32 %v545, %v1216
        %1218 = vadd.xlane.f32.xlu0 %v1217
        %v1219 = vpop.xlane.xlu0 %1218
        %v1220 = vmul.f32 %v551, 0.0051020407
        %v1221 = vmul.f32 %v555, 0.0051020407
        %v1222 = vmul.f32 %v559, 0.0051020407
        %v1223 = vmul.f32 %v563, 0.0051020407
        %v1224 = vmul.f32 %v567, 0.0051020407
        %v1225 = vmul.f32 %v571, 0.0051020407
        %v1226 = vmul.f32 %v575, 0.0051020407
        %v1227 = vmul.f32 %v579, 0.0051020407
        %v1228 = vmul.f32 %v583, 0.0051020407
        %v1229 = vmul.f32 %v587, 0.0051020407
        %v1230 = vmul.f32 %v591, 0.0051020407
        %v1231 = vmul.f32 %v595, 0.0051020407
        %v1232 = vmul.f32 %v599, 0.0051020407
        %v1233 = vmul.f32 %v603, 0.0051020407
        %v1234 = vmul.f32 %v607, 0.0051020407
        %v1235 = vmul.f32 %v611, 0.0051020407
        %v1236 = vmul.f32 %v615, 0.0051020407
        %v1237 = vmul.f32 %v619, 0.0051020407
        %v1238 = vmul.f32 %v623, 0.0051020407
        %v1239 = vmul.f32 %v627, 0.0051020407
        %v1240 = vmul.f32 %v631, 0.0051020407
        %v1241 = vmul.f32 %v635, 0.0051020407
        %v1242 = vmul.f32 %v639, 0.0051020407
        %v1243 = vmul.f32 %v643, 0.0051020407
        %v1244 = vmul.f32 %v647, 0.0051020407
        %v1245 = vmul.f32 %v651, 0.0051020407
        %v1246 = vmul.f32 %v655, 0.0051020407
        %v1247 = vmul.f32 %v659, 0.0051020407
        %v1248 = vmul.f32 %v663, 0.0051020407
        %v1249 = vmul.f32 %v667, 0.0051020407
        %v1250 = vmul.f32 %v671, 0.0051020407
        %v1251 = vmul.f32 %v675, 0.0051020407
        %v1252 = vmul.f32 %v679, 0.0051020407
        %v1253 = vmul.f32 %v683, 0.0051020407
        %v1254 = vmul.f32 %v687, 0.0051020407
        %v1255 = vmul.f32 %v691, 0.0051020407
        %v1256 = vmul.f32 %v695, 0.0051020407
        %v1257 = vmul.f32 %v699, 0.0051020407
        %v1258 = vmul.f32 %v703, 0.0051020407
        %v1259 = vmul.f32 %v707, 0.0051020407
        %v1260 = vmul.f32 %v711, 0.0051020407
        %v1261 = vmul.f32 %v715, 0.0051020407
        %v1262 = vmul.f32 %v719, 0.0051020407
        %v1263 = vmul.f32 %v723, 0.0051020407
        %v1264 = vmul.f32 %v727, 0.0051020407
        %v1265 = vmul.f32 %v731, 0.0051020407
        %v1266 = vmul.f32 %v735, 0.0051020407
        %v1267 = vmul.f32 %v739, 0.0051020407
        %v1268 = vmul.f32 %v743, 0.0051020407
        %v1269 = vmul.f32 %v747, 0.0051020407
        %v1270 = vmul.f32 %v751, 0.0051020407
        %v1271 = vmul.f32 %v755, 0.0051020407
        %v1272 = vmul.f32 %v759, 0.0051020407
        %v1273 = vmul.f32 %v763, 0.0051020407
        %v1274 = vmul.f32 %v767, 0.0051020407
        %v1275 = vmul.f32 %v771, 0.0051020407
        %v1276 = vmul.f32 %v775, 0.0051020407
        %v1277 = vmul.f32 %v779, 0.0051020407
        %v1278 = vmul.f32 %v783, 0.0051020407
        %v1279 = vmul.f32 %v787, 0.0051020407
        %v1280 = vmul.f32 %v791, 0.0051020407
        %v1281 = vmul.f32 %v795, 0.0051020407
        %v1282 = vmul.f32 %v799, 0.0051020407
        %v1283 = vmul.f32 %v803, 0.0051020407
        %v1284 = vmul.f32 %v807, 0.0051020407
        %v1285 = vmul.f32 %v811, 0.0051020407
        %v1286 = vmul.f32 %v815, 0.0051020407
        %v1287 = vmul.f32 %v819, 0.0051020407
        %v1288 = vmul.f32 %v823, 0.0051020407
        %v1289 = vmul.f32 %v827, 0.0051020407
        %v1290 = vmul.f32 %v831, 0.0051020407
        %v1291 = vmul.f32 %v835, 0.0051020407
        %v1292 = vmul.f32 %v839, 0.0051020407
        %v1293 = vmul.f32 %v843, 0.0051020407
        %v1294 = vmul.f32 %v847, 0.0051020407
        %v1295 = vmul.f32 %v851, 0.0051020407
        %v1296 = vmul.f32 %v855, 0.0051020407
        %v1297 = vmul.f32 %v859, 0.0051020407
        %v1298 = vmul.f32 %v863, 0.0051020407
        %v1299 = vmul.f32 %v867, 0.0051020407
        %v1300 = vmul.f32 %v871, 0.0051020407
        %v1301 = vmul.f32 %v875, 0.0051020407
        %v1302 = vmul.f32 %v879, 0.0051020407
        %v1303 = vmul.f32 %v883, 0.0051020407
        %v1304 = vmul.f32 %v887, 0.0051020407
        %v1305 = vmul.f32 %v891, 0.0051020407
        %v1306 = vmul.f32 %v895, 0.0051020407
        %v1307 = vmul.f32 %v899, 0.0051020407
        %v1308 = vmul.f32 %v903, 0.0051020407
        %v1309 = vmul.f32 %v907, 0.0051020407
        %v1310 = vmul.f32 %v911, 0.0051020407
        %v1311 = vmul.f32 %v915, 0.0051020407
        %v1312 = vmul.f32 %v919, 0.0051020407
        %v1313 = vmul.f32 %v923, 0.0051020407
        %v1314 = vmul.f32 %v927, 0.0051020407
        %v1315 = vmul.f32 %v931, 0.0051020407
        %v1316 = vmul.f32 %v935, 0.0051020407
        %v1317 = vmul.f32 %v939, 0.0051020407
        %v1318 = vmul.f32 %v943, 0.0051020407
        %v1319 = vmul.f32 %v947, 0.0051020407
        %v1320 = vmul.f32 %v951, 0.0051020407
        %v1321 = vmul.f32 %v955, 0.0051020407
        %v1322 = vmul.f32 %v959, 0.0051020407
        %v1323 = vmul.f32 %v963, 0.0051020407
        %v1324 = vmul.f32 %v967, 0.0051020407
        %v1325 = vmul.f32 %v971, 0.0051020407
        %v1326 = vmul.f32 %v975, 0.0051020407
        %v1327 = vmul.f32 %v979, 0.0051020407
        %v1328 = vmul.f32 %v983, 0.0051020407
        %v1329 = vmul.f32 %v987, 0.0051020407
        %v1330 = vmul.f32 %v991, 0.0051020407
        %v1331 = vmul.f32 %v995, 0.0051020407
        %v1332 = vmul.f32 %v999, 0.0051020407
        %v1333 = vmul.f32 %v1003, 0.0051020407
        %v1334 = vmul.f32 %v1007, 0.0051020407
        %v1335 = vmul.f32 %v1011, 0.0051020407
        %v1336 = vmul.f32 %v1015, 0.0051020407
        %v1337 = vmul.f32 %v1019, 0.0051020407
        %v1338 = vmul.f32 %v1023, 0.0051020407
        %v1339 = vmul.f32 %v1027, 0.0051020407
        %v1340 = vmul.f32 %v1031, 0.0051020407
        %v1341 = vmul.f32 %v1035, 0.0051020407
        %v1342 = vmul.f32 %v1039, 0.0051020407
        %v1343 = vmul.f32 %v1043, 0.0051020407
        %v1344 = vmul.f32 %v1047, 0.0051020407
        %v1345 = vmul.f32 %v1051, 0.0051020407
        %v1346 = vmul.f32 %v1055, 0.0051020407
        %v1347 = vmul.f32 %v1059, 0.0051020407
        %v1348 = vmul.f32 %v1063, 0.0051020407
        %v1349 = vmul.f32 %v1067, 0.0051020407
        %v1350 = vmul.f32 %v1071, 0.0051020407
        %v1351 = vmul.f32 %v1075, 0.0051020407
        %v1352 = vmul.f32 %v1079, 0.0051020407
        %v1353 = vmul.f32 %v1083, 0.0051020407
        %v1354 = vmul.f32 %v1087, 0.0051020407
        %v1355 = vmul.f32 %v1091, 0.0051020407
        %v1356 = vmul.f32 %v1095, 0.0051020407
        %v1357 = vmul.f32 %v1099, 0.0051020407
        %v1358 = vmul.f32 %v1103, 0.0051020407
        %v1359 = vmul.f32 %v1107, 0.0051020407
        %v1360 = vmul.f32 %v1111, 0.0051020407
        %v1361 = vmul.f32 %v1115, 0.0051020407
        %v1362 = vmul.f32 %v1119, 0.0051020407
        %v1363 = vmul.f32 %v1123, 0.0051020407
        %v1364 = vmul.f32 %v1127, 0.0051020407
        %v1365 = vmul.f32 %v1131, 0.0051020407
        %v1366 = vmul.f32 %v1135, 0.0051020407
        %v1367 = vmul.f32 %v1139, 0.0051020407
        %v1368 = vmul.f32 %v1143, 0.0051020407
        %v1369 = vmul.f32 %v1147, 0.0051020407
        %v1370 = vmul.f32 %v1151, 0.0051020407
        %v1371 = vmul.f32 %v1155, 0.0051020407
        %v1372 = vmul.f32 %v1159, 0.0051020407
        %v1373 = vmul.f32 %v1163, 0.0051020407
        %v1374 = vmul.f32 %v1167, 0.0051020407
        %v1375 = vmul.f32 %v1171, 0.0051020407
        %v1376 = vmul.f32 %v1175, 0.0051020407
        %v1377 = vmul.f32 %v1179, 0.0051020407
        %v1378 = vmul.f32 %v1183, 0.0051020407
        %v1379 = vmul.f32 %v1187, 0.0051020407
        %v1380 = vmul.f32 %v1191, 0.0051020407
        %v1381 = vmul.f32 %v1195, 0.0051020407
        %v1382 = vmul.f32 %v1199, 0.0051020407
        %v1383 = vmul.f32 %v1203, 0.0051020407
        %v1384 = vmul.f32 %v1207, 0.0051020407
        %v1385 = vmul.f32 %v1211, 0.0051020407
        %v1386 = vmul.f32 %v1215, 0.0051020407
        %v1387 = vmul.f32 %v1219, 0.0051020407
        %v1388 = vsub.f32 %v211, %v1220
        %v1389 = vsub.f32 %v212, %v1220
        %v1390 = vsub.f32 %v213, %v1221
        %v1391 = vsub.f32 %v214, %v1221
        %v1392 = vsub.f32 %v215, %v1222
        %v1393 = vsub.f32 %v216, %v1222
        %v1394 = vsub.f32 %v217, %v1223
        %v1395 = vsub.f32 %v218, %v1223
        %v1396 = vsub.f32 %v219, %v1224
        %v1397 = vsub.f32 %v220, %v1224
        %v1398 = vsub.f32 %v221, %v1225
        %v1399 = vsub.f32 %v222, %v1225
        %v1400 = vsub.f32 %v223, %v1226
        %v1401 = vsub.f32 %v224, %v1226
        %v1402 = vsub.f32 %v225, %v1227
        %v1403 = vsub.f32 %v226, %v1227
        %v1404 = vsub.f32 %v227, %v1228
        %v1405 = vsub.f32 %v228, %v1228
        %v1406 = vsub.f32 %v229, %v1229
        %v1407 = vsub.f32 %v230, %v1229
        %v1408 = vsub.f32 %v231, %v1230
        %v1409 = vsub.f32 %v232, %v1230
        %v1410 = vsub.f32 %v233, %v1231
        %v1411 = vsub.f32 %v234, %v1231
        %v1412 = vsub.f32 %v235, %v1232
        %v1413 = vsub.f32 %v236, %v1232
        %v1414 = vsub.f32 %v237, %v1233
        %v1415 = vsub.f32 %v238, %v1233
        %v1416 = vsub.f32 %v239, %v1234
        %v1417 = vsub.f32 %v240, %v1234
        %v1418 = vsub.f32 %v241, %v1235
        %v1419 = vsub.f32 %v242, %v1235
        %v1420 = vsub.f32 %v243, %v1236
        %v1421 = vsub.f32 %v244, %v1236
        %v1422 = vsub.f32 %v245, %v1237
        %v1423 = vsub.f32 %v246, %v1237
        %v1424 = vsub.f32 %v247, %v1238
        %v1425 = vsub.f32 %v248, %v1238
        %v1426 = vsub.f32 %v249, %v1239
        %v1427 = vsub.f32 %v250, %v1239
        %v1428 = vsub.f32 %v251, %v1240
        %v1429 = vsub.f32 %v252, %v1240
        %v1430 = vsub.f32 %v253, %v1241
        %v1431 = vsub.f32 %v254, %v1241
        %v1432 = vsub.f32 %v255, %v1242
        %v1433 = vsub.f32 %v256, %v1242
        %v1434 = vsub.f32 %v257, %v1243
        %v1435 = vsub.f32 %v258, %v1243
        %v1436 = vsub.f32 %v259, %v1244
        %v1437 = vsub.f32 %v260, %v1244
        %v1438 = vsub.f32 %v261, %v1245
        %v1439 = vsub.f32 %v262, %v1245
        %v1440 = vsub.f32 %v263, %v1246
        %v1441 = vsub.f32 %v264, %v1246
        %v1442 = vsub.f32 %v265, %v1247
        %v1443 = vsub.f32 %v266, %v1247
        %v1444 = vsub.f32 %v267, %v1248
        %v1445 = vsub.f32 %v268, %v1248
        %v1446 = vsub.f32 %v269, %v1249
        %v1447 = vsub.f32 %v270, %v1249
        %v1448 = vsub.f32 %v271, %v1250
        %v1449 = vsub.f32 %v272, %v1250
        %v1450 = vsub.f32 %v273, %v1251
        %v1451 = vsub.f32 %v274, %v1251
        %v1452 = vsub.f32 %v275, %v1252
        %v1453 = vsub.f32 %v276, %v1252
        %v1454 = vsub.f32 %v277, %v1253
        %v1455 = vsub.f32 %v278, %v1253
        %v1456 = vsub.f32 %v279, %v1254
        %v1457 = vsub.f32 %v280, %v1254
        %v1458 = vsub.f32 %v281, %v1255
        %v1459 = vsub.f32 %v282, %v1255
        %v1460 = vsub.f32 %v283, %v1256
        %v1461 = vsub.f32 %v284, %v1256
        %v1462 = vsub.f32 %v285, %v1257
        %v1463 = vsub.f32 %v286, %v1257
        %v1464 = vsub.f32 %v287, %v1258
        %v1465 = vsub.f32 %v288, %v1258
        %v1466 = vsub.f32 %v289, %v1259
        %v1467 = vsub.f32 %v290, %v1259
        %v1468 = vsub.f32 %v291, %v1260
        %v1469 = vsub.f32 %v292, %v1260
        %v1470 = vsub.f32 %v293, %v1261
        %v1471 = vsub.f32 %v294, %v1261
        %v1472 = vsub.f32 %v295, %v1262
        %v1473 = vsub.f32 %v296, %v1262
        %v1474 = vsub.f32 %v297, %v1263
        %v1475 = vsub.f32 %v298, %v1263
        %v1476 = vsub.f32 %v299, %v1264
        %v1477 = vsub.f32 %v300, %v1264
        %v1478 = vsub.f32 %v301, %v1265
        %v1479 = vsub.f32 %v302, %v1265
        %v1480 = vsub.f32 %v303, %v1266
        %v1481 = vsub.f32 %v304, %v1266
        %v1482 = vsub.f32 %v305, %v1267
        %v1483 = vsub.f32 %v306, %v1267
        %v1484 = vsub.f32 %v307, %v1268
        %v1485 = vsub.f32 %v308, %v1268
        %v1486 = vsub.f32 %v309, %v1269
        %v1487 = vsub.f32 %v310, %v1269
        %v1488 = vsub.f32 %v311, %v1270
        %v1489 = vsub.f32 %v312, %v1270
        %v1490 = vsub.f32 %v313, %v1271
        %v1491 = vsub.f32 %v314, %v1271
        %v1492 = vsub.f32 %v315, %v1272
        %v1493 = vsub.f32 %v316, %v1272
        %v1494 = vsub.f32 %v317, %v1273
        %v1495 = vsub.f32 %v318, %v1273
        %v1496 = vsub.f32 %v319, %v1274
        %v1497 = vsub.f32 %v320, %v1274
        %v1498 = vsub.f32 %v321, %v1275
        %v1499 = vsub.f32 %v322, %v1275
        %v1500 = vsub.f32 %v323, %v1276
        %v1501 = vsub.f32 %v324, %v1276
        %v1502 = vsub.f32 %v325, %v1277
        %v1503 = vsub.f32 %v326, %v1277
        %v1504 = vsub.f32 %v327, %v1278
        %v1505 = vsub.f32 %v328, %v1278
        %v1506 = vsub.f32 %v329, %v1279
        %v1507 = vsub.f32 %v330, %v1279
        %v1508 = vsub.f32 %v331, %v1280
        %v1509 = vsub.f32 %v332, %v1280
        %v1510 = vsub.f32 %v333, %v1281
        %v1511 = vsub.f32 %v334, %v1281
        %v1512 = vsub.f32 %v335, %v1282
        %v1513 = vsub.f32 %v336, %v1282
        %v1514 = vsub.f32 %v337, %v1283
        %v1515 = vsub.f32 %v338, %v1283
        %v1516 = vsub.f32 %v339, %v1284
        %v1517 = vsub.f32 %v340, %v1284
        %v1518 = vsub.f32 %v341, %v1285
        %v1519 = vsub.f32 %v342, %v1285
        %v1520 = vsub.f32 %v343, %v1286
        %v1521 = vsub.f32 %v344, %v1286
        %v1522 = vsub.f32 %v345, %v1287
        %v1523 = vsub.f32 %v346, %v1287
        %v1524 = vsub.f32 %v347, %v1288
        %v1525 = vsub.f32 %v348, %v1288
        %v1526 = vsub.f32 %v349, %v1289
        %v1527 = vsub.f32 %v350, %v1289
        %v1528 = vsub.f32 %v351, %v1290
        %v1529 = vsub.f32 %v352, %v1290
        %v1530 = vsub.f32 %v353, %v1291
        %v1531 = vsub.f32 %v354, %v1291
        %v1532 = vsub.f32 %v355, %v1292
        %v1533 = vsub.f32 %v356, %v1292
        %v1534 = vsub.f32 %v357, %v1293
        %v1535 = vsub.f32 %v358, %v1293
        %v1536 = vsub.f32 %v359, %v1294
        %v1537 = vsub.f32 %v360, %v1294
        %v1538 = vsub.f32 %v361, %v1295
        %v1539 = vsub.f32 %v362, %v1295
        %v1540 = vsub.f32 %v363, %v1296
        %v1541 = vsub.f32 %v364, %v1296
        %v1542 = vsub.f32 %v365, %v1297
        %v1543 = vsub.f32 %v366, %v1297
        %v1544 = vsub.f32 %v367, %v1298
        %v1545 = vsub.f32 %v368, %v1298
        %v1546 = vsub.f32 %v369, %v1299
        %v1547 = vsub.f32 %v370, %v1299
        %v1548 = vsub.f32 %v371, %v1300
        %v1549 = vsub.f32 %v372, %v1300
        %v1550 = vsub.f32 %v373, %v1301
        %v1551 = vsub.f32 %v374, %v1301
        %v1552 = vsub.f32 %v375, %v1302
        %v1553 = vsub.f32 %v376, %v1302
        %v1554 = vsub.f32 %v377, %v1303
        %v1555 = vsub.f32 %v378, %v1303
        %v1556 = vsub.f32 %v379, %v1304
        %v1557 = vsub.f32 %v380, %v1304
        %v1558 = vsub.f32 %v381, %v1305
        %v1559 = vsub.f32 %v382, %v1305
        %v1560 = vsub.f32 %v383, %v1306
        %v1561 = vsub.f32 %v384, %v1306
        %v1562 = vsub.f32 %v385, %v1307
        %v1563 = vsub.f32 %v386, %v1307
        %v1564 = vsub.f32 %v387, %v1308
        %v1565 = vsub.f32 %v388, %v1308
        %v1566 = vsub.f32 %v389, %v1309
        %v1567 = vsub.f32 %v390, %v1309
        %v1568 = vsub.f32 %v391, %v1310
        %v1569 = vsub.f32 %v392, %v1310
        %v1570 = vsub.f32 %v393, %v1311
        %v1571 = vsub.f32 %v394, %v1311
        %v1572 = vsub.f32 %v395, %v1312
        %v1573 = vsub.f32 %v396, %v1312
        %v1574 = vsub.f32 %v397, %v1313
        %v1575 = vsub.f32 %v398, %v1313
        %v1576 = vsub.f32 %v399, %v1314
        %v1577 = vsub.f32 %v400, %v1314
        %v1578 = vsub.f32 %v401, %v1315
        %v1579 = vsub.f32 %v402, %v1315
        %v1580 = vsub.f32 %v403, %v1316
        %v1581 = vsub.f32 %v404, %v1316
        %v1582 = vsub.f32 %v405, %v1317
        %v1583 = vsub.f32 %v406, %v1317
        %v1584 = vsub.f32 %v407, %v1318
        %v1585 = vsub.f32 %v408, %v1318
        %v1586 = vsub.f32 %v409, %v1319
        %v1587 = vsub.f32 %v410, %v1319
        %v1588 = vsub.f32 %v411, %v1320
        %v1589 = vsub.f32 %v412, %v1320
        %v1590 = vsub.f32 %v413, %v1321
        %v1591 = vsub.f32 %v414, %v1321
        %v1592 = vsub.f32 %v415, %v1322
        %v1593 = vsub.f32 %v416, %v1322
        %v1594 = vsub.f32 %v417, %v1323
        %v1595 = vsub.f32 %v418, %v1323
        %v1596 = vsub.f32 %v419, %v1324
        %v1597 = vsub.f32 %v420, %v1324
        %v1598 = vsub.f32 %v421, %v1325
        %v1599 = vsub.f32 %v422, %v1325
        %v1600 = vsub.f32 %v423, %v1326
        %v1601 = vsub.f32 %v424, %v1326
        %v1602 = vsub.f32 %v425, %v1327
        %v1603 = vsub.f32 %v426, %v1327
        %v1604 = vsub.f32 %v427, %v1328
        %v1605 = vsub.f32 %v428, %v1328
        %v1606 = vsub.f32 %v429, %v1329
        %v1607 = vsub.f32 %v430, %v1329
        %v1608 = vsub.f32 %v431, %v1330
        %v1609 = vsub.f32 %v432, %v1330
        %v1610 = vsub.f32 %v433, %v1331
        %v1611 = vsub.f32 %v434, %v1331
        %v1612 = vsub.f32 %v435, %v1332
        %v1613 = vsub.f32 %v436, %v1332
        %v1614 = vsub.f32 %v437, %v1333
        %v1615 = vsub.f32 %v438, %v1333
        %v1616 = vsub.f32 %v439, %v1334
        %v1617 = vsub.f32 %v440, %v1334
        %v1618 = vsub.f32 %v441, %v1335
        %v1619 = vsub.f32 %v442, %v1335
        %v1620 = vsub.f32 %v443, %v1336
        %v1621 = vsub.f32 %v444, %v1336
        %v1622 = vsub.f32 %v445, %v1337
        %v1623 = vsub.f32 %v446, %v1337
        %v1624 = vsub.f32 %v447, %v1338
        %v1625 = vsub.f32 %v448, %v1338
        %v1626 = vsub.f32 %v449, %v1339
        %v1627 = vsub.f32 %v450, %v1339
        %v1628 = vsub.f32 %v451, %v1340
        %v1629 = vsub.f32 %v452, %v1340
        %v1630 = vsub.f32 %v453, %v1341
        %v1631 = vsub.f32 %v454, %v1341
        %v1632 = vsub.f32 %v455, %v1342
        %v1633 = vsub.f32 %v456, %v1342
        %v1634 = vsub.f32 %v457, %v1343
        %v1635 = vsub.f32 %v458, %v1343
        %v1636 = vsub.f32 %v459, %v1344
        %v1637 = vsub.f32 %v460, %v1344
        %v1638 = vsub.f32 %v461, %v1345
        %v1639 = vsub.f32 %v462, %v1345
        %v1640 = vsub.f32 %v463, %v1346
        %v1641 = vsub.f32 %v464, %v1346
        %v1642 = vsub.f32 %v465, %v1347
        %v1643 = vsub.f32 %v466, %v1347
        %v1644 = vsub.f32 %v467, %v1348
        %v1645 = vsub.f32 %v468, %v1348
        %v1646 = vsub.f32 %v469, %v1349
        %v1647 = vsub.f32 %v470, %v1349
        %v1648 = vsub.f32 %v471, %v1350
        %v1649 = vsub.f32 %v472, %v1350
        %v1650 = vsub.f32 %v473, %v1351
        %v1651 = vsub.f32 %v474, %v1351
        %v1652 = vsub.f32 %v475, %v1352
        %v1653 = vsub.f32 %v476, %v1352
        %v1654 = vsub.f32 %v477, %v1353
        %v1655 = vsub.f32 %v478, %v1353
        %v1656 = vsub.f32 %v479, %v1354
        %v1657 = vsub.f32 %v480, %v1354
        %v1658 = vsub.f32 %v481, %v1355
        %v1659 = vsub.f32 %v482, %v1355
        %v1660 = vsub.f32 %v483, %v1356
        %v1661 = vsub.f32 %v484, %v1356
        %v1662 = vsub.f32 %v485, %v1357
        %v1663 = vsub.f32 %v486, %v1357
        %v1664 = vsub.f32 %v487, %v1358
        %v1665 = vsub.f32 %v488, %v1358
        %v1666 = vsub.f32 %v489, %v1359
        %v1667 = vsub.f32 %v490, %v1359
        %v1668 = vsub.f32 %v491, %v1360
        %v1669 = vsub.f32 %v492, %v1360
        %v1670 = vsub.f32 %v493, %v1361
        %v1671 = vsub.f32 %v494, %v1361
        %v1672 = vsub.f32 %v495, %v1362
        %v1673 = vsub.f32 %v496, %v1362
        %v1674 = vsub.f32 %v497, %v1363
        %v1675 = vsub.f32 %v498, %v1363
        %v1676 = vsub.f32 %v499, %v1364
        %v1677 = vsub.f32 %v500, %v1364
        %v1678 = vsub.f32 %v501, %v1365
        %v1679 = vsub.f32 %v502, %v1365
        %v1680 = vsub.f32 %v503, %v1366
        %v1681 = vsub.f32 %v504, %v1366
        %v1682 = vsub.f32 %v505, %v1367
        %v1683 = vsub.f32 %v506, %v1367
        %v1684 = vsub.f32 %v507, %v1368
        %v1685 = vsub.f32 %v508, %v1368
        %v1686 = vsub.f32 %v509, %v1369
        %v1687 = vsub.f32 %v510, %v1369
        %v1688 = vsub.f32 %v511, %v1370
        %v1689 = vsub.f32 %v512, %v1370
        %v1690 = vsub.f32 %v513, %v1371
        %v1691 = vsub.f32 %v514, %v1371
        %v1692 = vsub.f32 %v515, %v1372
        %v1693 = vsub.f32 %v516, %v1372
        %v1694 = vsub.f32 %v517, %v1373
        %v1695 = vsub.f32 %v518, %v1373
        %v1696 = vsub.f32 %v519, %v1374
        %v1697 = vsub.f32 %v520, %v1374
        %v1698 = vsub.f32 %v521, %v1375
        %v1699 = vsub.f32 %v522, %v1375
        %v1700 = vsub.f32 %v523, %v1376
        %v1701 = vsub.f32 %v524, %v1376
        %v1702 = vsub.f32 %v525, %v1377
        %v1703 = vsub.f32 %v526, %v1377
        %v1704 = vsub.f32 %v527, %v1378
        %v1705 = vsub.f32 %v528, %v1378
        %v1706 = vsub.f32 %v529, %v1379
        %v1707 = vsub.f32 %v530, %v1379
        %v1708 = vsub.f32 %v531, %v1380
        %v1709 = vsub.f32 %v532, %v1380
        %v1710 = vsub.f32 %v533, %v1381
        %v1711 = vsub.f32 %v534, %v1381
        %v1712 = vsub.f32 %v535, %v1382
        %v1713 = vsub.f32 %v536, %v1382
        %v1714 = vsub.f32 %v537, %v1383
        %v1715 = vsub.f32 %v538, %v1383
        %v1716 = vsub.f32 %v539, %v1384
        %v1717 = vsub.f32 %v540, %v1384
        %v1718 = vsub.f32 %v541, %v1385
        %v1719 = vsub.f32 %v542, %v1385
        %v1720 = vsub.f32 %v543, %v1386
        %v1721 = vsub.f32 %v544, %v1386
        %v1722 = vsub.f32 %v545, %v1387
        %v1723 = vsub.f32 %v546, %v1387
        %v1724 = vmul.f32 %v1388, %v1388
        %v1725 = vmul.f32 %v1389, %v1389
        %v1726 = vmul.f32 %v1390, %v1390
        %v1727 = vmul.f32 %v1391, %v1391
        %v1728 = vmul.f32 %v1392, %v1392
        %v1729 = vmul.f32 %v1393, %v1393
        %v1730 = vmul.f32 %v1394, %v1394
        %v1731 = vmul.f32 %v1395, %v1395
        %v1732 = vmul.f32 %v1396, %v1396
        %v1733 = vmul.f32 %v1397, %v1397
        %v1734 = vmul.f32 %v1398, %v1398
        %v1735 = vmul.f32 %v1399, %v1399
        %v1736 = vmul.f32 %v1400, %v1400
        %v1737 = vmul.f32 %v1401, %v1401
        %v1738 = vmul.f32 %v1402, %v1402
        %v1739 = vmul.f32 %v1403, %v1403
        %v1740 = vmul.f32 %v1404, %v1404
        %v1741 = vmul.f32 %v1405, %v1405
        %v1742 = vmul.f32 %v1406, %v1406
        %v1743 = vmul.f32 %v1407, %v1407
        %v1744 = vmul.f32 %v1408, %v1408
        %v1745 = vmul.f32 %v1409, %v1409
        %v1746 = vmul.f32 %v1410, %v1410
        %v1747 = vmul.f32 %v1411, %v1411
        %v1748 = vmul.f32 %v1412, %v1412
        %v1749 = vmul.f32 %v1413, %v1413
        %v1750 = vmul.f32 %v1414, %v1414
        %v1751 = vmul.f32 %v1415, %v1415
        %v1752 = vmul.f32 %v1416, %v1416
        %v1753 = vmul.f32 %v1417, %v1417
        %v1754 = vmul.f32 %v1418, %v1418
        %v1755 = vmul.f32 %v1419, %v1419
        %v1756 = vmul.f32 %v1420, %v1420
        %v1757 = vmul.f32 %v1421, %v1421
        %v1758 = vmul.f32 %v1422, %v1422
        %v1759 = vmul.f32 %v1423, %v1423
        %v1760 = vmul.f32 %v1424, %v1424
        %v1761 = vmul.f32 %v1425, %v1425
        %v1762 = vmul.f32 %v1426, %v1426
        %v1763 = vmul.f32 %v1427, %v1427
        %v1764 = vmul.f32 %v1428, %v1428
        %v1765 = vmul.f32 %v1429, %v1429
        %v1766 = vmul.f32 %v1430, %v1430
        %v1767 = vmul.f32 %v1431, %v1431
        %v1768 = vmul.f32 %v1432, %v1432
        %v1769 = vmul.f32 %v1433, %v1433
        %v1770 = vmul.f32 %v1434, %v1434
        %v1771 = vmul.f32 %v1435, %v1435
        %v1772 = vmul.f32 %v1436, %v1436
        %v1773 = vmul.f32 %v1437, %v1437
        %v1774 = vmul.f32 %v1438, %v1438
        %v1775 = vmul.f32 %v1439, %v1439
        %v1776 = vmul.f32 %v1440, %v1440
        %v1777 = vmul.f32 %v1441, %v1441
        %v1778 = vmul.f32 %v1442, %v1442
        %v1779 = vmul.f32 %v1443, %v1443
        %v1780 = vmul.f32 %v1444, %v1444
        %v1781 = vmul.f32 %v1445, %v1445
        %v1782 = vmul.f32 %v1446, %v1446
        %v1783 = vmul.f32 %v1447, %v1447
        %v1784 = vmul.f32 %v1448, %v1448
        %v1785 = vmul.f32 %v1449, %v1449
        %v1786 = vmul.f32 %v1450, %v1450
        %v1787 = vmul.f32 %v1451, %v1451
        %v1788 = vmul.f32 %v1452, %v1452
        %v1789 = vmul.f32 %v1453, %v1453
        %v1790 = vmul.f32 %v1454, %v1454
        %v1791 = vmul.f32 %v1455, %v1455
        %v1792 = vmul.f32 %v1456, %v1456
        %v1793 = vmul.f32 %v1457, %v1457
        %v1794 = vmul.f32 %v1458, %v1458
        %v1795 = vmul.f32 %v1459, %v1459
        %v1796 = vmul.f32 %v1460, %v1460
        %v1797 = vmul.f32 %v1461, %v1461
        %v1798 = vmul.f32 %v1462, %v1462
        %v1799 = vmul.f32 %v1463, %v1463
        %v1800 = vmul.f32 %v1464, %v1464
        %v1801 = vmul.f32 %v1465, %v1465
        %v1802 = vmul.f32 %v1466, %v1466
        %v1803 = vmul.f32 %v1467, %v1467
        %v1804 = vmul.f32 %v1468, %v1468
        %v1805 = vmul.f32 %v1469, %v1469
        %v1806 = vmul.f32 %v1470, %v1470
        %v1807 = vmul.f32 %v1471, %v1471
        %v1808 = vmul.f32 %v1472, %v1472
        %v1809 = vmul.f32 %v1473, %v1473
        %v1810 = vmul.f32 %v1474, %v1474
        %v1811 = vmul.f32 %v1475, %v1475
        %v1812 = vmul.f32 %v1476, %v1476
        %v1813 = vmul.f32 %v1477, %v1477
        %v1814 = vmul.f32 %v1478, %v1478
        %v1815 = vmul.f32 %v1479, %v1479
        %v1816 = vmul.f32 %v1480, %v1480
        %v1817 = vmul.f32 %v1481, %v1481
        %v1818 = vmul.f32 %v1482, %v1482
        %v1819 = vmul.f32 %v1483, %v1483
        %v1820 = vmul.f32 %v1484, %v1484
        %v1821 = vmul.f32 %v1485, %v1485
        %v1822 = vmul.f32 %v1486, %v1486
        %v1823 = vmul.f32 %v1487, %v1487
        %v1824 = vmul.f32 %v1488, %v1488
        %v1825 = vmul.f32 %v1489, %v1489
        %v1826 = vmul.f32 %v1490, %v1490
        %v1827 = vmul.f32 %v1491, %v1491
        %v1828 = vmul.f32 %v1492, %v1492
        %v1829 = vmul.f32 %v1493, %v1493
        %v1830 = vmul.f32 %v1494, %v1494
        %v1831 = vmul.f32 %v1495, %v1495
        %v1832 = vmul.f32 %v1496, %v1496
        %v1833 = vmul.f32 %v1497, %v1497
        %v1834 = vmul.f32 %v1498, %v1498
        %v1835 = vmul.f32 %v1499, %v1499
        %v1836 = vmul.f32 %v1500, %v1500
        %v1837 = vmul.f32 %v1501, %v1501
        %v1838 = vmul.f32 %v1502, %v1502
        %v1839 = vmul.f32 %v1503, %v1503
        %v1840 = vmul.f32 %v1504, %v1504
        %v1841 = vmul.f32 %v1505, %v1505
        %v1842 = vmul.f32 %v1506, %v1506
        %v1843 = vmul.f32 %v1507, %v1507
        %v1844 = vmul.f32 %v1508, %v1508
        %v1845 = vmul.f32 %v1509, %v1509
        %v1846 = vmul.f32 %v1510, %v1510
        %v1847 = vmul.f32 %v1511, %v1511
        %v1848 = vmul.f32 %v1512, %v1512
        %v1849 = vmul.f32 %v1513, %v1513
        %v1850 = vmul.f32 %v1514, %v1514
        %v1851 = vmul.f32 %v1515, %v1515
        %v1852 = vmul.f32 %v1516, %v1516
        %v1853 = vmul.f32 %v1517, %v1517
        %v1854 = vmul.f32 %v1518, %v1518
        %v1855 = vmul.f32 %v1519, %v1519
        %v1856 = vmul.f32 %v1520, %v1520
        %v1857 = vmul.f32 %v1521, %v1521
        %v1858 = vmul.f32 %v1522, %v1522
        %v1859 = vmul.f32 %v1523, %v1523
        %v1860 = vmul.f32 %v1524, %v1524
        %v1861 = vmul.f32 %v1525, %v1525
        %v1862 = vmul.f32 %v1526, %v1526
        %v1863 = vmul.f32 %v1527, %v1527
        %v1864 = vmul.f32 %v1528, %v1528
        %v1865 = vmul.f32 %v1529, %v1529
        %v1866 = vmul.f32 %v1530, %v1530
        %v1867 = vmul.f32 %v1531, %v1531
        %v1868 = vmul.f32 %v1532, %v1532
        %v1869 = vmul.f32 %v1533, %v1533
        %v1870 = vmul.f32 %v1534, %v1534
        %v1871 = vmul.f32 %v1535, %v1535
        %v1872 = vmul.f32 %v1536, %v1536
        %v1873 = vmul.f32 %v1537, %v1537
        %v1874 = vmul.f32 %v1538, %v1538
        %v1875 = vmul.f32 %v1539, %v1539
        %v1876 = vmul.f32 %v1540, %v1540
        %v1877 = vmul.f32 %v1541, %v1541
        %v1878 = vmul.f32 %v1542, %v1542
        %v1879 = vmul.f32 %v1543, %v1543
        %v1880 = vmul.f32 %v1544, %v1544
        %v1881 = vmul.f32 %v1545, %v1545
        %v1882 = vmul.f32 %v1546, %v1546
        %v1883 = vmul.f32 %v1547, %v1547
        %v1884 = vmul.f32 %v1548, %v1548
        %v1885 = vmul.f32 %v1549, %v1549
        %v1886 = vmul.f32 %v1550, %v1550
        %v1887 = vmul.f32 %v1551, %v1551
        %v1888 = vmul.f32 %v1552, %v1552
        %v1889 = vmul.f32 %v1553, %v1553
        %v1890 = vmul.f32 %v1554, %v1554
        %v1891 = vmul.f32 %v1555, %v1555
        %v1892 = vmul.f32 %v1556, %v1556
        %v1893 = vmul.f32 %v1557, %v1557
        %v1894 = vmul.f32 %v1558, %v1558
        %v1895 = vmul.f32 %v1559, %v1559
        %v1896 = vmul.f32 %v1560, %v1560
        %v1897 = vmul.f32 %v1561, %v1561
        %v1898 = vmul.f32 %v1562, %v1562
        %v1899 = vmul.f32 %v1563, %v1563
        %v1900 = vmul.f32 %v1564, %v1564
        %v1901 = vmul.f32 %v1565, %v1565
        %v1902 = vmul.f32 %v1566, %v1566
        %v1903 = vmul.f32 %v1567, %v1567
        %v1904 = vmul.f32 %v1568, %v1568
        %v1905 = vmul.f32 %v1569, %v1569
        %v1906 = vmul.f32 %v1570, %v1570
        %v1907 = vmul.f32 %v1571, %v1571
        %v1908 = vmul.f32 %v1572, %v1572
        %v1909 = vmul.f32 %v1573, %v1573
        %v1910 = vmul.f32 %v1574, %v1574
        %v1911 = vmul.f32 %v1575, %v1575
        %v1912 = vmul.f32 %v1576, %v1576
        %v1913 = vmul.f32 %v1577, %v1577
        %v1914 = vmul.f32 %v1578, %v1578
        %v1915 = vmul.f32 %v1579, %v1579
        %v1916 = vmul.f32 %v1580, %v1580
        %v1917 = vmul.f32 %v1581, %v1581
        %v1918 = vmul.f32 %v1582, %v1582
        %v1919 = vmul.f32 %v1583, %v1583
        %v1920 = vmul.f32 %v1584, %v1584
        %v1921 = vmul.f32 %v1585, %v1585
        %v1922 = vmul.f32 %v1586, %v1586
        %v1923 = vmul.f32 %v1587, %v1587
        %v1924 = vmul.f32 %v1588, %v1588
        %v1925 = vmul.f32 %v1589, %v1589
        %v1926 = vmul.f32 %v1590, %v1590
        %v1927 = vmul.f32 %v1591, %v1591
        %v1928 = vmul.f32 %v1592, %v1592
        %v1929 = vmul.f32 %v1593, %v1593
        %v1930 = vmul.f32 %v1594, %v1594
        %v1931 = vmul.f32 %v1595, %v1595
        %v1932 = vmul.f32 %v1596, %v1596
        %v1933 = vmul.f32 %v1597, %v1597
        %v1934 = vmul.f32 %v1598, %v1598
        %v1935 = vmul.f32 %v1599, %v1599
        %v1936 = vmul.f32 %v1600, %v1600
        %v1937 = vmul.f32 %v1601, %v1601
        %v1938 = vmul.f32 %v1602, %v1602
        %v1939 = vmul.f32 %v1603, %v1603
        %v1940 = vmul.f32 %v1604, %v1604
        %v1941 = vmul.f32 %v1605, %v1605
        %v1942 = vmul.f32 %v1606, %v1606
        %v1943 = vmul.f32 %v1607, %v1607
        %v1944 = vmul.f32 %v1608, %v1608
        %v1945 = vmul.f32 %v1609, %v1609
        %v1946 = vmul.f32 %v1610, %v1610
        %v1947 = vmul.f32 %v1611, %v1611
        %v1948 = vmul.f32 %v1612, %v1612
        %v1949 = vmul.f32 %v1613, %v1613
        %v1950 = vmul.f32 %v1614, %v1614
        %v1951 = vmul.f32 %v1615, %v1615
        %v1952 = vmul.f32 %v1616, %v1616
        %v1953 = vmul.f32 %v1617, %v1617
        %v1954 = vmul.f32 %v1618, %v1618
        %v1955 = vmul.f32 %v1619, %v1619
        %v1956 = vmul.f32 %v1620, %v1620
        %v1957 = vmul.f32 %v1621, %v1621
        %v1958 = vmul.f32 %v1622, %v1622
        %v1959 = vmul.f32 %v1623, %v1623
        %v1960 = vmul.f32 %v1624, %v1624
        %v1961 = vmul.f32 %v1625, %v1625
        %v1962 = vmul.f32 %v1626, %v1626
        %v1963 = vmul.f32 %v1627, %v1627
        %v1964 = vmul.f32 %v1628, %v1628
        %v1965 = vmul.f32 %v1629, %v1629
        %v1966 = vmul.f32 %v1630, %v1630
        %v1967 = vmul.f32 %v1631, %v1631
        %v1968 = vmul.f32 %v1632, %v1632
        %v1969 = vmul.f32 %v1633, %v1633
        %v1970 = vmul.f32 %v1634, %v1634
        %v1971 = vmul.f32 %v1635, %v1635
        %v1972 = vmul.f32 %v1636, %v1636
        %v1973 = vmul.f32 %v1637, %v1637
        %v1974 = vmul.f32 %v1638, %v1638
        %v1975 = vmul.f32 %v1639, %v1639
        %v1976 = vmul.f32 %v1640, %v1640
        %v1977 = vmul.f32 %v1641, %v1641
        %v1978 = vmul.f32 %v1642, %v1642
        %v1979 = vmul.f32 %v1643, %v1643
        %v1980 = vmul.f32 %v1644, %v1644
        %v1981 = vmul.f32 %v1645, %v1645
        %v1982 = vmul.f32 %v1646, %v1646
        %v1983 = vmul.f32 %v1647, %v1647
        %v1984 = vmul.f32 %v1648, %v1648
        %v1985 = vmul.f32 %v1649, %v1649
        %v1986 = vmul.f32 %v1650, %v1650
        %v1987 = vmul.f32 %v1651, %v1651
        %v1988 = vmul.f32 %v1652, %v1652
        %v1989 = vmul.f32 %v1653, %v1653
        %v1990 = vmul.f32 %v1654, %v1654
        %v1991 = vmul.f32 %v1655, %v1655
        %v1992 = vmul.f32 %v1656, %v1656
        %v1993 = vmul.f32 %v1657, %v1657
        %v1994 = vmul.f32 %v1658, %v1658
        %v1995 = vmul.f32 %v1659, %v1659
        %v1996 = vmul.f32 %v1660, %v1660
        %v1997 = vmul.f32 %v1661, %v1661
        %v1998 = vmul.f32 %v1662, %v1662
        %v1999 = vmul.f32 %v1663, %v1663
        %v2000 = vmul.f32 %v1664, %v1664
        %v2001 = vmul.f32 %v1665, %v1665
        %v2002 = vmul.f32 %v1666, %v1666
        %v2003 = vmul.f32 %v1667, %v1667
        %v2004 = vmul.f32 %v1668, %v1668
        %v2005 = vmul.f32 %v1669, %v1669
        %v2006 = vmul.f32 %v1670, %v1670
        %v2007 = vmul.f32 %v1671, %v1671
        %v2008 = vmul.f32 %v1672, %v1672
        %v2009 = vmul.f32 %v1673, %v1673
        %v2010 = vmul.f32 %v1674, %v1674
        %v2011 = vmul.f32 %v1675, %v1675
        %v2012 = vmul.f32 %v1676, %v1676
        %v2013 = vmul.f32 %v1677, %v1677
        %v2014 = vmul.f32 %v1678, %v1678
        %v2015 = vmul.f32 %v1679, %v1679
        %v2016 = vmul.f32 %v1680, %v1680
        %v2017 = vmul.f32 %v1681, %v1681
        %v2018 = vmul.f32 %v1682, %v1682
        %v2019 = vmul.f32 %v1683, %v1683
        %v2020 = vmul.f32 %v1684, %v1684
        %v2021 = vmul.f32 %v1685, %v1685
        %v2022 = vmul.f32 %v1686, %v1686
        %v2023 = vmul.f32 %v1687, %v1687
        %v2024 = vmul.f32 %v1688, %v1688
        %v2025 = vmul.f32 %v1689, %v1689
        %v2026 = vmul.f32 %v1690, %v1690
        %v2027 = vmul.f32 %v1691, %v1691
        %v2028 = vmul.f32 %v1692, %v1692
        %v2029 = vmul.f32 %v1693, %v1693
        %v2030 = vmul.f32 %v1694, %v1694
        %v2031 = vmul.f32 %v1695, %v1695
        %v2032 = vmul.f32 %v1696, %v1696
        %v2033 = vmul.f32 %v1697, %v1697
        %v2034 = vmul.f32 %v1698, %v1698
        %v2035 = vmul.f32 %v1699, %v1699
        %v2036 = vmul.f32 %v1700, %v1700
        %v2037 = vmul.f32 %v1701, %v1701
        %v2038 = vmul.f32 %v1702, %v1702
        %v2039 = vmul.f32 %v1703, %v1703
        %v2040 = vmul.f32 %v1704, %v1704
        %v2041 = vmul.f32 %v1705, %v1705
        %v2042 = vmul.f32 %v1706, %v1706
        %v2043 = vmul.f32 %v1707, %v1707
        %v2044 = vmul.f32 %v1708, %v1708
        %v2045 = vmul.f32 %v1709, %v1709
        %v2046 = vmul.f32 %v1710, %v1710
        %v2047 = vmul.f32 %v1711, %v1711
        %v2048 = vmul.f32 %v1712, %v1712
        %v2049 = vmul.f32 %v1713, %v1713
        %v2050 = vmul.f32 %v1714, %v1714
        %v2051 = vmul.f32 %v1715, %v1715
        %v2052 = vmul.f32 %v1716, %v1716
        %v2053 = vmul.f32 %v1717, %v1717
        %v2054 = vmul.f32 %v1718, %v1718
        %v2055 = vmul.f32 %v1719, %v1719
        %v2056 = vmul.f32 %v1720, %v1720
        %v2057 = vmul.f32 %v1721, %v1721
        %v2058 = vmul.f32 %v1722, %v1722
        %v2059 = vmul.f32 %v1723, %v1723
        %v2060 = vsel %vm547, %v1725, 0.0
        %v2061 = vadd.f32 %v1724, %v2060
        %2062 = vadd.xlane.f32.xlu0 %v2061
        %v2063 = vpop.xlane.xlu0 %2062
        %v2064 = vsel %vm547, %v1727, 0.0
        %v2065 = vadd.f32 %v1726, %v2064
        %2066 = vadd.xlane.f32.xlu0 %v2065
        %v2067 = vpop.xlane.xlu0 %2066
        %v2068 = vsel %vm547, %v1729, 0.0
        %v2069 = vadd.f32 %v1728, %v2068
        %2070 = vadd.xlane.f32.xlu0 %v2069
        %v2071 = vpop.xlane.xlu0 %2070
        %v2072 = vsel %vm547, %v1731, 0.0
        %v2073 = vadd.f32 %v1730, %v2072
        %2074 = vadd.xlane.f32.xlu0 %v2073
        %v2075 = vpop.xlane.xlu0 %2074
        %v2076 = vsel %vm547, %v1733, 0.0
        %v2077 = vadd.f32 %v1732, %v2076
        %2078 = vadd.xlane.f32.xlu0 %v2077
        %v2079 = vpop.xlane.xlu0 %2078
        %v2080 = vsel %vm547, %v1735, 0.0
        %v2081 = vadd.f32 %v1734, %v2080
        %2082 = vadd.xlane.f32.xlu0 %v2081
        %v2083 = vpop.xlane.xlu0 %2082
        %v2084 = vsel %vm547, %v1737, 0.0
        %v2085 = vadd.f32 %v1736, %v2084
        %2086 = vadd.xlane.f32.xlu0 %v2085
        %v2087 = vpop.xlane.xlu0 %2086
        %v2088 = vsel %vm547, %v1739, 0.0
        %v2089 = vadd.f32 %v1738, %v2088
        %2090 = vadd.xlane.f32.xlu0 %v2089
        %v2091 = vpop.xlane.xlu0 %2090
        %v2092 = vsel %vm547, %v1741, 0.0
        %v2093 = vadd.f32 %v1740, %v2092
        %2094 = vadd.xlane.f32.xlu0 %v2093
        %v2095 = vpop.xlane.xlu0 %2094
        %v2096 = vsel %vm547, %v1743, 0.0
        %v2097 = vadd.f32 %v1742, %v2096
        %2098 = vadd.xlane.f32.xlu0 %v2097
        %v2099 = vpop.xlane.xlu0 %2098
        %v2100 = vsel %vm547, %v1745, 0.0
        %v2101 = vadd.f32 %v1744, %v2100
        %2102 = vadd.xlane.f32.xlu0 %v2101
        %v2103 = vpop.xlane.xlu0 %2102
        %v2104 = vsel %vm547, %v1747, 0.0
        %v2105 = vadd.f32 %v1746, %v2104
        %2106 = vadd.xlane.f32.xlu0 %v2105
        %v2107 = vpop.xlane.xlu0 %2106
        %v2108 = vsel %vm547, %v1749, 0.0
        %v2109 = vadd.f32 %v1748, %v2108
        %2110 = vadd.xlane.f32.xlu0 %v2109
        %v2111 = vpop.xlane.xlu0 %2110
        %v2112 = vsel %vm547, %v1751, 0.0
        %v2113 = vadd.f32 %v1750, %v2112
        %2114 = vadd.xlane.f32.xlu0 %v2113
        %v2115 = vpop.xlane.xlu0 %2114
        %v2116 = vsel %vm547, %v1753, 0.0
        %v2117 = vadd.f32 %v1752, %v2116
        %2118 = vadd.xlane.f32.xlu0 %v2117
        %v2119 = vpop.xlane.xlu0 %2118
        %v2120 = vsel %vm547, %v1755, 0.0
        %v2121 = vadd.f32 %v1754, %v2120
        %2122 = vadd.xlane.f32.xlu0 %v2121
        %v2123 = vpop.xlane.xlu0 %2122
        %v2124 = vsel %vm547, %v1757, 0.0
        %v2125 = vadd.f32 %v1756, %v2124
        %2126 = vadd.xlane.f32.xlu0 %v2125
        %v2127 = vpop.xlane.xlu0 %2126
        %v2128 = vsel %vm547, %v1759, 0.0
        %v2129 = vadd.f32 %v1758, %v2128
        %2130 = vadd.xlane.f32.xlu0 %v2129
        %v2131 = vpop.xlane.xlu0 %2130
        %v2132 = vsel %vm547, %v1761, 0.0
        %v2133 = vadd.f32 %v1760, %v2132
        %2134 = vadd.xlane.f32.xlu0 %v2133
        %v2135 = vpop.xlane.xlu0 %2134
        %v2136 = vsel %vm547, %v1763, 0.0
        %v2137 = vadd.f32 %v1762, %v2136
        %2138 = vadd.xlane.f32.xlu0 %v2137
        %v2139 = vpop.xlane.xlu0 %2138
        %v2140 = vsel %vm547, %v1765, 0.0
        %v2141 = vadd.f32 %v1764, %v2140
        %2142 = vadd.xlane.f32.xlu0 %v2141
        %v2143 = vpop.xlane.xlu0 %2142
        %v2144 = vsel %vm547, %v1767, 0.0
        %v2145 = vadd.f32 %v1766, %v2144
        %2146 = vadd.xlane.f32.xlu0 %v2145
        %v2147 = vpop.xlane.xlu0 %2146
        %v2148 = vsel %vm547, %v1769, 0.0
        %v2149 = vadd.f32 %v1768, %v2148
        %2150 = vadd.xlane.f32.xlu0 %v2149
        %v2151 = vpop.xlane.xlu0 %2150
        %v2152 = vsel %vm547, %v1771, 0.0
        %v2153 = vadd.f32 %v1770, %v2152
        %2154 = vadd.xlane.f32.xlu0 %v2153
        %v2155 = vpop.xlane.xlu0 %2154
        %v2156 = vsel %vm547, %v1773, 0.0
        %v2157 = vadd.f32 %v1772, %v2156
        %2158 = vadd.xlane.f32.xlu0 %v2157
        %v2159 = vpop.xlane.xlu0 %2158
        %v2160 = vsel %vm547, %v1775, 0.0
        %v2161 = vadd.f32 %v1774, %v2160
        %2162 = vadd.xlane.f32.xlu0 %v2161
        %v2163 = vpop.xlane.xlu0 %2162
        %v2164 = vsel %vm547, %v1777, 0.0
        %v2165 = vadd.f32 %v1776, %v2164
        %2166 = vadd.xlane.f32.xlu0 %v2165
        %v2167 = vpop.xlane.xlu0 %2166
        %v2168 = vsel %vm547, %v1779, 0.0
        %v2169 = vadd.f32 %v1778, %v2168
        %2170 = vadd.xlane.f32.xlu0 %v2169
        %v2171 = vpop.xlane.xlu0 %2170
        %v2172 = vsel %vm547, %v1781, 0.0
        %v2173 = vadd.f32 %v1780, %v2172
        %2174 = vadd.xlane.f32.xlu0 %v2173
        %v2175 = vpop.xlane.xlu0 %2174
        %v2176 = vsel %vm547, %v1783, 0.0
        %v2177 = vadd.f32 %v1782, %v2176
        %2178 = vadd.xlane.f32.xlu0 %v2177
        %v2179 = vpop.xlane.xlu0 %2178
        %v2180 = vsel %vm547, %v1785, 0.0
        %v2181 = vadd.f32 %v1784, %v2180
        %2182 = vadd.xlane.f32.xlu0 %v2181
        %v2183 = vpop.xlane.xlu0 %2182
        %v2184 = vsel %vm547, %v1787, 0.0
        %v2185 = vadd.f32 %v1786, %v2184
        %2186 = vadd.xlane.f32.xlu0 %v2185
        %v2187 = vpop.xlane.xlu0 %2186
        %v2188 = vsel %vm547, %v1789, 0.0
        %v2189 = vadd.f32 %v1788, %v2188
        %2190 = vadd.xlane.f32.xlu0 %v2189
        %v2191 = vpop.xlane.xlu0 %2190
        %v2192 = vsel %vm547, %v1791, 0.0
        %v2193 = vadd.f32 %v1790, %v2192
        %2194 = vadd.xlane.f32.xlu0 %v2193
        %v2195 = vpop.xlane.xlu0 %2194
        %v2196 = vsel %vm547, %v1793, 0.0
        %v2197 = vadd.f32 %v1792, %v2196
        %2198 = vadd.xlane.f32.xlu0 %v2197
        %v2199 = vpop.xlane.xlu0 %2198
        %v2200 = vsel %vm547, %v1795, 0.0
        %v2201 = vadd.f32 %v1794, %v2200
        %2202 = vadd.xlane.f32.xlu0 %v2201
        %v2203 = vpop.xlane.xlu0 %2202
        %v2204 = vsel %vm547, %v1797, 0.0
        %v2205 = vadd.f32 %v1796, %v2204
        %2206 = vadd.xlane.f32.xlu0 %v2205
        %v2207 = vpop.xlane.xlu0 %2206
        %v2208 = vsel %vm547, %v1799, 0.0
        %v2209 = vadd.f32 %v1798, %v2208
        %2210 = vadd.xlane.f32.xlu0 %v2209
        %v2211 = vpop.xlane.xlu0 %2210
        %v2212 = vsel %vm547, %v1801, 0.0
        %v2213 = vadd.f32 %v1800, %v2212
        %2214 = vadd.xlane.f32.xlu0 %v2213
        %v2215 = vpop.xlane.xlu0 %2214
        %v2216 = vsel %vm547, %v1803, 0.0
        %v2217 = vadd.f32 %v1802, %v2216
        %2218 = vadd.xlane.f32.xlu0 %v2217
        %v2219 = vpop.xlane.xlu0 %2218
        %v2220 = vsel %vm547, %v1805, 0.0
        %v2221 = vadd.f32 %v1804, %v2220
        %2222 = vadd.xlane.f32.xlu0 %v2221
        %v2223 = vpop.xlane.xlu0 %2222
        %v2224 = vsel %vm547, %v1807, 0.0
        %v2225 = vadd.f32 %v1806, %v2224
        %2226 = vadd.xlane.f32.xlu0 %v2225
        %v2227 = vpop.xlane.xlu0 %2226
        %v2228 = vsel %vm547, %v1809, 0.0
        %v2229 = vadd.f32 %v1808, %v2228
        %2230 = vadd.xlane.f32.xlu0 %v2229
        %v2231 = vpop.xlane.xlu0 %2230
        %v2232 = vsel %vm547, %v1811, 0.0
        %v2233 = vadd.f32 %v1810, %v2232
        %2234 = vadd.xlane.f32.xlu0 %v2233
        %v2235 = vpop.xlane.xlu0 %2234
        %v2236 = vsel %vm547, %v1813, 0.0
        %v2237 = vadd.f32 %v1812, %v2236
        %2238 = vadd.xlane.f32.xlu0 %v2237
        %v2239 = vpop.xlane.xlu0 %2238
        %v2240 = vsel %vm547, %v1815, 0.0
        %v2241 = vadd.f32 %v1814, %v2240
        %2242 = vadd.xlane.f32.xlu0 %v2241
        %v2243 = vpop.xlane.xlu0 %2242
        %v2244 = vsel %vm547, %v1817, 0.0
        %v2245 = vadd.f32 %v1816, %v2244
        %2246 = vadd.xlane.f32.xlu0 %v2245
        %v2247 = vpop.xlane.xlu0 %2246
        %v2248 = vsel %vm547, %v1819, 0.0
        %v2249 = vadd.f32 %v1818, %v2248
        %2250 = vadd.xlane.f32.xlu0 %v2249
        %v2251 = vpop.xlane.xlu0 %2250
        %v2252 = vsel %vm547, %v1821, 0.0
        %v2253 = vadd.f32 %v1820, %v2252
        %2254 = vadd.xlane.f32.xlu0 %v2253
        %v2255 = vpop.xlane.xlu0 %2254
        %v2256 = vsel %vm547, %v1823, 0.0
        %v2257 = vadd.f32 %v1822, %v2256
        %2258 = vadd.xlane.f32.xlu0 %v2257
        %v2259 = vpop.xlane.xlu0 %2258
        %v2260 = vsel %vm547, %v1825, 0.0
        %v2261 = vadd.f32 %v1824, %v2260
        %2262 = vadd.xlane.f32.xlu0 %v2261
        %v2263 = vpop.xlane.xlu0 %2262
        %v2264 = vsel %vm547, %v1827, 0.0
        %v2265 = vadd.f32 %v1826, %v2264
        %2266 = vadd.xlane.f32.xlu0 %v2265
        %v2267 = vpop.xlane.xlu0 %2266
        %v2268 = vsel %vm547, %v1829, 0.0
        %v2269 = vadd.f32 %v1828, %v2268
        %2270 = vadd.xlane.f32.xlu0 %v2269
        %v2271 = vpop.xlane.xlu0 %2270
        %v2272 = vsel %vm547, %v1831, 0.0
        %v2273 = vadd.f32 %v1830, %v2272
        %2274 = vadd.xlane.f32.xlu0 %v2273
        %v2275 = vpop.xlane.xlu0 %2274
        %v2276 = vsel %vm547, %v1833, 0.0
        %v2277 = vadd.f32 %v1832, %v2276
        %2278 = vadd.xlane.f32.xlu0 %v2277
        %v2279 = vpop.xlane.xlu0 %2278
        %v2280 = vsel %vm547, %v1835, 0.0
        %v2281 = vadd.f32 %v1834, %v2280
        %2282 = vadd.xlane.f32.xlu0 %v2281
        %v2283 = vpop.xlane.xlu0 %2282
        %v2284 = vsel %vm547, %v1837, 0.0
        %v2285 = vadd.f32 %v1836, %v2284
        %2286 = vadd.xlane.f32.xlu0 %v2285
        %v2287 = vpop.xlane.xlu0 %2286
        %v2288 = vsel %vm547, %v1839, 0.0
        %v2289 = vadd.f32 %v1838, %v2288
        %2290 = vadd.xlane.f32.xlu0 %v2289
        %v2291 = vpop.xlane.xlu0 %2290
        %v2292 = vsel %vm547, %v1841, 0.0
        %v2293 = vadd.f32 %v1840, %v2292
        %2294 = vadd.xlane.f32.xlu0 %v2293
        %v2295 = vpop.xlane.xlu0 %2294
        %v2296 = vsel %vm547, %v1843, 0.0
        %v2297 = vadd.f32 %v1842, %v2296
        %2298 = vadd.xlane.f32.xlu0 %v2297
        %v2299 = vpop.xlane.xlu0 %2298
        %v2300 = vsel %vm547, %v1845, 0.0
        %v2301 = vadd.f32 %v1844, %v2300
        %2302 = vadd.xlane.f32.xlu0 %v2301
        %v2303 = vpop.xlane.xlu0 %2302
        %v2304 = vsel %vm547, %v1847, 0.0
        %v2305 = vadd.f32 %v1846, %v2304
        %2306 = vadd.xlane.f32.xlu0 %v2305
        %v2307 = vpop.xlane.xlu0 %2306
        %v2308 = vsel %vm547, %v1849, 0.0
        %v2309 = vadd.f32 %v1848, %v2308
        %2310 = vadd.xlane.f32.xlu0 %v2309
        %v2311 = vpop.xlane.xlu0 %2310
        %v2312 = vsel %vm547, %v1851, 0.0
        %v2313 = vadd.f32 %v1850, %v2312
        %2314 = vadd.xlane.f32.xlu0 %v2313
        %v2315 = vpop.xlane.xlu0 %2314
        %v2316 = vsel %vm547, %v1853, 0.0
        %v2317 = vadd.f32 %v1852, %v2316
        %2318 = vadd.xlane.f32.xlu0 %v2317
        %v2319 = vpop.xlane.xlu0 %2318
        %v2320 = vsel %vm547, %v1855, 0.0
        %v2321 = vadd.f32 %v1854, %v2320
        %2322 = vadd.xlane.f32.xlu0 %v2321
        %v2323 = vpop.xlane.xlu0 %2322
        %v2324 = vsel %vm547, %v1857, 0.0
        %v2325 = vadd.f32 %v1856, %v2324
        %2326 = vadd.xlane.f32.xlu0 %v2325
        %v2327 = vpop.xlane.xlu0 %2326
        %v2328 = vsel %vm547, %v1859, 0.0
        %v2329 = vadd.f32 %v1858, %v2328
        %2330 = vadd.xlane.f32.xlu0 %v2329
        %v2331 = vpop.xlane.xlu0 %2330
        %v2332 = vsel %vm547, %v1861, 0.0
        %v2333 = vadd.f32 %v1860, %v2332
        %2334 = vadd.xlane.f32.xlu0 %v2333
        %v2335 = vpop.xlane.xlu0 %2334
        %v2336 = vsel %vm547, %v1863, 0.0
        %v2337 = vadd.f32 %v1862, %v2336
        %2338 = vadd.xlane.f32.xlu0 %v2337
        %v2339 = vpop.xlane.xlu0 %2338
        %v2340 = vsel %vm547, %v1865, 0.0
        %v2341 = vadd.f32 %v1864, %v2340
        %2342 = vadd.xlane.f32.xlu0 %v2341
        %v2343 = vpop.xlane.xlu0 %2342
        %v2344 = vsel %vm547, %v1867, 0.0
        %v2345 = vadd.f32 %v1866, %v2344
        %2346 = vadd.xlane.f32.xlu0 %v2345
        %v2347 = vpop.xlane.xlu0 %2346
        %v2348 = vsel %vm547, %v1869, 0.0
        %v2349 = vadd.f32 %v1868, %v2348
        %2350 = vadd.xlane.f32.xlu0 %v2349
        %v2351 = vpop.xlane.xlu0 %2350
        %v2352 = vsel %vm547, %v1871, 0.0
        %v2353 = vadd.f32 %v1870, %v2352
        %2354 = vadd.xlane.f32.xlu0 %v2353
        %v2355 = vpop.xlane.xlu0 %2354
        %v2356 = vsel %vm547, %v1873, 0.0
        %v2357 = vadd.f32 %v1872, %v2356
        %2358 = vadd.xlane.f32.xlu0 %v2357
        %v2359 = vpop.xlane.xlu0 %2358
        %v2360 = vsel %vm547, %v1875, 0.0
        %v2361 = vadd.f32 %v1874, %v2360
        %2362 = vadd.xlane.f32.xlu0 %v2361
        %v2363 = vpop.xlane.xlu0 %2362
        %v2364 = vsel %vm547, %v1877, 0.0
        %v2365 = vadd.f32 %v1876, %v2364
        %2366 = vadd.xlane.f32.xlu0 %v2365
        %v2367 = vpop.xlane.xlu0 %2366
        %v2368 = vsel %vm547, %v1879, 0.0
        %v2369 = vadd.f32 %v1878, %v2368
        %2370 = vadd.xlane.f32.xlu0 %v2369
        %v2371 = vpop.xlane.xlu0 %2370
        %v2372 = vsel %vm547, %v1881, 0.0
        %v2373 = vadd.f32 %v1880, %v2372
        %2374 = vadd.xlane.f32.xlu0 %v2373
        %v2375 = vpop.xlane.xlu0 %2374
        %v2376 = vsel %vm547, %v1883, 0.0
        %v2377 = vadd.f32 %v1882, %v2376
        %2378 = vadd.xlane.f32.xlu0 %v2377
        %v2379 = vpop.xlane.xlu0 %2378
        %v2380 = vsel %vm547, %v1885, 0.0
        %v2381 = vadd.f32 %v1884, %v2380
        %2382 = vadd.xlane.f32.xlu0 %v2381
        %v2383 = vpop.xlane.xlu0 %2382
        %v2384 = vsel %vm547, %v1887, 0.0
        %v2385 = vadd.f32 %v1886, %v2384
        %2386 = vadd.xlane.f32.xlu0 %v2385
        %v2387 = vpop.xlane.xlu0 %2386
        %v2388 = vsel %vm547, %v1889, 0.0
        %v2389 = vadd.f32 %v1888, %v2388
        %2390 = vadd.xlane.f32.xlu0 %v2389
        %v2391 = vpop.xlane.xlu0 %2390
        %v2392 = vsel %vm547, %v1891, 0.0
        %v2393 = vadd.f32 %v1890, %v2392
        %2394 = vadd.xlane.f32.xlu0 %v2393
        %v2395 = vpop.xlane.xlu0 %2394
        %v2396 = vsel %vm547, %v1893, 0.0
        %v2397 = vadd.f32 %v1892, %v2396
        %2398 = vadd.xlane.f32.xlu0 %v2397
        %v2399 = vpop.xlane.xlu0 %2398
        %v2400 = vsel %vm547, %v1895, 0.0
        %v2401 = vadd.f32 %v1894, %v2400
        %2402 = vadd.xlane.f32.xlu0 %v2401
        %v2403 = vpop.xlane.xlu0 %2402
        %v2404 = vsel %vm547, %v1897, 0.0
        %v2405 = vadd.f32 %v1896, %v2404
        %2406 = vadd.xlane.f32.xlu0 %v2405
        %v2407 = vpop.xlane.xlu0 %2406
        %v2408 = vsel %vm547, %v1899, 0.0
        %v2409 = vadd.f32 %v1898, %v2408
        %2410 = vadd.xlane.f32.xlu0 %v2409
        %v2411 = vpop.xlane.xlu0 %2410
        %v2412 = vsel %vm547, %v1901, 0.0
        %v2413 = vadd.f32 %v1900, %v2412
        %2414 = vadd.xlane.f32.xlu0 %v2413
        %v2415 = vpop.xlane.xlu0 %2414
        %v2416 = vsel %vm547, %v1903, 0.0
        %v2417 = vadd.f32 %v1902, %v2416
        %2418 = vadd.xlane.f32.xlu0 %v2417
        %v2419 = vpop.xlane.xlu0 %2418
        %v2420 = vsel %vm547, %v1905, 0.0
        %v2421 = vadd.f32 %v1904, %v2420
        %2422 = vadd.xlane.f32.xlu0 %v2421
        %v2423 = vpop.xlane.xlu0 %2422
        %v2424 = vsel %vm547, %v1907, 0.0
        %v2425 = vadd.f32 %v1906, %v2424
        %2426 = vadd.xlane.f32.xlu0 %v2425
        %v2427 = vpop.xlane.xlu0 %2426
        %v2428 = vsel %vm547, %v1909, 0.0
        %v2429 = vadd.f32 %v1908, %v2428
        %2430 = vadd.xlane.f32.xlu0 %v2429
        %v2431 = vpop.xlane.xlu0 %2430
        %v2432 = vsel %vm547, %v1911, 0.0
        %v2433 = vadd.f32 %v1910, %v2432
        %2434 = vadd.xlane.f32.xlu0 %v2433
        %v2435 = vpop.xlane.xlu0 %2434
        %v2436 = vsel %vm547, %v1913, 0.0
        %v2437 = vadd.f32 %v1912, %v2436
        %2438 = vadd.xlane.f32.xlu0 %v2437
        %v2439 = vpop.xlane.xlu0 %2438
        %v2440 = vsel %vm547, %v1915, 0.0
        %v2441 = vadd.f32 %v1914, %v2440
        %2442 = vadd.xlane.f32.xlu0 %v2441
        %v2443 = vpop.xlane.xlu0 %2442
        %v2444 = vsel %vm547, %v1917, 0.0
        %v2445 = vadd.f32 %v1916, %v2444
        %2446 = vadd.xlane.f32.xlu0 %v2445
        %v2447 = vpop.xlane.xlu0 %2446
        %v2448 = vsel %vm547, %v1919, 0.0
        %v2449 = vadd.f32 %v1918, %v2448
        %2450 = vadd.xlane.f32.xlu0 %v2449
        %v2451 = vpop.xlane.xlu0 %2450
        %v2452 = vsel %vm547, %v1921, 0.0
        %v2453 = vadd.f32 %v1920, %v2452
        %2454 = vadd.xlane.f32.xlu0 %v2453
        %v2455 = vpop.xlane.xlu0 %2454
        %v2456 = vsel %vm547, %v1923, 0.0
        %v2457 = vadd.f32 %v1922, %v2456
        %2458 = vadd.xlane.f32.xlu0 %v2457
        %v2459 = vpop.xlane.xlu0 %2458
        %v2460 = vsel %vm547, %v1925, 0.0
        %v2461 = vadd.f32 %v1924, %v2460
        %2462 = vadd.xlane.f32.xlu0 %v2461
        %v2463 = vpop.xlane.xlu0 %2462
        %v2464 = vsel %vm547, %v1927, 0.0
        %v2465 = vadd.f32 %v1926, %v2464
        %2466 = vadd.xlane.f32.xlu0 %v2465
        %v2467 = vpop.xlane.xlu0 %2466
        %v2468 = vsel %vm547, %v1929, 0.0
        %v2469 = vadd.f32 %v1928, %v2468
        %2470 = vadd.xlane.f32.xlu0 %v2469
        %v2471 = vpop.xlane.xlu0 %2470
        %v2472 = vsel %vm547, %v1931, 0.0
        %v2473 = vadd.f32 %v1930, %v2472
        %2474 = vadd.xlane.f32.xlu0 %v2473
        %v2475 = vpop.xlane.xlu0 %2474
        %v2476 = vsel %vm547, %v1933, 0.0
        %v2477 = vadd.f32 %v1932, %v2476
        %2478 = vadd.xlane.f32.xlu0 %v2477
        %v2479 = vpop.xlane.xlu0 %2478
        %v2480 = vsel %vm547, %v1935, 0.0
        %v2481 = vadd.f32 %v1934, %v2480
        %2482 = vadd.xlane.f32.xlu0 %v2481
        %v2483 = vpop.xlane.xlu0 %2482
        %v2484 = vsel %vm547, %v1937, 0.0
        %v2485 = vadd.f32 %v1936, %v2484
        %2486 = vadd.xlane.f32.xlu0 %v2485
        %v2487 = vpop.xlane.xlu0 %2486
        %v2488 = vsel %vm547, %v1939, 0.0
        %v2489 = vadd.f32 %v1938, %v2488
        %2490 = vadd.xlane.f32.xlu0 %v2489
        %v2491 = vpop.xlane.xlu0 %2490
        %v2492 = vsel %vm547, %v1941, 0.0
        %v2493 = vadd.f32 %v1940, %v2492
        %2494 = vadd.xlane.f32.xlu0 %v2493
        %v2495 = vpop.xlane.xlu0 %2494
        %v2496 = vsel %vm547, %v1943, 0.0
        %v2497 = vadd.f32 %v1942, %v2496
        %2498 = vadd.xlane.f32.xlu0 %v2497
        %v2499 = vpop.xlane.xlu0 %2498
        %v2500 = vsel %vm547, %v1945, 0.0
        %v2501 = vadd.f32 %v1944, %v2500
        %2502 = vadd.xlane.f32.xlu0 %v2501
        %v2503 = vpop.xlane.xlu0 %2502
        %v2504 = vsel %vm547, %v1947, 0.0
        %v2505 = vadd.f32 %v1946, %v2504
        %2506 = vadd.xlane.f32.xlu0 %v2505
        %v2507 = vpop.xlane.xlu0 %2506
        %v2508 = vsel %vm547, %v1949, 0.0
        %v2509 = vadd.f32 %v1948, %v2508
        %2510 = vadd.xlane.f32.xlu0 %v2509
        %v2511 = vpop.xlane.xlu0 %2510
        %v2512 = vsel %vm547, %v1951, 0.0
        %v2513 = vadd.f32 %v1950, %v2512
        %2514 = vadd.xlane.f32.xlu0 %v2513
        %v2515 = vpop.xlane.xlu0 %2514
        %v2516 = vsel %vm547, %v1953, 0.0
        %v2517 = vadd.f32 %v1952, %v2516
        %2518 = vadd.xlane.f32.xlu0 %v2517
        %v2519 = vpop.xlane.xlu0 %2518
        %v2520 = vsel %vm547, %v1955, 0.0
        %v2521 = vadd.f32 %v1954, %v2520
        %2522 = vadd.xlane.f32.xlu0 %v2521
        %v2523 = vpop.xlane.xlu0 %2522
        %v2524 = vsel %vm547, %v1957, 0.0
        %v2525 = vadd.f32 %v1956, %v2524
        %2526 = vadd.xlane.f32.xlu0 %v2525
        %v2527 = vpop.xlane.xlu0 %2526
        %v2528 = vsel %vm547, %v1959, 0.0
        %v2529 = vadd.f32 %v1958, %v2528
        %2530 = vadd.xlane.f32.xlu0 %v2529
        %v2531 = vpop.xlane.xlu0 %2530
        %v2532 = vsel %vm547, %v1961, 0.0
        %v2533 = vadd.f32 %v1960, %v2532
        %2534 = vadd.xlane.f32.xlu0 %v2533
        %v2535 = vpop.xlane.xlu0 %2534
        %v2536 = vsel %vm547, %v1963, 0.0
        %v2537 = vadd.f32 %v1962, %v2536
        %2538 = vadd.xlane.f32.xlu0 %v2537
        %v2539 = vpop.xlane.xlu0 %2538
        %v2540 = vsel %vm547, %v1965, 0.0
        %v2541 = vadd.f32 %v1964, %v2540
        %2542 = vadd.xlane.f32.xlu0 %v2541
        %v2543 = vpop.xlane.xlu0 %2542
        %v2544 = vsel %vm547, %v1967, 0.0
        %v2545 = vadd.f32 %v1966, %v2544
        %2546 = vadd.xlane.f32.xlu0 %v2545
        %v2547 = vpop.xlane.xlu0 %2546
        %v2548 = vsel %vm547, %v1969, 0.0
        %v2549 = vadd.f32 %v1968, %v2548
        %2550 = vadd.xlane.f32.xlu0 %v2549
        %v2551 = vpop.xlane.xlu0 %2550
        %v2552 = vsel %vm547, %v1971, 0.0
        %v2553 = vadd.f32 %v1970, %v2552
        %2554 = vadd.xlane.f32.xlu0 %v2553
        %v2555 = vpop.xlane.xlu0 %2554
        %v2556 = vsel %vm547, %v1973, 0.0
        %v2557 = vadd.f32 %v1972, %v2556
        %2558 = vadd.xlane.f32.xlu0 %v2557
        %v2559 = vpop.xlane.xlu0 %2558
        %v2560 = vsel %vm547, %v1975, 0.0
        %v2561 = vadd.f32 %v1974, %v2560
        %2562 = vadd.xlane.f32.xlu0 %v2561
        %v2563 = vpop.xlane.xlu0 %2562
        %v2564 = vsel %vm547, %v1977, 0.0
        %v2565 = vadd.f32 %v1976, %v2564
        %2566 = vadd.xlane.f32.xlu0 %v2565
        %v2567 = vpop.xlane.xlu0 %2566
        %v2568 = vsel %vm547, %v1979, 0.0
        %v2569 = vadd.f32 %v1978, %v2568
        %2570 = vadd.xlane.f32.xlu0 %v2569
        %v2571 = vpop.xlane.xlu0 %2570
        %v2572 = vsel %vm547, %v1981, 0.0
        %v2573 = vadd.f32 %v1980, %v2572
        %2574 = vadd.xlane.f32.xlu0 %v2573
        %v2575 = vpop.xlane.xlu0 %2574
        %v2576 = vsel %vm547, %v1983, 0.0
        %v2577 = vadd.f32 %v1982, %v2576
        %2578 = vadd.xlane.f32.xlu0 %v2577
        %v2579 = vpop.xlane.xlu0 %2578
        %v2580 = vsel %vm547, %v1985, 0.0
        %v2581 = vadd.f32 %v1984, %v2580
        %2582 = vadd.xlane.f32.xlu0 %v2581
        %v2583 = vpop.xlane.xlu0 %2582
        %v2584 = vsel %vm547, %v1987, 0.0
        %v2585 = vadd.f32 %v1986, %v2584
        %2586 = vadd.xlane.f32.xlu0 %v2585
        %v2587 = vpop.xlane.xlu0 %2586
        %v2588 = vsel %vm547, %v1989, 0.0
        %v2589 = vadd.f32 %v1988, %v2588
        %2590 = vadd.xlane.f32.xlu0 %v2589
        %v2591 = vpop.xlane.xlu0 %2590
        %v2592 = vsel %vm547, %v1991, 0.0
        %v2593 = vadd.f32 %v1990, %v2592
        %2594 = vadd.xlane.f32.xlu0 %v2593
        %v2595 = vpop.xlane.xlu0 %2594
        %v2596 = vsel %vm547, %v1993, 0.0
        %v2597 = vadd.f32 %v1992, %v2596
        %2598 = vadd.xlane.f32.xlu0 %v2597
        %v2599 = vpop.xlane.xlu0 %2598
        %v2600 = vsel %vm547, %v1995, 0.0
        %v2601 = vadd.f32 %v1994, %v2600
        %2602 = vadd.xlane.f32.xlu0 %v2601
        %v2603 = vpop.xlane.xlu0 %2602
        %v2604 = vsel %vm547, %v1997, 0.0
        %v2605 = vadd.f32 %v1996, %v2604
        %2606 = vadd.xlane.f32.xlu0 %v2605
        %v2607 = vpop.xlane.xlu0 %2606
        %v2608 = vsel %vm547, %v1999, 0.0
        %v2609 = vadd.f32 %v1998, %v2608
        %2610 = vadd.xlane.f32.xlu0 %v2609
        %v2611 = vpop.xlane.xlu0 %2610
        %v2612 = vsel %vm547, %v2001, 0.0
        %v2613 = vadd.f32 %v2000, %v2612
        %2614 = vadd.xlane.f32.xlu0 %v2613
        %v2615 = vpop.xlane.xlu0 %2614
        %v2616 = vsel %vm547, %v2003, 0.0
        %v2617 = vadd.f32 %v2002, %v2616
        %2618 = vadd.xlane.f32.xlu0 %v2617
        %v2619 = vpop.xlane.xlu0 %2618
        %v2620 = vsel %vm547, %v2005, 0.0
        %v2621 = vadd.f32 %v2004, %v2620
        %2622 = vadd.xlane.f32.xlu0 %v2621
        %v2623 = vpop.xlane.xlu0 %2622
        %v2624 = vsel %vm547, %v2007, 0.0
        %v2625 = vadd.f32 %v2006, %v2624
        %2626 = vadd.xlane.f32.xlu0 %v2625
        %v2627 = vpop.xlane.xlu0 %2626
        %v2628 = vsel %vm547, %v2009, 0.0
        %v2629 = vadd.f32 %v2008, %v2628
        %2630 = vadd.xlane.f32.xlu0 %v2629
        %v2631 = vpop.xlane.xlu0 %2630
        %v2632 = vsel %vm547, %v2011, 0.0
        %v2633 = vadd.f32 %v2010, %v2632
        %2634 = vadd.xlane.f32.xlu0 %v2633
        %v2635 = vpop.xlane.xlu0 %2634
        %v2636 = vsel %vm547, %v2013, 0.0
        %v2637 = vadd.f32 %v2012, %v2636
        %2638 = vadd.xlane.f32.xlu0 %v2637
        %v2639 = vpop.xlane.xlu0 %2638
        %v2640 = vsel %vm547, %v2015, 0.0
        %v2641 = vadd.f32 %v2014, %v2640
        %2642 = vadd.xlane.f32.xlu0 %v2641
        %v2643 = vpop.xlane.xlu0 %2642
        %v2644 = vsel %vm547, %v2017, 0.0
        %v2645 = vadd.f32 %v2016, %v2644
        %2646 = vadd.xlane.f32.xlu0 %v2645
        %v2647 = vpop.xlane.xlu0 %2646
        %v2648 = vsel %vm547, %v2019, 0.0
        %v2649 = vadd.f32 %v2018, %v2648
        %2650 = vadd.xlane.f32.xlu0 %v2649
        %v2651 = vpop.xlane.xlu0 %2650
        %v2652 = vsel %vm547, %v2021, 0.0
        %v2653 = vadd.f32 %v2020, %v2652
        %2654 = vadd.xlane.f32.xlu0 %v2653
        %v2655 = vpop.xlane.xlu0 %2654
        %v2656 = vsel %vm547, %v2023, 0.0
        %v2657 = vadd.f32 %v2022, %v2656
        %2658 = vadd.xlane.f32.xlu0 %v2657
        %v2659 = vpop.xlane.xlu0 %2658
        %v2660 = vsel %vm547, %v2025, 0.0
        %v2661 = vadd.f32 %v2024, %v2660
        %2662 = vadd.xlane.f32.xlu0 %v2661
        %v2663 = vpop.xlane.xlu0 %2662
        %v2664 = vsel %vm547, %v2027, 0.0
        %v2665 = vadd.f32 %v2026, %v2664
        %2666 = vadd.xlane.f32.xlu0 %v2665
        %v2667 = vpop.xlane.xlu0 %2666
        %v2668 = vsel %vm547, %v2029, 0.0
        %v2669 = vadd.f32 %v2028, %v2668
        %2670 = vadd.xlane.f32.xlu0 %v2669
        %v2671 = vpop.xlane.xlu0 %2670
        %v2672 = vsel %vm547, %v2031, 0.0
        %v2673 = vadd.f32 %v2030, %v2672
        %2674 = vadd.xlane.f32.xlu0 %v2673
        %v2675 = vpop.xlane.xlu0 %2674
        %v2676 = vsel %vm547, %v2033, 0.0
        %v2677 = vadd.f32 %v2032, %v2676
        %2678 = vadd.xlane.f32.xlu0 %v2677
        %v2679 = vpop.xlane.xlu0 %2678
        %v2680 = vsel %vm547, %v2035, 0.0
        %v2681 = vadd.f32 %v2034, %v2680
        %2682 = vadd.xlane.f32.xlu0 %v2681
        %v2683 = vpop.xlane.xlu0 %2682
        %v2684 = vsel %vm547, %v2037, 0.0
        %v2685 = vadd.f32 %v2036, %v2684
        %2686 = vadd.xlane.f32.xlu0 %v2685
        %v2687 = vpop.xlane.xlu0 %2686
        %v2688 = vsel %vm547, %v2039, 0.0
        %v2689 = vadd.f32 %v2038, %v2688
        %2690 = vadd.xlane.f32.xlu0 %v2689
        %v2691 = vpop.xlane.xlu0 %2690
        %v2692 = vsel %vm547, %v2041, 0.0
        %v2693 = vadd.f32 %v2040, %v2692
        %2694 = vadd.xlane.f32.xlu0 %v2693
        %v2695 = vpop.xlane.xlu0 %2694
        %v2696 = vsel %vm547, %v2043, 0.0
        %v2697 = vadd.f32 %v2042, %v2696
        %2698 = vadd.xlane.f32.xlu0 %v2697
        %v2699 = vpop.xlane.xlu0 %2698
        %v2700 = vsel %vm547, %v2045, 0.0
        %v2701 = vadd.f32 %v2044, %v2700
        %2702 = vadd.xlane.f32.xlu0 %v2701
        %v2703 = vpop.xlane.xlu0 %2702
        %v2704 = vsel %vm547, %v2047, 0.0
        %v2705 = vadd.f32 %v2046, %v2704
        %2706 = vadd.xlane.f32.xlu0 %v2705
        %v2707 = vpop.xlane.xlu0 %2706
        %v2708 = vsel %vm547, %v2049, 0.0
        %v2709 = vadd.f32 %v2048, %v2708
        %2710 = vadd.xlane.f32.xlu0 %v2709
        %v2711 = vpop.xlane.xlu0 %2710
        %v2712 = vsel %vm547, %v2051, 0.0
        %v2713 = vadd.f32 %v2050, %v2712
        %2714 = vadd.xlane.f32.xlu0 %v2713
        %v2715 = vpop.xlane.xlu0 %2714
        %v2716 = vsel %vm547, %v2053, 0.0
        %v2717 = vadd.f32 %v2052, %v2716
        %2718 = vadd.xlane.f32.xlu0 %v2717
        %v2719 = vpop.xlane.xlu0 %2718
        %v2720 = vsel %vm547, %v2055, 0.0
        %v2721 = vadd.f32 %v2054, %v2720
        %2722 = vadd.xlane.f32.xlu0 %v2721
        %v2723 = vpop.xlane.xlu0 %2722
        %v2724 = vsel %vm547, %v2057, 0.0
        %v2725 = vadd.f32 %v2056, %v2724
        %2726 = vadd.xlane.f32.xlu0 %v2725
        %v2727 = vpop.xlane.xlu0 %2726
        %v2728 = vsel %vm547, %v2059, 0.0
        %v2729 = vadd.f32 %v2058, %v2728
        %2730 = vadd.xlane.f32.xlu0 %v2729
        %v2731 = vpop.xlane.xlu0 %2730
        %v2732 = vmul.f32 %v2063, 0.0051020407
        %v2733 = vmul.f32 %v2067, 0.0051020407
        %v2734 = vmul.f32 %v2071, 0.0051020407
        %v2735 = vmul.f32 %v2075, 0.0051020407
        %v2736 = vmul.f32 %v2079, 0.0051020407
        %v2737 = vmul.f32 %v2083, 0.0051020407
        %v2738 = vmul.f32 %v2087, 0.0051020407
        %v2739 = vmul.f32 %v2091, 0.0051020407
        %v2740 = vmul.f32 %v2095, 0.0051020407
        %v2741 = vmul.f32 %v2099, 0.0051020407
        %v2742 = vmul.f32 %v2103, 0.0051020407
        %v2743 = vmul.f32 %v2107, 0.0051020407
        %v2744 = vmul.f32 %v2111, 0.0051020407
        %v2745 = vmul.f32 %v2115, 0.0051020407
        %v2746 = vmul.f32 %v2119, 0.0051020407
        %v2747 = vmul.f32 %v2123, 0.0051020407
        %v2748 = vmul.f32 %v2127, 0.0051020407
        %v2749 = vmul.f32 %v2131, 0.0051020407
        %v2750 = vmul.f32 %v2135, 0.0051020407
        %v2751 = vmul.f32 %v2139, 0.0051020407
        %v2752 = vmul.f32 %v2143, 0.0051020407
        %v2753 = vmul.f32 %v2147, 0.0051020407
        %v2754 = vmul.f32 %v2151, 0.0051020407
        %v2755 = vmul.f32 %v2155, 0.0051020407
        %v2756 = vmul.f32 %v2159, 0.0051020407
        %v2757 = vmul.f32 %v2163, 0.0051020407
        %v2758 = vmul.f32 %v2167, 0.0051020407
        %v2759 = vmul.f32 %v2171, 0.0051020407
        %v2760 = vmul.f32 %v2175, 0.0051020407
        %v2761 = vmul.f32 %v2179, 0.0051020407
        %v2762 = vmul.f32 %v2183, 0.0051020407
        %v2763 = vmul.f32 %v2187, 0.0051020407
        %v2764 = vmul.f32 %v2191, 0.0051020407
        %v2765 = vmul.f32 %v2195, 0.0051020407
        %v2766 = vmul.f32 %v2199, 0.0051020407
        %v2767 = vmul.f32 %v2203, 0.0051020407
        %v2768 = vmul.f32 %v2207, 0.0051020407
        %v2769 = vmul.f32 %v2211, 0.0051020407
        %v2770 = vmul.f32 %v2215, 0.0051020407
        %v2771 = vmul.f32 %v2219, 0.0051020407
        %v2772 = vmul.f32 %v2223, 0.0051020407
        %v2773 = vmul.f32 %v2227, 0.0051020407
        %v2774 = vmul.f32 %v2231, 0.0051020407
        %v2775 = vmul.f32 %v2235, 0.0051020407
        %v2776 = vmul.f32 %v2239, 0.0051020407
        %v2777 = vmul.f32 %v2243, 0.0051020407
        %v2778 = vmul.f32 %v2247, 0.0051020407
        %v2779 = vmul.f32 %v2251, 0.0051020407
        %v2780 = vmul.f32 %v2255, 0.0051020407
        %v2781 = vmul.f32 %v2259, 0.0051020407
        %v2782 = vmul.f32 %v2263, 0.0051020407
        %v2783 = vmul.f32 %v2267, 0.0051020407
        %v2784 = vmul.f32 %v2271, 0.0051020407
        %v2785 = vmul.f32 %v2275, 0.0051020407
        %v2786 = vmul.f32 %v2279, 0.0051020407
        %v2787 = vmul.f32 %v2283, 0.0051020407
        %v2788 = vmul.f32 %v2287, 0.0051020407
        %v2789 = vmul.f32 %v2291, 0.0051020407
        %v2790 = vmul.f32 %v2295, 0.0051020407
        %v2791 = vmul.f32 %v2299, 0.0051020407
        %v2792 = vmul.f32 %v2303, 0.0051020407
        %v2793 = vmul.f32 %v2307, 0.0051020407
        %v2794 = vmul.f32 %v2311, 0.0051020407
        %v2795 = vmul.f32 %v2315, 0.0051020407
        %v2796 = vmul.f32 %v2319, 0.0051020407
        %v2797 = vmul.f32 %v2323, 0.0051020407
        %v2798 = vmul.f32 %v2327, 0.0051020407
        %v2799 = vmul.f32 %v2331, 0.0051020407
        %v2800 = vmul.f32 %v2335, 0.0051020407
        %v2801 = vmul.f32 %v2339, 0.0051020407
        %v2802 = vmul.f32 %v2343, 0.0051020407
        %v2803 = vmul.f32 %v2347, 0.0051020407
        %v2804 = vmul.f32 %v2351, 0.0051020407
        %v2805 = vmul.f32 %v2355, 0.0051020407
        %v2806 = vmul.f32 %v2359, 0.0051020407
        %v2807 = vmul.f32 %v2363, 0.0051020407
        %v2808 = vmul.f32 %v2367, 0.0051020407
        %v2809 = vmul.f32 %v2371, 0.0051020407
        %v2810 = vmul.f32 %v2375, 0.0051020407
        %v2811 = vmul.f32 %v2379, 0.0051020407
        %v2812 = vmul.f32 %v2383, 0.0051020407
        %v2813 = vmul.f32 %v2387, 0.0051020407
        %v2814 = vmul.f32 %v2391, 0.0051020407
        %v2815 = vmul.f32 %v2395, 0.0051020407
        %v2816 = vmul.f32 %v2399, 0.0051020407
        %v2817 = vmul.f32 %v2403, 0.0051020407
        %v2818 = vmul.f32 %v2407, 0.0051020407
        %v2819 = vmul.f32 %v2411, 0.0051020407
        %v2820 = vmul.f32 %v2415, 0.0051020407
        %v2821 = vmul.f32 %v2419, 0.0051020407
        %v2822 = vmul.f32 %v2423, 0.0051020407
        %v2823 = vmul.f32 %v2427, 0.0051020407
        %v2824 = vmul.f32 %v2431, 0.0051020407
        %v2825 = vmul.f32 %v2435, 0.0051020407
        %v2826 = vmul.f32 %v2439, 0.0051020407
        %v2827 = vmul.f32 %v2443, 0.0051020407
        %v2828 = vmul.f32 %v2447, 0.0051020407
        %v2829 = vmul.f32 %v2451, 0.0051020407
        %v2830 = vmul.f32 %v2455, 0.0051020407
        %v2831 = vmul.f32 %v2459, 0.0051020407
        %v2832 = vmul.f32 %v2463, 0.0051020407
        %v2833 = vmul.f32 %v2467, 0.0051020407
        %v2834 = vmul.f32 %v2471, 0.0051020407
        %v2835 = vmul.f32 %v2475, 0.0051020407
        %v2836 = vmul.f32 %v2479, 0.0051020407
        %v2837 = vmul.f32 %v2483, 0.0051020407
        %v2838 = vmul.f32 %v2487, 0.0051020407
        %v2839 = vmul.f32 %v2491, 0.0051020407
        %v2840 = vmul.f32 %v2495, 0.0051020407
        %v2841 = vmul.f32 %v2499, 0.0051020407
        %v2842 = vmul.f32 %v2503, 0.0051020407
        %v2843 = vmul.f32 %v2507, 0.0051020407
        %v2844 = vmul.f32 %v2511, 0.0051020407
        %v2845 = vmul.f32 %v2515, 0.0051020407
        %v2846 = vmul.f32 %v2519, 0.0051020407
        %v2847 = vmul.f32 %v2523, 0.0051020407
        %v2848 = vmul.f32 %v2527, 0.0051020407
        %v2849 = vmul.f32 %v2531, 0.0051020407
        %v2850 = vmul.f32 %v2535, 0.0051020407
        %v2851 = vmul.f32 %v2539, 0.0051020407
        %v2852 = vmul.f32 %v2543, 0.0051020407
        %v2853 = vmul.f32 %v2547, 0.0051020407
        %v2854 = vmul.f32 %v2551, 0.0051020407
        %v2855 = vmul.f32 %v2555, 0.0051020407
        %v2856 = vmul.f32 %v2559, 0.0051020407
        %v2857 = vmul.f32 %v2563, 0.0051020407
        %v2858 = vmul.f32 %v2567, 0.0051020407
        %v2859 = vmul.f32 %v2571, 0.0051020407
        %v2860 = vmul.f32 %v2575, 0.0051020407
        %v2861 = vmul.f32 %v2579, 0.0051020407
        %v2862 = vmul.f32 %v2583, 0.0051020407
        %v2863 = vmul.f32 %v2587, 0.0051020407
        %v2864 = vmul.f32 %v2591, 0.0051020407
        %v2865 = vmul.f32 %v2595, 0.0051020407
        %v2866 = vmul.f32 %v2599, 0.0051020407
        %v2867 = vmul.f32 %v2603, 0.0051020407
        %v2868 = vmul.f32 %v2607, 0.0051020407
        %v2869 = vmul.f32 %v2611, 0.0051020407
        %v2870 = vmul.f32 %v2615, 0.0051020407
        %v2871 = vmul.f32 %v2619, 0.0051020407
        %v2872 = vmul.f32 %v2623, 0.0051020407
        %v2873 = vmul.f32 %v2627, 0.0051020407
        %v2874 = vmul.f32 %v2631, 0.0051020407
        %v2875 = vmul.f32 %v2635, 0.0051020407
        %v2876 = vmul.f32 %v2639, 0.0051020407
        %v2877 = vmul.f32 %v2643, 0.0051020407
        %v2878 = vmul.f32 %v2647, 0.0051020407
        %v2879 = vmul.f32 %v2651, 0.0051020407
        %v2880 = vmul.f32 %v2655, 0.0051020407
        %v2881 = vmul.f32 %v2659, 0.0051020407
        %v2882 = vmul.f32 %v2663, 0.0051020407
        %v2883 = vmul.f32 %v2667, 0.0051020407
        %v2884 = vmul.f32 %v2671, 0.0051020407
        %v2885 = vmul.f32 %v2675, 0.0051020407
        %v2886 = vmul.f32 %v2679, 0.0051020407
        %v2887 = vmul.f32 %v2683, 0.0051020407
        %v2888 = vmul.f32 %v2687, 0.0051020407
        %v2889 = vmul.f32 %v2691, 0.0051020407
        %v2890 = vmul.f32 %v2695, 0.0051020407
        %v2891 = vmul.f32 %v2699, 0.0051020407
        %v2892 = vmul.f32 %v2703, 0.0051020407
        %v2893 = vmul.f32 %v2707, 0.0051020407
        %v2894 = vmul.f32 %v2711, 0.0051020407
        %v2895 = vmul.f32 %v2715, 0.0051020407
        %v2896 = vmul.f32 %v2719, 0.0051020407
        %v2897 = vmul.f32 %v2723, 0.0051020407
        %v2898 = vmul.f32 %v2727, 0.0051020407
        %v2899 = vmul.f32 %v2731, 0.0051020407
        %v2900 = vadd.f32 %v2732, 1e-05
        %v2901 = vadd.f32 %v2733, 1e-05
        %v2902 = vadd.f32 %v2734, 1e-05
        %v2903 = vadd.f32 %v2735, 1e-05
        %v2904 = vadd.f32 %v2736, 1e-05
        %v2905 = vadd.f32 %v2737, 1e-05
        %v2906 = vadd.f32 %v2738, 1e-05
        %v2907 = vadd.f32 %v2739, 1e-05
        %v2908 = vadd.f32 %v2740, 1e-05
        %v2909 = vadd.f32 %v2741, 1e-05
        %v2910 = vadd.f32 %v2742, 1e-05
        %v2911 = vadd.f32 %v2743, 1e-05
        %v2912 = vadd.f32 %v2744, 1e-05
        %v2913 = vadd.f32 %v2745, 1e-05
        %v2914 = vadd.f32 %v2746, 1e-05
        %v2915 = vadd.f32 %v2747, 1e-05
        %v2916 = vadd.f32 %v2748, 1e-05
        %v2917 = vadd.f32 %v2749, 1e-05
        %v2918 = vadd.f32 %v2750, 1e-05
        %v2919 = vadd.f32 %v2751, 1e-05
        %v2920 = vadd.f32 %v2752, 1e-05
        %v2921 = vadd.f32 %v2753, 1e-05
        %v2922 = vadd.f32 %v2754, 1e-05
        %v2923 = vadd.f32 %v2755, 1e-05
        %v2924 = vadd.f32 %v2756, 1e-05
        %v2925 = vadd.f32 %v2757, 1e-05
        %v2926 = vadd.f32 %v2758, 1e-05
        %v2927 = vadd.f32 %v2759, 1e-05
        %v2928 = vadd.f32 %v2760, 1e-05
        %v2929 = vadd.f32 %v2761, 1e-05
        %v2930 = vadd.f32 %v2762, 1e-05
        %v2931 = vadd.f32 %v2763, 1e-05
        %v2932 = vadd.f32 %v2764, 1e-05
        %v2933 = vadd.f32 %v2765, 1e-05
        %v2934 = vadd.f32 %v2766, 1e-05
        %v2935 = vadd.f32 %v2767, 1e-05
        %v2936 = vadd.f32 %v2768, 1e-05
        %v2937 = vadd.f32 %v2769, 1e-05
        %v2938 = vadd.f32 %v2770, 1e-05
        %v2939 = vadd.f32 %v2771, 1e-05
        %v2940 = vadd.f32 %v2772, 1e-05
        %v2941 = vadd.f32 %v2773, 1e-05
        %v2942 = vadd.f32 %v2774, 1e-05
        %v2943 = vadd.f32 %v2775, 1e-05
        %v2944 = vadd.f32 %v2776, 1e-05
        %v2945 = vadd.f32 %v2777, 1e-05
        %v2946 = vadd.f32 %v2778, 1e-05
        %v2947 = vadd.f32 %v2779, 1e-05
        %v2948 = vadd.f32 %v2780, 1e-05
        %v2949 = vadd.f32 %v2781, 1e-05
        %v2950 = vadd.f32 %v2782, 1e-05
        %v2951 = vadd.f32 %v2783, 1e-05
        %v2952 = vadd.f32 %v2784, 1e-05
        %v2953 = vadd.f32 %v2785, 1e-05
        %v2954 = vadd.f32 %v2786, 1e-05
        %v2955 = vadd.f32 %v2787, 1e-05
        %v2956 = vadd.f32 %v2788, 1e-05
        %v2957 = vadd.f32 %v2789, 1e-05
        %v2958 = vadd.f32 %v2790, 1e-05
        %v2959 = vadd.f32 %v2791, 1e-05
        %v2960 = vadd.f32 %v2792, 1e-05
        %v2961 = vadd.f32 %v2793, 1e-05
        %v2962 = vadd.f32 %v2794, 1e-05
        %v2963 = vadd.f32 %v2795, 1e-05
        %v2964 = vadd.f32 %v2796, 1e-05
        %v2965 = vadd.f32 %v2797, 1e-05
        %v2966 = vadd.f32 %v2798, 1e-05
        %v2967 = vadd.f32 %v2799, 1e-05
        %v2968 = vadd.f32 %v2800, 1e-05
        %v2969 = vadd.f32 %v2801, 1e-05
        %v2970 = vadd.f32 %v2802, 1e-05
        %v2971 = vadd.f32 %v2803, 1e-05
        %v2972 = vadd.f32 %v2804, 1e-05
        %v2973 = vadd.f32 %v2805, 1e-05
        %v2974 = vadd.f32 %v2806, 1e-05
        %v2975 = vadd.f32 %v2807, 1e-05
        %v2976 = vadd.f32 %v2808, 1e-05
        %v2977 = vadd.f32 %v2809, 1e-05
        %v2978 = vadd.f32 %v2810, 1e-05
        %v2979 = vadd.f32 %v2811, 1e-05
        %v2980 = vadd.f32 %v2812, 1e-05
        %v2981 = vadd.f32 %v2813, 1e-05
        %v2982 = vadd.f32 %v2814, 1e-05
        %v2983 = vadd.f32 %v2815, 1e-05
        %v2984 = vadd.f32 %v2816, 1e-05
        %v2985 = vadd.f32 %v2817, 1e-05
        %v2986 = vadd.f32 %v2818, 1e-05
        %v2987 = vadd.f32 %v2819, 1e-05
        %v2988 = vadd.f32 %v2820, 1e-05
        %v2989 = vadd.f32 %v2821, 1e-05
        %v2990 = vadd.f32 %v2822, 1e-05
        %v2991 = vadd.f32 %v2823, 1e-05
        %v2992 = vadd.f32 %v2824, 1e-05
        %v2993 = vadd.f32 %v2825, 1e-05
        %v2994 = vadd.f32 %v2826, 1e-05
        %v2995 = vadd.f32 %v2827, 1e-05
        %v2996 = vadd.f32 %v2828, 1e-05
        %v2997 = vadd.f32 %v2829, 1e-05
        %v2998 = vadd.f32 %v2830, 1e-05
        %v2999 = vadd.f32 %v2831, 1e-05
        %v3000 = vadd.f32 %v2832, 1e-05
        %v3001 = vadd.f32 %v2833, 1e-05
        %v3002 = vadd.f32 %v2834, 1e-05
        %v3003 = vadd.f32 %v2835, 1e-05
        %v3004 = vadd.f32 %v2836, 1e-05
        %v3005 = vadd.f32 %v2837, 1e-05
        %v3006 = vadd.f32 %v2838, 1e-05
        %v3007 = vadd.f32 %v2839, 1e-05
        %v3008 = vadd.f32 %v2840, 1e-05
        %v3009 = vadd.f32 %v2841, 1e-05
        %v3010 = vadd.f32 %v2842, 1e-05
        %v3011 = vadd.f32 %v2843, 1e-05
        %v3012 = vadd.f32 %v2844, 1e-05
        %v3013 = vadd.f32 %v2845, 1e-05
        %v3014 = vadd.f32 %v2846, 1e-05
        %v3015 = vadd.f32 %v2847, 1e-05
        %v3016 = vadd.f32 %v2848, 1e-05
        %v3017 = vadd.f32 %v2849, 1e-05
        %v3018 = vadd.f32 %v2850, 1e-05
        %v3019 = vadd.f32 %v2851, 1e-05
        %v3020 = vadd.f32 %v2852, 1e-05
        %v3021 = vadd.f32 %v2853, 1e-05
        %v3022 = vadd.f32 %v2854, 1e-05
        %v3023 = vadd.f32 %v2855, 1e-05
        %v3024 = vadd.f32 %v2856, 1e-05
        %v3025 = vadd.f32 %v2857, 1e-05
        %v3026 = vadd.f32 %v2858, 1e-05
        %v3027 = vadd.f32 %v2859, 1e-05
        %v3028 = vadd.f32 %v2860, 1e-05
        %v3029 = vadd.f32 %v2861, 1e-05
        %v3030 = vadd.f32 %v2862, 1e-05
        %v3031 = vadd.f32 %v2863, 1e-05
        %v3032 = vadd.f32 %v2864, 1e-05
        %v3033 = vadd.f32 %v2865, 1e-05
        %v3034 = vadd.f32 %v2866, 1e-05
        %v3035 = vadd.f32 %v2867, 1e-05
        %v3036 = vadd.f32 %v2868, 1e-05
        %v3037 = vadd.f32 %v2869, 1e-05
        %v3038 = vadd.f32 %v2870, 1e-05
        %v3039 = vadd.f32 %v2871, 1e-05
        %v3040 = vadd.f32 %v2872, 1e-05
        %v3041 = vadd.f32 %v2873, 1e-05
        %v3042 = vadd.f32 %v2874, 1e-05
        %v3043 = vadd.f32 %v2875, 1e-05
        %v3044 = vadd.f32 %v2876, 1e-05
        %v3045 = vadd.f32 %v2877, 1e-05
        %v3046 = vadd.f32 %v2878, 1e-05
        %v3047 = vadd.f32 %v2879, 1e-05
        %v3048 = vadd.f32 %v2880, 1e-05
        %v3049 = vadd.f32 %v2881, 1e-05
        %v3050 = vadd.f32 %v2882, 1e-05
        %v3051 = vadd.f32 %v2883, 1e-05
        %v3052 = vadd.f32 %v2884, 1e-05
        %v3053 = vadd.f32 %v2885, 1e-05
        %v3054 = vadd.f32 %v2886, 1e-05
        %v3055 = vadd.f32 %v2887, 1e-05
        %v3056 = vadd.f32 %v2888, 1e-05
        %v3057 = vadd.f32 %v2889, 1e-05
        %v3058 = vadd.f32 %v2890, 1e-05
        %v3059 = vadd.f32 %v2891, 1e-05
        %v3060 = vadd.f32 %v2892, 1e-05
        %v3061 = vadd.f32 %v2893, 1e-05
        %v3062 = vadd.f32 %v2894, 1e-05
        %v3063 = vadd.f32 %v2895, 1e-05
        %v3064 = vadd.f32 %v2896, 1e-05
        %v3065 = vadd.f32 %v2897, 1e-05
        %v3066 = vadd.f32 %v2898, 1e-05
        %v3067 = vadd.f32 %v2899, 1e-05
        %v3068 = vrsqrt.pop %v2900
        %v3069 = vrsqrt.pop %v2901
        %v3070 = vrsqrt.pop %v2902
        %v3071 = vrsqrt.pop %v2903
        %v3072 = vrsqrt.pop %v2904
        %v3073 = vrsqrt.pop %v2905
        %v3074 = vrsqrt.pop %v2906
        %v3075 = vrsqrt.pop %v2907
        %v3076 = vrsqrt.pop %v2908
        %v3077 = vrsqrt.pop %v2909
        %v3078 = vrsqrt.pop %v2910
        %v3079 = vrsqrt.pop %v2911
        %v3080 = vrsqrt.pop %v2912
        %v3081 = vrsqrt.pop %v2913
        %v3082 = vrsqrt.pop %v2914
        %v3083 = vrsqrt.pop %v2915
        %v3084 = vrsqrt.pop %v2916
        %v3085 = vrsqrt.pop %v2917
        %v3086 = vrsqrt.pop %v2918
        %v3087 = vrsqrt.pop %v2919
        %v3088 = vrsqrt.pop %v2920
        %v3089 = vrsqrt.pop %v2921
        %v3090 = vrsqrt.pop %v2922
        %v3091 = vrsqrt.pop %v2923
        %v3092 = vrsqrt.pop %v2924
        %v3093 = vrsqrt.pop %v2925
        %v3094 = vrsqrt.pop %v2926
        %v3095 = vrsqrt.pop %v2927
        %v3096 = vrsqrt.pop %v2928
        %v3097 = vrsqrt.pop %v2929
        %v3098 = vrsqrt.pop %v2930
        %v3099 = vrsqrt.pop %v2931
        %v3100 = vrsqrt.pop %v2932
        %v3101 = vrsqrt.pop %v2933
        %v3102 = vrsqrt.pop %v2934
        %v3103 = vrsqrt.pop %v2935
        %v3104 = vrsqrt.pop %v2936
        %v3105 = vrsqrt.pop %v2937
        %v3106 = vrsqrt.pop %v2938
        %v3107 = vrsqrt.pop %v2939
        %v3108 = vrsqrt.pop %v2940
        %v3109 = vrsqrt.pop %v2941
        %v3110 = vrsqrt.pop %v2942
        %v3111 = vrsqrt.pop %v2943
        %v3112 = vrsqrt.pop %v2944
        %v3113 = vrsqrt.pop %v2945
        %v3114 = vrsqrt.pop %v2946
        %v3115 = vrsqrt.pop %v2947
        %v3116 = vrsqrt.pop %v2948
        %v3117 = vrsqrt.pop %v2949
        %v3118 = vrsqrt.pop %v2950
        %v3119 = vrsqrt.pop %v2951
        %v3120 = vrsqrt.pop %v2952
        %v3121 = vrsqrt.pop %v2953
        %v3122 = vrsqrt.pop %v2954
        %v3123 = vrsqrt.pop %v2955
        %v3124 = vrsqrt.pop %v2956
        %v3125 = vrsqrt.pop %v2957
        %v3126 = vrsqrt.pop %v2958
        %v3127 = vrsqrt.pop %v2959
        %v3128 = vrsqrt.pop %v2960
        %v3129 = vrsqrt.pop %v2961
        %v3130 = vrsqrt.pop %v2962
        %v3131 = vrsqrt.pop %v2963
        %v3132 = vrsqrt.pop %v2964
        %v3133 = vrsqrt.pop %v2965
        %v3134 = vrsqrt.pop %v2966
        %v3135 = vrsqrt.pop %v2967
        %v3136 = vrsqrt.pop %v2968
        %v3137 = vrsqrt.pop %v2969
        %v3138 = vrsqrt.pop %v2970
        %v3139 = vrsqrt.pop %v2971
        %v3140 = vrsqrt.pop %v2972
        %v3141 = vrsqrt.pop %v2973
        %v3142 = vrsqrt.pop %v2974
        %v3143 = vrsqrt.pop %v2975
        %v3144 = vrsqrt.pop %v2976
        %v3145 = vrsqrt.pop %v2977
        %v3146 = vrsqrt.pop %v2978
        %v3147 = vrsqrt.pop %v2979
        %v3148 = vrsqrt.pop %v2980
        %v3149 = vrsqrt.pop %v2981
        %v3150 = vrsqrt.pop %v2982
        %v3151 = vrsqrt.pop %v2983
        %v3152 = vrsqrt.pop %v2984
        %v3153 = vrsqrt.pop %v2985
        %v3154 = vrsqrt.pop %v2986
        %v3155 = vrsqrt.pop %v2987
        %v3156 = vrsqrt.pop %v2988
        %v3157 = vrsqrt.pop %v2989
        %v3158 = vrsqrt.pop %v2990
        %v3159 = vrsqrt.pop %v2991
        %v3160 = vrsqrt.pop %v2992
        %v3161 = vrsqrt.pop %v2993
        %v3162 = vrsqrt.pop %v2994
        %v3163 = vrsqrt.pop %v2995
        %v3164 = vrsqrt.pop %v2996
        %v3165 = vrsqrt.pop %v2997
        %v3166 = vrsqrt.pop %v2998
        %v3167 = vrsqrt.pop %v2999
        %v3168 = vrsqrt.pop %v3000
        %v3169 = vrsqrt.pop %v3001
        %v3170 = vrsqrt.pop %v3002
        %v3171 = vrsqrt.pop %v3003
        %v3172 = vrsqrt.pop %v3004
        %v3173 = vrsqrt.pop %v3005
        %v3174 = vrsqrt.pop %v3006
        %v3175 = vrsqrt.pop %v3007
        %v3176 = vrsqrt.pop %v3008
        %v3177 = vrsqrt.pop %v3009
        %v3178 = vrsqrt.pop %v3010
        %v3179 = vrsqrt.pop %v3011
        %v3180 = vrsqrt.pop %v3012
        %v3181 = vrsqrt.pop %v3013
        %v3182 = vrsqrt.pop %v3014
        %v3183 = vrsqrt.pop %v3015
        %v3184 = vrsqrt.pop %v3016
        %v3185 = vrsqrt.pop %v3017
        %v3186 = vrsqrt.pop %v3018
        %v3187 = vrsqrt.pop %v3019
        %v3188 = vrsqrt.pop %v3020
        %v3189 = vrsqrt.pop %v3021
        %v3190 = vrsqrt.pop %v3022
        %v3191 = vrsqrt.pop %v3023
        %v3192 = vrsqrt.pop %v3024
        %v3193 = vrsqrt.pop %v3025
        %v3194 = vrsqrt.pop %v3026
        %v3195 = vrsqrt.pop %v3027
        %v3196 = vrsqrt.pop %v3028
        %v3197 = vrsqrt.pop %v3029
        %v3198 = vrsqrt.pop %v3030
        %v3199 = vrsqrt.pop %v3031
        %v3200 = vrsqrt.pop %v3032
        %v3201 = vrsqrt.pop %v3033
        %v3202 = vrsqrt.pop %v3034
        %v3203 = vrsqrt.pop %v3035
        %v3204 = vrsqrt.pop %v3036
        %v3205 = vrsqrt.pop %v3037
        %v3206 = vrsqrt.pop %v3038
        %v3207 = vrsqrt.pop %v3039
        %v3208 = vrsqrt.pop %v3040
        %v3209 = vrsqrt.pop %v3041
        %v3210 = vrsqrt.pop %v3042
        %v3211 = vrsqrt.pop %v3043
        %v3212 = vrsqrt.pop %v3044
        %v3213 = vrsqrt.pop %v3045
        %v3214 = vrsqrt.pop %v3046
        %v3215 = vrsqrt.pop %v3047
        %v3216 = vrsqrt.pop %v3048
        %v3217 = vrsqrt.pop %v3049
        %v3218 = vrsqrt.pop %v3050
        %v3219 = vrsqrt.pop %v3051
        %v3220 = vrsqrt.pop %v3052
        %v3221 = vrsqrt.pop %v3053
        %v3222 = vrsqrt.pop %v3054
        %v3223 = vrsqrt.pop %v3055
        %v3224 = vrsqrt.pop %v3056
        %v3225 = vrsqrt.pop %v3057
        %v3226 = vrsqrt.pop %v3058
        %v3227 = vrsqrt.pop %v3059
        %v3228 = vrsqrt.pop %v3060
        %v3229 = vrsqrt.pop %v3061
        %v3230 = vrsqrt.pop %v3062
        %v3231 = vrsqrt.pop %v3063
        %v3232 = vrsqrt.pop %v3064
        %v3233 = vrsqrt.pop %v3065
        %v3234 = vrsqrt.pop %v3066
        %v3235 = vrsqrt.pop %v3067
        %v3236 = vld [vmem:[%s1] sm:$0xff]
        %v3237 = vld [vmem:[%s1 + $0x8] sm:$0xff]
        %v3238 = vld [vmem:[%s1 + $0x10] sm:$0xff]
        %v3239 = vld [vmem:[%s1 + $0x18] sm:$0xff]
        %v3240 = vld [vmem:[%s1 + $0x20] sm:$0xff]
        %v3241 = vld [vmem:[%s1 + $0x28] sm:$0xff]
        %v3242 = vld [vmem:[%s1 + $0x30] sm:$0xff]
        %v3243 = vld [vmem:[%s1 + $0x38] sm:$0xff]
        %v3244 = vld [vmem:[%s1 + $0x40] sm:$0xff]
        %v3245 = vld [vmem:[%s1 + $0x48] sm:$0xff]
        %v3246 = vld [vmem:[%s1 + $0x50] sm:$0xff]
        %v3247 = vld [vmem:[%s1 + $0x58] sm:$0xff]
        %v3248 = vld [vmem:[%s1 + $0x60] sm:$0xff]
        %v3249 = vld [vmem:[%s1 + $0x68] sm:$0xff]
        %v3250 = vld [vmem:[%s1 + $0x70] sm:$0xff]
        %v3251 = vld [vmem:[%s1 + $0x78] sm:$0xff]
        %v3252 = vld [vmem:[%s1 + $0x80] sm:$0xff]
        %v3253 = vld [vmem:[%s1 + $0x88] sm:$0xff]
        %v3254 = vld [vmem:[%s1 + $0x90] sm:$0xff]
        %v3255 = vld [vmem:[%s1 + $0x98] sm:$0xff]
        %v3256 = vld [vmem:[%s1 + $0xa0] sm:$0xff]
        %v3257 = vld [vmem:[%s1 + $0xa8] sm:$0xff]
        %v3258 = vld [vmem:[%s1 + $0xb0] sm:$0xff]
        %v3259 = vld [vmem:[%s1 + $0xb8] sm:$0xff]
        %v3260 = vld [vmem:[%s1 + $0xc0] sm:$0xff]
        %v3261 = vld [vmem:[%s1 + $0xc8] sm:$0xff]
        %v3262 = vld [vmem:[%s1 + $0xd0] sm:$0xff]
        %v3263 = vld [vmem:[%s1 + $0xd8] sm:$0xff]
        %v3264 = vld [vmem:[%s1 + $0xe0] sm:$0xff]
        %v3265 = vld [vmem:[%s1 + $0xe8] sm:$0xff]
        %v3266 = vld [vmem:[%s1 + $0xf0] sm:$0xff]
        %v3267 = vld [vmem:[%s1 + $0xf8] sm:$0xff]
        %v3268 = vld [vmem:[%s1 + $0x100] sm:$0xff]
        %v3269 = vld [vmem:[%s1 + $0x108] sm:$0xff]
        %v3270 = vld [vmem:[%s1 + $0x110] sm:$0xff]
        %v3271 = vld [vmem:[%s1 + $0x118] sm:$0xff]
        %v3272 = vld [vmem:[%s1 + $0x120] sm:$0xff]
        %v3273 = vld [vmem:[%s1 + $0x128] sm:$0xff]
        %v3274 = vld [vmem:[%s1 + $0x130] sm:$0xff]
        %v3275 = vld [vmem:[%s1 + $0x138] sm:$0xff]
        %v3276 = vld [vmem:[%s1 + $0x140] sm:$0xff]
        %v3277 = vld [vmem:[%s1 + $0x148] sm:$0xff]
        %v3278 = vld [vmem:[%s1 + $0x150] sm:$0xff]
        %v3279 = vld [vmem:[%s1 + $0x158] sm:$0xff]
        %v3280 = vld [vmem:[%s1 + $0x160] sm:$0xff]
        %v3281 = vld [vmem:[%s1 + $0x168] sm:$0xff]
        %v3282 = vld [vmem:[%s1 + $0x170] sm:$0xff]
        %v3283 = vld [vmem:[%s1 + $0x178] sm:$0xff]
        %v3284 = vld [vmem:[%s1 + $0x180] sm:$0xff]
        %v3285 = vld [vmem:[%s1 + $0x188] sm:$0xff]
        %v3286 = vld [vmem:[%s1 + $0x190] sm:$0xff]
        %v3287 = vld [vmem:[%s1 + $0x198] sm:$0xff]
        %v3288 = vld [vmem:[%s1 + $0x1a0] sm:$0xff]
        %v3289 = vld [vmem:[%s1 + $0x1a8] sm:$0xff]
        %v3290 = vld [vmem:[%s1 + $0x1b0] sm:$0xff]
        %v3291 = vld [vmem:[%s1 + $0x1b8] sm:$0xff]
        %v3292 = vld [vmem:[%s1 + $0x1c0] sm:$0xff]
        %v3293 = vld [vmem:[%s1 + $0x1c8] sm:$0xff]
        %v3294 = vld [vmem:[%s1 + $0x1d0] sm:$0xff]
        %v3295 = vld [vmem:[%s1 + $0x1d8] sm:$0xff]
        %v3296 = vld [vmem:[%s1 + $0x1e0] sm:$0xff]
        %v3297 = vld [vmem:[%s1 + $0x1e8] sm:$0xff]
        %v3298 = vld [vmem:[%s1 + $0x1f0] sm:$0xff]
        %v3299 = vld [vmem:[%s1 + $0x1f8] sm:$0xff]
        %v3300 = vld [vmem:[%s1 + $0x200] sm:$0xff]
        %v3301 = vld [vmem:[%s1 + $0x208] sm:$0xff]
        %v3302 = vld [vmem:[%s1 + $0x210] sm:$0xff]
        %v3303 = vld [vmem:[%s1 + $0x218] sm:$0xff]
        %v3304 = vld [vmem:[%s1 + $0x220] sm:$0xff]
        %v3305 = vld [vmem:[%s1 + $0x228] sm:$0xff]
        %v3306 = vld [vmem:[%s1 + $0x230] sm:$0xff]
        %v3307 = vld [vmem:[%s1 + $0x238] sm:$0xff]
        %v3308 = vld [vmem:[%s1 + $0x240] sm:$0xff]
        %v3309 = vld [vmem:[%s1 + $0x248] sm:$0xff]
        %v3310 = vld [vmem:[%s1 + $0x250] sm:$0xff]
        %v3311 = vld [vmem:[%s1 + $0x258] sm:$0xff]
        %v3312 = vld [vmem:[%s1 + $0x260] sm:$0xff]
        %v3313 = vld [vmem:[%s1 + $0x268] sm:$0xff]
        %v3314 = vld [vmem:[%s1 + $0x270] sm:$0xff]
        %v3315 = vld [vmem:[%s1 + $0x278] sm:$0xff]
        %v3316 = vld [vmem:[%s1 + $0x280] sm:$0xff]
        %v3317 = vld [vmem:[%s1 + $0x288] sm:$0xff]
        %v3318 = vld [vmem:[%s1 + $0x290] sm:$0xff]
        %v3319 = vld [vmem:[%s1 + $0x298] sm:$0xff]
        %v3320 = vld [vmem:[%s1 + $0x2a0] sm:$0xff]
        %v3321 = vld [vmem:[%s1 + $0x2a8] sm:$0xff]
        %v3322 = vld [vmem:[%s1 + $0x2b0] sm:$0xff]
        %v3323 = vld [vmem:[%s1 + $0x2b8] sm:$0xff]
        %v3324 = vld [vmem:[%s1 + $0x2c0] sm:$0xff]
        %v3325 = vld [vmem:[%s1 + $0x2c8] sm:$0xff]
        %v3326 = vld [vmem:[%s1 + $0x2d0] sm:$0xff]
        %v3327 = vld [vmem:[%s1 + $0x2d8] sm:$0xff]
        %v3328 = vld [vmem:[%s1 + $0x2e0] sm:$0xff]
        %v3329 = vld [vmem:[%s1 + $0x2e8] sm:$0xff]
        %v3330 = vld [vmem:[%s1 + $0x2f0] sm:$0xff]
        %v3331 = vld [vmem:[%s1 + $0x2f8] sm:$0xff]
        %v3332 = vld [vmem:[%s1 + $0x300] sm:$0xff]
        %v3333 = vld [vmem:[%s1 + $0x308] sm:$0xff]
        %v3334 = vld [vmem:[%s1 + $0x310] sm:$0xff]
        %v3335 = vld [vmem:[%s1 + $0x318] sm:$0xff]
        %v3336 = vld [vmem:[%s1 + $0x320] sm:$0xff]
        %v3337 = vld [vmem:[%s1 + $0x328] sm:$0xff]
        %v3338 = vld [vmem:[%s1 + $0x330] sm:$0xff]
        %v3339 = vld [vmem:[%s1 + $0x338] sm:$0xff]
        %v3340 = vld [vmem:[%s1 + $0x340] sm:$0xff]
        %v3341 = vld [vmem:[%s1 + $0x348] sm:$0xff]
        %v3342 = vld [vmem:[%s1 + $0x350] sm:$0xff]
        %v3343 = vld [vmem:[%s1 + $0x358] sm:$0xff]
        %v3344 = vld [vmem:[%s1 + $0x360] sm:$0xff]
        %v3345 = vld [vmem:[%s1 + $0x368] sm:$0xff]
        %v3346 = vld [vmem:[%s1 + $0x370] sm:$0xff]
        %v3347 = vld [vmem:[%s1 + $0x378] sm:$0xff]
        %v3348 = vld [vmem:[%s1 + $0x380] sm:$0xff]
        %v3349 = vld [vmem:[%s1 + $0x388] sm:$0xff]
        %v3350 = vld [vmem:[%s1 + $0x390] sm:$0xff]
        %v3351 = vld [vmem:[%s1 + $0x398] sm:$0xff]
        %v3352 = vld [vmem:[%s1 + $0x3a0] sm:$0xff]
        %v3353 = vld [vmem:[%s1 + $0x3a8] sm:$0xff]
        %v3354 = vld [vmem:[%s1 + $0x3b0] sm:$0xff]
        %v3355 = vld [vmem:[%s1 + $0x3b8] sm:$0xff]
        %v3356 = vld [vmem:[%s1 + $0x3c0] sm:$0xff]
        %v3357 = vld [vmem:[%s1 + $0x3c8] sm:$0xff]
        %v3358 = vld [vmem:[%s1 + $0x3d0] sm:$0xff]
        %v3359 = vld [vmem:[%s1 + $0x3d8] sm:$0xff]
        %v3360 = vld [vmem:[%s1 + $0x3e0] sm:$0xff]
        %v3361 = vld [vmem:[%s1 + $0x3e8] sm:$0xff]
        %v3362 = vld [vmem:[%s1 + $0x3f0] sm:$0xff]
        %v3363 = vld [vmem:[%s1 + $0x3f8] sm:$0xff]
        %v3364 = vld [vmem:[%s1 + $0x400] sm:$0xff]
        %v3365 = vld [vmem:[%s1 + $0x408] sm:$0xff]
        %v3366 = vld [vmem:[%s1 + $0x410] sm:$0xff]
        %v3367 = vld [vmem:[%s1 + $0x418] sm:$0xff]
        %v3368 = vld [vmem:[%s1 + $0x420] sm:$0xff]
        %v3369 = vld [vmem:[%s1 + $0x428] sm:$0xff]
        %v3370 = vld [vmem:[%s1 + $0x430] sm:$0xff]
        %v3371 = vld [vmem:[%s1 + $0x438] sm:$0xff]
        %v3372 = vld [vmem:[%s1 + $0x440] sm:$0xff]
        %v3373 = vld [vmem:[%s1 + $0x448] sm:$0xff]
        %v3374 = vld [vmem:[%s1 + $0x450] sm:$0xff]
        %v3375 = vld [vmem:[%s1 + $0x458] sm:$0xff]
        %v3376 = vld [vmem:[%s1 + $0x460] sm:$0xff]
        %v3377 = vld [vmem:[%s1 + $0x468] sm:$0xff]
        %v3378 = vld [vmem:[%s1 + $0x470] sm:$0xff]
        %v3379 = vld [vmem:[%s1 + $0x478] sm:$0xff]
        %v3380 = vld [vmem:[%s1 + $0x480] sm:$0xff]
        %v3381 = vld [vmem:[%s1 + $0x488] sm:$0xff]
        %v3382 = vld [vmem:[%s1 + $0x490] sm:$0xff]
        %v3383 = vld [vmem:[%s1 + $0x498] sm:$0xff]
        %v3384 = vld [vmem:[%s1 + $0x4a0] sm:$0xff]
        %v3385 = vld [vmem:[%s1 + $0x4a8] sm:$0xff]
        %v3386 = vld [vmem:[%s1 + $0x4b0] sm:$0xff]
        %v3387 = vld [vmem:[%s1 + $0x4b8] sm:$0xff]
        %v3388 = vld [vmem:[%s1 + $0x4c0] sm:$0xff]
        %v3389 = vld [vmem:[%s1 + $0x4c8] sm:$0xff]
        %v3390 = vld [vmem:[%s1 + $0x4d0] sm:$0xff]
        %v3391 = vld [vmem:[%s1 + $0x4d8] sm:$0xff]
        %v3392 = vld [vmem:[%s1 + $0x4e0] sm:$0xff]
        %v3393 = vld [vmem:[%s1 + $0x4e8] sm:$0xff]
        %v3394 = vld [vmem:[%s1 + $0x4f0] sm:$0xff]
        %v3395 = vld [vmem:[%s1 + $0x4f8] sm:$0xff]
        %v3396 = vld [vmem:[%s1 + $0x500] sm:$0xff]
        %v3397 = vld [vmem:[%s1 + $0x508] sm:$0xff]
        %v3398 = vld [vmem:[%s1 + $0x510] sm:$0xff]
        %v3399 = vld [vmem:[%s1 + $0x518] sm:$0xff]
        %v3400 = vld [vmem:[%s1 + $0x520] sm:$0xff]
        %v3401 = vld [vmem:[%s1 + $0x528] sm:$0xff]
        %v3402 = vld [vmem:[%s1 + $0x530] sm:$0xff]
        %v3403 = vld [vmem:[%s1 + $0x538] sm:$0xff]
        %v3404 = vmul.f32 %v3068, %v3236
        %v3405 = vmul.f32 %v3069, %v3237
        %v3406 = vmul.f32 %v3070, %v3238
        %v3407 = vmul.f32 %v3071, %v3239
        %v3408 = vmul.f32 %v3072, %v3240
        %v3409 = vmul.f32 %v3073, %v3241
        %v3410 = vmul.f32 %v3074, %v3242
        %v3411 = vmul.f32 %v3075, %v3243
        %v3412 = vmul.f32 %v3076, %v3244
        %v3413 = vmul.f32 %v3077, %v3245
        %v3414 = vmul.f32 %v3078, %v3246
        %v3415 = vmul.f32 %v3079, %v3247
        %v3416 = vmul.f32 %v3080, %v3248
        %v3417 = vmul.f32 %v3081, %v3249
        %v3418 = vmul.f32 %v3082, %v3250
        %v3419 = vmul.f32 %v3083, %v3251
        %v3420 = vmul.f32 %v3084, %v3252
        %v3421 = vmul.f32 %v3085, %v3253
        %v3422 = vmul.f32 %v3086, %v3254
        %v3423 = vmul.f32 %v3087, %v3255
        %v3424 = vmul.f32 %v3088, %v3256
        %v3425 = vmul.f32 %v3089, %v3257
        %v3426 = vmul.f32 %v3090, %v3258
        %v3427 = vmul.f32 %v3091, %v3259
        %v3428 = vmul.f32 %v3092, %v3260
        %v3429 = vmul.f32 %v3093, %v3261
        %v3430 = vmul.f32 %v3094, %v3262
        %v3431 = vmul.f32 %v3095, %v3263
        %v3432 = vmul.f32 %v3096, %v3264
        %v3433 = vmul.f32 %v3097, %v3265
        %v3434 = vmul.f32 %v3098, %v3266
        %v3435 = vmul.f32 %v3099, %v3267
        %v3436 = vmul.f32 %v3100, %v3268
        %v3437 = vmul.f32 %v3101, %v3269
        %v3438 = vmul.f32 %v3102, %v3270
        %v3439 = vmul.f32 %v3103, %v3271
        %v3440 = vmul.f32 %v3104, %v3272
        %v3441 = vmul.f32 %v3105, %v3273
        %v3442 = vmul.f32 %v3106, %v3274
        %v3443 = vmul.f32 %v3107, %v3275
        %v3444 = vmul.f32 %v3108, %v3276
        %v3445 = vmul.f32 %v3109, %v3277
        %v3446 = vmul.f32 %v3110, %v3278
        %v3447 = vmul.f32 %v3111, %v3279
        %v3448 = vmul.f32 %v3112, %v3280
        %v3449 = vmul.f32 %v3113, %v3281
        %v3450 = vmul.f32 %v3114, %v3282
        %v3451 = vmul.f32 %v3115, %v3283
        %v3452 = vmul.f32 %v3116, %v3284
        %v3453 = vmul.f32 %v3117, %v3285
        %v3454 = vmul.f32 %v3118, %v3286
        %v3455 = vmul.f32 %v3119, %v3287
        %v3456 = vmul.f32 %v3120, %v3288
        %v3457 = vmul.f32 %v3121, %v3289
        %v3458 = vmul.f32 %v3122, %v3290
        %v3459 = vmul.f32 %v3123, %v3291
        %v3460 = vmul.f32 %v3124, %v3292
        %v3461 = vmul.f32 %v3125, %v3293
        %v3462 = vmul.f32 %v3126, %v3294
        %v3463 = vmul.f32 %v3127, %v3295
        %v3464 = vmul.f32 %v3128, %v3296
        %v3465 = vmul.f32 %v3129, %v3297
        %v3466 = vmul.f32 %v3130, %v3298
        %v3467 = vmul.f32 %v3131, %v3299
        %v3468 = vmul.f32 %v3132, %v3300
        %v3469 = vmul.f32 %v3133, %v3301
        %v3470 = vmul.f32 %v3134, %v3302
        %v3471 = vmul.f32 %v3135, %v3303
        %v3472 = vmul.f32 %v3136, %v3304
        %v3473 = vmul.f32 %v3137, %v3305
        %v3474 = vmul.f32 %v3138, %v3306
        %v3475 = vmul.f32 %v3139, %v3307
        %v3476 = vmul.f32 %v3140, %v3308
        %v3477 = vmul.f32 %v3141, %v3309
        %v3478 = vmul.f32 %v3142, %v3310
        %v3479 = vmul.f32 %v3143, %v3311
        %v3480 = vmul.f32 %v3144, %v3312
        %v3481 = vmul.f32 %v3145, %v3313
        %v3482 = vmul.f32 %v3146, %v3314
        %v3483 = vmul.f32 %v3147, %v3315
        %v3484 = vmul.f32 %v3148, %v3316
        %v3485 = vmul.f32 %v3149, %v3317
        %v3486 = vmul.f32 %v3150, %v3318
        %v3487 = vmul.f32 %v3151, %v3319
        %v3488 = vmul.f32 %v3152, %v3320
        %v3489 = vmul.f32 %v3153, %v3321
        %v3490 = vmul.f32 %v3154, %v3322
        %v3491 = vmul.f32 %v3155, %v3323
        %v3492 = vmul.f32 %v3156, %v3324
        %v3493 = vmul.f32 %v3157, %v3325
        %v3494 = vmul.f32 %v3158, %v3326
        %v3495 = vmul.f32 %v3159, %v3327
        %v3496 = vmul.f32 %v3160, %v3328
        %v3497 = vmul.f32 %v3161, %v3329
        %v3498 = vmul.f32 %v3162, %v3330
        %v3499 = vmul.f32 %v3163, %v3331
        %v3500 = vmul.f32 %v3164, %v3332
        %v3501 = vmul.f32 %v3165, %v3333
        %v3502 = vmul.f32 %v3166, %v3334
        %v3503 = vmul.f32 %v3167, %v3335
        %v3504 = vmul.f32 %v3168, %v3336
        %v3505 = vmul.f32 %v3169, %v3337
        %v3506 = vmul.f32 %v3170, %v3338
        %v3507 = vmul.f32 %v3171, %v3339
        %v3508 = vmul.f32 %v3172, %v3340
        %v3509 = vmul.f32 %v3173, %v3341
        %v3510 = vmul.f32 %v3174, %v3342
        %v3511 = vmul.f32 %v3175, %v3343
        %v3512 = vmul.f32 %v3176, %v3344
        %v3513 = vmul.f32 %v3177, %v3345
        %v3514 = vmul.f32 %v3178, %v3346
        %v3515 = vmul.f32 %v3179, %v3347
        %v3516 = vmul.f32 %v3180, %v3348
        %v3517 = vmul.f32 %v3181, %v3349
        %v3518 = vmul.f32 %v3182, %v3350
        %v3519 = vmul.f32 %v3183, %v3351
        %v3520 = vmul.f32 %v3184, %v3352
        %v3521 = vmul.f32 %v3185, %v3353
        %v3522 = vmul.f32 %v3186, %v3354
        %v3523 = vmul.f32 %v3187, %v3355
        %v3524 = vmul.f32 %v3188, %v3356
        %v3525 = vmul.f32 %v3189, %v3357
        %v3526 = vmul.f32 %v3190, %v3358
        %v3527 = vmul.f32 %v3191, %v3359
        %v3528 = vmul.f32 %v3192, %v3360
        %v3529 = vmul.f32 %v3193, %v3361
        %v3530 = vmul.f32 %v3194, %v3362
        %v3531 = vmul.f32 %v3195, %v3363
        %v3532 = vmul.f32 %v3196, %v3364
        %v3533 = vmul.f32 %v3197, %v3365
        %v3534 = vmul.f32 %v3198, %v3366
        %v3535 = vmul.f32 %v3199, %v3367
        %v3536 = vmul.f32 %v3200, %v3368
        %v3537 = vmul.f32 %v3201, %v3369
        %v3538 = vmul.f32 %v3202, %v3370
        %v3539 = vmul.f32 %v3203, %v3371
        %v3540 = vmul.f32 %v3204, %v3372
        %v3541 = vmul.f32 %v3205, %v3373
        %v3542 = vmul.f32 %v3206, %v3374
        %v3543 = vmul.f32 %v3207, %v3375
        %v3544 = vmul.f32 %v3208, %v3376
        %v3545 = vmul.f32 %v3209, %v3377
        %v3546 = vmul.f32 %v3210, %v3378
        %v3547 = vmul.f32 %v3211, %v3379
        %v3548 = vmul.f32 %v3212, %v3380
        %v3549 = vmul.f32 %v3213, %v3381
        %v3550 = vmul.f32 %v3214, %v3382
        %v3551 = vmul.f32 %v3215, %v3383
        %v3552 = vmul.f32 %v3216, %v3384
        %v3553 = vmul.f32 %v3217, %v3385
        %v3554 = vmul.f32 %v3218, %v3386
        %v3555 = vmul.f32 %v3219, %v3387
        %v3556 = vmul.f32 %v3220, %v3388
        %v3557 = vmul.f32 %v3221, %v3389
        %v3558 = vmul.f32 %v3222, %v3390
        %v3559 = vmul.f32 %v3223, %v3391
        %v3560 = vmul.f32 %v3224, %v3392
        %v3561 = vmul.f32 %v3225, %v3393
        %v3562 = vmul.f32 %v3226, %v3394
        %v3563 = vmul.f32 %v3227, %v3395
        %v3564 = vmul.f32 %v3228, %v3396
        %v3565 = vmul.f32 %v3229, %v3397
        %v3566 = vmul.f32 %v3230, %v3398
        %v3567 = vmul.f32 %v3231, %v3399
        %v3568 = vmul.f32 %v3232, %v3400
        %v3569 = vmul.f32 %v3233, %v3401
        %v3570 = vmul.f32 %v3234, %v3402
        %v3571 = vmul.f32 %v3235, %v3403
        %v3572 = vld [vmem:[%s2] sm:$0xff]
        %v3573 = vld [vmem:[%s2 + $0x8] sm:$0xff]
        %v3574 = vld [vmem:[%s2 + $0x10] sm:$0xff]
        %v3575 = vld [vmem:[%s2 + $0x18] sm:$0xff]
        %v3576 = vld [vmem:[%s2 + $0x20] sm:$0xff]
        %v3577 = vld [vmem:[%s2 + $0x28] sm:$0xff]
        %v3578 = vld [vmem:[%s2 + $0x30] sm:$0xff]
        %v3579 = vld [vmem:[%s2 + $0x38] sm:$0xff]
        %v3580 = vld [vmem:[%s2 + $0x40] sm:$0xff]
        %v3581 = vld [vmem:[%s2 + $0x48] sm:$0xff]
        %v3582 = vld [vmem:[%s2 + $0x50] sm:$0xff]
        %v3583 = vld [vmem:[%s2 + $0x58] sm:$0xff]
        %v3584 = vld [vmem:[%s2 + $0x60] sm:$0xff]
        %v3585 = vld [vmem:[%s2 + $0x68] sm:$0xff]
        %v3586 = vld [vmem:[%s2 + $0x70] sm:$0xff]
        %v3587 = vld [vmem:[%s2 + $0x78] sm:$0xff]
        %v3588 = vld [vmem:[%s2 + $0x80] sm:$0xff]
        %v3589 = vld [vmem:[%s2 + $0x88] sm:$0xff]
        %v3590 = vld [vmem:[%s2 + $0x90] sm:$0xff]
        %v3591 = vld [vmem:[%s2 + $0x98] sm:$0xff]
        %v3592 = vld [vmem:[%s2 + $0xa0] sm:$0xff]
        %v3593 = vld [vmem:[%s2 + $0xa8] sm:$0xff]
        %v3594 = vld [vmem:[%s2 + $0xb0] sm:$0xff]
        %v3595 = vld [vmem:[%s2 + $0xb8] sm:$0xff]
        %v3596 = vld [vmem:[%s2 + $0xc0] sm:$0xff]
        %v3597 = vld [vmem:[%s2 + $0xc8] sm:$0xff]
        %v3598 = vld [vmem:[%s2 + $0xd0] sm:$0xff]
        %v3599 = vld [vmem:[%s2 + $0xd8] sm:$0xff]
        %v3600 = vld [vmem:[%s2 + $0xe0] sm:$0xff]
        %v3601 = vld [vmem:[%s2 + $0xe8] sm:$0xff]
        %v3602 = vld [vmem:[%s2 + $0xf0] sm:$0xff]
        %v3603 = vld [vmem:[%s2 + $0xf8] sm:$0xff]
        %v3604 = vld [vmem:[%s2 + $0x100] sm:$0xff]
        %v3605 = vld [vmem:[%s2 + $0x108] sm:$0xff]
        %v3606 = vld [vmem:[%s2 + $0x110] sm:$0xff]
        %v3607 = vld [vmem:[%s2 + $0x118] sm:$0xff]
        %v3608 = vld [vmem:[%s2 + $0x120] sm:$0xff]
        %v3609 = vld [vmem:[%s2 + $0x128] sm:$0xff]
        %v3610 = vld [vmem:[%s2 + $0x130] sm:$0xff]
        %v3611 = vld [vmem:[%s2 + $0x138] sm:$0xff]
        %v3612 = vld [vmem:[%s2 + $0x140] sm:$0xff]
        %v3613 = vld [vmem:[%s2 + $0x148] sm:$0xff]
        %v3614 = vld [vmem:[%s2 + $0x150] sm:$0xff]
        %v3615 = vld [vmem:[%s2 + $0x158] sm:$0xff]
        %v3616 = vld [vmem:[%s2 + $0x160] sm:$0xff]
        %v3617 = vld [vmem:[%s2 + $0x168] sm:$0xff]
        %v3618 = vld [vmem:[%s2 + $0x170] sm:$0xff]
        %v3619 = vld [vmem:[%s2 + $0x178] sm:$0xff]
        %v3620 = vld [vmem:[%s2 + $0x180] sm:$0xff]
        %v3621 = vld [vmem:[%s2 + $0x188] sm:$0xff]
        %v3622 = vld [vmem:[%s2 + $0x190] sm:$0xff]
        %v3623 = vld [vmem:[%s2 + $0x198] sm:$0xff]
        %v3624 = vld [vmem:[%s2 + $0x1a0] sm:$0xff]
        %v3625 = vld [vmem:[%s2 + $0x1a8] sm:$0xff]
        %v3626 = vld [vmem:[%s2 + $0x1b0] sm:$0xff]
        %v3627 = vld [vmem:[%s2 + $0x1b8] sm:$0xff]
        %v3628 = vld [vmem:[%s2 + $0x1c0] sm:$0xff]
        %v3629 = vld [vmem:[%s2 + $0x1c8] sm:$0xff]
        %v3630 = vld [vmem:[%s2 + $0x1d0] sm:$0xff]
        %v3631 = vld [vmem:[%s2 + $0x1d8] sm:$0xff]
        %v3632 = vld [vmem:[%s2 + $0x1e0] sm:$0xff]
        %v3633 = vld [vmem:[%s2 + $0x1e8] sm:$0xff]
        %v3634 = vld [vmem:[%s2 + $0x1f0] sm:$0xff]
        %v3635 = vld [vmem:[%s2 + $0x1f8] sm:$0xff]
        %v3636 = vld [vmem:[%s2 + $0x200] sm:$0xff]
        %v3637 = vld [vmem:[%s2 + $0x208] sm:$0xff]
        %v3638 = vld [vmem:[%s2 + $0x210] sm:$0xff]
        %v3639 = vld [vmem:[%s2 + $0x218] sm:$0xff]
        %v3640 = vld [vmem:[%s2 + $0x220] sm:$0xff]
        %v3641 = vld [vmem:[%s2 + $0x228] sm:$0xff]
        %v3642 = vld [vmem:[%s2 + $0x230] sm:$0xff]
        %v3643 = vld [vmem:[%s2 + $0x238] sm:$0xff]
        %v3644 = vld [vmem:[%s2 + $0x240] sm:$0xff]
        %v3645 = vld [vmem:[%s2 + $0x248] sm:$0xff]
        %v3646 = vld [vmem:[%s2 + $0x250] sm:$0xff]
        %v3647 = vld [vmem:[%s2 + $0x258] sm:$0xff]
        %v3648 = vld [vmem:[%s2 + $0x260] sm:$0xff]
        %v3649 = vld [vmem:[%s2 + $0x268] sm:$0xff]
        %v3650 = vld [vmem:[%s2 + $0x270] sm:$0xff]
        %v3651 = vld [vmem:[%s2 + $0x278] sm:$0xff]
        %v3652 = vld [vmem:[%s2 + $0x280] sm:$0xff]
        %v3653 = vld [vmem:[%s2 + $0x288] sm:$0xff]
        %v3654 = vld [vmem:[%s2 + $0x290] sm:$0xff]
        %v3655 = vld [vmem:[%s2 + $0x298] sm:$0xff]
        %v3656 = vld [vmem:[%s2 + $0x2a0] sm:$0xff]
        %v3657 = vld [vmem:[%s2 + $0x2a8] sm:$0xff]
        %v3658 = vld [vmem:[%s2 + $0x2b0] sm:$0xff]
        %v3659 = vld [vmem:[%s2 + $0x2b8] sm:$0xff]
        %v3660 = vld [vmem:[%s2 + $0x2c0] sm:$0xff]
        %v3661 = vld [vmem:[%s2 + $0x2c8] sm:$0xff]
        %v3662 = vld [vmem:[%s2 + $0x2d0] sm:$0xff]
        %v3663 = vld [vmem:[%s2 + $0x2d8] sm:$0xff]
        %v3664 = vld [vmem:[%s2 + $0x2e0] sm:$0xff]
        %v3665 = vld [vmem:[%s2 + $0x2e8] sm:$0xff]
        %v3666 = vld [vmem:[%s2 + $0x2f0] sm:$0xff]
        %v3667 = vld [vmem:[%s2 + $0x2f8] sm:$0xff]
        %v3668 = vld [vmem:[%s2 + $0x300] sm:$0xff]
        %v3669 = vld [vmem:[%s2 + $0x308] sm:$0xff]
        %v3670 = vld [vmem:[%s2 + $0x310] sm:$0xff]
        %v3671 = vld [vmem:[%s2 + $0x318] sm:$0xff]
        %v3672 = vld [vmem:[%s2 + $0x320] sm:$0xff]
        %v3673 = vld [vmem:[%s2 + $0x328] sm:$0xff]
        %v3674 = vld [vmem:[%s2 + $0x330] sm:$0xff]
        %v3675 = vld [vmem:[%s2 + $0x338] sm:$0xff]
        %v3676 = vld [vmem:[%s2 + $0x340] sm:$0xff]
        %v3677 = vld [vmem:[%s2 + $0x348] sm:$0xff]
        %v3678 = vld [vmem:[%s2 + $0x350] sm:$0xff]
        %v3679 = vld [vmem:[%s2 + $0x358] sm:$0xff]
        %v3680 = vld [vmem:[%s2 + $0x360] sm:$0xff]
        %v3681 = vld [vmem:[%s2 + $0x368] sm:$0xff]
        %v3682 = vld [vmem:[%s2 + $0x370] sm:$0xff]
        %v3683 = vld [vmem:[%s2 + $0x378] sm:$0xff]
        %v3684 = vld [vmem:[%s2 + $0x380] sm:$0xff]
        %v3685 = vld [vmem:[%s2 + $0x388] sm:$0xff]
        %v3686 = vld [vmem:[%s2 + $0x390] sm:$0xff]
        %v3687 = vld [vmem:[%s2 + $0x398] sm:$0xff]
        %v3688 = vld [vmem:[%s2 + $0x3a0] sm:$0xff]
        %v3689 = vld [vmem:[%s2 + $0x3a8] sm:$0xff]
        %v3690 = vld [vmem:[%s2 + $0x3b0] sm:$0xff]
        %v3691 = vld [vmem:[%s2 + $0x3b8] sm:$0xff]
        %v3692 = vld [vmem:[%s2 + $0x3c0] sm:$0xff]
        %v3693 = vld [vmem:[%s2 + $0x3c8] sm:$0xff]
        %v3694 = vld [vmem:[%s2 + $0x3d0] sm:$0xff]
        %v3695 = vld [vmem:[%s2 + $0x3d8] sm:$0xff]
        %v3696 = vld [vmem:[%s2 + $0x3e0] sm:$0xff]
        %v3697 = vld [vmem:[%s2 + $0x3e8] sm:$0xff]
        %v3698 = vld [vmem:[%s2 + $0x3f0] sm:$0xff]
        %v3699 = vld [vmem:[%s2 + $0x3f8] sm:$0xff]
        %v3700 = vld [vmem:[%s2 + $0x400] sm:$0xff]
        %v3701 = vld [vmem:[%s2 + $0x408] sm:$0xff]
        %v3702 = vld [vmem:[%s2 + $0x410] sm:$0xff]
        %v3703 = vld [vmem:[%s2 + $0x418] sm:$0xff]
        %v3704 = vld [vmem:[%s2 + $0x420] sm:$0xff]
        %v3705 = vld [vmem:[%s2 + $0x428] sm:$0xff]
        %v3706 = vld [vmem:[%s2 + $0x430] sm:$0xff]
        %v3707 = vld [vmem:[%s2 + $0x438] sm:$0xff]
        %v3708 = vld [vmem:[%s2 + $0x440] sm:$0xff]
        %v3709 = vld [vmem:[%s2 + $0x448] sm:$0xff]
        %v3710 = vld [vmem:[%s2 + $0x450] sm:$0xff]
        %v3711 = vld [vmem:[%s2 + $0x458] sm:$0xff]
        %v3712 = vld [vmem:[%s2 + $0x460] sm:$0xff]
        %v3713 = vld [vmem:[%s2 + $0x468] sm:$0xff]
        %v3714 = vld [vmem:[%s2 + $0x470] sm:$0xff]
        %v3715 = vld [vmem:[%s2 + $0x478] sm:$0xff]
        %v3716 = vld [vmem:[%s2 + $0x480] sm:$0xff]
        %v3717 = vld [vmem:[%s2 + $0x488] sm:$0xff]
        %v3718 = vld [vmem:[%s2 + $0x490] sm:$0xff]
        %v3719 = vld [vmem:[%s2 + $0x498] sm:$0xff]
        %v3720 = vld [vmem:[%s2 + $0x4a0] sm:$0xff]
        %v3721 = vld [vmem:[%s2 + $0x4a8] sm:$0xff]
        %v3722 = vld [vmem:[%s2 + $0x4b0] sm:$0xff]
        %v3723 = vld [vmem:[%s2 + $0x4b8] sm:$0xff]
        %v3724 = vld [vmem:[%s2 + $0x4c0] sm:$0xff]
        %v3725 = vld [vmem:[%s2 + $0x4c8] sm:$0xff]
        %v3726 = vld [vmem:[%s2 + $0x4d0] sm:$0xff]
        %v3727 = vld [vmem:[%s2 + $0x4d8] sm:$0xff]
        %v3728 = vld [vmem:[%s2 + $0x4e0] sm:$0xff]
        %v3729 = vld [vmem:[%s2 + $0x4e8] sm:$0xff]
        %v3730 = vld [vmem:[%s2 + $0x4f0] sm:$0xff]
        %v3731 = vld [vmem:[%s2 + $0x4f8] sm:$0xff]
        %v3732 = vld [vmem:[%s2 + $0x500] sm:$0xff]
        %v3733 = vld [vmem:[%s2 + $0x508] sm:$0xff]
        %v3734 = vld [vmem:[%s2 + $0x510] sm:$0xff]
        %v3735 = vld [vmem:[%s2 + $0x518] sm:$0xff]
        %v3736 = vld [vmem:[%s2 + $0x520] sm:$0xff]
        %v3737 = vld [vmem:[%s2 + $0x528] sm:$0xff]
        %v3738 = vld [vmem:[%s2 + $0x530] sm:$0xff]
        %v3739 = vld [vmem:[%s2 + $0x538] sm:$0xff]
        %v3740 = vmul.f32 %v1220, %v3404
        %v3741 = vmul.f32 %v1221, %v3405
        %v3742 = vmul.f32 %v1222, %v3406
        %v3743 = vmul.f32 %v1223, %v3407
        %v3744 = vmul.f32 %v1224, %v3408
        %v3745 = vmul.f32 %v1225, %v3409
        %v3746 = vmul.f32 %v1226, %v3410
        %v3747 = vmul.f32 %v1227, %v3411
        %v3748 = vmul.f32 %v1228, %v3412
        %v3749 = vmul.f32 %v1229, %v3413
        %v3750 = vmul.f32 %v1230, %v3414
        %v3751 = vmul.f32 %v1231, %v3415
        %v3752 = vmul.f32 %v1232, %v3416
        %v3753 = vmul.f32 %v1233, %v3417
        %v3754 = vmul.f32 %v1234, %v3418
        %v3755 = vmul.f32 %v1235, %v3419
        %v3756 = vmul.f32 %v1236, %v3420
        %v3757 = vmul.f32 %v1237, %v3421
        %v3758 = vmul.f32 %v1238, %v3422
        %v3759 = vmul.f32 %v1239, %v3423
        %v3760 = vmul.f32 %v1240, %v3424
        %v3761 = vmul.f32 %v1241, %v3425
        %v3762 = vmul.f32 %v1242, %v3426
        %v3763 = vmul.f32 %v1243, %v3427
        %v3764 = vmul.f32 %v1244, %v3428
        %v3765 = vmul.f32 %v1245, %v3429
        %v3766 = vmul.f32 %v1246, %v3430
        %v3767 = vmul.f32 %v1247, %v3431
        %v3768 = vmul.f32 %v1248, %v3432
        %v3769 = vmul.f32 %v1249, %v3433
        %v3770 = vmul.f32 %v1250, %v3434
        %v3771 = vmul.f32 %v1251, %v3435
        %v3772 = vmul.f32 %v1252, %v3436
        %v3773 = vmul.f32 %v1253, %v3437
        %v3774 = vmul.f32 %v1254, %v3438
        %v3775 = vmul.f32 %v1255, %v3439
        %v3776 = vmul.f32 %v1256, %v3440
        %v3777 = vmul.f32 %v1257, %v3441
        %v3778 = vmul.f32 %v1258, %v3442
        %v3779 = vmul.f32 %v1259, %v3443
        %v3780 = vmul.f32 %v1260, %v3444
        %v3781 = vmul.f32 %v1261, %v3445
        %v3782 = vmul.f32 %v1262, %v3446
        %v3783 = vmul.f32 %v1263, %v3447
        %v3784 = vmul.f32 %v1264, %v3448
        %v3785 = vmul.f32 %v1265, %v3449
        %v3786 = vmul.f32 %v1266, %v3450
        %v3787 = vmul.f32 %v1267, %v3451
        %v3788 = vmul.f32 %v1268, %v3452
        %v3789 = vmul.f32 %v1269, %v3453
        %v3790 = vmul.f32 %v1270, %v3454
        %v3791 = vmul.f32 %v1271, %v3455
        %v3792 = vmul.f32 %v1272, %v3456
        %v3793 = vmul.f32 %v1273, %v3457
        %v3794 = vmul.f32 %v1274, %v3458
        %v3795 = vmul.f32 %v1275, %v3459
        %v3796 = vmul.f32 %v1276, %v3460
        %v3797 = vmul.f32 %v1277, %v3461
        %v3798 = vmul.f32 %v1278, %v3462
        %v3799 = vmul.f32 %v1279, %v3463
        %v3800 = vmul.f32 %v1280, %v3464
        %v3801 = vmul.f32 %v1281, %v3465
        %v3802 = vmul.f32 %v1282, %v3466
        %v3803 = vmul.f32 %v1283, %v3467
        %v3804 = vmul.f32 %v1284, %v3468
        %v3805 = vmul.f32 %v1285, %v3469
        %v3806 = vmul.f32 %v1286, %v3470
        %v3807 = vmul.f32 %v1287, %v3471
        %v3808 = vmul.f32 %v1288, %v3472
        %v3809 = vmul.f32 %v1289, %v3473
        %v3810 = vmul.f32 %v1290, %v3474
        %v3811 = vmul.f32 %v1291, %v3475
        %v3812 = vmul.f32 %v1292, %v3476
        %v3813 = vmul.f32 %v1293, %v3477
        %v3814 = vmul.f32 %v1294, %v3478
        %v3815 = vmul.f32 %v1295, %v3479
        %v3816 = vmul.f32 %v1296, %v3480
        %v3817 = vmul.f32 %v1297, %v3481
        %v3818 = vmul.f32 %v1298, %v3482
        %v3819 = vmul.f32 %v1299, %v3483
        %v3820 = vmul.f32 %v1300, %v3484
        %v3821 = vmul.f32 %v1301, %v3485
        %v3822 = vmul.f32 %v1302, %v3486
        %v3823 = vmul.f32 %v1303, %v3487
        %v3824 = vmul.f32 %v1304, %v3488
        %v3825 = vmul.f32 %v1305, %v3489
        %v3826 = vmul.f32 %v1306, %v3490
        %v3827 = vmul.f32 %v1307, %v3491
        %v3828 = vmul.f32 %v1308, %v3492
        %v3829 = vmul.f32 %v1309, %v3493
        %v3830 = vmul.f32 %v1310, %v3494
        %v3831 = vmul.f32 %v1311, %v3495
        %v3832 = vmul.f32 %v1312, %v3496
        %v3833 = vmul.f32 %v1313, %v3497
        %v3834 = vmul.f32 %v1314, %v3498
        %v3835 = vmul.f32 %v1315, %v3499
        %v3836 = vmul.f32 %v1316, %v3500
        %v3837 = vmul.f32 %v1317, %v3501
        %v3838 = vmul.f32 %v1318, %v3502
        %v3839 = vmul.f32 %v1319, %v3503
        %v3840 = vmul.f32 %v1320, %v3504
        %v3841 = vmul.f32 %v1321, %v3505
        %v3842 = vmul.f32 %v1322, %v3506
        %v3843 = vmul.f32 %v1323, %v3507
        %v3844 = vmul.f32 %v1324, %v3508
        %v3845 = vmul.f32 %v1325, %v3509
        %v3846 = vmul.f32 %v1326, %v3510
        %v3847 = vmul.f32 %v1327, %v3511
        %v3848 = vmul.f32 %v1328, %v3512
        %v3849 = vmul.f32 %v1329, %v3513
        %v3850 = vmul.f32 %v1330, %v3514
        %v3851 = vmul.f32 %v1331, %v3515
        %v3852 = vmul.f32 %v1332, %v3516
        %v3853 = vmul.f32 %v1333, %v3517
        %v3854 = vmul.f32 %v1334, %v3518
        %v3855 = vmul.f32 %v1335, %v3519
        %v3856 = vmul.f32 %v1336, %v3520
        %v3857 = vmul.f32 %v1337, %v3521
        %v3858 = vmul.f32 %v1338, %v3522
        %v3859 = vmul.f32 %v1339, %v3523
        %v3860 = vmul.f32 %v1340, %v3524
        %v3861 = vmul.f32 %v1341, %v3525
        %v3862 = vmul.f32 %v1342, %v3526
        %v3863 = vmul.f32 %v1343, %v3527
        %v3864 = vmul.f32 %v1344, %v3528
        %v3865 = vmul.f32 %v1345, %v3529
        %v3866 = vmul.f32 %v1346, %v3530
        %v3867 = vmul.f32 %v1347, %v3531
        %v3868 = vmul.f32 %v1348, %v3532
        %v3869 = vmul.f32 %v1349, %v3533
        %v3870 = vmul.f32 %v1350, %v3534
        %v3871 = vmul.f32 %v1351, %v3535
        %v3872 = vmul.f32 %v1352, %v3536
        %v3873 = vmul.f32 %v1353, %v3537
        %v3874 = vmul.f32 %v1354, %v3538
        %v3875 = vmul.f32 %v1355, %v3539
        %v3876 = vmul.f32 %v1356, %v3540
        %v3877 = vmul.f32 %v1357, %v3541
        %v3878 = vmul.f32 %v1358, %v3542
        %v3879 = vmul.f32 %v1359, %v3543
        %v3880 = vmul.f32 %v1360, %v3544
        %v3881 = vmul.f32 %v1361, %v3545
        %v3882 = vmul.f32 %v1362, %v3546
        %v3883 = vmul.f32 %v1363, %v3547
        %v3884 = vmul.f32 %v1364, %v3548
        %v3885 = vmul.f32 %v1365, %v3549
        %v3886 = vmul.f32 %v1366, %v3550
        %v3887 = vmul.f32 %v1367, %v3551
        %v3888 = vmul.f32 %v1368, %v3552
        %v3889 = vmul.f32 %v1369, %v3553
        %v3890 = vmul.f32 %v1370, %v3554
        %v3891 = vmul.f32 %v1371, %v3555
        %v3892 = vmul.f32 %v1372, %v3556
        %v3893 = vmul.f32 %v1373, %v3557
        %v3894 = vmul.f32 %v1374, %v3558
        %v3895 = vmul.f32 %v1375, %v3559
        %v3896 = vmul.f32 %v1376, %v3560
        %v3897 = vmul.f32 %v1377, %v3561
        %v3898 = vmul.f32 %v1378, %v3562
        %v3899 = vmul.f32 %v1379, %v3563
        %v3900 = vmul.f32 %v1380, %v3564
        %v3901 = vmul.f32 %v1381, %v3565
        %v3902 = vmul.f32 %v1382, %v3566
        %v3903 = vmul.f32 %v1383, %v3567
        %v3904 = vmul.f32 %v1384, %v3568
        %v3905 = vmul.f32 %v1385, %v3569
        %v3906 = vmul.f32 %v1386, %v3570
        %v3907 = vmul.f32 %v1387, %v3571
        %v3908 = vsub.f32 %v3572, %v3740
        %v3909 = vsub.f32 %v3573, %v3741
        %v3910 = vsub.f32 %v3574, %v3742
        %v3911 = vsub.f32 %v3575, %v3743
        %v3912 = vsub.f32 %v3576, %v3744
        %v3913 = vsub.f32 %v3577, %v3745
        %v3914 = vsub.f32 %v3578, %v3746
        %v3915 = vsub.f32 %v3579, %v3747
        %v3916 = vsub.f32 %v3580, %v3748
        %v3917 = vsub.f32 %v3581, %v3749
        %v3918 = vsub.f32 %v3582, %v3750
        %v3919 = vsub.f32 %v3583, %v3751
        %v3920 = vsub.f32 %v3584, %v3752
        %v3921 = vsub.f32 %v3585, %v3753
        %v3922 = vsub.f32 %v3586, %v3754
        %v3923 = vsub.f32 %v3587, %v3755
        %v3924 = vsub.f32 %v3588, %v3756
        %v3925 = vsub.f32 %v3589, %v3757
        %v3926 = vsub.f32 %v3590, %v3758
        %v3927 = vsub.f32 %v3591, %v3759
        %v3928 = vsub.f32 %v3592, %v3760
        %v3929 = vsub.f32 %v3593, %v3761
        %v3930 = vsub.f32 %v3594, %v3762
        %v3931 = vsub.f32 %v3595, %v3763
        %v3932 = vsub.f32 %v3596, %v3764
        %v3933 = vsub.f32 %v3597, %v3765
        %v3934 = vsub.f32 %v3598, %v3766
        %v3935 = vsub.f32 %v3599, %v3767
        %v3936 = vsub.f32 %v3600, %v3768
        %v3937 = vsub.f32 %v3601, %v3769
        %v3938 = vsub.f32 %v3602, %v3770
        %v3939 = vsub.f32 %v3603, %v3771
        %v3940 = vsub.f32 %v3604, %v3772
        %v3941 = vsub.f32 %v3605, %v3773
        %v3942 = vsub.f32 %v3606, %v3774
        %v3943 = vsub.f32 %v3607, %v3775
        %v3944 = vsub.f32 %v3608, %v3776
        %v3945 = vsub.f32 %v3609, %v3777
        %v3946 = vsub.f32 %v3610, %v3778
        %v3947 = vsub.f32 %v3611, %v3779
        %v3948 = vsub.f32 %v3612, %v3780
        %v3949 = vsub.f32 %v3613, %v3781
        %v3950 = vsub.f32 %v3614, %v3782
        %v3951 = vsub.f32 %v3615, %v3783
        %v3952 = vsub.f32 %v3616, %v3784
        %v3953 = vsub.f32 %v3617, %v3785
        %v3954 = vsub.f32 %v3618, %v3786
        %v3955 = vsub.f32 %v3619, %v3787
        %v3956 = vsub.f32 %v3620, %v3788
        %v3957 = vsub.f32 %v3621, %v3789
        %v3958 = vsub.f32 %v3622, %v3790
        %v3959 = vsub.f32 %v3623, %v3791
        %v3960 = vsub.f32 %v3624, %v3792
        %v3961 = vsub.f32 %v3625, %v3793
        %v3962 = vsub.f32 %v3626, %v3794
        %v3963 = vsub.f32 %v3627, %v3795
        %v3964 = vsub.f32 %v3628, %v3796
        %v3965 = vsub.f32 %v3629, %v3797
        %v3966 = vsub.f32 %v3630, %v3798
        %v3967 = vsub.f32 %v3631, %v3799
        %v3968 = vsub.f32 %v3632, %v3800
        %v3969 = vsub.f32 %v3633, %v3801
        %v3970 = vsub.f32 %v3634, %v3802
        %v3971 = vsub.f32 %v3635, %v3803
        %v3972 = vsub.f32 %v3636, %v3804
        %v3973 = vsub.f32 %v3637, %v3805
        %v3974 = vsub.f32 %v3638, %v3806
        %v3975 = vsub.f32 %v3639, %v3807
        %v3976 = vsub.f32 %v3640, %v3808
        %v3977 = vsub.f32 %v3641, %v3809
        %v3978 = vsub.f32 %v3642, %v3810
        %v3979 = vsub.f32 %v3643, %v3811
        %v3980 = vsub.f32 %v3644, %v3812
        %v3981 = vsub.f32 %v3645, %v3813
        %v3982 = vsub.f32 %v3646, %v3814
        %v3983 = vsub.f32 %v3647, %v3815
        %v3984 = vsub.f32 %v3648, %v3816
        %v3985 = vsub.f32 %v3649, %v3817
        %v3986 = vsub.f32 %v3650, %v3818
        %v3987 = vsub.f32 %v3651, %v3819
        %v3988 = vsub.f32 %v3652, %v3820
        %v3989 = vsub.f32 %v3653, %v3821
        %v3990 = vsub.f32 %v3654, %v3822
        %v3991 = vsub.f32 %v3655, %v3823
        %v3992 = vsub.f32 %v3656, %v3824
        %v3993 = vsub.f32 %v3657, %v3825
        %v3994 = vsub.f32 %v3658, %v3826
        %v3995 = vsub.f32 %v3659, %v3827
        %v3996 = vsub.f32 %v3660, %v3828
        %v3997 = vsub.f32 %v3661, %v3829
        %v3998 = vsub.f32 %v3662, %v3830
        %v3999 = vsub.f32 %v3663, %v3831
        %v4000 = vsub.f32 %v3664, %v3832
        %v4001 = vsub.f32 %v3665, %v3833
        %v4002 = vsub.f32 %v3666, %v3834
        %v4003 = vsub.f32 %v3667, %v3835
        %v4004 = vsub.f32 %v3668, %v3836
        %v4005 = vsub.f32 %v3669, %v3837
        %v4006 = vsub.f32 %v3670, %v3838
        %v4007 = vsub.f32 %v3671, %v3839
        %v4008 = vsub.f32 %v3672, %v3840
        %v4009 = vsub.f32 %v3673, %v3841
        %v4010 = vsub.f32 %v3674, %v3842
        %v4011 = vsub.f32 %v3675, %v3843
        %v4012 = vsub.f32 %v3676, %v3844
        %v4013 = vsub.f32 %v3677, %v3845
        %v4014 = vsub.f32 %v3678, %v3846
        %v4015 = vsub.f32 %v3679, %v3847
        %v4016 = vsub.f32 %v3680, %v3848
        %v4017 = vsub.f32 %v3681, %v3849
        %v4018 = vsub.f32 %v3682, %v3850
        %v4019 = vsub.f32 %v3683, %v3851
        %v4020 = vsub.f32 %v3684, %v3852
        %v4021 = vsub.f32 %v3685, %v3853
        %v4022 = vsub.f32 %v3686, %v3854
        %v4023 = vsub.f32 %v3687, %v3855
        %v4024 = vsub.f32 %v3688, %v3856
        %v4025 = vsub.f32 %v3689, %v3857
        %v4026 = vsub.f32 %v3690, %v3858
        %v4027 = vsub.f32 %v3691, %v3859
        %v4028 = vsub.f32 %v3692, %v3860
        %v4029 = vsub.f32 %v3693, %v3861
        %v4030 = vsub.f32 %v3694, %v3862
        %v4031 = vsub.f32 %v3695, %v3863
        %v4032 = vsub.f32 %v3696, %v3864
        %v4033 = vsub.f32 %v3697, %v3865
        %v4034 = vsub.f32 %v3698, %v3866
        %v4035 = vsub.f32 %v3699, %v3867
        %v4036 = vsub.f32 %v3700, %v3868
        %v4037 = vsub.f32 %v3701, %v3869
        %v4038 = vsub.f32 %v3702, %v3870
        %v4039 = vsub.f32 %v3703, %v3871
        %v4040 = vsub.f32 %v3704, %v3872
        %v4041 = vsub.f32 %v3705, %v3873
        %v4042 = vsub.f32 %v3706, %v3874
        %v4043 = vsub.f32 %v3707, %v3875
        %v4044 = vsub.f32 %v3708, %v3876
        %v4045 = vsub.f32 %v3709, %v3877
        %v4046 = vsub.f32 %v3710, %v3878
        %v4047 = vsub.f32 %v3711, %v3879
        %v4048 = vsub.f32 %v3712, %v3880
        %v4049 = vsub.f32 %v3713, %v3881
        %v4050 = vsub.f32 %v3714, %v3882
        %v4051 = vsub.f32 %v3715, %v3883
        %v4052 = vsub.f32 %v3716, %v3884
        %v4053 = vsub.f32 %v3717, %v3885
        %v4054 = vsub.f32 %v3718, %v3886
        %v4055 = vsub.f32 %v3719, %v3887
        %v4056 = vsub.f32 %v3720, %v3888
        %v4057 = vsub.f32 %v3721, %v3889
        %v4058 = vsub.f32 %v3722, %v3890
        %v4059 = vsub.f32 %v3723, %v3891
        %v4060 = vsub.f32 %v3724, %v3892
        %v4061 = vsub.f32 %v3725, %v3893
        %v4062 = vsub.f32 %v3726, %v3894
        %v4063 = vsub.f32 %v3727, %v3895
        %v4064 = vsub.f32 %v3728, %v3896
        %v4065 = vsub.f32 %v3729, %v3897
        %v4066 = vsub.f32 %v3730, %v3898
        %v4067 = vsub.f32 %v3731, %v3899
        %v4068 = vsub.f32 %v3732, %v3900
        %v4069 = vsub.f32 %v3733, %v3901
        %v4070 = vsub.f32 %v3734, %v3902
        %v4071 = vsub.f32 %v3735, %v3903
        %v4072 = vsub.f32 %v3736, %v3904
        %v4073 = vsub.f32 %v3737, %v3905
        %v4074 = vsub.f32 %v3738, %v3906
        %v4075 = vsub.f32 %v3739, %v3907
        %4077 = vset.pattern.permute.xlu0 0
        %4078 = vperm.xlu0 %4077, %v3404
        %v4079 = vpop.permute.xlu0 %4078
        %4082 = vset.pattern.permute.xlu0 0
        %4083 = vperm.xlu0 %4082, %v3405
        %v4084 = vpop.permute.xlu0 %4083
        %4087 = vset.pattern.permute.xlu0 0
        %4088 = vperm.xlu0 %4087, %v3406
        %v4089 = vpop.permute.xlu0 %4088
        %4092 = vset.pattern.permute.xlu0 0
        %4093 = vperm.xlu0 %4092, %v3407
        %v4094 = vpop.permute.xlu0 %4093
        %4097 = vset.pattern.permute.xlu0 0
        %4098 = vperm.xlu0 %4097, %v3408
        %v4099 = vpop.permute.xlu0 %4098
        %4102 = vset.pattern.permute.xlu0 0
        %4103 = vperm.xlu0 %4102, %v3409
        %v4104 = vpop.permute.xlu0 %4103
        %4107 = vset.pattern.permute.xlu0 0
        %4108 = vperm.xlu0 %4107, %v3410
        %v4109 = vpop.permute.xlu0 %4108
        %4112 = vset.pattern.permute.xlu0 0
        %4113 = vperm.xlu0 %4112, %v3411
        %v4114 = vpop.permute.xlu0 %4113
        %4117 = vset.pattern.permute.xlu0 0
        %4118 = vperm.xlu0 %4117, %v3412
        %v4119 = vpop.permute.xlu0 %4118
        %4122 = vset.pattern.permute.xlu0 0
        %4123 = vperm.xlu0 %4122, %v3413
        %v4124 = vpop.permute.xlu0 %4123
        %4127 = vset.pattern.permute.xlu0 0
        %4128 = vperm.xlu0 %4127, %v3414
        %v4129 = vpop.permute.xlu0 %4128
        %4132 = vset.pattern.permute.xlu0 0
        %4133 = vperm.xlu0 %4132, %v3415
        %v4134 = vpop.permute.xlu0 %4133
        %4137 = vset.pattern.permute.xlu0 0
        %4138 = vperm.xlu0 %4137, %v3416
        %v4139 = vpop.permute.xlu0 %4138
        %4142 = vset.pattern.permute.xlu0 0
        %4143 = vperm.xlu0 %4142, %v3417
        %v4144 = vpop.permute.xlu0 %4143
        %4147 = vset.pattern.permute.xlu0 0
        %4148 = vperm.xlu0 %4147, %v3418
        %v4149 = vpop.permute.xlu0 %4148
        %4152 = vset.pattern.permute.xlu0 0
        %4153 = vperm.xlu0 %4152, %v3419
        %v4154 = vpop.permute.xlu0 %4153
        %4157 = vset.pattern.permute.xlu0 0
        %4158 = vperm.xlu0 %4157, %v3420
        %v4159 = vpop.permute.xlu0 %4158
        %4162 = vset.pattern.permute.xlu0 0
        %4163 = vperm.xlu0 %4162, %v3421
        %v4164 = vpop.permute.xlu0 %4163
        %4167 = vset.pattern.permute.xlu0 0
        %4168 = vperm.xlu0 %4167, %v3422
        %v4169 = vpop.permute.xlu0 %4168
        %4172 = vset.pattern.permute.xlu0 0
        %4173 = vperm.xlu0 %4172, %v3423
        %v4174 = vpop.permute.xlu0 %4173
        %4177 = vset.pattern.permute.xlu0 0
        %4178 = vperm.xlu0 %4177, %v3424
        %v4179 = vpop.permute.xlu0 %4178
        %4182 = vset.pattern.permute.xlu0 0
        %4183 = vperm.xlu0 %4182, %v3425
        %v4184 = vpop.permute.xlu0 %4183
        %4187 = vset.pattern.permute.xlu0 0
        %4188 = vperm.xlu0 %4187, %v3426
        %v4189 = vpop.permute.xlu0 %4188
        %4192 = vset.pattern.permute.xlu0 0
        %4193 = vperm.xlu0 %4192, %v3427
        %v4194 = vpop.permute.xlu0 %4193
        %4197 = vset.pattern.permute.xlu0 0
        %4198 = vperm.xlu0 %4197, %v3428
        %v4199 = vpop.permute.xlu0 %4198
        %4202 = vset.pattern.permute.xlu0 0
        %4203 = vperm.xlu0 %4202, %v3429
        %v4204 = vpop.permute.xlu0 %4203
        %4207 = vset.pattern.permute.xlu0 0
        %4208 = vperm.xlu0 %4207, %v3430
        %v4209 = vpop.permute.xlu0 %4208
        %4212 = vset.pattern.permute.xlu0 0
        %4213 = vperm.xlu0 %4212, %v3431
        %v4214 = vpop.permute.xlu0 %4213
        %4217 = vset.pattern.permute.xlu0 0
        %4218 = vperm.xlu0 %4217, %v3432
        %v4219 = vpop.permute.xlu0 %4218
        %4222 = vset.pattern.permute.xlu0 0
        %4223 = vperm.xlu0 %4222, %v3433
        %v4224 = vpop.permute.xlu0 %4223
        %4227 = vset.pattern.permute.xlu0 0
        %4228 = vperm.xlu0 %4227, %v3434
        %v4229 = vpop.permute.xlu0 %4228
        %4232 = vset.pattern.permute.xlu0 0
        %4233 = vperm.xlu0 %4232, %v3435
        %v4234 = vpop.permute.xlu0 %4233
        %4237 = vset.pattern.permute.xlu0 0
        %4238 = vperm.xlu0 %4237, %v3436
        %v4239 = vpop.permute.xlu0 %4238
        %4242 = vset.pattern.permute.xlu0 0
        %4243 = vperm.xlu0 %4242, %v3437
        %v4244 = vpop.permute.xlu0 %4243
        %4247 = vset.pattern.permute.xlu0 0
        %4248 = vperm.xlu0 %4247, %v3438
        %v4249 = vpop.permute.xlu0 %4248
        %4252 = vset.pattern.permute.xlu0 0
        %4253 = vperm.xlu0 %4252, %v3439
        %v4254 = vpop.permute.xlu0 %4253
        %4257 = vset.pattern.permute.xlu0 0
        %4258 = vperm.xlu0 %4257, %v3440
        %v4259 = vpop.permute.xlu0 %4258
        %4262 = vset.pattern.permute.xlu0 0
        %4263 = vperm.xlu0 %4262, %v3441
        %v4264 = vpop.permute.xlu0 %4263
        %4267 = vset.pattern.permute.xlu0 0
        %4268 = vperm.xlu0 %4267, %v3442
        %v4269 = vpop.permute.xlu0 %4268
        %4272 = vset.pattern.permute.xlu0 0
        %4273 = vperm.xlu0 %4272, %v3443
        %v4274 = vpop.permute.xlu0 %4273
        %4277 = vset.pattern.permute.xlu0 0
        %4278 = vperm.xlu0 %4277, %v3444
        %v4279 = vpop.permute.xlu0 %4278
        %4282 = vset.pattern.permute.xlu0 0
        %4283 = vperm.xlu0 %4282, %v3445
        %v4284 = vpop.permute.xlu0 %4283
        %4287 = vset.pattern.permute.xlu0 0
        %4288 = vperm.xlu0 %4287, %v3446
        %v4289 = vpop.permute.xlu0 %4288
        %4292 = vset.pattern.permute.xlu0 0
        %4293 = vperm.xlu0 %4292, %v3447
        %v4294 = vpop.permute.xlu0 %4293
        %4297 = vset.pattern.permute.xlu0 0
        %4298 = vperm.xlu0 %4297, %v3448
        %v4299 = vpop.permute.xlu0 %4298
        %4302 = vset.pattern.permute.xlu0 0
        %4303 = vperm.xlu0 %4302, %v3449
        %v4304 = vpop.permute.xlu0 %4303
        %4307 = vset.pattern.permute.xlu0 0
        %4308 = vperm.xlu0 %4307, %v3450
        %v4309 = vpop.permute.xlu0 %4308
        %4312 = vset.pattern.permute.xlu0 0
        %4313 = vperm.xlu0 %4312, %v3451
        %v4314 = vpop.permute.xlu0 %4313
        %4317 = vset.pattern.permute.xlu0 0
        %4318 = vperm.xlu0 %4317, %v3452
        %v4319 = vpop.permute.xlu0 %4318
        %4322 = vset.pattern.permute.xlu0 0
        %4323 = vperm.xlu0 %4322, %v3453
        %v4324 = vpop.permute.xlu0 %4323
        %4327 = vset.pattern.permute.xlu0 0
        %4328 = vperm.xlu0 %4327, %v3454
        %v4329 = vpop.permute.xlu0 %4328
        %4332 = vset.pattern.permute.xlu0 0
        %4333 = vperm.xlu0 %4332, %v3455
        %v4334 = vpop.permute.xlu0 %4333
        %4337 = vset.pattern.permute.xlu0 0
        %4338 = vperm.xlu0 %4337, %v3456
        %v4339 = vpop.permute.xlu0 %4338
        %4342 = vset.pattern.permute.xlu0 0
        %4343 = vperm.xlu0 %4342, %v3457
        %v4344 = vpop.permute.xlu0 %4343
        %4347 = vset.pattern.permute.xlu0 0
        %4348 = vperm.xlu0 %4347, %v3458
        %v4349 = vpop.permute.xlu0 %4348
        %4352 = vset.pattern.permute.xlu0 0
        %4353 = vperm.xlu0 %4352, %v3459
        %v4354 = vpop.permute.xlu0 %4353
        %4357 = vset.pattern.permute.xlu0 0
        %4358 = vperm.xlu0 %4357, %v3460
        %v4359 = vpop.permute.xlu0 %4358
        %4362 = vset.pattern.permute.xlu0 0
        %4363 = vperm.xlu0 %4362, %v3461
        %v4364 = vpop.permute.xlu0 %4363
        %4367 = vset.pattern.permute.xlu0 0
        %4368 = vperm.xlu0 %4367, %v3462
        %v4369 = vpop.permute.xlu0 %4368
        %4372 = vset.pattern.permute.xlu0 0
        %4373 = vperm.xlu0 %4372, %v3463
        %v4374 = vpop.permute.xlu0 %4373
        %4377 = vset.pattern.permute.xlu0 0
        %4378 = vperm.xlu0 %4377, %v3464
        %v4379 = vpop.permute.xlu0 %4378
        %4382 = vset.pattern.permute.xlu0 0
        %4383 = vperm.xlu0 %4382, %v3465
        %v4384 = vpop.permute.xlu0 %4383
        %4387 = vset.pattern.permute.xlu0 0
        %4388 = vperm.xlu0 %4387, %v3466
        %v4389 = vpop.permute.xlu0 %4388
        %4392 = vset.pattern.permute.xlu0 0
        %4393 = vperm.xlu0 %4392, %v3467
        %v4394 = vpop.permute.xlu0 %4393
        %4397 = vset.pattern.permute.xlu0 0
        %4398 = vperm.xlu0 %4397, %v3468
        %v4399 = vpop.permute.xlu0 %4398
        %4402 = vset.pattern.permute.xlu0 0
        %4403 = vperm.xlu0 %4402, %v3469
        %v4404 = vpop.permute.xlu0 %4403
        %4407 = vset.pattern.permute.xlu0 0
        %4408 = vperm.xlu0 %4407, %v3470
        %v4409 = vpop.permute.xlu0 %4408
        %4412 = vset.pattern.permute.xlu0 0
        %4413 = vperm.xlu0 %4412, %v3471
        %v4414 = vpop.permute.xlu0 %4413
        %4417 = vset.pattern.permute.xlu0 0
        %4418 = vperm.xlu0 %4417, %v3472
        %v4419 = vpop.permute.xlu0 %4418
        %4422 = vset.pattern.permute.xlu0 0
        %4423 = vperm.xlu0 %4422, %v3473
        %v4424 = vpop.permute.xlu0 %4423
        %4427 = vset.pattern.permute.xlu0 0
        %4428 = vperm.xlu0 %4427, %v3474
        %v4429 = vpop.permute.xlu0 %4428
        %4432 = vset.pattern.permute.xlu0 0
        %4433 = vperm.xlu0 %4432, %v3475
        %v4434 = vpop.permute.xlu0 %4433
        %4437 = vset.pattern.permute.xlu0 0
        %4438 = vperm.xlu0 %4437, %v3476
        %v4439 = vpop.permute.xlu0 %4438
        %4442 = vset.pattern.permute.xlu0 0
        %4443 = vperm.xlu0 %4442, %v3477
        %v4444 = vpop.permute.xlu0 %4443
        %4447 = vset.pattern.permute.xlu0 0
        %4448 = vperm.xlu0 %4447, %v3478
        %v4449 = vpop.permute.xlu0 %4448
        %4452 = vset.pattern.permute.xlu0 0
        %4453 = vperm.xlu0 %4452, %v3479
        %v4454 = vpop.permute.xlu0 %4453
        %4457 = vset.pattern.permute.xlu0 0
        %4458 = vperm.xlu0 %4457, %v3480
        %v4459 = vpop.permute.xlu0 %4458
        %4462 = vset.pattern.permute.xlu0 0
        %4463 = vperm.xlu0 %4462, %v3481
        %v4464 = vpop.permute.xlu0 %4463
        %4467 = vset.pattern.permute.xlu0 0
        %4468 = vperm.xlu0 %4467, %v3482
        %v4469 = vpop.permute.xlu0 %4468
        %4472 = vset.pattern.permute.xlu0 0
        %4473 = vperm.xlu0 %4472, %v3483
        %v4474 = vpop.permute.xlu0 %4473
        %4477 = vset.pattern.permute.xlu0 0
        %4478 = vperm.xlu0 %4477, %v3484
        %v4479 = vpop.permute.xlu0 %4478
        %4482 = vset.pattern.permute.xlu0 0
        %4483 = vperm.xlu0 %4482, %v3485
        %v4484 = vpop.permute.xlu0 %4483
        %4487 = vset.pattern.permute.xlu0 0
        %4488 = vperm.xlu0 %4487, %v3486
        %v4489 = vpop.permute.xlu0 %4488
        %4492 = vset.pattern.permute.xlu0 0
        %4493 = vperm.xlu0 %4492, %v3487
        %v4494 = vpop.permute.xlu0 %4493
        %4497 = vset.pattern.permute.xlu0 0
        %4498 = vperm.xlu0 %4497, %v3488
        %v4499 = vpop.permute.xlu0 %4498
        %4502 = vset.pattern.permute.xlu0 0
        %4503 = vperm.xlu0 %4502, %v3489
        %v4504 = vpop.permute.xlu0 %4503
        %4507 = vset.pattern.permute.xlu0 0
        %4508 = vperm.xlu0 %4507, %v3490
        %v4509 = vpop.permute.xlu0 %4508
        %4512 = vset.pattern.permute.xlu0 0
        %4513 = vperm.xlu0 %4512, %v3491
        %v4514 = vpop.permute.xlu0 %4513
        %4517 = vset.pattern.permute.xlu0 0
        %4518 = vperm.xlu0 %4517, %v3492
        %v4519 = vpop.permute.xlu0 %4518
        %4522 = vset.pattern.permute.xlu0 0
        %4523 = vperm.xlu0 %4522, %v3493
        %v4524 = vpop.permute.xlu0 %4523
        %4527 = vset.pattern.permute.xlu0 0
        %4528 = vperm.xlu0 %4527, %v3494
        %v4529 = vpop.permute.xlu0 %4528
        %4532 = vset.pattern.permute.xlu0 0
        %4533 = vperm.xlu0 %4532, %v3495
        %v4534 = vpop.permute.xlu0 %4533
        %4537 = vset.pattern.permute.xlu0 0
        %4538 = vperm.xlu0 %4537, %v3496
        %v4539 = vpop.permute.xlu0 %4538
        %4542 = vset.pattern.permute.xlu0 0
        %4543 = vperm.xlu0 %4542, %v3497
        %v4544 = vpop.permute.xlu0 %4543
        %4547 = vset.pattern.permute.xlu0 0
        %4548 = vperm.xlu0 %4547, %v3498
        %v4549 = vpop.permute.xlu0 %4548
        %4552 = vset.pattern.permute.xlu0 0
        %4553 = vperm.xlu0 %4552, %v3499
        %v4554 = vpop.permute.xlu0 %4553
        %4557 = vset.pattern.permute.xlu0 0
        %4558 = vperm.xlu0 %4557, %v3500
        %v4559 = vpop.permute.xlu0 %4558
        %4562 = vset.pattern.permute.xlu0 0
        %4563 = vperm.xlu0 %4562, %v3501
        %v4564 = vpop.permute.xlu0 %4563
        %4567 = vset.pattern.permute.xlu0 0
        %4568 = vperm.xlu0 %4567, %v3502
        %v4569 = vpop.permute.xlu0 %4568
        %4572 = vset.pattern.permute.xlu0 0
        %4573 = vperm.xlu0 %4572, %v3503
        %v4574 = vpop.permute.xlu0 %4573
        %4577 = vset.pattern.permute.xlu0 0
        %4578 = vperm.xlu0 %4577, %v3504
        %v4579 = vpop.permute.xlu0 %4578
        %4582 = vset.pattern.permute.xlu0 0
        %4583 = vperm.xlu0 %4582, %v3505
        %v4584 = vpop.permute.xlu0 %4583
        %4587 = vset.pattern.permute.xlu0 0
        %4588 = vperm.xlu0 %4587, %v3506
        %v4589 = vpop.permute.xlu0 %4588
        %4592 = vset.pattern.permute.xlu0 0
        %4593 = vperm.xlu0 %4592, %v3507
        %v4594 = vpop.permute.xlu0 %4593
        %4597 = vset.pattern.permute.xlu0 0
        %4598 = vperm.xlu0 %4597, %v3508
        %v4599 = vpop.permute.xlu0 %4598
        %4602 = vset.pattern.permute.xlu0 0
        %4603 = vperm.xlu0 %4602, %v3509
        %v4604 = vpop.permute.xlu0 %4603
        %4607 = vset.pattern.permute.xlu0 0
        %4608 = vperm.xlu0 %4607, %v3510
        %v4609 = vpop.permute.xlu0 %4608
        %4612 = vset.pattern.permute.xlu0 0
        %4613 = vperm.xlu0 %4612, %v3511
        %v4614 = vpop.permute.xlu0 %4613
        %4617 = vset.pattern.permute.xlu0 0
        %4618 = vperm.xlu0 %4617, %v3512
        %v4619 = vpop.permute.xlu0 %4618
        %4622 = vset.pattern.permute.xlu0 0
        %4623 = vperm.xlu0 %4622, %v3513
        %v4624 = vpop.permute.xlu0 %4623
        %4627 = vset.pattern.permute.xlu0 0
        %4628 = vperm.xlu0 %4627, %v3514
        %v4629 = vpop.permute.xlu0 %4628
        %4632 = vset.pattern.permute.xlu0 0
        %4633 = vperm.xlu0 %4632, %v3515
        %v4634 = vpop.permute.xlu0 %4633
        %4637 = vset.pattern.permute.xlu0 0
        %4638 = vperm.xlu0 %4637, %v3516
        %v4639 = vpop.permute.xlu0 %4638
        %4642 = vset.pattern.permute.xlu0 0
        %4643 = vperm.xlu0 %4642, %v3517
        %v4644 = vpop.permute.xlu0 %4643
        %4647 = vset.pattern.permute.xlu0 0
        %4648 = vperm.xlu0 %4647, %v3518
        %v4649 = vpop.permute.xlu0 %4648
        %4652 = vset.pattern.permute.xlu0 0
        %4653 = vperm.xlu0 %4652, %v3519
        %v4654 = vpop.permute.xlu0 %4653
        %4657 = vset.pattern.permute.xlu0 0
        %4658 = vperm.xlu0 %4657, %v3520
        %v4659 = vpop.permute.xlu0 %4658
        %4662 = vset.pattern.permute.xlu0 0
        %4663 = vperm.xlu0 %4662, %v3521
        %v4664 = vpop.permute.xlu0 %4663
        %4667 = vset.pattern.permute.xlu0 0
        %4668 = vperm.xlu0 %4667, %v3522
        %v4669 = vpop.permute.xlu0 %4668
        %4672 = vset.pattern.permute.xlu0 0
        %4673 = vperm.xlu0 %4672, %v3523
        %v4674 = vpop.permute.xlu0 %4673
        %4677 = vset.pattern.permute.xlu0 0
        %4678 = vperm.xlu0 %4677, %v3524
        %v4679 = vpop.permute.xlu0 %4678
        %4682 = vset.pattern.permute.xlu0 0
        %4683 = vperm.xlu0 %4682, %v3525
        %v4684 = vpop.permute.xlu0 %4683
        %4687 = vset.pattern.permute.xlu0 0
        %4688 = vperm.xlu0 %4687, %v3526
        %v4689 = vpop.permute.xlu0 %4688
        %4692 = vset.pattern.permute.xlu0 0
        %4693 = vperm.xlu0 %4692, %v3527
        %v4694 = vpop.permute.xlu0 %4693
        %4697 = vset.pattern.permute.xlu0 0
        %4698 = vperm.xlu0 %4697, %v3528
        %v4699 = vpop.permute.xlu0 %4698
        %4702 = vset.pattern.permute.xlu0 0
        %4703 = vperm.xlu0 %4702, %v3529
        %v4704 = vpop.permute.xlu0 %4703
        %4707 = vset.pattern.permute.xlu0 0
        %4708 = vperm.xlu0 %4707, %v3530
        %v4709 = vpop.permute.xlu0 %4708
        %4712 = vset.pattern.permute.xlu0 0
        %4713 = vperm.xlu0 %4712, %v3531
        %v4714 = vpop.permute.xlu0 %4713
        %4717 = vset.pattern.permute.xlu0 0
        %4718 = vperm.xlu0 %4717, %v3532
        %v4719 = vpop.permute.xlu0 %4718
        %4722 = vset.pattern.permute.xlu0 0
        %4723 = vperm.xlu0 %4722, %v3533
        %v4724 = vpop.permute.xlu0 %4723
        %4727 = vset.pattern.permute.xlu0 0
        %4728 = vperm.xlu0 %4727, %v3534
        %v4729 = vpop.permute.xlu0 %4728
        %4732 = vset.pattern.permute.xlu0 0
        %4733 = vperm.xlu0 %4732, %v3535
        %v4734 = vpop.permute.xlu0 %4733
        %4737 = vset.pattern.permute.xlu0 0
        %4738 = vperm.xlu0 %4737, %v3536
        %v4739 = vpop.permute.xlu0 %4738
        %4742 = vset.pattern.permute.xlu0 0
        %4743 = vperm.xlu0 %4742, %v3537
        %v4744 = vpop.permute.xlu0 %4743
        %4747 = vset.pattern.permute.xlu0 0
        %4748 = vperm.xlu0 %4747, %v3538
        %v4749 = vpop.permute.xlu0 %4748
        %4752 = vset.pattern.permute.xlu0 0
        %4753 = vperm.xlu0 %4752, %v3539
        %v4754 = vpop.permute.xlu0 %4753
        %4757 = vset.pattern.permute.xlu0 0
        %4758 = vperm.xlu0 %4757, %v3540
        %v4759 = vpop.permute.xlu0 %4758
        %4762 = vset.pattern.permute.xlu0 0
        %4763 = vperm.xlu0 %4762, %v3541
        %v4764 = vpop.permute.xlu0 %4763
        %4767 = vset.pattern.permute.xlu0 0
        %4768 = vperm.xlu0 %4767, %v3542
        %v4769 = vpop.permute.xlu0 %4768
        %4772 = vset.pattern.permute.xlu0 0
        %4773 = vperm.xlu0 %4772, %v3543
        %v4774 = vpop.permute.xlu0 %4773
        %4777 = vset.pattern.permute.xlu0 0
        %4778 = vperm.xlu0 %4777, %v3544
        %v4779 = vpop.permute.xlu0 %4778
        %4782 = vset.pattern.permute.xlu0 0
        %4783 = vperm.xlu0 %4782, %v3545
        %v4784 = vpop.permute.xlu0 %4783
        %4787 = vset.pattern.permute.xlu0 0
        %4788 = vperm.xlu0 %4787, %v3546
        %v4789 = vpop.permute.xlu0 %4788
        %4792 = vset.pattern.permute.xlu0 0
        %4793 = vperm.xlu0 %4792, %v3547
        %v4794 = vpop.permute.xlu0 %4793
        %4797 = vset.pattern.permute.xlu0 0
        %4798 = vperm.xlu0 %4797, %v3548
        %v4799 = vpop.permute.xlu0 %4798
        %4802 = vset.pattern.permute.xlu0 0
        %4803 = vperm.xlu0 %4802, %v3549
        %v4804 = vpop.permute.xlu0 %4803
        %4807 = vset.pattern.permute.xlu0 0
        %4808 = vperm.xlu0 %4807, %v3550
        %v4809 = vpop.permute.xlu0 %4808
        %4812 = vset.pattern.permute.xlu0 0
        %4813 = vperm.xlu0 %4812, %v3551
        %v4814 = vpop.permute.xlu0 %4813
        %4817 = vset.pattern.permute.xlu0 0
        %4818 = vperm.xlu0 %4817, %v3552
        %v4819 = vpop.permute.xlu0 %4818
        %4822 = vset.pattern.permute.xlu0 0
        %4823 = vperm.xlu0 %4822, %v3553
        %v4824 = vpop.permute.xlu0 %4823
        %4827 = vset.pattern.permute.xlu0 0
        %4828 = vperm.xlu0 %4827, %v3554
        %v4829 = vpop.permute.xlu0 %4828
        %4832 = vset.pattern.permute.xlu0 0
        %4833 = vperm.xlu0 %4832, %v3555
        %v4834 = vpop.permute.xlu0 %4833
        %4837 = vset.pattern.permute.xlu0 0
        %4838 = vperm.xlu0 %4837, %v3556
        %v4839 = vpop.permute.xlu0 %4838
        %4842 = vset.pattern.permute.xlu0 0
        %4843 = vperm.xlu0 %4842, %v3557
        %v4844 = vpop.permute.xlu0 %4843
        %4847 = vset.pattern.permute.xlu0 0
        %4848 = vperm.xlu0 %4847, %v3558
        %v4849 = vpop.permute.xlu0 %4848
        %4852 = vset.pattern.permute.xlu0 0
        %4853 = vperm.xlu0 %4852, %v3559
        %v4854 = vpop.permute.xlu0 %4853
        %4857 = vset.pattern.permute.xlu0 0
        %4858 = vperm.xlu0 %4857, %v3560
        %v4859 = vpop.permute.xlu0 %4858
        %4862 = vset.pattern.permute.xlu0 0
        %4863 = vperm.xlu0 %4862, %v3561
        %v4864 = vpop.permute.xlu0 %4863
        %4867 = vset.pattern.permute.xlu0 0
        %4868 = vperm.xlu0 %4867, %v3562
        %v4869 = vpop.permute.xlu0 %4868
        %4872 = vset.pattern.permute.xlu0 0
        %4873 = vperm.xlu0 %4872, %v3563
        %v4874 = vpop.permute.xlu0 %4873
        %4877 = vset.pattern.permute.xlu0 0
        %4878 = vperm.xlu0 %4877, %v3564
        %v4879 = vpop.permute.xlu0 %4878
        %4882 = vset.pattern.permute.xlu0 0
        %4883 = vperm.xlu0 %4882, %v3565
        %v4884 = vpop.permute.xlu0 %4883
        %4887 = vset.pattern.permute.xlu0 0
        %4888 = vperm.xlu0 %4887, %v3566
        %v4889 = vpop.permute.xlu0 %4888
        %4892 = vset.pattern.permute.xlu0 0
        %4893 = vperm.xlu0 %4892, %v3567
        %v4894 = vpop.permute.xlu0 %4893
        %4897 = vset.pattern.permute.xlu0 0
        %4898 = vperm.xlu0 %4897, %v3568
        %v4899 = vpop.permute.xlu0 %4898
        %4902 = vset.pattern.permute.xlu0 0
        %4903 = vperm.xlu0 %4902, %v3569
        %v4904 = vpop.permute.xlu0 %4903
        %4907 = vset.pattern.permute.xlu0 0
        %4908 = vperm.xlu0 %4907, %v3570
        %v4909 = vpop.permute.xlu0 %4908
        %4912 = vset.pattern.permute.xlu0 0
        %4913 = vperm.xlu0 %4912, %v3571
        %v4914 = vpop.permute.xlu0 %4913
        %v4916 = vmul.f32 %v211, %v4079
        %v4917 = vmul.f32 %v212, %v4079
        %v4918 = vmul.f32 %v213, %v4084
        %v4919 = vmul.f32 %v214, %v4084
        %v4920 = vmul.f32 %v215, %v4089
        %v4921 = vmul.f32 %v216, %v4089
        %v4922 = vmul.f32 %v217, %v4094
        %v4923 = vmul.f32 %v218, %v4094
        %v4924 = vmul.f32 %v219, %v4099
        %v4925 = vmul.f32 %v220, %v4099
        %v4926 = vmul.f32 %v221, %v4104
        %v4927 = vmul.f32 %v222, %v4104
        %v4928 = vmul.f32 %v223, %v4109
        %v4929 = vmul.f32 %v224, %v4109
        %v4930 = vmul.f32 %v225, %v4114
        %v4931 = vmul.f32 %v226, %v4114
        %v4932 = vmul.f32 %v227, %v4119
        %v4933 = vmul.f32 %v228, %v4119
        %v4934 = vmul.f32 %v229, %v4124
        %v4935 = vmul.f32 %v230, %v4124
        %v4936 = vmul.f32 %v231, %v4129
        %v4937 = vmul.f32 %v232, %v4129
        %v4938 = vmul.f32 %v233, %v4134
        %v4939 = vmul.f32 %v234, %v4134
        %v4940 = vmul.f32 %v235, %v4139
        %v4941 = vmul.f32 %v236, %v4139
        %v4942 = vmul.f32 %v237, %v4144
        %v4943 = vmul.f32 %v238, %v4144
        %v4944 = vmul.f32 %v239, %v4149
        %v4945 = vmul.f32 %v240, %v4149
        %v4946 = vmul.f32 %v241, %v4154
        %v4947 = vmul.f32 %v242, %v4154
        %v4948 = vmul.f32 %v243, %v4159
        %v4949 = vmul.f32 %v244, %v4159
        %v4950 = vmul.f32 %v245, %v4164
        %v4951 = vmul.f32 %v246, %v4164
        %v4952 = vmul.f32 %v247, %v4169
        %v4953 = vmul.f32 %v248, %v4169
        %v4954 = vmul.f32 %v249, %v4174
        %v4955 = vmul.f32 %v250, %v4174
        %v4956 = vmul.f32 %v251, %v4179
        %v4957 = vmul.f32 %v252, %v4179
        %v4958 = vmul.f32 %v253, %v4184
        %v4959 = vmul.f32 %v254, %v4184
        %v4960 = vmul.f32 %v255, %v4189
        %v4961 = vmul.f32 %v256, %v4189
        %v4962 = vmul.f32 %v257, %v4194
        %v4963 = vmul.f32 %v258, %v4194
        %v4964 = vmul.f32 %v259, %v4199
        %v4965 = vmul.f32 %v260, %v4199
        %v4966 = vmul.f32 %v261, %v4204
        %v4967 = vmul.f32 %v262, %v4204
        %v4968 = vmul.f32 %v263, %v4209
        %v4969 = vmul.f32 %v264, %v4209
        %v4970 = vmul.f32 %v265, %v4214
        %v4971 = vmul.f32 %v266, %v4214
        %v4972 = vmul.f32 %v267, %v4219
        %v4973 = vmul.f32 %v268, %v4219
        %v4974 = vmul.f32 %v269, %v4224
        %v4975 = vmul.f32 %v270, %v4224
        %v4976 = vmul.f32 %v271, %v4229
        %v4977 = vmul.f32 %v272, %v4229
        %v4978 = vmul.f32 %v273, %v4234
        %v4979 = vmul.f32 %v274, %v4234
        %v4980 = vmul.f32 %v275, %v4239
        %v4981 = vmul.f32 %v276, %v4239
        %v4982 = vmul.f32 %v277, %v4244
        %v4983 = vmul.f32 %v278, %v4244
        %v4984 = vmul.f32 %v279, %v4249
        %v4985 = vmul.f32 %v280, %v4249
        %v4986 = vmul.f32 %v281, %v4254
        %v4987 = vmul.f32 %v282, %v4254
        %v4988 = vmul.f32 %v283, %v4259
        %v4989 = vmul.f32 %v284, %v4259
        %v4990 = vmul.f32 %v285, %v4264
        %v4991 = vmul.f32 %v286, %v4264
        %v4992 = vmul.f32 %v287, %v4269
        %v4993 = vmul.f32 %v288, %v4269
        %v4994 = vmul.f32 %v289, %v4274
        %v4995 = vmul.f32 %v290, %v4274
        %v4996 = vmul.f32 %v291, %v4279
        %v4997 = vmul.f32 %v292, %v4279
        %v4998 = vmul.f32 %v293, %v4284
        %v4999 = vmul.f32 %v294, %v4284
        %v5000 = vmul.f32 %v295, %v4289
        %v5001 = vmul.f32 %v296, %v4289
        %v5002 = vmul.f32 %v297, %v4294
        %v5003 = vmul.f32 %v298, %v4294
        %v5004 = vmul.f32 %v299, %v4299
        %v5005 = vmul.f32 %v300, %v4299
        %v5006 = vmul.f32 %v301, %v4304
        %v5007 = vmul.f32 %v302, %v4304
        %v5008 = vmul.f32 %v303, %v4309
        %v5009 = vmul.f32 %v304, %v4309
        %v5010 = vmul.f32 %v305, %v4314
        %v5011 = vmul.f32 %v306, %v4314
        %v5012 = vmul.f32 %v307, %v4319
        %v5013 = vmul.f32 %v308, %v4319
        %v5014 = vmul.f32 %v309, %v4324
        %v5015 = vmul.f32 %v310, %v4324
        %v5016 = vmul.f32 %v311, %v4329
        %v5017 = vmul.f32 %v312, %v4329
        %v5018 = vmul.f32 %v313, %v4334
        %v5019 = vmul.f32 %v314, %v4334
        %v5020 = vmul.f32 %v315, %v4339
        %v5021 = vmul.f32 %v316, %v4339
        %v5022 = vmul.f32 %v317, %v4344
        %v5023 = vmul.f32 %v318, %v4344
        %v5024 = vmul.f32 %v319, %v4349
        %v5025 = vmul.f32 %v320, %v4349
        %v5026 = vmul.f32 %v321, %v4354
        %v5027 = vmul.f32 %v322, %v4354
        %v5028 = vmul.f32 %v323, %v4359
        %v5029 = vmul.f32 %v324, %v4359
        %v5030 = vmul.f32 %v325, %v4364
        %v5031 = vmul.f32 %v326, %v4364
        %v5032 = vmul.f32 %v327, %v4369
        %v5033 = vmul.f32 %v328, %v4369
        %v5034 = vmul.f32 %v329, %v4374
        %v5035 = vmul.f32 %v330, %v4374
        %v5036 = vmul.f32 %v331, %v4379
        %v5037 = vmul.f32 %v332, %v4379
        %v5038 = vmul.f32 %v333, %v4384
        %v5039 = vmul.f32 %v334, %v4384
        %v5040 = vmul.f32 %v335, %v4389
        %v5041 = vmul.f32 %v336, %v4389
        %v5042 = vmul.f32 %v337, %v4394
        %v5043 = vmul.f32 %v338, %v4394
        %v5044 = vmul.f32 %v339, %v4399
        %v5045 = vmul.f32 %v340, %v4399
        %v5046 = vmul.f32 %v341, %v4404
        %v5047 = vmul.f32 %v342, %v4404
        %v5048 = vmul.f32 %v343, %v4409
        %v5049 = vmul.f32 %v344, %v4409
        %v5050 = vmul.f32 %v345, %v4414
        %v5051 = vmul.f32 %v346, %v4414
        %v5052 = vmul.f32 %v347, %v4419
        %v5053 = vmul.f32 %v348, %v4419
        %v5054 = vmul.f32 %v349, %v4424
        %v5055 = vmul.f32 %v350, %v4424
        %v5056 = vmul.f32 %v351, %v4429
        %v5057 = vmul.f32 %v352, %v4429
        %v5058 = vmul.f32 %v353, %v4434
        %v5059 = vmul.f32 %v354, %v4434
        %v5060 = vmul.f32 %v355, %v4439
        %v5061 = vmul.f32 %v356, %v4439
        %v5062 = vmul.f32 %v357, %v4444
        %v5063 = vmul.f32 %v358, %v4444
        %v5064 = vmul.f32 %v359, %v4449
        %v5065 = vmul.f32 %v360, %v4449
        %v5066 = vmul.f32 %v361, %v4454
        %v5067 = vmul.f32 %v362, %v4454
        %v5068 = vmul.f32 %v363, %v4459
        %v5069 = vmul.f32 %v364, %v4459
        %v5070 = vmul.f32 %v365, %v4464
        %v5071 = vmul.f32 %v366, %v4464
        %v5072 = vmul.f32 %v367, %v4469
        %v5073 = vmul.f32 %v368, %v4469
        %v5074 = vmul.f32 %v369, %v4474
        %v5075 = vmul.f32 %v370, %v4474
        %v5076 = vmul.f32 %v371, %v4479
        %v5077 = vmul.f32 %v372, %v4479
        %v5078 = vmul.f32 %v373, %v4484
        %v5079 = vmul.f32 %v374, %v4484
        %v5080 = vmul.f32 %v375, %v4489
        %v5081 = vmul.f32 %v376, %v4489
        %v5082 = vmul.f32 %v377, %v4494
        %v5083 = vmul.f32 %v378, %v4494
        %v5084 = vmul.f32 %v379, %v4499
        %v5085 = vmul.f32 %v380, %v4499
        %v5086 = vmul.f32 %v381, %v4504
        %v5087 = vmul.f32 %v382, %v4504
        %v5088 = vmul.f32 %v383, %v4509
        %v5089 = vmul.f32 %v384, %v4509
        %v5090 = vmul.f32 %v385, %v4514
        %v5091 = vmul.f32 %v386, %v4514
        %v5092 = vmul.f32 %v387, %v4519
        %v5093 = vmul.f32 %v388, %v4519
        %v5094 = vmul.f32 %v389, %v4524
        %v5095 = vmul.f32 %v390, %v4524
        %v5096 = vmul.f32 %v391, %v4529
        %v5097 = vmul.f32 %v392, %v4529
        %v5098 = vmul.f32 %v393, %v4534
        %v5099 = vmul.f32 %v394, %v4534
        %v5100 = vmul.f32 %v395, %v4539
        %v5101 = vmul.f32 %v396, %v4539
        %v5102 = vmul.f32 %v397, %v4544
        %v5103 = vmul.f32 %v398, %v4544
        %v5104 = vmul.f32 %v399, %v4549
        %v5105 = vmul.f32 %v400, %v4549
        %v5106 = vmul.f32 %v401, %v4554
        %v5107 = vmul.f32 %v402, %v4554
        %v5108 = vmul.f32 %v403, %v4559
        %v5109 = vmul.f32 %v404, %v4559
        %v5110 = vmul.f32 %v405, %v4564
        %v5111 = vmul.f32 %v406, %v4564
        %v5112 = vmul.f32 %v407, %v4569
        %v5113 = vmul.f32 %v408, %v4569
        %v5114 = vmul.f32 %v409, %v4574
        %v5115 = vmul.f32 %v410, %v4574
        %v5116 = vmul.f32 %v411, %v4579
        %v5117 = vmul.f32 %v412, %v4579
        %v5118 = vmul.f32 %v413, %v4584
        %v5119 = vmul.f32 %v414, %v4584
        %v5120 = vmul.f32 %v415, %v4589
        %v5121 = vmul.f32 %v416, %v4589
        %v5122 = vmul.f32 %v417, %v4594
        %v5123 = vmul.f32 %v418, %v4594
        %v5124 = vmul.f32 %v419, %v4599
        %v5125 = vmul.f32 %v420, %v4599
        %v5126 = vmul.f32 %v421, %v4604
        %v5127 = vmul.f32 %v422, %v4604
        %v5128 = vmul.f32 %v423, %v4609
        %v5129 = vmul.f32 %v424, %v4609
        %v5130 = vmul.f32 %v425, %v4614
        %v5131 = vmul.f32 %v426, %v4614
        %v5132 = vmul.f32 %v427, %v4619
        %v5133 = vmul.f32 %v428, %v4619
        %v5134 = vmul.f32 %v429, %v4624
        %v5135 = vmul.f32 %v430, %v4624
        %v5136 = vmul.f32 %v431, %v4629
        %v5137 = vmul.f32 %v432, %v4629
        %v5138 = vmul.f32 %v433, %v4634
        %v5139 = vmul.f32 %v434, %v4634
        %v5140 = vmul.f32 %v435, %v4639
        %v5141 = vmul.f32 %v436, %v4639
        %v5142 = vmul.f32 %v437, %v4644
        %v5143 = vmul.f32 %v438, %v4644
        %v5144 = vmul.f32 %v439, %v4649
        %v5145 = vmul.f32 %v440, %v4649
        %v5146 = vmul.f32 %v441, %v4654
        %v5147 = vmul.f32 %v442, %v4654
        %v5148 = vmul.f32 %v443, %v4659
        %v5149 = vmul.f32 %v444, %v4659
        %v5150 = vmul.f32 %v445, %v4664
        %v5151 = vmul.f32 %v446, %v4664
        %v5152 = vmul.f32 %v447, %v4669
        %v5153 = vmul.f32 %v448, %v4669
        %v5154 = vmul.f32 %v449, %v4674
        %v5155 = vmul.f32 %v450, %v4674
        %v5156 = vmul.f32 %v451, %v4679
        %v5157 = vmul.f32 %v452, %v4679
        %v5158 = vmul.f32 %v453, %v4684
        %v5159 = vmul.f32 %v454, %v4684
        %v5160 = vmul.f32 %v455, %v4689
        %v5161 = vmul.f32 %v456, %v4689
        %v5162 = vmul.f32 %v457, %v4694
        %v5163 = vmul.f32 %v458, %v4694
        %v5164 = vmul.f32 %v459, %v4699
        %v5165 = vmul.f32 %v460, %v4699
        %v5166 = vmul.f32 %v461, %v4704
        %v5167 = vmul.f32 %v462, %v4704
        %v5168 = vmul.f32 %v463, %v4709
        %v5169 = vmul.f32 %v464, %v4709
        %v5170 = vmul.f32 %v465, %v4714
        %v5171 = vmul.f32 %v466, %v4714
        %v5172 = vmul.f32 %v467, %v4719
        %v5173 = vmul.f32 %v468, %v4719
        %v5174 = vmul.f32 %v469, %v4724
        %v5175 = vmul.f32 %v470, %v4724
        %v5176 = vmul.f32 %v471, %v4729
        %v5177 = vmul.f32 %v472, %v4729
        %v5178 = vmul.f32 %v473, %v4734
        %v5179 = vmul.f32 %v474, %v4734
        %v5180 = vmul.f32 %v475, %v4739
        %v5181 = vmul.f32 %v476, %v4739
        %v5182 = vmul.f32 %v477, %v4744
        %v5183 = vmul.f32 %v478, %v4744
        %v5184 = vmul.f32 %v479, %v4749
        %v5185 = vmul.f32 %v480, %v4749
        %v5186 = vmul.f32 %v481, %v4754
        %v5187 = vmul.f32 %v482, %v4754
        %v5188 = vmul.f32 %v483, %v4759
        %v5189 = vmul.f32 %v484, %v4759
        %v5190 = vmul.f32 %v485, %v4764
        %v5191 = vmul.f32 %v486, %v4764
        %v5192 = vmul.f32 %v487, %v4769
        %v5193 = vmul.f32 %v488, %v4769
        %v5194 = vmul.f32 %v489, %v4774
        %v5195 = vmul.f32 %v490, %v4774
        %v5196 = vmul.f32 %v491, %v4779
        %v5197 = vmul.f32 %v492, %v4779
        %v5198 = vmul.f32 %v493, %v4784
        %v5199 = vmul.f32 %v494, %v4784
        %v5200 = vmul.f32 %v495, %v4789
        %v5201 = vmul.f32 %v496, %v4789
        %v5202 = vmul.f32 %v497, %v4794
        %v5203 = vmul.f32 %v498, %v4794
        %v5204 = vmul.f32 %v499, %v4799
        %v5205 = vmul.f32 %v500, %v4799
        %v5206 = vmul.f32 %v501, %v4804
        %v5207 = vmul.f32 %v502, %v4804
        %v5208 = vmul.f32 %v503, %v4809
        %v5209 = vmul.f32 %v504, %v4809
        %v5210 = vmul.f32 %v505, %v4814
        %v5211 = vmul.f32 %v506, %v4814
        %v5212 = vmul.f32 %v507, %v4819
        %v5213 = vmul.f32 %v508, %v4819
        %v5214 = vmul.f32 %v509, %v4824
        %v5215 = vmul.f32 %v510, %v4824
        %v5216 = vmul.f32 %v511, %v4829
        %v5217 = vmul.f32 %v512, %v4829
        %v5218 = vmul.f32 %v513, %v4834
        %v5219 = vmul.f32 %v514, %v4834
        %v5220 = vmul.f32 %v515, %v4839
        %v5221 = vmul.f32 %v516, %v4839
        %v5222 = vmul.f32 %v517, %v4844
        %v5223 = vmul.f32 %v518, %v4844
        %v5224 = vmul.f32 %v519, %v4849
        %v5225 = vmul.f32 %v520, %v4849
        %v5226 = vmul.f32 %v521, %v4854
        %v5227 = vmul.f32 %v522, %v4854
        %v5228 = vmul.f32 %v523, %v4859
        %v5229 = vmul.f32 %v524, %v4859
        %v5230 = vmul.f32 %v525, %v4864
        %v5231 = vmul.f32 %v526, %v4864
        %v5232 = vmul.f32 %v527, %v4869
        %v5233 = vmul.f32 %v528, %v4869
        %v5234 = vmul.f32 %v529, %v4874
        %v5235 = vmul.f32 %v530, %v4874
        %v5236 = vmul.f32 %v531, %v4879
        %v5237 = vmul.f32 %v532, %v4879
        %v5238 = vmul.f32 %v533, %v4884
        %v5239 = vmul.f32 %v534, %v4884
        %v5240 = vmul.f32 %v535, %v4889
        %v5241 = vmul.f32 %v536, %v4889
        %v5242 = vmul.f32 %v537, %v4894
        %v5243 = vmul.f32 %v538, %v4894
        %v5244 = vmul.f32 %v539, %v4899
        %v5245 = vmul.f32 %v540, %v4899
        %v5246 = vmul.f32 %v541, %v4904
        %v5247 = vmul.f32 %v542, %v4904
        %v5248 = vmul.f32 %v543, %v4909
        %v5249 = vmul.f32 %v544, %v4909
        %v5250 = vmul.f32 %v545, %v4914
        %v5251 = vmul.f32 %v546, %v4914
        %5253 = vset.pattern.permute.xlu0 0
        %5254 = vperm.xlu0 %5253, %v3908
        %v5255 = vpop.permute.xlu0 %5254
        %5258 = vset.pattern.permute.xlu0 0
        %5259 = vperm.xlu0 %5258, %v3909
        %v5260 = vpop.permute.xlu0 %5259
        %5263 = vset.pattern.permute.xlu0 0
        %5264 = vperm.xlu0 %5263, %v3910
        %v5265 = vpop.permute.xlu0 %5264
        %5268 = vset.pattern.permute.xlu0 0
        %5269 = vperm.xlu0 %5268, %v3911
        %v5270 = vpop.permute.xlu0 %5269
        %5273 = vset.pattern.permute.xlu0 0
        %5274 = vperm.xlu0 %5273, %v3912
        %v5275 = vpop.permute.xlu0 %5274
        %5278 = vset.pattern.permute.xlu0 0
        %5279 = vperm.xlu0 %5278, %v3913
        %v5280 = vpop.permute.xlu0 %5279
        %5283 = vset.pattern.permute.xlu0 0
        %5284 = vperm.xlu0 %5283, %v3914
        %v5285 = vpop.permute.xlu0 %5284
        %5288 = vset.pattern.permute.xlu0 0
        %5289 = vperm.xlu0 %5288, %v3915
        %v5290 = vpop.permute.xlu0 %5289
        %5293 = vset.pattern.permute.xlu0 0
        %5294 = vperm.xlu0 %5293, %v3916
        %v5295 = vpop.permute.xlu0 %5294
        %5298 = vset.pattern.permute.xlu0 0
        %5299 = vperm.xlu0 %5298, %v3917
        %v5300 = vpop.permute.xlu0 %5299
        %5303 = vset.pattern.permute.xlu0 0
        %5304 = vperm.xlu0 %5303, %v3918
        %v5305 = vpop.permute.xlu0 %5304
        %5308 = vset.pattern.permute.xlu0 0
        %5309 = vperm.xlu0 %5308, %v3919
        %v5310 = vpop.permute.xlu0 %5309
        %5313 = vset.pattern.permute.xlu0 0
        %5314 = vperm.xlu0 %5313, %v3920
        %v5315 = vpop.permute.xlu0 %5314
        %5318 = vset.pattern.permute.xlu0 0
        %5319 = vperm.xlu0 %5318, %v3921
        %v5320 = vpop.permute.xlu0 %5319
        %5323 = vset.pattern.permute.xlu0 0
        %5324 = vperm.xlu0 %5323, %v3922
        %v5325 = vpop.permute.xlu0 %5324
        %5328 = vset.pattern.permute.xlu0 0
        %5329 = vperm.xlu0 %5328, %v3923
        %v5330 = vpop.permute.xlu0 %5329
        %5333 = vset.pattern.permute.xlu0 0
        %5334 = vperm.xlu0 %5333, %v3924
        %v5335 = vpop.permute.xlu0 %5334
        %5338 = vset.pattern.permute.xlu0 0
        %5339 = vperm.xlu0 %5338, %v3925
        %v5340 = vpop.permute.xlu0 %5339
        %5343 = vset.pattern.permute.xlu0 0
        %5344 = vperm.xlu0 %5343, %v3926
        %v5345 = vpop.permute.xlu0 %5344
        %5348 = vset.pattern.permute.xlu0 0
        %5349 = vperm.xlu0 %5348, %v3927
        %v5350 = vpop.permute.xlu0 %5349
        %5353 = vset.pattern.permute.xlu0 0
        %5354 = vperm.xlu0 %5353, %v3928
        %v5355 = vpop.permute.xlu0 %5354
        %5358 = vset.pattern.permute.xlu0 0
        %5359 = vperm.xlu0 %5358, %v3929
        %v5360 = vpop.permute.xlu0 %5359
        %5363 = vset.pattern.permute.xlu0 0
        %5364 = vperm.xlu0 %5363, %v3930
        %v5365 = vpop.permute.xlu0 %5364
        %5368 = vset.pattern.permute.xlu0 0
        %5369 = vperm.xlu0 %5368, %v3931
        %v5370 = vpop.permute.xlu0 %5369
        %5373 = vset.pattern.permute.xlu0 0
        %5374 = vperm.xlu0 %5373, %v3932
        %v5375 = vpop.permute.xlu0 %5374
        %5378 = vset.pattern.permute.xlu0 0
        %5379 = vperm.xlu0 %5378, %v3933
        %v5380 = vpop.permute.xlu0 %5379
        %5383 = vset.pattern.permute.xlu0 0
        %5384 = vperm.xlu0 %5383, %v3934
        %v5385 = vpop.permute.xlu0 %5384
        %5388 = vset.pattern.permute.xlu0 0
        %5389 = vperm.xlu0 %5388, %v3935
        %v5390 = vpop.permute.xlu0 %5389
        %5393 = vset.pattern.permute.xlu0 0
        %5394 = vperm.xlu0 %5393, %v3936
        %v5395 = vpop.permute.xlu0 %5394
        %5398 = vset.pattern.permute.xlu0 0
        %5399 = vperm.xlu0 %5398, %v3937
        %v5400 = vpop.permute.xlu0 %5399
        %5403 = vset.pattern.permute.xlu0 0
        %5404 = vperm.xlu0 %5403, %v3938
        %v5405 = vpop.permute.xlu0 %5404
        %5408 = vset.pattern.permute.xlu0 0
        %5409 = vperm.xlu0 %5408, %v3939
        %v5410 = vpop.permute.xlu0 %5409
        %5413 = vset.pattern.permute.xlu0 0
        %5414 = vperm.xlu0 %5413, %v3940
        %v5415 = vpop.permute.xlu0 %5414
        %5418 = vset.pattern.permute.xlu0 0
        %5419 = vperm.xlu0 %5418, %v3941
        %v5420 = vpop.permute.xlu0 %5419
        %5423 = vset.pattern.permute.xlu0 0
        %5424 = vperm.xlu0 %5423, %v3942
        %v5425 = vpop.permute.xlu0 %5424
        %5428 = vset.pattern.permute.xlu0 0
        %5429 = vperm.xlu0 %5428, %v3943
        %v5430 = vpop.permute.xlu0 %5429
        %5433 = vset.pattern.permute.xlu0 0
        %5434 = vperm.xlu0 %5433, %v3944
        %v5435 = vpop.permute.xlu0 %5434
        %5438 = vset.pattern.permute.xlu0 0
        %5439 = vperm.xlu0 %5438, %v3945
        %v5440 = vpop.permute.xlu0 %5439
        %5443 = vset.pattern.permute.xlu0 0
        %5444 = vperm.xlu0 %5443, %v3946
        %v5445 = vpop.permute.xlu0 %5444
        %5448 = vset.pattern.permute.xlu0 0
        %5449 = vperm.xlu0 %5448, %v3947
        %v5450 = vpop.permute.xlu0 %5449
        %5453 = vset.pattern.permute.xlu0 0
        %5454 = vperm.xlu0 %5453, %v3948
        %v5455 = vpop.permute.xlu0 %5454
        %5458 = vset.pattern.permute.xlu0 0
        %5459 = vperm.xlu0 %5458, %v3949
        %v5460 = vpop.permute.xlu0 %5459
        %5463 = vset.pattern.permute.xlu0 0
        %5464 = vperm.xlu0 %5463, %v3950
        %v5465 = vpop.permute.xlu0 %5464
        %5468 = vset.pattern.permute.xlu0 0
        %5469 = vperm.xlu0 %5468, %v3951
        %v5470 = vpop.permute.xlu0 %5469
        %5473 = vset.pattern.permute.xlu0 0
        %5474 = vperm.xlu0 %5473, %v3952
        %v5475 = vpop.permute.xlu0 %5474
        %5478 = vset.pattern.permute.xlu0 0
        %5479 = vperm.xlu0 %5478, %v3953
        %v5480 = vpop.permute.xlu0 %5479
        %5483 = vset.pattern.permute.xlu0 0
        %5484 = vperm.xlu0 %5483, %v3954
        %v5485 = vpop.permute.xlu0 %5484
        %5488 = vset.pattern.permute.xlu0 0
        %5489 = vperm.xlu0 %5488, %v3955
        %v5490 = vpop.permute.xlu0 %5489
        %5493 = vset.pattern.permute.xlu0 0
        %5494 = vperm.xlu0 %5493, %v3956
        %v5495 = vpop.permute.xlu0 %5494
        %5498 = vset.pattern.permute.xlu0 0
        %5499 = vperm.xlu0 %5498, %v3957
        %v5500 = vpop.permute.xlu0 %5499
        %5503 = vset.pattern.permute.xlu0 0
        %5504 = vperm.xlu0 %5503, %v3958
        %v5505 = vpop.permute.xlu0 %5504
        %5508 = vset.pattern.permute.xlu0 0
        %5509 = vperm.xlu0 %5508, %v3959
        %v5510 = vpop.permute.xlu0 %5509
        %5513 = vset.pattern.permute.xlu0 0
        %5514 = vperm.xlu0 %5513, %v3960
        %v5515 = vpop.permute.xlu0 %5514
        %5518 = vset.pattern.permute.xlu0 0
        %5519 = vperm.xlu0 %5518, %v3961
        %v5520 = vpop.permute.xlu0 %5519
        %5523 = vset.pattern.permute.xlu0 0
        %5524 = vperm.xlu0 %5523, %v3962
        %v5525 = vpop.permute.xlu0 %5524
        %5528 = vset.pattern.permute.xlu0 0
        %5529 = vperm.xlu0 %5528, %v3963
        %v5530 = vpop.permute.xlu0 %5529
        %5533 = vset.pattern.permute.xlu0 0
        %5534 = vperm.xlu0 %5533, %v3964
        %v5535 = vpop.permute.xlu0 %5534
        %5538 = vset.pattern.permute.xlu0 0
        %5539 = vperm.xlu0 %5538, %v3965
        %v5540 = vpop.permute.xlu0 %5539
        %5543 = vset.pattern.permute.xlu0 0
        %5544 = vperm.xlu0 %5543, %v3966
        %v5545 = vpop.permute.xlu0 %5544
        %5548 = vset.pattern.permute.xlu0 0
        %5549 = vperm.xlu0 %5548, %v3967
        %v5550 = vpop.permute.xlu0 %5549
        %5553 = vset.pattern.permute.xlu0 0
        %5554 = vperm.xlu0 %5553, %v3968
        %v5555 = vpop.permute.xlu0 %5554
        %5558 = vset.pattern.permute.xlu0 0
        %5559 = vperm.xlu0 %5558, %v3969
        %v5560 = vpop.permute.xlu0 %5559
        %5563 = vset.pattern.permute.xlu0 0
        %5564 = vperm.xlu0 %5563, %v3970
        %v5565 = vpop.permute.xlu0 %5564
        %5568 = vset.pattern.permute.xlu0 0
        %5569 = vperm.xlu0 %5568, %v3971
        %v5570 = vpop.permute.xlu0 %5569
        %5573 = vset.pattern.permute.xlu0 0
        %5574 = vperm.xlu0 %5573, %v3972
        %v5575 = vpop.permute.xlu0 %5574
        %5578 = vset.pattern.permute.xlu0 0
        %5579 = vperm.xlu0 %5578, %v3973
        %v5580 = vpop.permute.xlu0 %5579
        %5583 = vset.pattern.permute.xlu0 0
        %5584 = vperm.xlu0 %5583, %v3974
        %v5585 = vpop.permute.xlu0 %5584
        %5588 = vset.pattern.permute.xlu0 0
        %5589 = vperm.xlu0 %5588, %v3975
        %v5590 = vpop.permute.xlu0 %5589
        %5593 = vset.pattern.permute.xlu0 0
        %5594 = vperm.xlu0 %5593, %v3976
        %v5595 = vpop.permute.xlu0 %5594
        %5598 = vset.pattern.permute.xlu0 0
        %5599 = vperm.xlu0 %5598, %v3977
        %v5600 = vpop.permute.xlu0 %5599
        %5603 = vset.pattern.permute.xlu0 0
        %5604 = vperm.xlu0 %5603, %v3978
        %v5605 = vpop.permute.xlu0 %5604
        %5608 = vset.pattern.permute.xlu0 0
        %5609 = vperm.xlu0 %5608, %v3979
        %v5610 = vpop.permute.xlu0 %5609
        %5613 = vset.pattern.permute.xlu0 0
        %5614 = vperm.xlu0 %5613, %v3980
        %v5615 = vpop.permute.xlu0 %5614
        %5618 = vset.pattern.permute.xlu0 0
        %5619 = vperm.xlu0 %5618, %v3981
        %v5620 = vpop.permute.xlu0 %5619
        %5623 = vset.pattern.permute.xlu0 0
        %5624 = vperm.xlu0 %5623, %v3982
        %v5625 = vpop.permute.xlu0 %5624
        %5628 = vset.pattern.permute.xlu0 0
        %5629 = vperm.xlu0 %5628, %v3983
        %v5630 = vpop.permute.xlu0 %5629
        %5633 = vset.pattern.permute.xlu0 0
        %5634 = vperm.xlu0 %5633, %v3984
        %v5635 = vpop.permute.xlu0 %5634
        %5638 = vset.pattern.permute.xlu0 0
        %5639 = vperm.xlu0 %5638, %v3985
        %v5640 = vpop.permute.xlu0 %5639
        %5643 = vset.pattern.permute.xlu0 0
        %5644 = vperm.xlu0 %5643, %v3986
        %v5645 = vpop.permute.xlu0 %5644
        %5648 = vset.pattern.permute.xlu0 0
        %5649 = vperm.xlu0 %5648, %v3987
        %v5650 = vpop.permute.xlu0 %5649
        %5653 = vset.pattern.permute.xlu0 0
        %5654 = vperm.xlu0 %5653, %v3988
        %v5655 = vpop.permute.xlu0 %5654
        %5658 = vset.pattern.permute.xlu0 0
        %5659 = vperm.xlu0 %5658, %v3989
        %v5660 = vpop.permute.xlu0 %5659
        %5663 = vset.pattern.permute.xlu0 0
        %5664 = vperm.xlu0 %5663, %v3990
        %v5665 = vpop.permute.xlu0 %5664
        %5668 = vset.pattern.permute.xlu0 0
        %5669 = vperm.xlu0 %5668, %v3991
        %v5670 = vpop.permute.xlu0 %5669
        %5673 = vset.pattern.permute.xlu0 0
        %5674 = vperm.xlu0 %5673, %v3992
        %v5675 = vpop.permute.xlu0 %5674
        %5678 = vset.pattern.permute.xlu0 0
        %5679 = vperm.xlu0 %5678, %v3993
        %v5680 = vpop.permute.xlu0 %5679
        %5683 = vset.pattern.permute.xlu0 0
        %5684 = vperm.xlu0 %5683, %v3994
        %v5685 = vpop.permute.xlu0 %5684
        %5688 = vset.pattern.permute.xlu0 0
        %5689 = vperm.xlu0 %5688, %v3995
        %v5690 = vpop.permute.xlu0 %5689
        %5693 = vset.pattern.permute.xlu0 0
        %5694 = vperm.xlu0 %5693, %v3996
        %v5695 = vpop.permute.xlu0 %5694
        %5698 = vset.pattern.permute.xlu0 0
        %5699 = vperm.xlu0 %5698, %v3997
        %v5700 = vpop.permute.xlu0 %5699
        %5703 = vset.pattern.permute.xlu0 0
        %5704 = vperm.xlu0 %5703, %v3998
        %v5705 = vpop.permute.xlu0 %5704
        %5708 = vset.pattern.permute.xlu0 0
        %5709 = vperm.xlu0 %5708, %v3999
        %v5710 = vpop.permute.xlu0 %5709
        %5713 = vset.pattern.permute.xlu0 0
        %5714 = vperm.xlu0 %5713, %v4000
        %v5715 = vpop.permute.xlu0 %5714
        %5718 = vset.pattern.permute.xlu0 0
        %5719 = vperm.xlu0 %5718, %v4001
        %v5720 = vpop.permute.xlu0 %5719
        %5723 = vset.pattern.permute.xlu0 0
        %5724 = vperm.xlu0 %5723, %v4002
        %v5725 = vpop.permute.xlu0 %5724
        %5728 = vset.pattern.permute.xlu0 0
        %5729 = vperm.xlu0 %5728, %v4003
        %v5730 = vpop.permute.xlu0 %5729
        %5733 = vset.pattern.permute.xlu0 0
        %5734 = vperm.xlu0 %5733, %v4004
        %v5735 = vpop.permute.xlu0 %5734
        %5738 = vset.pattern.permute.xlu0 0
        %5739 = vperm.xlu0 %5738, %v4005
        %v5740 = vpop.permute.xlu0 %5739
        %5743 = vset.pattern.permute.xlu0 0
        %5744 = vperm.xlu0 %5743, %v4006
        %v5745 = vpop.permute.xlu0 %5744
        %5748 = vset.pattern.permute.xlu0 0
        %5749 = vperm.xlu0 %5748, %v4007
        %v5750 = vpop.permute.xlu0 %5749
        %5753 = vset.pattern.permute.xlu0 0
        %5754 = vperm.xlu0 %5753, %v4008
        %v5755 = vpop.permute.xlu0 %5754
        %5758 = vset.pattern.permute.xlu0 0
        %5759 = vperm.xlu0 %5758, %v4009
        %v5760 = vpop.permute.xlu0 %5759
        %5763 = vset.pattern.permute.xlu0 0
        %5764 = vperm.xlu0 %5763, %v4010
        %v5765 = vpop.permute.xlu0 %5764
        %5768 = vset.pattern.permute.xlu0 0
        %5769 = vperm.xlu0 %5768, %v4011
        %v5770 = vpop.permute.xlu0 %5769
        %5773 = vset.pattern.permute.xlu0 0
        %5774 = vperm.xlu0 %5773, %v4012
        %v5775 = vpop.permute.xlu0 %5774
        %5778 = vset.pattern.permute.xlu0 0
        %5779 = vperm.xlu0 %5778, %v4013
        %v5780 = vpop.permute.xlu0 %5779
        %5783 = vset.pattern.permute.xlu0 0
        %5784 = vperm.xlu0 %5783, %v4014
        %v5785 = vpop.permute.xlu0 %5784
        %5788 = vset.pattern.permute.xlu0 0
        %5789 = vperm.xlu0 %5788, %v4015
        %v5790 = vpop.permute.xlu0 %5789
        %5793 = vset.pattern.permute.xlu0 0
        %5794 = vperm.xlu0 %5793, %v4016
        %v5795 = vpop.permute.xlu0 %5794
        %5798 = vset.pattern.permute.xlu0 0
        %5799 = vperm.xlu0 %5798, %v4017
        %v5800 = vpop.permute.xlu0 %5799
        %5803 = vset.pattern.permute.xlu0 0
        %5804 = vperm.xlu0 %5803, %v4018
        %v5805 = vpop.permute.xlu0 %5804
        %5808 = vset.pattern.permute.xlu0 0
        %5809 = vperm.xlu0 %5808, %v4019
        %v5810 = vpop.permute.xlu0 %5809
        %5813 = vset.pattern.permute.xlu0 0
        %5814 = vperm.xlu0 %5813, %v4020
        %v5815 = vpop.permute.xlu0 %5814
        %5818 = vset.pattern.permute.xlu0 0
        %5819 = vperm.xlu0 %5818, %v4021
        %v5820 = vpop.permute.xlu0 %5819
        %5823 = vset.pattern.permute.xlu0 0
        %5824 = vperm.xlu0 %5823, %v4022
        %v5825 = vpop.permute.xlu0 %5824
        %5828 = vset.pattern.permute.xlu0 0
        %5829 = vperm.xlu0 %5828, %v4023
        %v5830 = vpop.permute.xlu0 %5829
        %5833 = vset.pattern.permute.xlu0 0
        %5834 = vperm.xlu0 %5833, %v4024
        %v5835 = vpop.permute.xlu0 %5834
        %5838 = vset.pattern.permute.xlu0 0
        %5839 = vperm.xlu0 %5838, %v4025
        %v5840 = vpop.permute.xlu0 %5839
        %5843 = vset.pattern.permute.xlu0 0
        %5844 = vperm.xlu0 %5843, %v4026
        %v5845 = vpop.permute.xlu0 %5844
        %5848 = vset.pattern.permute.xlu0 0
        %5849 = vperm.xlu0 %5848, %v4027
        %v5850 = vpop.permute.xlu0 %5849
        %5853 = vset.pattern.permute.xlu0 0
        %5854 = vperm.xlu0 %5853, %v4028
        %v5855 = vpop.permute.xlu0 %5854
        %5858 = vset.pattern.permute.xlu0 0
        %5859 = vperm.xlu0 %5858, %v4029
        %v5860 = vpop.permute.xlu0 %5859
        %5863 = vset.pattern.permute.xlu0 0
        %5864 = vperm.xlu0 %5863, %v4030
        %v5865 = vpop.permute.xlu0 %5864
        %5868 = vset.pattern.permute.xlu0 0
        %5869 = vperm.xlu0 %5868, %v4031
        %v5870 = vpop.permute.xlu0 %5869
        %5873 = vset.pattern.permute.xlu0 0
        %5874 = vperm.xlu0 %5873, %v4032
        %v5875 = vpop.permute.xlu0 %5874
        %5878 = vset.pattern.permute.xlu0 0
        %5879 = vperm.xlu0 %5878, %v4033
        %v5880 = vpop.permute.xlu0 %5879
        %5883 = vset.pattern.permute.xlu0 0
        %5884 = vperm.xlu0 %5883, %v4034
        %v5885 = vpop.permute.xlu0 %5884
        %5888 = vset.pattern.permute.xlu0 0
        %5889 = vperm.xlu0 %5888, %v4035
        %v5890 = vpop.permute.xlu0 %5889
        %5893 = vset.pattern.permute.xlu0 0
        %5894 = vperm.xlu0 %5893, %v4036
        %v5895 = vpop.permute.xlu0 %5894
        %5898 = vset.pattern.permute.xlu0 0
        %5899 = vperm.xlu0 %5898, %v4037
        %v5900 = vpop.permute.xlu0 %5899
        %5903 = vset.pattern.permute.xlu0 0
        %5904 = vperm.xlu0 %5903, %v4038
        %v5905 = vpop.permute.xlu0 %5904
        %5908 = vset.pattern.permute.xlu0 0
        %5909 = vperm.xlu0 %5908, %v4039
        %v5910 = vpop.permute.xlu0 %5909
        %5913 = vset.pattern.permute.xlu0 0
        %5914 = vperm.xlu0 %5913, %v4040
        %v5915 = vpop.permute.xlu0 %5914
        %5918 = vset.pattern.permute.xlu0 0
        %5919 = vperm.xlu0 %5918, %v4041
        %v5920 = vpop.permute.xlu0 %5919
        %5923 = vset.pattern.permute.xlu0 0
        %5924 = vperm.xlu0 %5923, %v4042
        %v5925 = vpop.permute.xlu0 %5924
        %5928 = vset.pattern.permute.xlu0 0
        %5929 = vperm.xlu0 %5928, %v4043
        %v5930 = vpop.permute.xlu0 %5929
        %5933 = vset.pattern.permute.xlu0 0
        %5934 = vperm.xlu0 %5933, %v4044
        %v5935 = vpop.permute.xlu0 %5934
        %5938 = vset.pattern.permute.xlu0 0
        %5939 = vperm.xlu0 %5938, %v4045
        %v5940 = vpop.permute.xlu0 %5939
        %5943 = vset.pattern.permute.xlu0 0
        %5944 = vperm.xlu0 %5943, %v4046
        %v5945 = vpop.permute.xlu0 %5944
        %5948 = vset.pattern.permute.xlu0 0
        %5949 = vperm.xlu0 %5948, %v4047
        %v5950 = vpop.permute.xlu0 %5949
        %5953 = vset.pattern.permute.xlu0 0
        %5954 = vperm.xlu0 %5953, %v4048
        %v5955 = vpop.permute.xlu0 %5954
        %5958 = vset.pattern.permute.xlu0 0
        %5959 = vperm.xlu0 %5958, %v4049
        %v5960 = vpop.permute.xlu0 %5959
        %5963 = vset.pattern.permute.xlu0 0
        %5964 = vperm.xlu0 %5963, %v4050
        %v5965 = vpop.permute.xlu0 %5964
        %5968 = vset.pattern.permute.xlu0 0
        %5969 = vperm.xlu0 %5968, %v4051
        %v5970 = vpop.permute.xlu0 %5969
        %5973 = vset.pattern.permute.xlu0 0
        %5974 = vperm.xlu0 %5973, %v4052
        %v5975 = vpop.permute.xlu0 %5974
        %5978 = vset.pattern.permute.xlu0 0
        %5979 = vperm.xlu0 %5978, %v4053
        %v5980 = vpop.permute.xlu0 %5979
        %5983 = vset.pattern.permute.xlu0 0
        %5984 = vperm.xlu0 %5983, %v4054
        %v5985 = vpop.permute.xlu0 %5984
        %5988 = vset.pattern.permute.xlu0 0
        %5989 = vperm.xlu0 %5988, %v4055
        %v5990 = vpop.permute.xlu0 %5989
        %5993 = vset.pattern.permute.xlu0 0
        %5994 = vperm.xlu0 %5993, %v4056
        %v5995 = vpop.permute.xlu0 %5994
        %5998 = vset.pattern.permute.xlu0 0
        %5999 = vperm.xlu0 %5998, %v4057
        %v6000 = vpop.permute.xlu0 %5999
        %6003 = vset.pattern.permute.xlu0 0
        %6004 = vperm.xlu0 %6003, %v4058
        %v6005 = vpop.permute.xlu0 %6004
        %6008 = vset.pattern.permute.xlu0 0
        %6009 = vperm.xlu0 %6008, %v4059
        %v6010 = vpop.permute.xlu0 %6009
        %6013 = vset.pattern.permute.xlu0 0
        %6014 = vperm.xlu0 %6013, %v4060
        %v6015 = vpop.permute.xlu0 %6014
        %6018 = vset.pattern.permute.xlu0 0
        %6019 = vperm.xlu0 %6018, %v4061
        %v6020 = vpop.permute.xlu0 %6019
        %6023 = vset.pattern.permute.xlu0 0
        %6024 = vperm.xlu0 %6023, %v4062
        %v6025 = vpop.permute.xlu0 %6024
        %6028 = vset.pattern.permute.xlu0 0
        %6029 = vperm.xlu0 %6028, %v4063
        %v6030 = vpop.permute.xlu0 %6029
        %6033 = vset.pattern.permute.xlu0 0
        %6034 = vperm.xlu0 %6033, %v4064
        %v6035 = vpop.permute.xlu0 %6034
        %6038 = vset.pattern.permute.xlu0 0
        %6039 = vperm.xlu0 %6038, %v4065
        %v6040 = vpop.permute.xlu0 %6039
        %6043 = vset.pattern.permute.xlu0 0
        %6044 = vperm.xlu0 %6043, %v4066
        %v6045 = vpop.permute.xlu0 %6044
        %6048 = vset.pattern.permute.xlu0 0
        %6049 = vperm.xlu0 %6048, %v4067
        %v6050 = vpop.permute.xlu0 %6049
        %6053 = vset.pattern.permute.xlu0 0
        %6054 = vperm.xlu0 %6053, %v4068
        %v6055 = vpop.permute.xlu0 %6054
        %6058 = vset.pattern.permute.xlu0 0
        %6059 = vperm.xlu0 %6058, %v4069
        %v6060 = vpop.permute.xlu0 %6059
        %6063 = vset.pattern.permute.xlu0 0
        %6064 = vperm.xlu0 %6063, %v4070
        %v6065 = vpop.permute.xlu0 %6064
        %6068 = vset.pattern.permute.xlu0 0
        %6069 = vperm.xlu0 %6068, %v4071
        %v6070 = vpop.permute.xlu0 %6069
        %6073 = vset.pattern.permute.xlu0 0
        %6074 = vperm.xlu0 %6073, %v4072
        %v6075 = vpop.permute.xlu0 %6074
        %6078 = vset.pattern.permute.xlu0 0
        %6079 = vperm.xlu0 %6078, %v4073
        %v6080 = vpop.permute.xlu0 %6079
        %6083 = vset.pattern.permute.xlu0 0
        %6084 = vperm.xlu0 %6083, %v4074
        %v6085 = vpop.permute.xlu0 %6084
        %6088 = vset.pattern.permute.xlu0 0
        %6089 = vperm.xlu0 %6088, %v4075
        %v6090 = vpop.permute.xlu0 %6089
        %v6092 = vadd.f32 %v4916, %v5255
        %v6093 = vadd.f32 %v4917, %v5255
        %v6094 = vadd.f32 %v4918, %v5260
        %v6095 = vadd.f32 %v4919, %v5260
        %v6096 = vadd.f32 %v4920, %v5265
        %v6097 = vadd.f32 %v4921, %v5265
        %v6098 = vadd.f32 %v4922, %v5270
        %v6099 = vadd.f32 %v4923, %v5270
        %v6100 = vadd.f32 %v4924, %v5275
        %v6101 = vadd.f32 %v4925, %v5275
        %v6102 = vadd.f32 %v4926, %v5280
        %v6103 = vadd.f32 %v4927, %v5280
        %v6104 = vadd.f32 %v4928, %v5285
        %v6105 = vadd.f32 %v4929, %v5285
        %v6106 = vadd.f32 %v4930, %v5290
        %v6107 = vadd.f32 %v4931, %v5290
        %v6108 = vadd.f32 %v4932, %v5295
        %v6109 = vadd.f32 %v4933, %v5295
        %v6110 = vadd.f32 %v4934, %v5300
        %v6111 = vadd.f32 %v4935, %v5300
        %v6112 = vadd.f32 %v4936, %v5305
        %v6113 = vadd.f32 %v4937, %v5305
        %v6114 = vadd.f32 %v4938, %v5310
        %v6115 = vadd.f32 %v4939, %v5310
        %v6116 = vadd.f32 %v4940, %v5315
        %v6117 = vadd.f32 %v4941, %v5315
        %v6118 = vadd.f32 %v4942, %v5320
        %v6119 = vadd.f32 %v4943, %v5320
        %v6120 = vadd.f32 %v4944, %v5325
        %v6121 = vadd.f32 %v4945, %v5325
        %v6122 = vadd.f32 %v4946, %v5330
        %v6123 = vadd.f32 %v4947, %v5330
        %v6124 = vadd.f32 %v4948, %v5335
        %v6125 = vadd.f32 %v4949, %v5335
        %v6126 = vadd.f32 %v4950, %v5340
        %v6127 = vadd.f32 %v4951, %v5340
        %v6128 = vadd.f32 %v4952, %v5345
        %v6129 = vadd.f32 %v4953, %v5345
        %v6130 = vadd.f32 %v4954, %v5350
        %v6131 = vadd.f32 %v4955, %v5350
        %v6132 = vadd.f32 %v4956, %v5355
        %v6133 = vadd.f32 %v4957, %v5355
        %v6134 = vadd.f32 %v4958, %v5360
        %v6135 = vadd.f32 %v4959, %v5360
        %v6136 = vadd.f32 %v4960, %v5365
        %v6137 = vadd.f32 %v4961, %v5365
        %v6138 = vadd.f32 %v4962, %v5370
        %v6139 = vadd.f32 %v4963, %v5370
        %v6140 = vadd.f32 %v4964, %v5375
        %v6141 = vadd.f32 %v4965, %v5375
        %v6142 = vadd.f32 %v4966, %v5380
        %v6143 = vadd.f32 %v4967, %v5380
        %v6144 = vadd.f32 %v4968, %v5385
        %v6145 = vadd.f32 %v4969, %v5385
        %v6146 = vadd.f32 %v4970, %v5390
        %v6147 = vadd.f32 %v4971, %v5390
        %v6148 = vadd.f32 %v4972, %v5395
        %v6149 = vadd.f32 %v4973, %v5395
        %v6150 = vadd.f32 %v4974, %v5400
        %v6151 = vadd.f32 %v4975, %v5400
        %v6152 = vadd.f32 %v4976, %v5405
        %v6153 = vadd.f32 %v4977, %v5405
        %v6154 = vadd.f32 %v4978, %v5410
        %v6155 = vadd.f32 %v4979, %v5410
        %v6156 = vadd.f32 %v4980, %v5415
        %v6157 = vadd.f32 %v4981, %v5415
        %v6158 = vadd.f32 %v4982, %v5420
        %v6159 = vadd.f32 %v4983, %v5420
        %v6160 = vadd.f32 %v4984, %v5425
        %v6161 = vadd.f32 %v4985, %v5425
        %v6162 = vadd.f32 %v4986, %v5430
        %v6163 = vadd.f32 %v4987, %v5430
        %v6164 = vadd.f32 %v4988, %v5435
        %v6165 = vadd.f32 %v4989, %v5435
        %v6166 = vadd.f32 %v4990, %v5440
        %v6167 = vadd.f32 %v4991, %v5440
        %v6168 = vadd.f32 %v4992, %v5445
        %v6169 = vadd.f32 %v4993, %v5445
        %v6170 = vadd.f32 %v4994, %v5450
        %v6171 = vadd.f32 %v4995, %v5450
        %v6172 = vadd.f32 %v4996, %v5455
        %v6173 = vadd.f32 %v4997, %v5455
        %v6174 = vadd.f32 %v4998, %v5460
        %v6175 = vadd.f32 %v4999, %v5460
        %v6176 = vadd.f32 %v5000, %v5465
        %v6177 = vadd.f32 %v5001, %v5465
        %v6178 = vadd.f32 %v5002, %v5470
        %v6179 = vadd.f32 %v5003, %v5470
        %v6180 = vadd.f32 %v5004, %v5475
        %v6181 = vadd.f32 %v5005, %v5475
        %v6182 = vadd.f32 %v5006, %v5480
        %v6183 = vadd.f32 %v5007, %v5480
        %v6184 = vadd.f32 %v5008, %v5485
        %v6185 = vadd.f32 %v5009, %v5485
        %v6186 = vadd.f32 %v5010, %v5490
        %v6187 = vadd.f32 %v5011, %v5490
        %v6188 = vadd.f32 %v5012, %v5495
        %v6189 = vadd.f32 %v5013, %v5495
        %v6190 = vadd.f32 %v5014, %v5500
        %v6191 = vadd.f32 %v5015, %v5500
        %v6192 = vadd.f32 %v5016, %v5505
        %v6193 = vadd.f32 %v5017, %v5505
        %v6194 = vadd.f32 %v5018, %v5510
        %v6195 = vadd.f32 %v5019, %v5510
        %v6196 = vadd.f32 %v5020, %v5515
        %v6197 = vadd.f32 %v5021, %v5515
        %v6198 = vadd.f32 %v5022, %v5520
        %v6199 = vadd.f32 %v5023, %v5520
        %v6200 = vadd.f32 %v5024, %v5525
        %v6201 = vadd.f32 %v5025, %v5525
        %v6202 = vadd.f32 %v5026, %v5530
        %v6203 = vadd.f32 %v5027, %v5530
        %v6204 = vadd.f32 %v5028, %v5535
        %v6205 = vadd.f32 %v5029, %v5535
        %v6206 = vadd.f32 %v5030, %v5540
        %v6207 = vadd.f32 %v5031, %v5540
        %v6208 = vadd.f32 %v5032, %v5545
        %v6209 = vadd.f32 %v5033, %v5545
        %v6210 = vadd.f32 %v5034, %v5550
        %v6211 = vadd.f32 %v5035, %v5550
        %v6212 = vadd.f32 %v5036, %v5555
        %v6213 = vadd.f32 %v5037, %v5555
        %v6214 = vadd.f32 %v5038, %v5560
        %v6215 = vadd.f32 %v5039, %v5560
        %v6216 = vadd.f32 %v5040, %v5565
        %v6217 = vadd.f32 %v5041, %v5565
        %v6218 = vadd.f32 %v5042, %v5570
        %v6219 = vadd.f32 %v5043, %v5570
        %v6220 = vadd.f32 %v5044, %v5575
        %v6221 = vadd.f32 %v5045, %v5575
        %v6222 = vadd.f32 %v5046, %v5580
        %v6223 = vadd.f32 %v5047, %v5580
        %v6224 = vadd.f32 %v5048, %v5585
        %v6225 = vadd.f32 %v5049, %v5585
        %v6226 = vadd.f32 %v5050, %v5590
        %v6227 = vadd.f32 %v5051, %v5590
        %v6228 = vadd.f32 %v5052, %v5595
        %v6229 = vadd.f32 %v5053, %v5595
        %v6230 = vadd.f32 %v5054, %v5600
        %v6231 = vadd.f32 %v5055, %v5600
        %v6232 = vadd.f32 %v5056, %v5605
        %v6233 = vadd.f32 %v5057, %v5605
        %v6234 = vadd.f32 %v5058, %v5610
        %v6235 = vadd.f32 %v5059, %v5610
        %v6236 = vadd.f32 %v5060, %v5615
        %v6237 = vadd.f32 %v5061, %v5615
        %v6238 = vadd.f32 %v5062, %v5620
        %v6239 = vadd.f32 %v5063, %v5620
        %v6240 = vadd.f32 %v5064, %v5625
        %v6241 = vadd.f32 %v5065, %v5625
        %v6242 = vadd.f32 %v5066, %v5630
        %v6243 = vadd.f32 %v5067, %v5630
        %v6244 = vadd.f32 %v5068, %v5635
        %v6245 = vadd.f32 %v5069, %v5635
        %v6246 = vadd.f32 %v5070, %v5640
        %v6247 = vadd.f32 %v5071, %v5640
        %v6248 = vadd.f32 %v5072, %v5645
        %v6249 = vadd.f32 %v5073, %v5645
        %v6250 = vadd.f32 %v5074, %v5650
        %v6251 = vadd.f32 %v5075, %v5650
        %v6252 = vadd.f32 %v5076, %v5655
        %v6253 = vadd.f32 %v5077, %v5655
        %v6254 = vadd.f32 %v5078, %v5660
        %v6255 = vadd.f32 %v5079, %v5660
        %v6256 = vadd.f32 %v5080, %v5665
        %v6257 = vadd.f32 %v5081, %v5665
        %v6258 = vadd.f32 %v5082, %v5670
        %v6259 = vadd.f32 %v5083, %v5670
        %v6260 = vadd.f32 %v5084, %v5675
        %v6261 = vadd.f32 %v5085, %v5675
        %v6262 = vadd.f32 %v5086, %v5680
        %v6263 = vadd.f32 %v5087, %v5680
        %v6264 = vadd.f32 %v5088, %v5685
        %v6265 = vadd.f32 %v5089, %v5685
        %v6266 = vadd.f32 %v5090, %v5690
        %v6267 = vadd.f32 %v5091, %v5690
        %v6268 = vadd.f32 %v5092, %v5695
        %v6269 = vadd.f32 %v5093, %v5695
        %v6270 = vadd.f32 %v5094, %v5700
        %v6271 = vadd.f32 %v5095, %v5700
        %v6272 = vadd.f32 %v5096, %v5705
        %v6273 = vadd.f32 %v5097, %v5705
        %v6274 = vadd.f32 %v5098, %v5710
        %v6275 = vadd.f32 %v5099, %v5710
        %v6276 = vadd.f32 %v5100, %v5715
        %v6277 = vadd.f32 %v5101, %v5715
        %v6278 = vadd.f32 %v5102, %v5720
        %v6279 = vadd.f32 %v5103, %v5720
        %v6280 = vadd.f32 %v5104, %v5725
        %v6281 = vadd.f32 %v5105, %v5725
        %v6282 = vadd.f32 %v5106, %v5730
        %v6283 = vadd.f32 %v5107, %v5730
        %v6284 = vadd.f32 %v5108, %v5735
        %v6285 = vadd.f32 %v5109, %v5735
        %v6286 = vadd.f32 %v5110, %v5740
        %v6287 = vadd.f32 %v5111, %v5740
        %v6288 = vadd.f32 %v5112, %v5745
        %v6289 = vadd.f32 %v5113, %v5745
        %v6290 = vadd.f32 %v5114, %v5750
        %v6291 = vadd.f32 %v5115, %v5750
        %v6292 = vadd.f32 %v5116, %v5755
        %v6293 = vadd.f32 %v5117, %v5755
        %v6294 = vadd.f32 %v5118, %v5760
        %v6295 = vadd.f32 %v5119, %v5760
        %v6296 = vadd.f32 %v5120, %v5765
        %v6297 = vadd.f32 %v5121, %v5765
        %v6298 = vadd.f32 %v5122, %v5770
        %v6299 = vadd.f32 %v5123, %v5770
        %v6300 = vadd.f32 %v5124, %v5775
        %v6301 = vadd.f32 %v5125, %v5775
        %v6302 = vadd.f32 %v5126, %v5780
        %v6303 = vadd.f32 %v5127, %v5780
        %v6304 = vadd.f32 %v5128, %v5785
        %v6305 = vadd.f32 %v5129, %v5785
        %v6306 = vadd.f32 %v5130, %v5790
        %v6307 = vadd.f32 %v5131, %v5790
        %v6308 = vadd.f32 %v5132, %v5795
        %v6309 = vadd.f32 %v5133, %v5795
        %v6310 = vadd.f32 %v5134, %v5800
        %v6311 = vadd.f32 %v5135, %v5800
        %v6312 = vadd.f32 %v5136, %v5805
        %v6313 = vadd.f32 %v5137, %v5805
        %v6314 = vadd.f32 %v5138, %v5810
        %v6315 = vadd.f32 %v5139, %v5810
        %v6316 = vadd.f32 %v5140, %v5815
        %v6317 = vadd.f32 %v5141, %v5815
        %v6318 = vadd.f32 %v5142, %v5820
        %v6319 = vadd.f32 %v5143, %v5820
        %v6320 = vadd.f32 %v5144, %v5825
        %v6321 = vadd.f32 %v5145, %v5825
        %v6322 = vadd.f32 %v5146, %v5830
        %v6323 = vadd.f32 %v5147, %v5830
        %v6324 = vadd.f32 %v5148, %v5835
        %v6325 = vadd.f32 %v5149, %v5835
        %v6326 = vadd.f32 %v5150, %v5840
        %v6327 = vadd.f32 %v5151, %v5840
        %v6328 = vadd.f32 %v5152, %v5845
        %v6329 = vadd.f32 %v5153, %v5845
        %v6330 = vadd.f32 %v5154, %v5850
        %v6331 = vadd.f32 %v5155, %v5850
        %v6332 = vadd.f32 %v5156, %v5855
        %v6333 = vadd.f32 %v5157, %v5855
        %v6334 = vadd.f32 %v5158, %v5860
        %v6335 = vadd.f32 %v5159, %v5860
        %v6336 = vadd.f32 %v5160, %v5865
        %v6337 = vadd.f32 %v5161, %v5865
        %v6338 = vadd.f32 %v5162, %v5870
        %v6339 = vadd.f32 %v5163, %v5870
        %v6340 = vadd.f32 %v5164, %v5875
        %v6341 = vadd.f32 %v5165, %v5875
        %v6342 = vadd.f32 %v5166, %v5880
        %v6343 = vadd.f32 %v5167, %v5880
        %v6344 = vadd.f32 %v5168, %v5885
        %v6345 = vadd.f32 %v5169, %v5885
        %v6346 = vadd.f32 %v5170, %v5890
        %v6347 = vadd.f32 %v5171, %v5890
        %v6348 = vadd.f32 %v5172, %v5895
        %v6349 = vadd.f32 %v5173, %v5895
        %v6350 = vadd.f32 %v5174, %v5900
        %v6351 = vadd.f32 %v5175, %v5900
        %v6352 = vadd.f32 %v5176, %v5905
        %v6353 = vadd.f32 %v5177, %v5905
        %v6354 = vadd.f32 %v5178, %v5910
        %v6355 = vadd.f32 %v5179, %v5910
        %v6356 = vadd.f32 %v5180, %v5915
        %v6357 = vadd.f32 %v5181, %v5915
        %v6358 = vadd.f32 %v5182, %v5920
        %v6359 = vadd.f32 %v5183, %v5920
        %v6360 = vadd.f32 %v5184, %v5925
        %v6361 = vadd.f32 %v5185, %v5925
        %v6362 = vadd.f32 %v5186, %v5930
        %v6363 = vadd.f32 %v5187, %v5930
        %v6364 = vadd.f32 %v5188, %v5935
        %v6365 = vadd.f32 %v5189, %v5935
        %v6366 = vadd.f32 %v5190, %v5940
        %v6367 = vadd.f32 %v5191, %v5940
        %v6368 = vadd.f32 %v5192, %v5945
        %v6369 = vadd.f32 %v5193, %v5945
        %v6370 = vadd.f32 %v5194, %v5950
        %v6371 = vadd.f32 %v5195, %v5950
        %v6372 = vadd.f32 %v5196, %v5955
        %v6373 = vadd.f32 %v5197, %v5955
        %v6374 = vadd.f32 %v5198, %v5960
        %v6375 = vadd.f32 %v5199, %v5960
        %v6376 = vadd.f32 %v5200, %v5965
        %v6377 = vadd.f32 %v5201, %v5965
        %v6378 = vadd.f32 %v5202, %v5970
        %v6379 = vadd.f32 %v5203, %v5970
        %v6380 = vadd.f32 %v5204, %v5975
        %v6381 = vadd.f32 %v5205, %v5975
        %v6382 = vadd.f32 %v5206, %v5980
        %v6383 = vadd.f32 %v5207, %v5980
        %v6384 = vadd.f32 %v5208, %v5985
        %v6385 = vadd.f32 %v5209, %v5985
        %v6386 = vadd.f32 %v5210, %v5990
        %v6387 = vadd.f32 %v5211, %v5990
        %v6388 = vadd.f32 %v5212, %v5995
        %v6389 = vadd.f32 %v5213, %v5995
        %v6390 = vadd.f32 %v5214, %v6000
        %v6391 = vadd.f32 %v5215, %v6000
        %v6392 = vadd.f32 %v5216, %v6005
        %v6393 = vadd.f32 %v5217, %v6005
        %v6394 = vadd.f32 %v5218, %v6010
        %v6395 = vadd.f32 %v5219, %v6010
        %v6396 = vadd.f32 %v5220, %v6015
        %v6397 = vadd.f32 %v5221, %v6015
        %v6398 = vadd.f32 %v5222, %v6020
        %v6399 = vadd.f32 %v5223, %v6020
        %v6400 = vadd.f32 %v5224, %v6025
        %v6401 = vadd.f32 %v5225, %v6025
        %v6402 = vadd.f32 %v5226, %v6030
        %v6403 = vadd.f32 %v5227, %v6030
        %v6404 = vadd.f32 %v5228, %v6035
        %v6405 = vadd.f32 %v5229, %v6035
        %v6406 = vadd.f32 %v5230, %v6040
        %v6407 = vadd.f32 %v5231, %v6040
        %v6408 = vadd.f32 %v5232, %v6045
        %v6409 = vadd.f32 %v5233, %v6045
        %v6410 = vadd.f32 %v5234, %v6050
        %v6411 = vadd.f32 %v5235, %v6050
        %v6412 = vadd.f32 %v5236, %v6055
        %v6413 = vadd.f32 %v5237, %v6055
        %v6414 = vadd.f32 %v5238, %v6060
        %v6415 = vadd.f32 %v5239, %v6060
        %v6416 = vadd.f32 %v5240, %v6065
        %v6417 = vadd.f32 %v5241, %v6065
        %v6418 = vadd.f32 %v5242, %v6070
        %v6419 = vadd.f32 %v5243, %v6070
        %v6420 = vadd.f32 %v5244, %v6075
        %v6421 = vadd.f32 %v5245, %v6075
        %v6422 = vadd.f32 %v5246, %v6080
        %v6423 = vadd.f32 %v5247, %v6080
        %v6424 = vadd.f32 %v5248, %v6085
        %v6425 = vadd.f32 %v5249, %v6085
        %v6426 = vadd.f32 %v5250, %v6090
        %v6427 = vadd.f32 %v5251, %v6090
        %v6428 = vmax.f32 %v6092, 0.0
        %v6429 = vmax.f32 %v6093, 0.0
        %v6430 = vmax.f32 %v6094, 0.0
        %v6431 = vmax.f32 %v6095, 0.0
        %v6432 = vmax.f32 %v6096, 0.0
        %v6433 = vmax.f32 %v6097, 0.0
        %v6434 = vmax.f32 %v6098, 0.0
        %v6435 = vmax.f32 %v6099, 0.0
        %v6436 = vmax.f32 %v6100, 0.0
        %v6437 = vmax.f32 %v6101, 0.0
        %v6438 = vmax.f32 %v6102, 0.0
        %v6439 = vmax.f32 %v6103, 0.0
        %v6440 = vmax.f32 %v6104, 0.0
        %v6441 = vmax.f32 %v6105, 0.0
        %v6442 = vmax.f32 %v6106, 0.0
        %v6443 = vmax.f32 %v6107, 0.0
        %v6444 = vmax.f32 %v6108, 0.0
        %v6445 = vmax.f32 %v6109, 0.0
        %v6446 = vmax.f32 %v6110, 0.0
        %v6447 = vmax.f32 %v6111, 0.0
        %v6448 = vmax.f32 %v6112, 0.0
        %v6449 = vmax.f32 %v6113, 0.0
        %v6450 = vmax.f32 %v6114, 0.0
        %v6451 = vmax.f32 %v6115, 0.0
        %v6452 = vmax.f32 %v6116, 0.0
        %v6453 = vmax.f32 %v6117, 0.0
        %v6454 = vmax.f32 %v6118, 0.0
        %v6455 = vmax.f32 %v6119, 0.0
        %v6456 = vmax.f32 %v6120, 0.0
        %v6457 = vmax.f32 %v6121, 0.0
        %v6458 = vmax.f32 %v6122, 0.0
        %v6459 = vmax.f32 %v6123, 0.0
        %v6460 = vmax.f32 %v6124, 0.0
        %v6461 = vmax.f32 %v6125, 0.0
        %v6462 = vmax.f32 %v6126, 0.0
        %v6463 = vmax.f32 %v6127, 0.0
        %v6464 = vmax.f32 %v6128, 0.0
        %v6465 = vmax.f32 %v6129, 0.0
        %v6466 = vmax.f32 %v6130, 0.0
        %v6467 = vmax.f32 %v6131, 0.0
        %v6468 = vmax.f32 %v6132, 0.0
        %v6469 = vmax.f32 %v6133, 0.0
        %v6470 = vmax.f32 %v6134, 0.0
        %v6471 = vmax.f32 %v6135, 0.0
        %v6472 = vmax.f32 %v6136, 0.0
        %v6473 = vmax.f32 %v6137, 0.0
        %v6474 = vmax.f32 %v6138, 0.0
        %v6475 = vmax.f32 %v6139, 0.0
        %v6476 = vmax.f32 %v6140, 0.0
        %v6477 = vmax.f32 %v6141, 0.0
        %v6478 = vmax.f32 %v6142, 0.0
        %v6479 = vmax.f32 %v6143, 0.0
        %v6480 = vmax.f32 %v6144, 0.0
        %v6481 = vmax.f32 %v6145, 0.0
        %v6482 = vmax.f32 %v6146, 0.0
        %v6483 = vmax.f32 %v6147, 0.0
        %v6484 = vmax.f32 %v6148, 0.0
        %v6485 = vmax.f32 %v6149, 0.0
        %v6486 = vmax.f32 %v6150, 0.0
        %v6487 = vmax.f32 %v6151, 0.0
        %v6488 = vmax.f32 %v6152, 0.0
        %v6489 = vmax.f32 %v6153, 0.0
        %v6490 = vmax.f32 %v6154, 0.0
        %v6491 = vmax.f32 %v6155, 0.0
        %v6492 = vmax.f32 %v6156, 0.0
        %v6493 = vmax.f32 %v6157, 0.0
        %v6494 = vmax.f32 %v6158, 0.0
        %v6495 = vmax.f32 %v6159, 0.0
        %v6496 = vmax.f32 %v6160, 0.0
        %v6497 = vmax.f32 %v6161, 0.0
        %v6498 = vmax.f32 %v6162, 0.0
        %v6499 = vmax.f32 %v6163, 0.0
        %v6500 = vmax.f32 %v6164, 0.0
        %v6501 = vmax.f32 %v6165, 0.0
        %v6502 = vmax.f32 %v6166, 0.0
        %v6503 = vmax.f32 %v6167, 0.0
        %v6504 = vmax.f32 %v6168, 0.0
        %v6505 = vmax.f32 %v6169, 0.0
        %v6506 = vmax.f32 %v6170, 0.0
        %v6507 = vmax.f32 %v6171, 0.0
        %v6508 = vmax.f32 %v6172, 0.0
        %v6509 = vmax.f32 %v6173, 0.0
        %v6510 = vmax.f32 %v6174, 0.0
        %v6511 = vmax.f32 %v6175, 0.0
        %v6512 = vmax.f32 %v6176, 0.0
        %v6513 = vmax.f32 %v6177, 0.0
        %v6514 = vmax.f32 %v6178, 0.0
        %v6515 = vmax.f32 %v6179, 0.0
        %v6516 = vmax.f32 %v6180, 0.0
        %v6517 = vmax.f32 %v6181, 0.0
        %v6518 = vmax.f32 %v6182, 0.0
        %v6519 = vmax.f32 %v6183, 0.0
        %v6520 = vmax.f32 %v6184, 0.0
        %v6521 = vmax.f32 %v6185, 0.0
        %v6522 = vmax.f32 %v6186, 0.0
        %v6523 = vmax.f32 %v6187, 0.0
        %v6524 = vmax.f32 %v6188, 0.0
        %v6525 = vmax.f32 %v6189, 0.0
        %v6526 = vmax.f32 %v6190, 0.0
        %v6527 = vmax.f32 %v6191, 0.0
        %v6528 = vmax.f32 %v6192, 0.0
        %v6529 = vmax.f32 %v6193, 0.0
        %v6530 = vmax.f32 %v6194, 0.0
        %v6531 = vmax.f32 %v6195, 0.0
        %v6532 = vmax.f32 %v6196, 0.0
        %v6533 = vmax.f32 %v6197, 0.0
        %v6534 = vmax.f32 %v6198, 0.0
        %v6535 = vmax.f32 %v6199, 0.0
        %v6536 = vmax.f32 %v6200, 0.0
        %v6537 = vmax.f32 %v6201, 0.0
        %v6538 = vmax.f32 %v6202, 0.0
        %v6539 = vmax.f32 %v6203, 0.0
        %v6540 = vmax.f32 %v6204, 0.0
        %v6541 = vmax.f32 %v6205, 0.0
        %v6542 = vmax.f32 %v6206, 0.0
        %v6543 = vmax.f32 %v6207, 0.0
        %v6544 = vmax.f32 %v6208, 0.0
        %v6545 = vmax.f32 %v6209, 0.0
        %v6546 = vmax.f32 %v6210, 0.0
        %v6547 = vmax.f32 %v6211, 0.0
        %v6548 = vmax.f32 %v6212, 0.0
        %v6549 = vmax.f32 %v6213, 0.0
        %v6550 = vmax.f32 %v6214, 0.0
        %v6551 = vmax.f32 %v6215, 0.0
        %v6552 = vmax.f32 %v6216, 0.0
        %v6553 = vmax.f32 %v6217, 0.0
        %v6554 = vmax.f32 %v6218, 0.0
        %v6555 = vmax.f32 %v6219, 0.0
        %v6556 = vmax.f32 %v6220, 0.0
        %v6557 = vmax.f32 %v6221, 0.0
        %v6558 = vmax.f32 %v6222, 0.0
        %v6559 = vmax.f32 %v6223, 0.0
        %v6560 = vmax.f32 %v6224, 0.0
        %v6561 = vmax.f32 %v6225, 0.0
        %v6562 = vmax.f32 %v6226, 0.0
        %v6563 = vmax.f32 %v6227, 0.0
        %v6564 = vmax.f32 %v6228, 0.0
        %v6565 = vmax.f32 %v6229, 0.0
        %v6566 = vmax.f32 %v6230, 0.0
        %v6567 = vmax.f32 %v6231, 0.0
        %v6568 = vmax.f32 %v6232, 0.0
        %v6569 = vmax.f32 %v6233, 0.0
        %v6570 = vmax.f32 %v6234, 0.0
        %v6571 = vmax.f32 %v6235, 0.0
        %v6572 = vmax.f32 %v6236, 0.0
        %v6573 = vmax.f32 %v6237, 0.0
        %v6574 = vmax.f32 %v6238, 0.0
        %v6575 = vmax.f32 %v6239, 0.0
        %v6576 = vmax.f32 %v6240, 0.0
        %v6577 = vmax.f32 %v6241, 0.0
        %v6578 = vmax.f32 %v6242, 0.0
        %v6579 = vmax.f32 %v6243, 0.0
        %v6580 = vmax.f32 %v6244, 0.0
        %v6581 = vmax.f32 %v6245, 0.0
        %v6582 = vmax.f32 %v6246, 0.0
        %v6583 = vmax.f32 %v6247, 0.0
        %v6584 = vmax.f32 %v6248, 0.0
        %v6585 = vmax.f32 %v6249, 0.0
        %v6586 = vmax.f32 %v6250, 0.0
        %v6587 = vmax.f32 %v6251, 0.0
        %v6588 = vmax.f32 %v6252, 0.0
        %v6589 = vmax.f32 %v6253, 0.0
        %v6590 = vmax.f32 %v6254, 0.0
        %v6591 = vmax.f32 %v6255, 0.0
        %v6592 = vmax.f32 %v6256, 0.0
        %v6593 = vmax.f32 %v6257, 0.0
        %v6594 = vmax.f32 %v6258, 0.0
        %v6595 = vmax.f32 %v6259, 0.0
        %v6596 = vmax.f32 %v6260, 0.0
        %v6597 = vmax.f32 %v6261, 0.0
        %v6598 = vmax.f32 %v6262, 0.0
        %v6599 = vmax.f32 %v6263, 0.0
        %v6600 = vmax.f32 %v6264, 0.0
        %v6601 = vmax.f32 %v6265, 0.0
        %v6602 = vmax.f32 %v6266, 0.0
        %v6603 = vmax.f32 %v6267, 0.0
        %v6604 = vmax.f32 %v6268, 0.0
        %v6605 = vmax.f32 %v6269, 0.0
        %v6606 = vmax.f32 %v6270, 0.0
        %v6607 = vmax.f32 %v6271, 0.0
        %v6608 = vmax.f32 %v6272, 0.0
        %v6609 = vmax.f32 %v6273, 0.0
        %v6610 = vmax.f32 %v6274, 0.0
        %v6611 = vmax.f32 %v6275, 0.0
        %v6612 = vmax.f32 %v6276, 0.0
        %v6613 = vmax.f32 %v6277, 0.0
        %v6614 = vmax.f32 %v6278, 0.0
        %v6615 = vmax.f32 %v6279, 0.0
        %v6616 = vmax.f32 %v6280, 0.0
        %v6617 = vmax.f32 %v6281, 0.0
        %v6618 = vmax.f32 %v6282, 0.0
        %v6619 = vmax.f32 %v6283, 0.0
        %v6620 = vmax.f32 %v6284, 0.0
        %v6621 = vmax.f32 %v6285, 0.0
        %v6622 = vmax.f32 %v6286, 0.0
        %v6623 = vmax.f32 %v6287, 0.0
        %v6624 = vmax.f32 %v6288, 0.0
        %v6625 = vmax.f32 %v6289, 0.0
        %v6626 = vmax.f32 %v6290, 0.0
        %v6627 = vmax.f32 %v6291, 0.0
        %v6628 = vmax.f32 %v6292, 0.0
        %v6629 = vmax.f32 %v6293, 0.0
        %v6630 = vmax.f32 %v6294, 0.0
        %v6631 = vmax.f32 %v6295, 0.0
        %v6632 = vmax.f32 %v6296, 0.0
        %v6633 = vmax.f32 %v6297, 0.0
        %v6634 = vmax.f32 %v6298, 0.0
        %v6635 = vmax.f32 %v6299, 0.0
        %v6636 = vmax.f32 %v6300, 0.0
        %v6637 = vmax.f32 %v6301, 0.0
        %v6638 = vmax.f32 %v6302, 0.0
        %v6639 = vmax.f32 %v6303, 0.0
        %v6640 = vmax.f32 %v6304, 0.0
        %v6641 = vmax.f32 %v6305, 0.0
        %v6642 = vmax.f32 %v6306, 0.0
        %v6643 = vmax.f32 %v6307, 0.0
        %v6644 = vmax.f32 %v6308, 0.0
        %v6645 = vmax.f32 %v6309, 0.0
        %v6646 = vmax.f32 %v6310, 0.0
        %v6647 = vmax.f32 %v6311, 0.0
        %v6648 = vmax.f32 %v6312, 0.0
        %v6649 = vmax.f32 %v6313, 0.0
        %v6650 = vmax.f32 %v6314, 0.0
        %v6651 = vmax.f32 %v6315, 0.0
        %v6652 = vmax.f32 %v6316, 0.0
        %v6653 = vmax.f32 %v6317, 0.0
        %v6654 = vmax.f32 %v6318, 0.0
        %v6655 = vmax.f32 %v6319, 0.0
        %v6656 = vmax.f32 %v6320, 0.0
        %v6657 = vmax.f32 %v6321, 0.0
        %v6658 = vmax.f32 %v6322, 0.0
        %v6659 = vmax.f32 %v6323, 0.0
        %v6660 = vmax.f32 %v6324, 0.0
        %v6661 = vmax.f32 %v6325, 0.0
        %v6662 = vmax.f32 %v6326, 0.0
        %v6663 = vmax.f32 %v6327, 0.0
        %v6664 = vmax.f32 %v6328, 0.0
        %v6665 = vmax.f32 %v6329, 0.0
        %v6666 = vmax.f32 %v6330, 0.0
        %v6667 = vmax.f32 %v6331, 0.0
        %v6668 = vmax.f32 %v6332, 0.0
        %v6669 = vmax.f32 %v6333, 0.0
        %v6670 = vmax.f32 %v6334, 0.0
        %v6671 = vmax.f32 %v6335, 0.0
        %v6672 = vmax.f32 %v6336, 0.0
        %v6673 = vmax.f32 %v6337, 0.0
        %v6674 = vmax.f32 %v6338, 0.0
        %v6675 = vmax.f32 %v6339, 0.0
        %v6676 = vmax.f32 %v6340, 0.0
        %v6677 = vmax.f32 %v6341, 0.0
        %v6678 = vmax.f32 %v6342, 0.0
        %v6679 = vmax.f32 %v6343, 0.0
        %v6680 = vmax.f32 %v6344, 0.0
        %v6681 = vmax.f32 %v6345, 0.0
        %v6682 = vmax.f32 %v6346, 0.0
        %v6683 = vmax.f32 %v6347, 0.0
        %v6684 = vmax.f32 %v6348, 0.0
        %v6685 = vmax.f32 %v6349, 0.0
        %v6686 = vmax.f32 %v6350, 0.0
        %v6687 = vmax.f32 %v6351, 0.0
        %v6688 = vmax.f32 %v6352, 0.0
        %v6689 = vmax.f32 %v6353, 0.0
        %v6690 = vmax.f32 %v6354, 0.0
        %v6691 = vmax.f32 %v6355, 0.0
        %v6692 = vmax.f32 %v6356, 0.0
        %v6693 = vmax.f32 %v6357, 0.0
        %v6694 = vmax.f32 %v6358, 0.0
        %v6695 = vmax.f32 %v6359, 0.0
        %v6696 = vmax.f32 %v6360, 0.0
        %v6697 = vmax.f32 %v6361, 0.0
        %v6698 = vmax.f32 %v6362, 0.0
        %v6699 = vmax.f32 %v6363, 0.0
        %v6700 = vmax.f32 %v6364, 0.0
        %v6701 = vmax.f32 %v6365, 0.0
        %v6702 = vmax.f32 %v6366, 0.0
        %v6703 = vmax.f32 %v6367, 0.0
        %v6704 = vmax.f32 %v6368, 0.0
        %v6705 = vmax.f32 %v6369, 0.0
        %v6706 = vmax.f32 %v6370, 0.0
        %v6707 = vmax.f32 %v6371, 0.0
        %v6708 = vmax.f32 %v6372, 0.0
        %v6709 = vmax.f32 %v6373, 0.0
        %v6710 = vmax.f32 %v6374, 0.0
        %v6711 = vmax.f32 %v6375, 0.0
        %v6712 = vmax.f32 %v6376, 0.0
        %v6713 = vmax.f32 %v6377, 0.0
        %v6714 = vmax.f32 %v6378, 0.0
        %v6715 = vmax.f32 %v6379, 0.0
        %v6716 = vmax.f32 %v6380, 0.0
        %v6717 = vmax.f32 %v6381, 0.0
        %v6718 = vmax.f32 %v6382, 0.0
        %v6719 = vmax.f32 %v6383, 0.0
        %v6720 = vmax.f32 %v6384, 0.0
        %v6721 = vmax.f32 %v6385, 0.0
        %v6722 = vmax.f32 %v6386, 0.0
        %v6723 = vmax.f32 %v6387, 0.0
        %v6724 = vmax.f32 %v6388, 0.0
        %v6725 = vmax.f32 %v6389, 0.0
        %v6726 = vmax.f32 %v6390, 0.0
        %v6727 = vmax.f32 %v6391, 0.0
        %v6728 = vmax.f32 %v6392, 0.0
        %v6729 = vmax.f32 %v6393, 0.0
        %v6730 = vmax.f32 %v6394, 0.0
        %v6731 = vmax.f32 %v6395, 0.0
        %v6732 = vmax.f32 %v6396, 0.0
        %v6733 = vmax.f32 %v6397, 0.0
        %v6734 = vmax.f32 %v6398, 0.0
        %v6735 = vmax.f32 %v6399, 0.0
        %v6736 = vmax.f32 %v6400, 0.0
        %v6737 = vmax.f32 %v6401, 0.0
        %v6738 = vmax.f32 %v6402, 0.0
        %v6739 = vmax.f32 %v6403, 0.0
        %v6740 = vmax.f32 %v6404, 0.0
        %v6741 = vmax.f32 %v6405, 0.0
        %v6742 = vmax.f32 %v6406, 0.0
        %v6743 = vmax.f32 %v6407, 0.0
        %v6744 = vmax.f32 %v6408, 0.0
        %v6745 = vmax.f32 %v6409, 0.0
        %v6746 = vmax.f32 %v6410, 0.0
        %v6747 = vmax.f32 %v6411, 0.0
        %v6748 = vmax.f32 %v6412, 0.0
        %v6749 = vmax.f32 %v6413, 0.0
        %v6750 = vmax.f32 %v6414, 0.0
        %v6751 = vmax.f32 %v6415, 0.0
        %v6752 = vmax.f32 %v6416, 0.0
        %v6753 = vmax.f32 %v6417, 0.0
        %v6754 = vmax.f32 %v6418, 0.0
        %v6755 = vmax.f32 %v6419, 0.0
        %v6756 = vmax.f32 %v6420, 0.0
        %v6757 = vmax.f32 %v6421, 0.0
        %v6758 = vmax.f32 %v6422, 0.0
        %v6759 = vmax.f32 %v6423, 0.0
        %v6760 = vmax.f32 %v6424, 0.0
        %v6761 = vmax.f32 %v6425, 0.0
        %v6762 = vmax.f32 %v6426, 0.0
        %v6763 = vmax.f32 %v6427, 0.0
        %v6764 = vpack.c.bf16 %v6430, %v6428
        %v6765 = vpack.c.bf16 %v6431, %v6429
        %v6766 = vpack.c.bf16 %v6434, %v6432
        %v6767 = vpack.c.bf16 %v6435, %v6433
        %v6768 = vpack.c.bf16 %v6438, %v6436
        %v6769 = vpack.c.bf16 %v6439, %v6437
        %v6770 = vpack.c.bf16 %v6442, %v6440
        %v6771 = vpack.c.bf16 %v6443, %v6441
        %v6772 = vpack.c.bf16 %v6446, %v6444
        %v6773 = vpack.c.bf16 %v6447, %v6445
        %v6774 = vpack.c.bf16 %v6450, %v6448
        %v6775 = vpack.c.bf16 %v6451, %v6449
        %v6776 = vpack.c.bf16 %v6454, %v6452
        %v6777 = vpack.c.bf16 %v6455, %v6453
        %v6778 = vpack.c.bf16 %v6458, %v6456
        %v6779 = vpack.c.bf16 %v6459, %v6457
        %v6780 = vpack.c.bf16 %v6462, %v6460
        %v6781 = vpack.c.bf16 %v6463, %v6461
        %v6782 = vpack.c.bf16 %v6466, %v6464
        %v6783 = vpack.c.bf16 %v6467, %v6465
        %v6784 = vpack.c.bf16 %v6470, %v6468
        %v6785 = vpack.c.bf16 %v6471, %v6469
        %v6786 = vpack.c.bf16 %v6474, %v6472
        %v6787 = vpack.c.bf16 %v6475, %v6473
        %v6788 = vpack.c.bf16 %v6478, %v6476
        %v6789 = vpack.c.bf16 %v6479, %v6477
        %v6790 = vpack.c.bf16 %v6482, %v6480
        %v6791 = vpack.c.bf16 %v6483, %v6481
        %v6792 = vpack.c.bf16 %v6486, %v6484
        %v6793 = vpack.c.bf16 %v6487, %v6485
        %v6794 = vpack.c.bf16 %v6490, %v6488
        %v6795 = vpack.c.bf16 %v6491, %v6489
        %v6796 = vpack.c.bf16 %v6494, %v6492
        %v6797 = vpack.c.bf16 %v6495, %v6493
        %v6798 = vpack.c.bf16 %v6498, %v6496
        %v6799 = vpack.c.bf16 %v6499, %v6497
        %v6800 = vpack.c.bf16 %v6502, %v6500
        %v6801 = vpack.c.bf16 %v6503, %v6501
        %v6802 = vpack.c.bf16 %v6506, %v6504
        %v6803 = vpack.c.bf16 %v6507, %v6505
        %v6804 = vpack.c.bf16 %v6510, %v6508
        %v6805 = vpack.c.bf16 %v6511, %v6509
        %v6806 = vpack.c.bf16 %v6514, %v6512
        %v6807 = vpack.c.bf16 %v6515, %v6513
        %v6808 = vpack.c.bf16 %v6518, %v6516
        %v6809 = vpack.c.bf16 %v6519, %v6517
        %v6810 = vpack.c.bf16 %v6522, %v6520
        %v6811 = vpack.c.bf16 %v6523, %v6521
        %v6812 = vpack.c.bf16 %v6526, %v6524
        %v6813 = vpack.c.bf16 %v6527, %v6525
        %v6814 = vpack.c.bf16 %v6530, %v6528
        %v6815 = vpack.c.bf16 %v6531, %v6529
        %v6816 = vpack.c.bf16 %v6534, %v6532
        %v6817 = vpack.c.bf16 %v6535, %v6533
        %v6818 = vpack.c.bf16 %v6538, %v6536
        %v6819 = vpack.c.bf16 %v6539, %v6537
        %v6820 = vpack.c.bf16 %v6542, %v6540
        %v6821 = vpack.c.bf16 %v6543, %v6541
        %v6822 = vpack.c.bf16 %v6546, %v6544
        %v6823 = vpack.c.bf16 %v6547, %v6545
        %v6824 = vpack.c.bf16 %v6550, %v6548
        %v6825 = vpack.c.bf16 %v6551, %v6549
        %v6826 = vpack.c.bf16 %v6554, %v6552
        %v6827 = vpack.c.bf16 %v6555, %v6553
        %v6828 = vpack.c.bf16 %v6558, %v6556
        %v6829 = vpack.c.bf16 %v6559, %v6557
        %v6830 = vpack.c.bf16 %v6562, %v6560
        %v6831 = vpack.c.bf16 %v6563, %v6561
        %v6832 = vpack.c.bf16 %v6566, %v6564
        %v6833 = vpack.c.bf16 %v6567, %v6565
        %v6834 = vpack.c.bf16 %v6570, %v6568
        %v6835 = vpack.c.bf16 %v6571, %v6569
        %v6836 = vpack.c.bf16 %v6574, %v6572
        %v6837 = vpack.c.bf16 %v6575, %v6573
        %v6838 = vpack.c.bf16 %v6578, %v6576
        %v6839 = vpack.c.bf16 %v6579, %v6577
        %v6840 = vpack.c.bf16 %v6582, %v6580
        %v6841 = vpack.c.bf16 %v6583, %v6581
        %v6842 = vpack.c.bf16 %v6586, %v6584
        %v6843 = vpack.c.bf16 %v6587, %v6585
        %v6844 = vpack.c.bf16 %v6590, %v6588
        %v6845 = vpack.c.bf16 %v6591, %v6589
        %v6846 = vpack.c.bf16 %v6594, %v6592
        %v6847 = vpack.c.bf16 %v6595, %v6593
        %v6848 = vpack.c.bf16 %v6598, %v6596
        %v6849 = vpack.c.bf16 %v6599, %v6597
        %v6850 = vpack.c.bf16 %v6602, %v6600
        %v6851 = vpack.c.bf16 %v6603, %v6601
        %v6852 = vpack.c.bf16 %v6606, %v6604
        %v6853 = vpack.c.bf16 %v6607, %v6605
        %v6854 = vpack.c.bf16 %v6610, %v6608
        %v6855 = vpack.c.bf16 %v6611, %v6609
        %v6856 = vpack.c.bf16 %v6614, %v6612
        %v6857 = vpack.c.bf16 %v6615, %v6613
        %v6858 = vpack.c.bf16 %v6618, %v6616
        %v6859 = vpack.c.bf16 %v6619, %v6617
        %v6860 = vpack.c.bf16 %v6622, %v6620
        %v6861 = vpack.c.bf16 %v6623, %v6621
        %v6862 = vpack.c.bf16 %v6626, %v6624
        %v6863 = vpack.c.bf16 %v6627, %v6625
        %v6864 = vpack.c.bf16 %v6630, %v6628
        %v6865 = vpack.c.bf16 %v6631, %v6629
        %v6866 = vpack.c.bf16 %v6634, %v6632
        %v6867 = vpack.c.bf16 %v6635, %v6633
        %v6868 = vpack.c.bf16 %v6638, %v6636
        %v6869 = vpack.c.bf16 %v6639, %v6637
        %v6870 = vpack.c.bf16 %v6642, %v6640
        %v6871 = vpack.c.bf16 %v6643, %v6641
        %v6872 = vpack.c.bf16 %v6646, %v6644
        %v6873 = vpack.c.bf16 %v6647, %v6645
        %v6874 = vpack.c.bf16 %v6650, %v6648
        %v6875 = vpack.c.bf16 %v6651, %v6649
        %v6876 = vpack.c.bf16 %v6654, %v6652
        %v6877 = vpack.c.bf16 %v6655, %v6653
        %v6878 = vpack.c.bf16 %v6658, %v6656
        %v6879 = vpack.c.bf16 %v6659, %v6657
        %v6880 = vpack.c.bf16 %v6662, %v6660
        %v6881 = vpack.c.bf16 %v6663, %v6661
        %v6882 = vpack.c.bf16 %v6666, %v6664
        %v6883 = vpack.c.bf16 %v6667, %v6665
        %v6884 = vpack.c.bf16 %v6670, %v6668
        %v6885 = vpack.c.bf16 %v6671, %v6669
        %v6886 = vpack.c.bf16 %v6674, %v6672
        %v6887 = vpack.c.bf16 %v6675, %v6673
        %v6888 = vpack.c.bf16 %v6678, %v6676
        %v6889 = vpack.c.bf16 %v6679, %v6677
        %v6890 = vpack.c.bf16 %v6682, %v6680
        %v6891 = vpack.c.bf16 %v6683, %v6681
        %v6892 = vpack.c.bf16 %v6686, %v6684
        %v6893 = vpack.c.bf16 %v6687, %v6685
        %v6894 = vpack.c.bf16 %v6690, %v6688
        %v6895 = vpack.c.bf16 %v6691, %v6689
        %v6896 = vpack.c.bf16 %v6694, %v6692
        %v6897 = vpack.c.bf16 %v6695, %v6693
        %v6898 = vpack.c.bf16 %v6698, %v6696
        %v6899 = vpack.c.bf16 %v6699, %v6697
        %v6900 = vpack.c.bf16 %v6702, %v6700
        %v6901 = vpack.c.bf16 %v6703, %v6701
        %v6902 = vpack.c.bf16 %v6706, %v6704
        %v6903 = vpack.c.bf16 %v6707, %v6705
        %v6904 = vpack.c.bf16 %v6710, %v6708
        %v6905 = vpack.c.bf16 %v6711, %v6709
        %v6906 = vpack.c.bf16 %v6714, %v6712
        %v6907 = vpack.c.bf16 %v6715, %v6713
        %v6908 = vpack.c.bf16 %v6718, %v6716
        %v6909 = vpack.c.bf16 %v6719, %v6717
        %v6910 = vpack.c.bf16 %v6722, %v6720
        %v6911 = vpack.c.bf16 %v6723, %v6721
        %v6912 = vpack.c.bf16 %v6726, %v6724
        %v6913 = vpack.c.bf16 %v6727, %v6725
        %v6914 = vpack.c.bf16 %v6730, %v6728
        %v6915 = vpack.c.bf16 %v6731, %v6729
        %v6916 = vpack.c.bf16 %v6734, %v6732
        %v6917 = vpack.c.bf16 %v6735, %v6733
        %v6918 = vpack.c.bf16 %v6738, %v6736
        %v6919 = vpack.c.bf16 %v6739, %v6737
        %v6920 = vpack.c.bf16 %v6742, %v6740
        %v6921 = vpack.c.bf16 %v6743, %v6741
        %v6922 = vpack.c.bf16 %v6746, %v6744
        %v6923 = vpack.c.bf16 %v6747, %v6745
        %v6924 = vpack.c.bf16 %v6750, %v6748
        %v6925 = vpack.c.bf16 %v6751, %v6749
        %v6926 = vpack.c.bf16 %v6754, %v6752
        %v6927 = vpack.c.bf16 %v6755, %v6753
        %v6928 = vpack.c.bf16 %v6758, %v6756
        %v6929 = vpack.c.bf16 %v6759, %v6757
        %v6930 = vpack.c.bf16 %v6762, %v6760
        %v6931 = vpack.c.bf16 %v6763, %v6761
        %6932 = vst [vmem:[#allocation2] sm:$0xff] %v6764
        %6933 = vst.msk [vmem:[#allocation2 + $0x8] sm:$0xff] %vm547, %v6765
        %6934 = vst [vmem:[#allocation2 + $0x10] sm:$0xff] %v6766
        %6935 = vst.msk [vmem:[#allocation2 + $0x18] sm:$0xff] %vm547, %v6767
        %6936 = vst [vmem:[#allocation2 + $0x20] sm:$0xff] %v6768
        %6937 = vst.msk [vmem:[#allocation2 + $0x28] sm:$0xff] %vm547, %v6769
        %6938 = vst [vmem:[#allocation2 + $0x30] sm:$0xff] %v6770
        %6939 = vst.msk [vmem:[#allocation2 + $0x38] sm:$0xff] %vm547, %v6771
        %6940 = vst [vmem:[#allocation2 + $0x40] sm:$0xff] %v6772
        %6941 = vst.msk [vmem:[#allocation2 + $0x48] sm:$0xff] %vm547, %v6773
        %6942 = vst [vmem:[#allocation2 + $0x50] sm:$0xff] %v6774
        %6943 = vst.msk [vmem:[#allocation2 + $0x58] sm:$0xff] %vm547, %v6775
        %6944 = vst [vmem:[#allocation2 + $0x60] sm:$0xff] %v6776
        %6945 = vst.msk [vmem:[#allocation2 + $0x68] sm:$0xff] %vm547, %v6777
        %6946 = vst [vmem:[#allocation2 + $0x70] sm:$0xff] %v6778
        %6947 = vst.msk [vmem:[#allocation2 + $0x78] sm:$0xff] %vm547, %v6779
        %6948 = vst [vmem:[#allocation2 + $0x80] sm:$0xff] %v6780
        %6949 = vst.msk [vmem:[#allocation2 + $0x88] sm:$0xff] %vm547, %v6781
        %6950 = vst [vmem:[#allocation2 + $0x90] sm:$0xff] %v6782
        %6951 = vst.msk [vmem:[#allocation2 + $0x98] sm:$0xff] %vm547, %v6783
        %6952 = vst [vmem:[#allocation2 + $0xa0] sm:$0xff] %v6784
        %6953 = vst.msk [vmem:[#allocation2 + $0xa8] sm:$0xff] %vm547, %v6785
        %6954 = vst [vmem:[#allocation2 + $0xb0] sm:$0xff] %v6786
        %6955 = vst.msk [vmem:[#allocation2 + $0xb8] sm:$0xff] %vm547, %v6787
        %6956 = vst [vmem:[#allocation2 + $0xc0] sm:$0xff] %v6788
        %6957 = vst.msk [vmem:[#allocation2 + $0xc8] sm:$0xff] %vm547, %v6789
        %6958 = vst [vmem:[#allocation2 + $0xd0] sm:$0xff] %v6790
        %6959 = vst.msk [vmem:[#allocation2 + $0xd8] sm:$0xff] %vm547, %v6791
        %6960 = vst [vmem:[#allocation2 + $0xe0] sm:$0xff] %v6792
        %6961 = vst.msk [vmem:[#allocation2 + $0xe8] sm:$0xff] %vm547, %v6793
        %6962 = vst [vmem:[#allocation2 + $0xf0] sm:$0xff] %v6794
        %6963 = vst.msk [vmem:[#allocation2 + $0xf8] sm:$0xff] %vm547, %v6795
        %6964 = vst [vmem:[#allocation2 + $0x100] sm:$0xff] %v6796
        %6965 = vst.msk [vmem:[#allocation2 + $0x108] sm:$0xff] %vm547, %v6797
        %6966 = vst [vmem:[#allocation2 + $0x110] sm:$0xff] %v6798
        %6967 = vst.msk [vmem:[#allocation2 + $0x118] sm:$0xff] %vm547, %v6799
        %6968 = vst [vmem:[#allocation2 + $0x120] sm:$0xff] %v6800
        %6969 = vst.msk [vmem:[#allocation2 + $0x128] sm:$0xff] %vm547, %v6801
        %6970 = vst [vmem:[#allocation2 + $0x130] sm:$0xff] %v6802
        %6971 = vst.msk [vmem:[#allocation2 + $0x138] sm:$0xff] %vm547, %v6803
        %6972 = vst [vmem:[#allocation2 + $0x140] sm:$0xff] %v6804
        %6973 = vst.msk [vmem:[#allocation2 + $0x148] sm:$0xff] %vm547, %v6805
        %6974 = vst [vmem:[#allocation2 + $0x150] sm:$0xff] %v6806
        %6975 = vst.msk [vmem:[#allocation2 + $0x158] sm:$0xff] %vm547, %v6807
        %6976 = vst [vmem:[#allocation2 + $0x160] sm:$0xff] %v6808
        %6977 = vst.msk [vmem:[#allocation2 + $0x168] sm:$0xff] %vm547, %v6809
        %6978 = vst [vmem:[#allocation2 + $0x170] sm:$0xff] %v6810
        %6979 = vst.msk [vmem:[#allocation2 + $0x178] sm:$0xff] %vm547, %v6811
        %6980 = vst [vmem:[#allocation2 + $0x180] sm:$0xff] %v6812
        %6981 = vst.msk [vmem:[#allocation2 + $0x188] sm:$0xff] %vm547, %v6813
        %6982 = vst [vmem:[#allocation2 + $0x190] sm:$0xff] %v6814
        %6983 = vst.msk [vmem:[#allocation2 + $0x198] sm:$0xff] %vm547, %v6815
        %6984 = vst [vmem:[#allocation2 + $0x1a0] sm:$0xff] %v6816
        %6985 = vst.msk [vmem:[#allocation2 + $0x1a8] sm:$0xff] %vm547, %v6817
        %6986 = vst [vmem:[#allocation2 + $0x1b0] sm:$0xff] %v6818
        %6987 = vst.msk [vmem:[#allocation2 + $0x1b8] sm:$0xff] %vm547, %v6819
        %6988 = vst [vmem:[#allocation2 + $0x1c0] sm:$0xff] %v6820
        %6989 = vst.msk [vmem:[#allocation2 + $0x1c8] sm:$0xff] %vm547, %v6821
        %6990 = vst [vmem:[#allocation2 + $0x1d0] sm:$0xff] %v6822
        %6991 = vst.msk [vmem:[#allocation2 + $0x1d8] sm:$0xff] %vm547, %v6823
        %6992 = vst [vmem:[#allocation2 + $0x1e0] sm:$0xff] %v6824
        %6993 = vst.msk [vmem:[#allocation2 + $0x1e8] sm:$0xff] %vm547, %v6825
        %6994 = vst [vmem:[#allocation2 + $0x1f0] sm:$0xff] %v6826
        %6995 = vst.msk [vmem:[#allocation2 + $0x1f8] sm:$0xff] %vm547, %v6827
        %6996 = vst [vmem:[#allocation2 + $0x200] sm:$0xff] %v6828
        %6997 = vst.msk [vmem:[#allocation2 + $0x208] sm:$0xff] %vm547, %v6829
        %6998 = vst [vmem:[#allocation2 + $0x210] sm:$0xff] %v6830
        %6999 = vst.msk [vmem:[#allocation2 + $0x218] sm:$0xff] %vm547, %v6831
        %7000 = vst [vmem:[#allocation2 + $0x220] sm:$0xff] %v6832
        %7001 = vst.msk [vmem:[#allocation2 + $0x228] sm:$0xff] %vm547, %v6833
        %7002 = vst [vmem:[#allocation2 + $0x230] sm:$0xff] %v6834
        %7003 = vst.msk [vmem:[#allocation2 + $0x238] sm:$0xff] %vm547, %v6835
        %7004 = vst [vmem:[#allocation2 + $0x240] sm:$0xff] %v6836
        %7005 = vst.msk [vmem:[#allocation2 + $0x248] sm:$0xff] %vm547, %v6837
        %7006 = vst [vmem:[#allocation2 + $0x250] sm:$0xff] %v6838
        %7007 = vst.msk [vmem:[#allocation2 + $0x258] sm:$0xff] %vm547, %v6839
        %7008 = vst [vmem:[#allocation2 + $0x260] sm:$0xff] %v6840
        %7009 = vst.msk [vmem:[#allocation2 + $0x268] sm:$0xff] %vm547, %v6841
        %7010 = vst [vmem:[#allocation2 + $0x270] sm:$0xff] %v6842
        %7011 = vst.msk [vmem:[#allocation2 + $0x278] sm:$0xff] %vm547, %v6843
        %7012 = vst [vmem:[#allocation2 + $0x280] sm:$0xff] %v6844
        %7013 = vst.msk [vmem:[#allocation2 + $0x288] sm:$0xff] %vm547, %v6845
        %7014 = vst [vmem:[#allocation2 + $0x290] sm:$0xff] %v6846
        %7015 = vst.msk [vmem:[#allocation2 + $0x298] sm:$0xff] %vm547, %v6847
        %7016 = vst [vmem:[#allocation2 + $0x2a0] sm:$0xff] %v6848
        %7017 = vst.msk [vmem:[#allocation2 + $0x2a8] sm:$0xff] %vm547, %v6849
        %7018 = vst [vmem:[#allocation2 + $0x2b0] sm:$0xff] %v6850
        %7019 = vst.msk [vmem:[#allocation2 + $0x2b8] sm:$0xff] %vm547, %v6851
        %7020 = vst [vmem:[#allocation2 + $0x2c0] sm:$0xff] %v6852
        %7021 = vst.msk [vmem:[#allocation2 + $0x2c8] sm:$0xff] %vm547, %v6853
        %7022 = vst [vmem:[#allocation2 + $0x2d0] sm:$0xff] %v6854
        %7023 = vst.msk [vmem:[#allocation2 + $0x2d8] sm:$0xff] %vm547, %v6855
        %7024 = vst [vmem:[#allocation2 + $0x2e0] sm:$0xff] %v6856
        %7025 = vst.msk [vmem:[#allocation2 + $0x2e8] sm:$0xff] %vm547, %v6857
        %7026 = vst [vmem:[#allocation2 + $0x2f0] sm:$0xff] %v6858
        %7027 = vst.msk [vmem:[#allocation2 + $0x2f8] sm:$0xff] %vm547, %v6859
        %7028 = vst [vmem:[#allocation2 + $0x300] sm:$0xff] %v6860
        %7029 = vst.msk [vmem:[#allocation2 + $0x308] sm:$0xff] %vm547, %v6861
        %7030 = vst [vmem:[#allocation2 + $0x310] sm:$0xff] %v6862
        %7031 = vst.msk [vmem:[#allocation2 + $0x318] sm:$0xff] %vm547, %v6863
        %7032 = vst [vmem:[#allocation2 + $0x320] sm:$0xff] %v6864
        %7033 = vst.msk [vmem:[#allocation2 + $0x328] sm:$0xff] %vm547, %v6865
        %7034 = vst [vmem:[#allocation2 + $0x330] sm:$0xff] %v6866
        %7035 = vst.msk [vmem:[#allocation2 + $0x338] sm:$0xff] %vm547, %v6867
        %7036 = vst [vmem:[#allocation2 + $0x340] sm:$0xff] %v6868
        %7037 = vst.msk [vmem:[#allocation2 + $0x348] sm:$0xff] %vm547, %v6869
        %7038 = vst [vmem:[#allocation2 + $0x350] sm:$0xff] %v6870
        %7039 = vst.msk [vmem:[#allocation2 + $0x358] sm:$0xff] %vm547, %v6871
        %7040 = vst [vmem:[#allocation2 + $0x360] sm:$0xff] %v6872
        %7041 = vst.msk [vmem:[#allocation2 + $0x368] sm:$0xff] %vm547, %v6873
        %7042 = vst [vmem:[#allocation2 + $0x370] sm:$0xff] %v6874
        %7043 = vst.msk [vmem:[#allocation2 + $0x378] sm:$0xff] %vm547, %v6875
        %7044 = vst [vmem:[#allocation2 + $0x380] sm:$0xff] %v6876
        %7045 = vst.msk [vmem:[#allocation2 + $0x388] sm:$0xff] %vm547, %v6877
        %7046 = vst [vmem:[#allocation2 + $0x390] sm:$0xff] %v6878
        %7047 = vst.msk [vmem:[#allocation2 + $0x398] sm:$0xff] %vm547, %v6879
        %7048 = vst [vmem:[#allocation2 + $0x3a0] sm:$0xff] %v6880
        %7049 = vst.msk [vmem:[#allocation2 + $0x3a8] sm:$0xff] %vm547, %v6881
        %7050 = vst [vmem:[#allocation2 + $0x3b0] sm:$0xff] %v6882
        %7051 = vst.msk [vmem:[#allocation2 + $0x3b8] sm:$0xff] %vm547, %v6883
        %7052 = vst [vmem:[#allocation2 + $0x3c0] sm:$0xff] %v6884
        %7053 = vst.msk [vmem:[#allocation2 + $0x3c8] sm:$0xff] %vm547, %v6885
        %7054 = vst [vmem:[#allocation2 + $0x3d0] sm:$0xff] %v6886
        %7055 = vst.msk [vmem:[#allocation2 + $0x3d8] sm:$0xff] %vm547, %v6887
        %7056 = vst [vmem:[#allocation2 + $0x3e0] sm:$0xff] %v6888
        %7057 = vst.msk [vmem:[#allocation2 + $0x3e8] sm:$0xff] %vm547, %v6889
        %7058 = vst [vmem:[#allocation2 + $0x3f0] sm:$0xff] %v6890
        %7059 = vst.msk [vmem:[#allocation2 + $0x3f8] sm:$0xff] %vm547, %v6891
        %7060 = vst [vmem:[#allocation2 + $0x400] sm:$0xff] %v6892
        %7061 = vst.msk [vmem:[#allocation2 + $0x408] sm:$0xff] %vm547, %v6893
        %7062 = vst [vmem:[#allocation2 + $0x410] sm:$0xff] %v6894
        %7063 = vst.msk [vmem:[#allocation2 + $0x418] sm:$0xff] %vm547, %v6895
        %7064 = vst [vmem:[#allocation2 + $0x420] sm:$0xff] %v6896
        %7065 = vst.msk [vmem:[#allocation2 + $0x428] sm:$0xff] %vm547, %v6897
        %7066 = vst [vmem:[#allocation2 + $0x430] sm:$0xff] %v6898
        %7067 = vst.msk [vmem:[#allocation2 + $0x438] sm:$0xff] %vm547, %v6899
        %7068 = vst [vmem:[#allocation2 + $0x440] sm:$0xff] %v6900
        %7069 = vst.msk [vmem:[#allocation2 + $0x448] sm:$0xff] %vm547, %v6901
        %7070 = vst [vmem:[#allocation2 + $0x450] sm:$0xff] %v6902
        %7071 = vst.msk [vmem:[#allocation2 + $0x458] sm:$0xff] %vm547, %v6903
        %7072 = vst [vmem:[#allocation2 + $0x460] sm:$0xff] %v6904
        %7073 = vst.msk [vmem:[#allocation2 + $0x468] sm:$0xff] %vm547, %v6905
        %7074 = vst [vmem:[#allocation2 + $0x470] sm:$0xff] %v6906
        %7075 = vst.msk [vmem:[#allocation2 + $0x478] sm:$0xff] %vm547, %v6907
        %7076 = vst [vmem:[#allocation2 + $0x480] sm:$0xff] %v6908
        %7077 = vst.msk [vmem:[#allocation2 + $0x488] sm:$0xff] %vm547, %v6909
        %7078 = vst [vmem:[#allocation2 + $0x490] sm:$0xff] %v6910
        %7079 = vst.msk [vmem:[#allocation2 + $0x498] sm:$0xff] %vm547, %v6911
        %7080 = vst [vmem:[#allocation2 + $0x4a0] sm:$0xff] %v6912
        %7081 = vst.msk [vmem:[#allocation2 + $0x4a8] sm:$0xff] %vm547, %v6913
        %7082 = vst [vmem:[#allocation2 + $0x4b0] sm:$0xff] %v6914
        %7083 = vst.msk [vmem:[#allocation2 + $0x4b8] sm:$0xff] %vm547, %v6915
        %7084 = vst [vmem:[#allocation2 + $0x4c0] sm:$0xff] %v6916
        %7085 = vst.msk [vmem:[#allocation2 + $0x4c8] sm:$0xff] %vm547, %v6917
        %7086 = vst [vmem:[#allocation2 + $0x4d0] sm:$0xff] %v6918
        %7087 = vst.msk [vmem:[#allocation2 + $0x4d8] sm:$0xff] %vm547, %v6919
        %7088 = vst [vmem:[#allocation2 + $0x4e0] sm:$0xff] %v6920
        %7089 = vst.msk [vmem:[#allocation2 + $0x4e8] sm:$0xff] %vm547, %v6921
        %7090 = vst [vmem:[#allocation2 + $0x4f0] sm:$0xff] %v6922
        %7091 = vst.msk [vmem:[#allocation2 + $0x4f8] sm:$0xff] %vm547, %v6923
        %7092 = vst [vmem:[#allocation2 + $0x500] sm:$0xff] %v6924
        %7093 = vst.msk [vmem:[#allocation2 + $0x508] sm:$0xff] %vm547, %v6925
        %7094 = vst [vmem:[#allocation2 + $0x510] sm:$0xff] %v6926
        %7095 = vst.msk [vmem:[#allocation2 + $0x518] sm:$0xff] %vm547, %v6927
        %7096 = vst [vmem:[#allocation2 + $0x520] sm:$0xff] %v6928
        %7097 = vst.msk [vmem:[#allocation2 + $0x528] sm:$0xff] %vm547, %v6929
        %7098 = vst [vmem:[#allocation2 + $0x530] sm:$0xff] %v6930
        %7099 = vst.msk [vmem:[#allocation2 + $0x538] sm:$0xff] %vm547, %v6931
      $region40: #{bn_relu_conv1x1.1} parent=35 // pred_fallthru
        _
      %v7100 = vld [vmem:[%s197] sm:$0xff]
      %v7101 = vld [vmem:[%s197 + $0x8] sm:$0xff]
      %v7102 = vld [vmem:[%s197 + $0x10] sm:$0xff]
      %v7103 = vld [vmem:[%s197 + $0x18] sm:$0xff]
      %v7104 = vld [vmem:[%s197 + $0x20] sm:$0xff]
      %v7105 = vld [vmem:[%s197 + $0x28] sm:$0xf]
      %v7106 = vld [vmem:[%s197 + $0x2c] sm:$0xff]
      %v7107 = vld [vmem:[%s197 + $0x34] sm:$0xff]
      %v7108 = vld [vmem:[%s197 + $0x3c] sm:$0xff]
      %v7109 = vld [vmem:[%s197 + $0x44] sm:$0xff]
      %v7110 = vld [vmem:[%s197 + $0x4c] sm:$0xff]
      %v7111 = vld [vmem:[%s197 + $0x54] sm:$0xf]
      %v7112 = vld [vmem:[%s197 + $0x58] sm:$0xff]
      %v7113 = vld [vmem:[%s197 + $0x60] sm:$0xff]
      %v7114 = vld [vmem:[%s197 + $0x68] sm:$0xff]
      %v7115 = vld [vmem:[%s197 + $0x70] sm:$0xff]
      %v7116 = vld [vmem:[%s197 + $0x78] sm:$0xff]
      %v7117 = vld [vmem:[%s197 + $0x80] sm:$0xf]
      %v7118 = vld [vmem:[%s197 + $0x84] sm:$0xff]
      %v7119 = vld [vmem:[%s197 + $0x8c] sm:$0xff]
      %v7120 = vld [vmem:[%s197 + $0x94] sm:$0xff]
      %v7121 = vld [vmem:[%s197 + $0x9c] sm:$0xff]
      %v7122 = vld [vmem:[%s197 + $0xa4] sm:$0xff]
      %v7123 = vld [vmem:[%s197 + $0xac] sm:$0xf]
      %v7124 = vld [vmem:[%s197 + $0xb0] sm:$0xff]
      %v7125 = vld [vmem:[%s197 + $0xb8] sm:$0xff]
      %v7126 = vld [vmem:[%s197 + $0xc0] sm:$0xff]
      %v7127 = vld [vmem:[%s197 + $0xc8] sm:$0xff]
      %v7128 = vld [vmem:[%s197 + $0xd0] sm:$0xff]
      %v7129 = vld [vmem:[%s197 + $0xd8] sm:$0xf]
      %v7130 = vld [vmem:[%s197 + $0xdc] sm:$0xff]
      %v7131 = vld [vmem:[%s197 + $0xe4] sm:$0xff]
      %v7132 = vld [vmem:[%s197 + $0xec] sm:$0xff]
      %v7133 = vld [vmem:[%s197 + $0xf4] sm:$0xff]
      %v7134 = vld [vmem:[%s197 + $0xfc] sm:$0xff]
      %v7135 = vld [vmem:[%s197 + $0x104] sm:$0xf]
      %v7136 = vld [vmem:[%s197 + $0x108] sm:$0xff]
      %v7137 = vld [vmem:[%s197 + $0x110] sm:$0xff]
      %v7138 = vld [vmem:[%s197 + $0x118] sm:$0xff]
      %v7139 = vld [vmem:[%s197 + $0x120] sm:$0xff]
      %v7140 = vld [vmem:[%s197 + $0x128] sm:$0xff]
      %v7141 = vld [vmem:[%s197 + $0x130] sm:$0xf]
      %v7142 = vld [vmem:[%s197 + $0x134] sm:$0xff]
      %v7143 = vld [vmem:[%s197 + $0x13c] sm:$0xff]
      %v7144 = vld [vmem:[%s197 + $0x144] sm:$0xff]
      %v7145 = vld [vmem:[%s197 + $0x14c] sm:$0xff]
      %v7146 = vld [vmem:[%s197 + $0x154] sm:$0xff]
      %v7147 = vld [vmem:[%s197 + $0x15c] sm:$0xf]
      %v7148 = vld [vmem:[%s197 + $0x160] sm:$0xff]
      %v7149 = vld [vmem:[%s197 + $0x168] sm:$0xff]
      %v7150 = vld [vmem:[%s197 + $0x170] sm:$0xff]
      %v7151 = vld [vmem:[%s197 + $0x178] sm:$0xff]
      %v7152 = vld [vmem:[%s197 + $0x180] sm:$0xff]
      %v7153 = vld [vmem:[%s197 + $0x188] sm:$0xf]
      %v7154 = vld [vmem:[%s197 + $0x18c] sm:$0xff]
      %v7155 = vld [vmem:[%s197 + $0x194] sm:$0xff]
      %v7156 = vld [vmem:[%s197 + $0x19c] sm:$0xff]
      %v7157 = vld [vmem:[%s197 + $0x1a4] sm:$0xff]
      %v7158 = vld [vmem:[%s197 + $0x1ac] sm:$0xff]
      %v7159 = vld [vmem:[%s197 + $0x1b4] sm:$0xf]
      %v7160 = vld [vmem:[%s197 + $0x1b8] sm:$0xff]
      %v7161 = vld [vmem:[%s197 + $0x1c0] sm:$0xff]
      %v7162 = vld [vmem:[%s197 + $0x1c8] sm:$0xff]
      %v7163 = vld [vmem:[%s197 + $0x1d0] sm:$0xff]
      %v7164 = vld [vmem:[%s197 + $0x1d8] sm:$0xff]
      %v7165 = vld [vmem:[%s197 + $0x1e0] sm:$0xf]
      %v7166 = vld [vmem:[%s197 + $0x1e4] sm:$0xff]
      %v7167 = vld [vmem:[%s197 + $0x1ec] sm:$0xff]
      %v7168 = vld [vmem:[%s197 + $0x1f4] sm:$0xff]
      %v7169 = vld [vmem:[%s197 + $0x1fc] sm:$0xff]
      %v7170 = vld [vmem:[%s197 + $0x204] sm:$0xff]
      %v7171 = vld [vmem:[%s197 + $0x20c] sm:$0xf]
      %v7172 = vld [vmem:[%s197 + $0x210] sm:$0xff]
      %v7173 = vld [vmem:[%s197 + $0x218] sm:$0xff]
      %v7174 = vld [vmem:[%s197 + $0x220] sm:$0xff]
      %v7175 = vld [vmem:[%s197 + $0x228] sm:$0xff]
      %v7176 = vld [vmem:[%s197 + $0x230] sm:$0xff]
      %v7177 = vld [vmem:[%s197 + $0x238] sm:$0xf]
      %v7178 = vld [vmem:[%s197 + $0x23c] sm:$0xff]
      %v7179 = vld [vmem:[%s197 + $0x244] sm:$0xff]
      %v7180 = vld [vmem:[%s197 + $0x24c] sm:$0xff]
      %v7181 = vld [vmem:[%s197 + $0x254] sm:$0xff]
      %v7182 = vld [vmem:[%s197 + $0x25c] sm:$0xff]
      %v7183 = vld [vmem:[%s197 + $0x264] sm:$0xf]
      %v7184 = vld [vmem:[%s197 + $0x268] sm:$0xff]
      %v7185 = vld [vmem:[%s197 + $0x270] sm:$0xff]
      %v7186 = vld [vmem:[%s197 + $0x278] sm:$0xff]
      %v7187 = vld [vmem:[%s197 + $0x280] sm:$0xff]
      %v7188 = vld [vmem:[%s197 + $0x288] sm:$0xff]
      %v7189 = vld [vmem:[%s197 + $0x290] sm:$0xf]
      %v7190 = vld [vmem:[%s197 + $0x294] sm:$0xff]
      %v7191 = vld [vmem:[%s197 + $0x29c] sm:$0xff]
      %v7192 = vld [vmem:[%s197 + $0x2a4] sm:$0xff]
      %v7193 = vld [vmem:[%s197 + $0x2ac] sm:$0xff]
      %v7194 = vld [vmem:[%s197 + $0x2b4] sm:$0xff]
      %v7195 = vld [vmem:[%s197 + $0x2bc] sm:$0xf]
      %v7196 = vld [vmem:[%s197 + $0x2c0] sm:$0xff]
      %v7197 = vld [vmem:[%s197 + $0x2c8] sm:$0xff]
      %v7198 = vld [vmem:[%s197 + $0x2d0] sm:$0xff]
      %v7199 = vld [vmem:[%s197 + $0x2d8] sm:$0xff]
      %v7200 = vld [vmem:[%s197 + $0x2e0] sm:$0xff]
      %v7201 = vld [vmem:[%s197 + $0x2e8] sm:$0xf]
      %v7202 = vld [vmem:[%s197 + $0x2ec] sm:$0xff]
      %v7203 = vld [vmem:[%s197 + $0x2f4] sm:$0xff]
      %v7204 = vld [vmem:[%s197 + $0x2fc] sm:$0xff]
      %v7205 = vld [vmem:[%s197 + $0x304] sm:$0xff]
      %v7206 = vld [vmem:[%s197 + $0x30c] sm:$0xff]
      %v7207 = vld [vmem:[%s197 + $0x314] sm:$0xf]
      %v7208 = vld [vmem:[%s197 + $0x318] sm:$0xff]
      %v7209 = vld [vmem:[%s197 + $0x320] sm:$0xff]
      %v7210 = vld [vmem:[%s197 + $0x328] sm:$0xff]
      %v7211 = vld [vmem:[%s197 + $0x330] sm:$0xff]
      %v7212 = vld [vmem:[%s197 + $0x338] sm:$0xff]
      %v7213 = vld [vmem:[%s197 + $0x340] sm:$0xf]
      %v7214 = vld [vmem:[%s197 + $0x344] sm:$0xff]
      %v7215 = vld [vmem:[%s197 + $0x34c] sm:$0xff]
      %v7216 = vld [vmem:[%s197 + $0x354] sm:$0xff]
      %v7217 = vld [vmem:[%s197 + $0x35c] sm:$0xff]
      %v7218 = vld [vmem:[%s197 + $0x364] sm:$0xff]
      %v7219 = vld [vmem:[%s197 + $0x36c] sm:$0xf]
      %v7220 = vld [vmem:[%s197 + $0x370] sm:$0xff]
      %v7221 = vld [vmem:[%s197 + $0x378] sm:$0xff]
      %v7222 = vld [vmem:[%s197 + $0x380] sm:$0xff]
      %v7223 = vld [vmem:[%s197 + $0x388] sm:$0xff]
      %v7224 = vld [vmem:[%s197 + $0x390] sm:$0xff]
      %v7225 = vld [vmem:[%s197 + $0x398] sm:$0xf]
      %v7226 = vld [vmem:[%s197 + $0x39c] sm:$0xff]
      %v7227 = vld [vmem:[%s197 + $0x3a4] sm:$0xff]
      %v7228 = vld [vmem:[%s197 + $0x3ac] sm:$0xff]
      %v7229 = vld [vmem:[%s197 + $0x3b4] sm:$0xff]
      %v7230 = vld [vmem:[%s197 + $0x3bc] sm:$0xff]
      %v7231 = vld [vmem:[%s197 + $0x3c4] sm:$0xf]
      %v7232 = vld [vmem:[%s197 + $0x3c8] sm:$0xff]
      %v7233 = vld [vmem:[%s197 + $0x3d0] sm:$0xff]
      %v7234 = vld [vmem:[%s197 + $0x3d8] sm:$0xff]
      %v7235 = vld [vmem:[%s197 + $0x3e0] sm:$0xff]
      %v7236 = vld [vmem:[%s197 + $0x3e8] sm:$0xff]
      %v7237 = vld [vmem:[%s197 + $0x3f0] sm:$0xf]
      %v7238 = vld [vmem:[%s197 + $0x3f4] sm:$0xff]
      %v7239 = vld [vmem:[%s197 + $0x3fc] sm:$0xff]
      %v7240 = vld [vmem:[%s197 + $0x404] sm:$0xff]
      %v7241 = vld [vmem:[%s197 + $0x40c] sm:$0xff]
      %v7242 = vld [vmem:[%s197 + $0x414] sm:$0xff]
      %v7243 = vld [vmem:[%s197 + $0x41c] sm:$0xf]
      %v7244 = vld [vmem:[%s197 + $0x420] sm:$0xff]
      %v7245 = vld [vmem:[%s197 + $0x428] sm:$0xff]
      %v7246 = vld [vmem:[%s197 + $0x430] sm:$0xff]
      %v7247 = vld [vmem:[%s197 + $0x438] sm:$0xff]
      %v7248 = vld [vmem:[%s197 + $0x440] sm:$0xff]
      %v7249 = vld [vmem:[%s197 + $0x448] sm:$0xf]
      %v7250 = vld [vmem:[%s197 + $0x44c] sm:$0xff]
      %v7251 = vld [vmem:[%s197 + $0x454] sm:$0xff]
      %v7252 = vld [vmem:[%s197 + $0x45c] sm:$0xff]
      %v7253 = vld [vmem:[%s197 + $0x464] sm:$0xff]
      %v7254 = vld [vmem:[%s197 + $0x46c] sm:$0xff]
      %v7255 = vld [vmem:[%s197 + $0x474] sm:$0xf]
      %v7256 = vld [vmem:[%s197 + $0x478] sm:$0xff]
      %v7257 = vld [vmem:[%s197 + $0x480] sm:$0xff]
      %v7258 = vld [vmem:[%s197 + $0x488] sm:$0xff]
      %v7259 = vld [vmem:[%s197 + $0x490] sm:$0xff]
      %v7260 = vld [vmem:[%s197 + $0x498] sm:$0xff]
      %v7261 = vld [vmem:[%s197 + $0x4a0] sm:$0xf]
      %v7262 = vld [vmem:[%s197 + $0x4a4] sm:$0xff]
      %v7263 = vld [vmem:[%s197 + $0x4ac] sm:$0xff]
      %v7264 = vld [vmem:[%s197 + $0x4b4] sm:$0xff]
      %v7265 = vld [vmem:[%s197 + $0x4bc] sm:$0xff]
      %v7266 = vld [vmem:[%s197 + $0x4c4] sm:$0xff]
      %v7267 = vld [vmem:[%s197 + $0x4cc] sm:$0xf]
      %v7268 = vld [vmem:[%s197 + $0x4d0] sm:$0xff]
      %v7269 = vld [vmem:[%s197 + $0x4d8] sm:$0xff]
      %v7270 = vld [vmem:[%s197 + $0x4e0] sm:$0xff]
      %v7271 = vld [vmem:[%s197 + $0x4e8] sm:$0xff]
      %v7272 = vld [vmem:[%s197 + $0x4f0] sm:$0xff]
      %v7273 = vld [vmem:[%s197 + $0x4f8] sm:$0xf]
      %v7274 = vld [vmem:[%s197 + $0x4fc] sm:$0xff]
      %v7275 = vld [vmem:[%s197 + $0x504] sm:$0xff]
      %v7276 = vld [vmem:[%s197 + $0x50c] sm:$0xff]
      %v7277 = vld [vmem:[%s197 + $0x514] sm:$0xff]
      %v7278 = vld [vmem:[%s197 + $0x51c] sm:$0xff]
      %v7279 = vld [vmem:[%s197 + $0x524] sm:$0xf]
      %v7280 = vld [vmem:[%s197 + $0x528] sm:$0xff]
      %v7281 = vld [vmem:[%s197 + $0x530] sm:$0xff]
      %v7282 = vld [vmem:[%s197 + $0x538] sm:$0xff]
      %v7283 = vld [vmem:[%s197 + $0x540] sm:$0xff]
      %v7284 = vld [vmem:[%s197 + $0x548] sm:$0xff]
      %v7285 = vld [vmem:[%s197 + $0x550] sm:$0xf]
      %v7286 = vld [vmem:[%s197 + $0x554] sm:$0xff]
      %v7287 = vld [vmem:[%s197 + $0x55c] sm:$0xff]
      %v7288 = vld [vmem:[%s197 + $0x564] sm:$0xff]
      %v7289 = vld [vmem:[%s197 + $0x56c] sm:$0xff]
      %v7290 = vld [vmem:[%s197 + $0x574] sm:$0xff]
      %v7291 = vld [vmem:[%s197 + $0x57c] sm:$0xf]
      %v7292 = vld [vmem:[%s197 + $0x580] sm:$0xff]
      %v7293 = vld [vmem:[%s197 + $0x588] sm:$0xff]
      %v7294 = vld [vmem:[%s197 + $0x590] sm:$0xff]
      %v7295 = vld [vmem:[%s197 + $0x598] sm:$0xff]
      %v7296 = vld [vmem:[%s197 + $0x5a0] sm:$0xff]
      %v7297 = vld [vmem:[%s197 + $0x5a8] sm:$0xf]
      %v7298 = vld [vmem:[%s197 + $0x5ac] sm:$0xff]
      %v7299 = vld [vmem:[%s197 + $0x5b4] sm:$0xff]
      %v7300 = vld [vmem:[%s197 + $0x5bc] sm:$0xff]
      %v7301 = vld [vmem:[%s197 + $0x5c4] sm:$0xff]
      %v7302 = vld [vmem:[%s197 + $0x5cc] sm:$0xff]
      %v7303 = vld [vmem:[%s197 + $0x5d4] sm:$0xf]
      %v7304 = vld [vmem:[%s197 + $0x5d8] sm:$0xff]
      %v7305 = vld [vmem:[%s197 + $0x5e0] sm:$0xff]
      %v7306 = vld [vmem:[%s197 + $0x5e8] sm:$0xff]
      %v7307 = vld [vmem:[%s197 + $0x5f0] sm:$0xff]
      %v7308 = vld [vmem:[%s197 + $0x5f8] sm:$0xff]
      %v7309 = vld [vmem:[%s197 + $0x600] sm:$0xf]
      %v7310 = vld [vmem:[%s197 + $0x604] sm:$0xff]
      %v7311 = vld [vmem:[%s197 + $0x60c] sm:$0xff]
      %v7312 = vld [vmem:[%s197 + $0x614] sm:$0xff]
      %v7313 = vld [vmem:[%s197 + $0x61c] sm:$0xff]
      %v7314 = vld [vmem:[%s197 + $0x624] sm:$0xff]
      %v7315 = vld [vmem:[%s197 + $0x62c] sm:$0xf]
      %v7316 = vld [vmem:[%s197 + $0x630] sm:$0xff]
      %v7317 = vld [vmem:[%s197 + $0x638] sm:$0xff]
      %v7318 = vld [vmem:[%s197 + $0x640] sm:$0xff]
      %v7319 = vld [vmem:[%s197 + $0x648] sm:$0xff]
      %v7320 = vld [vmem:[%s197 + $0x650] sm:$0xff]
      %v7321 = vld [vmem:[%s197 + $0x658] sm:$0xf]
      %v7322 = vld [vmem:[%s197 + $0x65c] sm:$0xff]
      %v7323 = vld [vmem:[%s197 + $0x664] sm:$0xff]
      %v7324 = vld [vmem:[%s197 + $0x66c] sm:$0xff]
      %v7325 = vld [vmem:[%s197 + $0x674] sm:$0xff]
      %v7326 = vld [vmem:[%s197 + $0x67c] sm:$0xff]
      %v7327 = vld [vmem:[%s197 + $0x684] sm:$0xf]
      %v7328 = vld [vmem:[%s197 + $0x688] sm:$0xff]
      %v7329 = vld [vmem:[%s197 + $0x690] sm:$0xff]
      %v7330 = vld [vmem:[%s197 + $0x698] sm:$0xff]
      %v7331 = vld [vmem:[%s197 + $0x6a0] sm:$0xff]
      %v7332 = vld [vmem:[%s197 + $0x6a8] sm:$0xff]
      %v7333 = vld [vmem:[%s197 + $0x6b0] sm:$0xf]
      %v7334 = vld [vmem:[%s197 + $0x6b4] sm:$0xff]
      %v7335 = vld [vmem:[%s197 + $0x6bc] sm:$0xff]
      %v7336 = vld [vmem:[%s197 + $0x6c4] sm:$0xff]
      %v7337 = vld [vmem:[%s197 + $0x6cc] sm:$0xff]
      %v7338 = vld [vmem:[%s197 + $0x6d4] sm:$0xff]
      %v7339 = vld [vmem:[%s197 + $0x6dc] sm:$0xf]
      %v7340 = vld [vmem:[%s197 + $0x6e0] sm:$0xff]
      %v7341 = vld [vmem:[%s197 + $0x6e8] sm:$0xff]
      %v7342 = vld [vmem:[%s197 + $0x6f0] sm:$0xff]
      %v7343 = vld [vmem:[%s197 + $0x6f8] sm:$0xff]
      %v7344 = vld [vmem:[%s197 + $0x700] sm:$0xff]
      %v7345 = vld [vmem:[%s197 + $0x708] sm:$0xf]
      %v7346 = vld [vmem:[%s197 + $0x70c] sm:$0xff]
      %v7347 = vld [vmem:[%s197 + $0x714] sm:$0xff]
      %v7348 = vld [vmem:[%s197 + $0x71c] sm:$0xff]
      %v7349 = vld [vmem:[%s197 + $0x724] sm:$0xff]
      %v7350 = vld [vmem:[%s197 + $0x72c] sm:$0xff]
      %v7351 = vld [vmem:[%s197 + $0x734] sm:$0xf]
      %v7352 = vld [vmem:[%s197 + $0x738] sm:$0xff]
      %v7353 = vld [vmem:[%s197 + $0x740] sm:$0xff]
      %v7354 = vld [vmem:[%s197 + $0x748] sm:$0xff]
      %v7355 = vld [vmem:[%s197 + $0x750] sm:$0xff]
      %v7356 = vld [vmem:[%s197 + $0x758] sm:$0xff]
      %v7357 = vld [vmem:[%s197 + $0x760] sm:$0xf]
      %v7358 = vld [vmem:[%s197 + $0x764] sm:$0xff]
      %v7359 = vld [vmem:[%s197 + $0x76c] sm:$0xff]
      %v7360 = vld [vmem:[%s197 + $0x774] sm:$0xff]
      %v7361 = vld [vmem:[%s197 + $0x77c] sm:$0xff]
      %v7362 = vld [vmem:[%s197 + $0x784] sm:$0xff]
      %v7363 = vld [vmem:[%s197 + $0x78c] sm:$0xf]
      %v7364 = vld [vmem:[%s197 + $0x790] sm:$0xff]
      %v7365 = vld [vmem:[%s197 + $0x798] sm:$0xff]
      %v7366 = vld [vmem:[%s197 + $0x7a0] sm:$0xff]
      %v7367 = vld [vmem:[%s197 + $0x7a8] sm:$0xff]
      %v7368 = vld [vmem:[%s197 + $0x7b0] sm:$0xff]
      %v7369 = vld [vmem:[%s197 + $0x7b8] sm:$0xf]
      %v7370 = vld [vmem:[%s197 + $0x7bc] sm:$0xff]
      %v7371 = vld [vmem:[%s197 + $0x7c4] sm:$0xff]
      %v7372 = vld [vmem:[%s197 + $0x7cc] sm:$0xff]
      %v7373 = vld [vmem:[%s197 + $0x7d4] sm:$0xff]
      %v7374 = vld [vmem:[%s197 + $0x7dc] sm:$0xff]
      %v7375 = vld [vmem:[%s197 + $0x7e4] sm:$0xf]
      %v7376 = vld [vmem:[%s197 + $0x7e8] sm:$0xff]
      %v7377 = vld [vmem:[%s197 + $0x7f0] sm:$0xff]
      %v7378 = vld [vmem:[%s197 + $0x7f8] sm:$0xff]
      %v7379 = vld [vmem:[%s197 + $0x800] sm:$0xff]
      %v7380 = vld [vmem:[%s197 + $0x808] sm:$0xff]
      %v7381 = vld [vmem:[%s197 + $0x810] sm:$0xf]
      %v7382 = vld [vmem:[%s197 + $0x814] sm:$0xff]
      %v7383 = vld [vmem:[%s197 + $0x81c] sm:$0xff]
      %v7384 = vld [vmem:[%s197 + $0x824] sm:$0xff]
      %v7385 = vld [vmem:[%s197 + $0x82c] sm:$0xff]
      %v7386 = vld [vmem:[%s197 + $0x834] sm:$0xff]
      %v7387 = vld [vmem:[%s197 + $0x83c] sm:$0xf]
      %v7388 = vld [vmem:[%s197 + $0x840] sm:$0xff]
      %v7389 = vld [vmem:[%s197 + $0x848] sm:$0xff]
      %v7390 = vld [vmem:[%s197 + $0x850] sm:$0xff]
      %v7391 = vld [vmem:[%s197 + $0x858] sm:$0xff]
      %v7392 = vld [vmem:[%s197 + $0x860] sm:$0xff]
      %v7393 = vld [vmem:[%s197 + $0x868] sm:$0xf]
      %v7394 = vld [vmem:[%s197 + $0x86c] sm:$0xff]
      %v7395 = vld [vmem:[%s197 + $0x874] sm:$0xff]
      %v7396 = vld [vmem:[%s197 + $0x87c] sm:$0xff]
      %v7397 = vld [vmem:[%s197 + $0x884] sm:$0xff]
      %v7398 = vld [vmem:[%s197 + $0x88c] sm:$0xff]
      %v7399 = vld [vmem:[%s197 + $0x894] sm:$0xf]
      %v7400 = vld [vmem:[%s197 + $0x898] sm:$0xff]
      %v7401 = vld [vmem:[%s197 + $0x8a0] sm:$0xff]
      %v7402 = vld [vmem:[%s197 + $0x8a8] sm:$0xff]
      %v7403 = vld [vmem:[%s197 + $0x8b0] sm:$0xff]
      %v7404 = vld [vmem:[%s197 + $0x8b8] sm:$0xff]
      %v7405 = vld [vmem:[%s197 + $0x8c0] sm:$0xf]
      %v7406 = vld [vmem:[%s197 + $0x8c4] sm:$0xff]
      %v7407 = vld [vmem:[%s197 + $0x8cc] sm:$0xff]
      %v7408 = vld [vmem:[%s197 + $0x8d4] sm:$0xff]
      %v7409 = vld [vmem:[%s197 + $0x8dc] sm:$0xff]
      %v7410 = vld [vmem:[%s197 + $0x8e4] sm:$0xff]
      %v7411 = vld [vmem:[%s197 + $0x8ec] sm:$0xf]
      %v7412 = vld [vmem:[%s197 + $0x8f0] sm:$0xff]
      %v7413 = vld [vmem:[%s197 + $0x8f8] sm:$0xff]
      %v7414 = vld [vmem:[%s197 + $0x900] sm:$0xff]
      %v7415 = vld [vmem:[%s197 + $0x908] sm:$0xff]
      %v7416 = vld [vmem:[%s197 + $0x910] sm:$0xff]
      %v7417 = vld [vmem:[%s197 + $0x918] sm:$0xf]
      %v7418 = vld [vmem:[%s197 + $0x91c] sm:$0xff]
      %v7419 = vld [vmem:[%s197 + $0x924] sm:$0xff]
      %v7420 = vld [vmem:[%s197 + $0x92c] sm:$0xff]
      %v7421 = vld [vmem:[%s197 + $0x934] sm:$0xff]
      %v7422 = vld [vmem:[%s197 + $0x93c] sm:$0xff]
      %v7423 = vld [vmem:[%s197 + $0x944] sm:$0xf]
      %v7424 = vld [vmem:[%s197 + $0x948] sm:$0xff]
      %v7425 = vld [vmem:[%s197 + $0x950] sm:$0xff]
      %v7426 = vld [vmem:[%s197 + $0x958] sm:$0xff]
      %v7427 = vld [vmem:[%s197 + $0x960] sm:$0xff]
      %v7428 = vld [vmem:[%s197 + $0x968] sm:$0xff]
      %v7429 = vld [vmem:[%s197 + $0x970] sm:$0xf]
      %v7430 = vld [vmem:[%s197 + $0x974] sm:$0xff]
      %v7431 = vld [vmem:[%s197 + $0x97c] sm:$0xff]
      %v7432 = vld [vmem:[%s197 + $0x984] sm:$0xff]
      %v7433 = vld [vmem:[%s197 + $0x98c] sm:$0xff]
      %v7434 = vld [vmem:[%s197 + $0x994] sm:$0xff]
      %v7435 = vld [vmem:[%s197 + $0x99c] sm:$0xf]
      %v7436 = vld [vmem:[#allocation2] sm:$0xff]
      %v7437 = vld [vmem:[#allocation2 + $0x8] sm:$0xff]
      %v7438 = vld [vmem:[#allocation2 + $0x10] sm:$0xff]
      %v7439 = vld [vmem:[#allocation2 + $0x18] sm:$0xff]
      %v7440 = vld [vmem:[#allocation2 + $0x20] sm:$0xff]
      %v7441 = vld [vmem:[#allocation2 + $0x28] sm:$0xff]
      %v7442 = vld [vmem:[#allocation2 + $0x30] sm:$0xff]
      %v7443 = vld [vmem:[#allocation2 + $0x38] sm:$0xff]
      %v7444 = vld [vmem:[#allocation2 + $0x40] sm:$0xff]
      %v7445 = vld [vmem:[#allocation2 + $0x48] sm:$0xff]
      %v7446 = vld [vmem:[#allocation2 + $0x50] sm:$0xff]
      %v7447 = vld [vmem:[#allocation2 + $0x58] sm:$0xff]
      %v7448 = vld [vmem:[#allocation2 + $0x60] sm:$0xff]
      %v7449 = vld [vmem:[#allocation2 + $0x68] sm:$0xff]
      %v7450 = vld [vmem:[#allocation2 + $0x70] sm:$0xff]
      %v7451 = vld [vmem:[#allocation2 + $0x78] sm:$0xff]
      %v7452 = vld [vmem:[#allocation2 + $0x80] sm:$0xff]
      %v7453 = vld [vmem:[#allocation2 + $0x88] sm:$0xff]
      %v7454 = vld [vmem:[#allocation2 + $0x90] sm:$0xff]
      %v7455 = vld [vmem:[#allocation2 + $0x98] sm:$0xff]
      %v7456 = vld [vmem:[#allocation2 + $0xa0] sm:$0xff]
      %v7457 = vld [vmem:[#allocation2 + $0xa8] sm:$0xff]
      %v7458 = vld [vmem:[#allocation2 + $0xb0] sm:$0xff]
      %v7459 = vld [vmem:[#allocation2 + $0xb8] sm:$0xff]
      %v7460 = vld [vmem:[#allocation2 + $0xc0] sm:$0xff]
      %v7461 = vld [vmem:[#allocation2 + $0xc8] sm:$0xff]
      %v7462 = vld [vmem:[#allocation2 + $0xd0] sm:$0xff]
      %v7463 = vld [vmem:[#allocation2 + $0xd8] sm:$0xff]
      %v7464 = vld [vmem:[#allocation2 + $0xe0] sm:$0xff]
      %v7465 = vld [vmem:[#allocation2 + $0xe8] sm:$0xff]
      %v7466 = vld [vmem:[#allocation2 + $0xf0] sm:$0xff]
      %v7467 = vld [vmem:[#allocation2 + $0xf8] sm:$0xff]
      %v7468 = vld [vmem:[#allocation2 + $0x100] sm:$0xff]
      %v7469 = vld [vmem:[#allocation2 + $0x108] sm:$0xff]
      %v7470 = vld [vmem:[#allocation2 + $0x110] sm:$0xff]
      %v7471 = vld [vmem:[#allocation2 + $0x118] sm:$0xff]
      %v7472 = vld [vmem:[#allocation2 + $0x120] sm:$0xff]
      %v7473 = vld [vmem:[#allocation2 + $0x128] sm:$0xff]
      %v7474 = vld [vmem:[#allocation2 + $0x130] sm:$0xff]
      %v7475 = vld [vmem:[#allocation2 + $0x138] sm:$0xff]
      %v7476 = vld [vmem:[#allocation2 + $0x140] sm:$0xff]
      %v7477 = vld [vmem:[#allocation2 + $0x148] sm:$0xff]
      %v7478 = vld [vmem:[#allocation2 + $0x150] sm:$0xff]
      %v7479 = vld [vmem:[#allocation2 + $0x158] sm:$0xff]
      %v7480 = vld [vmem:[#allocation2 + $0x160] sm:$0xff]
      %v7481 = vld [vmem:[#allocation2 + $0x168] sm:$0xff]
      %v7482 = vld [vmem:[#allocation2 + $0x170] sm:$0xff]
      %v7483 = vld [vmem:[#allocation2 + $0x178] sm:$0xff]
      %v7484 = vld [vmem:[#allocation2 + $0x180] sm:$0xff]
      %v7485 = vld [vmem:[#allocation2 + $0x188] sm:$0xff]
      %v7486 = vld [vmem:[#allocation2 + $0x190] sm:$0xff]
      %v7487 = vld [vmem:[#allocation2 + $0x198] sm:$0xff]
      %v7488 = vld [vmem:[#allocation2 + $0x1a0] sm:$0xff]
      %v7489 = vld [vmem:[#allocation2 + $0x1a8] sm:$0xff]
      %v7490 = vld [vmem:[#allocation2 + $0x1b0] sm:$0xff]
      %v7491 = vld [vmem:[#allocation2 + $0x1b8] sm:$0xff]
      %v7492 = vld [vmem:[#allocation2 + $0x1c0] sm:$0xff]
      %v7493 = vld [vmem:[#allocation2 + $0x1c8] sm:$0xff]
      %v7494 = vld [vmem:[#allocation2 + $0x1d0] sm:$0xff]
      %v7495 = vld [vmem:[#allocation2 + $0x1d8] sm:$0xff]
      %v7496 = vld [vmem:[#allocation2 + $0x1e0] sm:$0xff]
      %v7497 = vld [vmem:[#allocation2 + $0x1e8] sm:$0xff]
      %v7498 = vld [vmem:[#allocation2 + $0x1f0] sm:$0xff]
      %v7499 = vld [vmem:[#allocation2 + $0x1f8] sm:$0xff]
      %v7500 = vld [vmem:[#allocation2 + $0x200] sm:$0xff]
      %v7501 = vld [vmem:[#allocation2 + $0x208] sm:$0xff]
      %v7502 = vld [vmem:[#allocation2 + $0x210] sm:$0xff]
      %v7503 = vld [vmem:[#allocation2 + $0x218] sm:$0xff]
      %v7504 = vld [vmem:[#allocation2 + $0x220] sm:$0xff]
      %v7505 = vld [vmem:[#allocation2 + $0x228] sm:$0xff]
      %v7506 = vld [vmem:[#allocation2 + $0x230] sm:$0xff]
      %v7507 = vld [vmem:[#allocation2 + $0x238] sm:$0xff]
      %v7508 = vld [vmem:[#allocation2 + $0x240] sm:$0xff]
      %v7509 = vld [vmem:[#allocation2 + $0x248] sm:$0xff]
      %v7510 = vld [vmem:[#allocation2 + $0x250] sm:$0xff]
      %v7511 = vld [vmem:[#allocation2 + $0x258] sm:$0xff]
      %v7512 = vld [vmem:[#allocation2 + $0x260] sm:$0xff]
      %v7513 = vld [vmem:[#allocation2 + $0x268] sm:$0xff]
      %v7514 = vld [vmem:[#allocation2 + $0x270] sm:$0xff]
      %v7515 = vld [vmem:[#allocation2 + $0x278] sm:$0xff]
      %v7516 = vld [vmem:[#allocation2 + $0x280] sm:$0xff]
      %v7517 = vld [vmem:[#allocation2 + $0x288] sm:$0xff]
      %v7518 = vld [vmem:[#allocation2 + $0x290] sm:$0xff]
      %v7519 = vld [vmem:[#allocation2 + $0x298] sm:$0xff]
      %v7520 = vld [vmem:[#allocation2 + $0x2a0] sm:$0xff]
      %v7521 = vld [vmem:[#allocation2 + $0x2a8] sm:$0xff]
      %v7522 = vld [vmem:[#allocation2 + $0x2b0] sm:$0xff]
      %v7523 = vld [vmem:[#allocation2 + $0x2b8] sm:$0xff]
      %v7524 = vld [vmem:[#allocation2 + $0x2c0] sm:$0xff]
      %v7525 = vld [vmem:[#allocation2 + $0x2c8] sm:$0xff]
      %v7526 = vld [vmem:[#allocation2 + $0x2d0] sm:$0xff]
      %v7527 = vld [vmem:[#allocation2 + $0x2d8] sm:$0xff]
      %v7528 = vld [vmem:[#allocation2 + $0x2e0] sm:$0xff]
      %v7529 = vld [vmem:[#allocation2 + $0x2e8] sm:$0xff]
      %v7530 = vld [vmem:[#allocation2 + $0x2f0] sm:$0xff]
      %v7531 = vld [vmem:[#allocation2 + $0x2f8] sm:$0xff]
      %v7532 = vld [vmem:[#allocation2 + $0x300] sm:$0xff]
      %v7533 = vld [vmem:[#allocation2 + $0x308] sm:$0xff]
      %v7534 = vld [vmem:[#allocation2 + $0x310] sm:$0xff]
      %v7535 = vld [vmem:[#allocation2 + $0x318] sm:$0xff]
      %v7536 = vld [vmem:[#allocation2 + $0x320] sm:$0xff]
      %v7537 = vld [vmem:[#allocation2 + $0x328] sm:$0xff]
      %v7538 = vld [vmem:[#allocation2 + $0x330] sm:$0xff]
      %v7539 = vld [vmem:[#allocation2 + $0x338] sm:$0xff]
      %v7540 = vld [vmem:[#allocation2 + $0x340] sm:$0xff]
      %v7541 = vld [vmem:[#allocation2 + $0x348] sm:$0xff]
      %v7542 = vld [vmem:[#allocation2 + $0x350] sm:$0xff]
      %v7543 = vld [vmem:[#allocation2 + $0x358] sm:$0xff]
      %v7544 = vld [vmem:[#allocation2 + $0x360] sm:$0xff]
      %v7545 = vld [vmem:[#allocation2 + $0x368] sm:$0xff]
      %v7546 = vld [vmem:[#allocation2 + $0x370] sm:$0xff]
      %v7547 = vld [vmem:[#allocation2 + $0x378] sm:$0xff]
      %v7548 = vld [vmem:[#allocation2 + $0x380] sm:$0xff]
      %v7549 = vld [vmem:[#allocation2 + $0x388] sm:$0xff]
      %v7550 = vld [vmem:[#allocation2 + $0x390] sm:$0xff]
      %v7551 = vld [vmem:[#allocation2 + $0x398] sm:$0xff]
      %v7552 = vld [vmem:[#allocation2 + $0x3a0] sm:$0xff]
      %v7553 = vld [vmem:[#allocation2 + $0x3a8] sm:$0xff]
      %v7554 = vld [vmem:[#allocation2 + $0x3b0] sm:$0xff]
      %v7555 = vld [vmem:[#allocation2 + $0x3b8] sm:$0xff]
      %v7556 = vld [vmem:[#allocation2 + $0x3c0] sm:$0xff]
      %v7557 = vld [vmem:[#allocation2 + $0x3c8] sm:$0xff]
      %v7558 = vld [vmem:[#allocation2 + $0x3d0] sm:$0xff]
      %v7559 = vld [vmem:[#allocation2 + $0x3d8] sm:$0xff]
      %v7560 = vld [vmem:[#allocation2 + $0x3e0] sm:$0xff]
      %v7561 = vld [vmem:[#allocation2 + $0x3e8] sm:$0xff]
      %v7562 = vld [vmem:[#allocation2 + $0x3f0] sm:$0xff]
      %v7563 = vld [vmem:[#allocation2 + $0x3f8] sm:$0xff]
      %v7564 = vld [vmem:[#allocation2 + $0x400] sm:$0xff]
      %v7565 = vld [vmem:[#allocation2 + $0x408] sm:$0xff]
      %v7566 = vld [vmem:[#allocation2 + $0x410] sm:$0xff]
      %v7567 = vld [vmem:[#allocation2 + $0x418] sm:$0xff]
      %v7568 = vld [vmem:[#allocation2 + $0x420] sm:$0xff]
      %v7569 = vld [vmem:[#allocation2 + $0x428] sm:$0xff]
      %v7570 = vld [vmem:[#allocation2 + $0x430] sm:$0xff]
      %v7571 = vld [vmem:[#allocation2 + $0x438] sm:$0xff]
      %v7572 = vld [vmem:[#allocation2 + $0x440] sm:$0xff]
      %v7573 = vld [vmem:[#allocation2 + $0x448] sm:$0xff]
      %v7574 = vld [vmem:[#allocation2 + $0x450] sm:$0xff]
      %v7575 = vld [vmem:[#allocation2 + $0x458] sm:$0xff]
      %v7576 = vld [vmem:[#allocation2 + $0x460] sm:$0xff]
      %v7577 = vld [vmem:[#allocation2 + $0x468] sm:$0xff]
      %v7578 = vld [vmem:[#allocation2 + $0x470] sm:$0xff]
      %v7579 = vld [vmem:[#allocation2 + $0x478] sm:$0xff]
      %v7580 = vld [vmem:[#allocation2 + $0x480] sm:$0xff]
      %v7581 = vld [vmem:[#allocation2 + $0x488] sm:$0xff]
      %v7582 = vld [vmem:[#allocation2 + $0x490] sm:$0xff]
      %v7583 = vld [vmem:[#allocation2 + $0x498] sm:$0xff]
      %v7584 = vld [vmem:[#allocation2 + $0x4a0] sm:$0xff]
      %v7585 = vld [vmem:[#allocation2 + $0x4a8] sm:$0xff]
      %v7586 = vld [vmem:[#allocation2 + $0x4b0] sm:$0xff]
      %v7587 = vld [vmem:[#allocation2 + $0x4b8] sm:$0xff]
      %v7588 = vld [vmem:[#allocation2 + $0x4c0] sm:$0xff]
      %v7589 = vld [vmem:[#allocation2 + $0x4c8] sm:$0xff]
      %v7590 = vld [vmem:[#allocation2 + $0x4d0] sm:$0xff]
      %v7591 = vld [vmem:[#allocation2 + $0x4d8] sm:$0xff]
      %v7592 = vld [vmem:[#allocation2 + $0x4e0] sm:$0xff]
      %v7593 = vld [vmem:[#allocation2 + $0x4e8] sm:$0xff]
      %v7594 = vld [vmem:[#allocation2 + $0x4f0] sm:$0xff]
      %v7595 = vld [vmem:[#allocation2 + $0x4f8] sm:$0xff]
      %v7596 = vld [vmem:[#allocation2 + $0x500] sm:$0xff]
      %v7597 = vld [vmem:[#allocation2 + $0x508] sm:$0xff]
      %v7598 = vld [vmem:[#allocation2 + $0x510] sm:$0xff]
      %v7599 = vld [vmem:[#allocation2 + $0x518] sm:$0xff]
      %v7600 = vld [vmem:[#allocation2 + $0x520] sm:$0xff]
      %v7601 = vld [vmem:[#allocation2 + $0x528] sm:$0xff]
      %v7602 = vld [vmem:[#allocation2 + $0x530] sm:$0xff]
      %v7603 = vld [vmem:[#allocation2 + $0x538] sm:$0xff]
      %v7940 = vunpack.c.l.b16 %v7100
      %v7941 = vunpack.c.h.b16 %v7100
      %v7942 = vunpack.c.l.b16 %v7101
      %v7943 = vunpack.c.h.b16 %v7101
      %v7944 = vunpack.c.l.b16 %v7102
      %v7945 = vunpack.c.h.b16 %v7102
      %v7946 = vunpack.c.l.b16 %v7103
      %v7947 = vunpack.c.h.b16 %v7103
      %v7948 = vunpack.c.l.b16 %v7104
      %v7949 = vunpack.c.h.b16 %v7104
      %v7950 = vunpack.c.l.b16 %v7105
      %v7951 = vunpack.c.l.b16 %v7106
      %v7952 = vunpack.c.h.b16 %v7106
      %v7953 = vunpack.c.l.b16 %v7107
      %v7954 = vunpack.c.h.b16 %v7107
      %v7955 = vunpack.c.l.b16 %v7108
      %v7956 = vunpack.c.h.b16 %v7108
      %v7957 = vunpack.c.l.b16 %v7109
      %v7958 = vunpack.c.h.b16 %v7109
      %v7959 = vunpack.c.l.b16 %v7110
      %v7960 = vunpack.c.h.b16 %v7110
      %v7961 = vunpack.c.l.b16 %v7111
      %v7962 = vunpack.c.l.b16 %v7112
      %v7963 = vunpack.c.h.b16 %v7112
      %v7964 = vunpack.c.l.b16 %v7113
      %v7965 = vunpack.c.h.b16 %v7113
      %v7966 = vunpack.c.l.b16 %v7114
      %v7967 = vunpack.c.h.b16 %v7114
      %v7968 = vunpack.c.l.b16 %v7115
      %v7969 = vunpack.c.h.b16 %v7115
      %v7970 = vunpack.c.l.b16 %v7116
      %v7971 = vunpack.c.h.b16 %v7116
      %v7972 = vunpack.c.l.b16 %v7117
      %v7973 = vunpack.c.l.b16 %v7118
      %v7974 = vunpack.c.h.b16 %v7118
      %v7975 = vunpack.c.l.b16 %v7119
      %v7976 = vunpack.c.h.b16 %v7119
      %v7977 = vunpack.c.l.b16 %v7120
      %v7978 = vunpack.c.h.b16 %v7120
      %v7979 = vunpack.c.l.b16 %v7121
      %v7980 = vunpack.c.h.b16 %v7121
      %v7981 = vunpack.c.l.b16 %v7122
      %v7982 = vunpack.c.h.b16 %v7122
      %v7983 = vunpack.c.l.b16 %v7123
      %v7984 = vunpack.c.l.b16 %v7124
      %v7985 = vunpack.c.h.b16 %v7124
      %v7986 = vunpack.c.l.b16 %v7125
      %v7987 = vunpack.c.h.b16 %v7125
      %v7988 = vunpack.c.l.b16 %v7126
      %v7989 = vunpack.c.h.b16 %v7126
      %v7990 = vunpack.c.l.b16 %v7127
      %v7991 = vunpack.c.h.b16 %v7127
      %v7992 = vunpack.c.l.b16 %v7128
      %v7993 = vunpack.c.h.b16 %v7128
      %v7994 = vunpack.c.l.b16 %v7129
      %v7995 = vunpack.c.l.b16 %v7130
      %v7996 = vunpack.c.h.b16 %v7130
      %v7997 = vunpack.c.l.b16 %v7131
      %v7998 = vunpack.c.h.b16 %v7131
      %v7999 = vunpack.c.l.b16 %v7132
      %v8000 = vunpack.c.h.b16 %v7132
      %v8001 = vunpack.c.l.b16 %v7133
      %v8002 = vunpack.c.h.b16 %v7133
      %v8003 = vunpack.c.l.b16 %v7134
      %v8004 = vunpack.c.h.b16 %v7134
      %v8005 = vunpack.c.l.b16 %v7135
      %v8006 = vunpack.c.l.b16 %v7136
      %v8007 = vunpack.c.h.b16 %v7136
      %v8008 = vunpack.c.l.b16 %v7137
      %v8009 = vunpack.c.h.b16 %v7137
      %v8010 = vunpack.c.l.b16 %v7138
      %v8011 = vunpack.c.h.b16 %v7138
      %v8012 = vunpack.c.l.b16 %v7139
      %v8013 = vunpack.c.h.b16 %v7139
      %v8014 = vunpack.c.l.b16 %v7140
      %v8015 = vunpack.c.h.b16 %v7140
      %v8016 = vunpack.c.l.b16 %v7141
      %v8017 = vunpack.c.l.b16 %v7142
      %v8018 = vunpack.c.h.b16 %v7142
      %v8019 = vunpack.c.l.b16 %v7143
      %v8020 = vunpack.c.h.b16 %v7143
      %v8021 = vunpack.c.l.b16 %v7144
      %v8022 = vunpack.c.h.b16 %v7144
      %v8023 = vunpack.c.l.b16 %v7145
      %v8024 = vunpack.c.h.b16 %v7145
      %v8025 = vunpack.c.l.b16 %v7146
      %v8026 = vunpack.c.h.b16 %v7146
      %v8027 = vunpack.c.l.b16 %v7147
      %v8028 = vunpack.c.l.b16 %v7148
      %v8029 = vunpack.c.h.b16 %v7148
      %v8030 = vunpack.c.l.b16 %v7149
      %v8031 = vunpack.c.h.b16 %v7149
      %v8032 = vunpack.c.l.b16 %v7150
      %v8033 = vunpack.c.h.b16 %v7150
      %v8034 = vunpack.c.l.b16 %v7151
      %v8035 = vunpack.c.h.b16 %v7151
      %v8036 = vunpack.c.l.b16 %v7152
      %v8037 = vunpack.c.h.b16 %v7152
      %v8038 = vunpack.c.l.b16 %v7153
      %v8039 = vunpack.c.l.b16 %v7154
      %v8040 = vunpack.c.h.b16 %v7154
      %v8041 = vunpack.c.l.b16 %v7155
      %v8042 = vunpack.c.h.b16 %v7155
      %v8043 = vunpack.c.l.b16 %v7156
      %v8044 = vunpack.c.h.b16 %v7156
      %v8045 = vunpack.c.l.b16 %v7157
      %v8046 = vunpack.c.h.b16 %v7157
      %v8047 = vunpack.c.l.b16 %v7158
      %v8048 = vunpack.c.h.b16 %v7158
      %v8049 = vunpack.c.l.b16 %v7159
      %v8050 = vunpack.c.l.b16 %v7160
      %v8051 = vunpack.c.h.b16 %v7160
      %v8052 = vunpack.c.l.b16 %v7161
      %v8053 = vunpack.c.h.b16 %v7161
      %v8054 = vunpack.c.l.b16 %v7162
      %v8055 = vunpack.c.h.b16 %v7162
      %v8056 = vunpack.c.l.b16 %v7163
      %v8057 = vunpack.c.h.b16 %v7163
      %v8058 = vunpack.c.l.b16 %v7164
      %v8059 = vunpack.c.h.b16 %v7164
      %v8060 = vunpack.c.l.b16 %v7165
      %v8061 = vunpack.c.l.b16 %v7166
      %v8062 = vunpack.c.h.b16 %v7166
      %v8063 = vunpack.c.l.b16 %v7167
      %v8064 = vunpack.c.h.b16 %v7167
      %v8065 = vunpack.c.l.b16 %v7168
      %v8066 = vunpack.c.h.b16 %v7168
      %v8067 = vunpack.c.l.b16 %v7169
      %v8068 = vunpack.c.h.b16 %v7169
      %v8069 = vunpack.c.l.b16 %v7170
      %v8070 = vunpack.c.h.b16 %v7170
      %v8071 = vunpack.c.l.b16 %v7171
      %v8072 = vunpack.c.l.b16 %v7172
      %v8073 = vunpack.c.h.b16 %v7172
      %v8074 = vunpack.c.l.b16 %v7173
      %v8075 = vunpack.c.h.b16 %v7173
      %v8076 = vunpack.c.l.b16 %v7174
      %v8077 = vunpack.c.h.b16 %v7174
      %v8078 = vunpack.c.l.b16 %v7175
      %v8079 = vunpack.c.h.b16 %v7175
      %v8080 = vunpack.c.l.b16 %v7176
      %v8081 = vunpack.c.h.b16 %v7176
      %v8082 = vunpack.c.l.b16 %v7177
      %v8083 = vunpack.c.l.b16 %v7178
      %v8084 = vunpack.c.h.b16 %v7178
      %v8085 = vunpack.c.l.b16 %v7179
      %v8086 = vunpack.c.h.b16 %v7179
      %v8087 = vunpack.c.l.b16 %v7180
      %v8088 = vunpack.c.h.b16 %v7180
      %v8089 = vunpack.c.l.b16 %v7181
      %v8090 = vunpack.c.h.b16 %v7181
      %v8091 = vunpack.c.l.b16 %v7182
      %v8092 = vunpack.c.h.b16 %v7182
      %v8093 = vunpack.c.l.b16 %v7183
      %v8094 = vunpack.c.l.b16 %v7184
      %v8095 = vunpack.c.h.b16 %v7184
      %v8096 = vunpack.c.l.b16 %v7185
      %v8097 = vunpack.c.h.b16 %v7185
      %v8098 = vunpack.c.l.b16 %v7186
      %v8099 = vunpack.c.h.b16 %v7186
      %v8100 = vunpack.c.l.b16 %v7187
      %v8101 = vunpack.c.h.b16 %v7187
      %v8102 = vunpack.c.l.b16 %v7188
      %v8103 = vunpack.c.h.b16 %v7188
      %v8104 = vunpack.c.l.b16 %v7189
      %v8105 = vunpack.c.l.b16 %v7190
      %v8106 = vunpack.c.h.b16 %v7190
      %v8107 = vunpack.c.l.b16 %v7191
      %v8108 = vunpack.c.h.b16 %v7191
      %v8109 = vunpack.c.l.b16 %v7192
      %v8110 = vunpack.c.h.b16 %v7192
      %v8111 = vunpack.c.l.b16 %v7193
      %v8112 = vunpack.c.h.b16 %v7193
      %v8113 = vunpack.c.l.b16 %v7194
      %v8114 = vunpack.c.h.b16 %v7194
      %v8115 = vunpack.c.l.b16 %v7195
      %v8116 = vunpack.c.l.b16 %v7196
      %v8117 = vunpack.c.h.b16 %v7196
      %v8118 = vunpack.c.l.b16 %v7197
      %v8119 = vunpack.c.h.b16 %v7197
      %v8120 = vunpack.c.l.b16 %v7198
      %v8121 = vunpack.c.h.b16 %v7198
      %v8122 = vunpack.c.l.b16 %v7199
      %v8123 = vunpack.c.h.b16 %v7199
      %v8124 = vunpack.c.l.b16 %v7200
      %v8125 = vunpack.c.h.b16 %v7200
      %v8126 = vunpack.c.l.b16 %v7201
      %v8127 = vunpack.c.l.b16 %v7202
      %v8128 = vunpack.c.h.b16 %v7202
      %v8129 = vunpack.c.l.b16 %v7203
      %v8130 = vunpack.c.h.b16 %v7203
      %v8131 = vunpack.c.l.b16 %v7204
      %v8132 = vunpack.c.h.b16 %v7204
      %v8133 = vunpack.c.l.b16 %v7205
      %v8134 = vunpack.c.h.b16 %v7205
      %v8135 = vunpack.c.l.b16 %v7206
      %v8136 = vunpack.c.h.b16 %v7206
      %v8137 = vunpack.c.l.b16 %v7207
      %v8138 = vunpack.c.l.b16 %v7208
      %v8139 = vunpack.c.h.b16 %v7208
      %v8140 = vunpack.c.l.b16 %v7209
      %v8141 = vunpack.c.h.b16 %v7209
      %v8142 = vunpack.c.l.b16 %v7210
      %v8143 = vunpack.c.h.b16 %v7210
      %v8144 = vunpack.c.l.b16 %v7211
      %v8145 = vunpack.c.h.b16 %v7211
      %v8146 = vunpack.c.l.b16 %v7212
      %v8147 = vunpack.c.h.b16 %v7212
      %v8148 = vunpack.c.l.b16 %v7213
      %v8149 = vunpack.c.l.b16 %v7214
      %v8150 = vunpack.c.h.b16 %v7214
      %v8151 = vunpack.c.l.b16 %v7215
      %v8152 = vunpack.c.h.b16 %v7215
      %v8153 = vunpack.c.l.b16 %v7216
      %v8154 = vunpack.c.h.b16 %v7216
      %v8155 = vunpack.c.l.b16 %v7217
      %v8156 = vunpack.c.h.b16 %v7217
      %v8157 = vunpack.c.l.b16 %v7218
      %v8158 = vunpack.c.h.b16 %v7218
      %v8159 = vunpack.c.l.b16 %v7219
      %v8160 = vunpack.c.l.b16 %v7220
      %v8161 = vunpack.c.h.b16 %v7220
      %v8162 = vunpack.c.l.b16 %v7221
      %v8163 = vunpack.c.h.b16 %v7221
      %v8164 = vunpack.c.l.b16 %v7222
      %v8165 = vunpack.c.h.b16 %v7222
      %v8166 = vunpack.c.l.b16 %v7223
      %v8167 = vunpack.c.h.b16 %v7223
      %v8168 = vunpack.c.l.b16 %v7224
      %v8169 = vunpack.c.h.b16 %v7224
      %v8170 = vunpack.c.l.b16 %v7225
      %v8171 = vunpack.c.l.b16 %v7226
      %v8172 = vunpack.c.h.b16 %v7226
      %v8173 = vunpack.c.l.b16 %v7227
      %v8174 = vunpack.c.h.b16 %v7227
      %v8175 = vunpack.c.l.b16 %v7228
      %v8176 = vunpack.c.h.b16 %v7228
      %v8177 = vunpack.c.l.b16 %v7229
      %v8178 = vunpack.c.h.b16 %v7229
      %v8179 = vunpack.c.l.b16 %v7230
      %v8180 = vunpack.c.h.b16 %v7230
      %v8181 = vunpack.c.l.b16 %v7231
      %v8182 = vunpack.c.l.b16 %v7232
      %v8183 = vunpack.c.h.b16 %v7232
      %v8184 = vunpack.c.l.b16 %v7233
      %v8185 = vunpack.c.h.b16 %v7233
      %v8186 = vunpack.c.l.b16 %v7234
      %v8187 = vunpack.c.h.b16 %v7234
      %v8188 = vunpack.c.l.b16 %v7235
      %v8189 = vunpack.c.h.b16 %v7235
      %v8190 = vunpack.c.l.b16 %v7236
      %v8191 = vunpack.c.h.b16 %v7236
      %v8192 = vunpack.c.l.b16 %v7237
      %v8193 = vunpack.c.l.b16 %v7238
      %v8194 = vunpack.c.h.b16 %v7238
      %v8195 = vunpack.c.l.b16 %v7239
      %v8196 = vunpack.c.h.b16 %v7239
      %v8197 = vunpack.c.l.b16 %v7240
      %v8198 = vunpack.c.h.b16 %v7240
      %v8199 = vunpack.c.l.b16 %v7241
      %v8200 = vunpack.c.h.b16 %v7241
      %v8201 = vunpack.c.l.b16 %v7242
      %v8202 = vunpack.c.h.b16 %v7242
      %v8203 = vunpack.c.l.b16 %v7243
      %v8204 = vunpack.c.l.b16 %v7244
      %v8205 = vunpack.c.h.b16 %v7244
      %v8206 = vunpack.c.l.b16 %v7245
      %v8207 = vunpack.c.h.b16 %v7245
      %v8208 = vunpack.c.l.b16 %v7246
      %v8209 = vunpack.c.h.b16 %v7246
      %v8210 = vunpack.c.l.b16 %v7247
      %v8211 = vunpack.c.h.b16 %v7247
      %v8212 = vunpack.c.l.b16 %v7248
      %v8213 = vunpack.c.h.b16 %v7248
      %v8214 = vunpack.c.l.b16 %v7249
      %v8215 = vunpack.c.l.b16 %v7250
      %v8216 = vunpack.c.h.b16 %v7250
      %v8217 = vunpack.c.l.b16 %v7251
      %v8218 = vunpack.c.h.b16 %v7251
      %v8219 = vunpack.c.l.b16 %v7252
      %v8220 = vunpack.c.h.b16 %v7252
      %v8221 = vunpack.c.l.b16 %v7253
      %v8222 = vunpack.c.h.b16 %v7253
      %v8223 = vunpack.c.l.b16 %v7254
      %v8224 = vunpack.c.h.b16 %v7254
      %v8225 = vunpack.c.l.b16 %v7255
      %v8226 = vunpack.c.l.b16 %v7256
      %v8227 = vunpack.c.h.b16 %v7256
      %v8228 = vunpack.c.l.b16 %v7257
      %v8229 = vunpack.c.h.b16 %v7257
      %v8230 = vunpack.c.l.b16 %v7258
      %v8231 = vunpack.c.h.b16 %v7258
      %v8232 = vunpack.c.l.b16 %v7259
      %v8233 = vunpack.c.h.b16 %v7259
      %v8234 = vunpack.c.l.b16 %v7260
      %v8235 = vunpack.c.h.b16 %v7260
      %v8236 = vunpack.c.l.b16 %v7261
      %v8237 = vunpack.c.l.b16 %v7262
      %v8238 = vunpack.c.h.b16 %v7262
      %v8239 = vunpack.c.l.b16 %v7263
      %v8240 = vunpack.c.h.b16 %v7263
      %v8241 = vunpack.c.l.b16 %v7264
      %v8242 = vunpack.c.h.b16 %v7264
      %v8243 = vunpack.c.l.b16 %v7265
      %v8244 = vunpack.c.h.b16 %v7265
      %v8245 = vunpack.c.l.b16 %v7266
      %v8246 = vunpack.c.h.b16 %v7266
      %v8247 = vunpack.c.l.b16 %v7267
      %v8248 = vunpack.c.l.b16 %v7268
      %v8249 = vunpack.c.h.b16 %v7268
      %v8250 = vunpack.c.l.b16 %v7269
      %v8251 = vunpack.c.h.b16 %v7269
      %v8252 = vunpack.c.l.b16 %v7270
      %v8253 = vunpack.c.h.b16 %v7270
      %v8254 = vunpack.c.l.b16 %v7271
      %v8255 = vunpack.c.h.b16 %v7271
      %v8256 = vunpack.c.l.b16 %v7272
      %v8257 = vunpack.c.h.b16 %v7272
      %v8258 = vunpack.c.l.b16 %v7273
      %v8259 = vunpack.c.l.b16 %v7274
      %v8260 = vunpack.c.h.b16 %v7274
      %v8261 = vunpack.c.l.b16 %v7275
      %v8262 = vunpack.c.h.b16 %v7275
      %v8263 = vunpack.c.l.b16 %v7276
      %v8264 = vunpack.c.h.b16 %v7276
      %v8265 = vunpack.c.l.b16 %v7277
      %v8266 = vunpack.c.h.b16 %v7277
      %v8267 = vunpack.c.l.b16 %v7278
      %v8268 = vunpack.c.h.b16 %v7278
      %v8269 = vunpack.c.l.b16 %v7279
      %v8270 = vunpack.c.l.b16 %v7280
      %v8271 = vunpack.c.h.b16 %v7280
      %v8272 = vunpack.c.l.b16 %v7281
      %v8273 = vunpack.c.h.b16 %v7281
      %v8274 = vunpack.c.l.b16 %v7282
      %v8275 = vunpack.c.h.b16 %v7282
      %v8276 = vunpack.c.l.b16 %v7283
      %v8277 = vunpack.c.h.b16 %v7283
      %v8278 = vunpack.c.l.b16 %v7284
      %v8279 = vunpack.c.h.b16 %v7284
      %v8280 = vunpack.c.l.b16 %v7285
      %v8281 = vunpack.c.l.b16 %v7286
      %v8282 = vunpack.c.h.b16 %v7286
      %v8283 = vunpack.c.l.b16 %v7287
      %v8284 = vunpack.c.h.b16 %v7287
      %v8285 = vunpack.c.l.b16 %v7288
      %v8286 = vunpack.c.h.b16 %v7288
      %v8287 = vunpack.c.l.b16 %v7289
      %v8288 = vunpack.c.h.b16 %v7289
      %v8289 = vunpack.c.l.b16 %v7290
      %v8290 = vunpack.c.h.b16 %v7290
      %v8291 = vunpack.c.l.b16 %v7291
      %v8292 = vunpack.c.l.b16 %v7292
      %v8293 = vunpack.c.h.b16 %v7292
      %v8294 = vunpack.c.l.b16 %v7293
      %v8295 = vunpack.c.h.b16 %v7293
      %v8296 = vunpack.c.l.b16 %v7294
      %v8297 = vunpack.c.h.b16 %v7294
      %v8298 = vunpack.c.l.b16 %v7295
      %v8299 = vunpack.c.h.b16 %v7295
      %v8300 = vunpack.c.l.b16 %v7296
      %v8301 = vunpack.c.h.b16 %v7296
      %v8302 = vunpack.c.l.b16 %v7297
      %v8303 = vunpack.c.l.b16 %v7298
      %v8304 = vunpack.c.h.b16 %v7298
      %v8305 = vunpack.c.l.b16 %v7299
      %v8306 = vunpack.c.h.b16 %v7299
      %v8307 = vunpack.c.l.b16 %v7300
      %v8308 = vunpack.c.h.b16 %v7300
      %v8309 = vunpack.c.l.b16 %v7301
      %v8310 = vunpack.c.h.b16 %v7301
      %v8311 = vunpack.c.l.b16 %v7302
      %v8312 = vunpack.c.h.b16 %v7302
      %v8313 = vunpack.c.l.b16 %v7303
      %v8314 = vunpack.c.l.b16 %v7304
      %v8315 = vunpack.c.h.b16 %v7304
      %v8316 = vunpack.c.l.b16 %v7305
      %v8317 = vunpack.c.h.b16 %v7305
      %v8318 = vunpack.c.l.b16 %v7306
      %v8319 = vunpack.c.h.b16 %v7306
      %v8320 = vunpack.c.l.b16 %v7307
      %v8321 = vunpack.c.h.b16 %v7307
      %v8322 = vunpack.c.l.b16 %v7308
      %v8323 = vunpack.c.h.b16 %v7308
      %v8324 = vunpack.c.l.b16 %v7309
      %v8325 = vunpack.c.l.b16 %v7310
      %v8326 = vunpack.c.h.b16 %v7310
      %v8327 = vunpack.c.l.b16 %v7311
      %v8328 = vunpack.c.h.b16 %v7311
      %v8329 = vunpack.c.l.b16 %v7312
      %v8330 = vunpack.c.h.b16 %v7312
      %v8331 = vunpack.c.l.b16 %v7313
      %v8332 = vunpack.c.h.b16 %v7313
      %v8333 = vunpack.c.l.b16 %v7314
      %v8334 = vunpack.c.h.b16 %v7314
      %v8335 = vunpack.c.l.b16 %v7315
      %v8336 = vunpack.c.l.b16 %v7316
      %v8337 = vunpack.c.h.b16 %v7316
      %v8338 = vunpack.c.l.b16 %v7317
      %v8339 = vunpack.c.h.b16 %v7317
      %v8340 = vunpack.c.l.b16 %v7318
      %v8341 = vunpack.c.h.b16 %v7318
      %v8342 = vunpack.c.l.b16 %v7319
      %v8343 = vunpack.c.h.b16 %v7319
      %v8344 = vunpack.c.l.b16 %v7320
      %v8345 = vunpack.c.h.b16 %v7320
      %v8346 = vunpack.c.l.b16 %v7321
      %v8347 = vunpack.c.l.b16 %v7322
      %v8348 = vunpack.c.h.b16 %v7322
      %v8349 = vunpack.c.l.b16 %v7323
      %v8350 = vunpack.c.h.b16 %v7323
      %v8351 = vunpack.c.l.b16 %v7324
      %v8352 = vunpack.c.h.b16 %v7324
      %v8353 = vunpack.c.l.b16 %v7325
      %v8354 = vunpack.c.h.b16 %v7325
      %v8355 = vunpack.c.l.b16 %v7326
      %v8356 = vunpack.c.h.b16 %v7326
      %v8357 = vunpack.c.l.b16 %v7327
      %v8358 = vunpack.c.l.b16 %v7328
      %v8359 = vunpack.c.h.b16 %v7328
      %v8360 = vunpack.c.l.b16 %v7329
      %v8361 = vunpack.c.h.b16 %v7329
      %v8362 = vunpack.c.l.b16 %v7330
      %v8363 = vunpack.c.h.b16 %v7330
      %v8364 = vunpack.c.l.b16 %v7331
      %v8365 = vunpack.c.h.b16 %v7331
      %v8366 = vunpack.c.l.b16 %v7332
      %v8367 = vunpack.c.h.b16 %v7332
      %v8368 = vunpack.c.l.b16 %v7333
      %v8369 = vunpack.c.l.b16 %v7334
      %v8370 = vunpack.c.h.b16 %v7334
      %v8371 = vunpack.c.l.b16 %v7335
      %v8372 = vunpack.c.h.b16 %v7335
      %v8373 = vunpack.c.l.b16 %v7336
      %v8374 = vunpack.c.h.b16 %v7336
      %v8375 = vunpack.c.l.b16 %v7337
      %v8376 = vunpack.c.h.b16 %v7337
      %v8377 = vunpack.c.l.b16 %v7338
      %v8378 = vunpack.c.h.b16 %v7338
      %v8379 = vunpack.c.l.b16 %v7339
      %v8380 = vunpack.c.l.b16 %v7340
      %v8381 = vunpack.c.h.b16 %v7340
      %v8382 = vunpack.c.l.b16 %v7341
      %v8383 = vunpack.c.h.b16 %v7341
      %v8384 = vunpack.c.l.b16 %v7342
      %v8385 = vunpack.c.h.b16 %v7342
      %v8386 = vunpack.c.l.b16 %v7343
      %v8387 = vunpack.c.h.b16 %v7343
      %v8388 = vunpack.c.l.b16 %v7344
      %v8389 = vunpack.c.h.b16 %v7344
      %v8390 = vunpack.c.l.b16 %v7345
      %v8391 = vunpack.c.l.b16 %v7346
      %v8392 = vunpack.c.h.b16 %v7346
      %v8393 = vunpack.c.l.b16 %v7347
      %v8394 = vunpack.c.h.b16 %v7347
      %v8395 = vunpack.c.l.b16 %v7348
      %v8396 = vunpack.c.h.b16 %v7348
      %v8397 = vunpack.c.l.b16 %v7349
      %v8398 = vunpack.c.h.b16 %v7349
      %v8399 = vunpack.c.l.b16 %v7350
      %v8400 = vunpack.c.h.b16 %v7350
      %v8401 = vunpack.c.l.b16 %v7351
      %v8402 = vunpack.c.l.b16 %v7352
      %v8403 = vunpack.c.h.b16 %v7352
      %v8404 = vunpack.c.l.b16 %v7353
      %v8405 = vunpack.c.h.b16 %v7353
      %v8406 = vunpack.c.l.b16 %v7354
      %v8407 = vunpack.c.h.b16 %v7354
      %v8408 = vunpack.c.l.b16 %v7355
      %v8409 = vunpack.c.h.b16 %v7355
      %v8410 = vunpack.c.l.b16 %v7356
      %v8411 = vunpack.c.h.b16 %v7356
      %v8412 = vunpack.c.l.b16 %v7357
      %v8413 = vunpack.c.l.b16 %v7358
      %v8414 = vunpack.c.h.b16 %v7358
      %v8415 = vunpack.c.l.b16 %v7359
      %v8416 = vunpack.c.h.b16 %v7359
      %v8417 = vunpack.c.l.b16 %v7360
      %v8418 = vunpack.c.h.b16 %v7360
      %v8419 = vunpack.c.l.b16 %v7361
      %v8420 = vunpack.c.h.b16 %v7361
      %v8421 = vunpack.c.l.b16 %v7362
      %v8422 = vunpack.c.h.b16 %v7362
      %v8423 = vunpack.c.l.b16 %v7363
      %v8424 = vunpack.c.l.b16 %v7364
      %v8425 = vunpack.c.h.b16 %v7364
      %v8426 = vunpack.c.l.b16 %v7365
      %v8427 = vunpack.c.h.b16 %v7365
      %v8428 = vunpack.c.l.b16 %v7366
      %v8429 = vunpack.c.h.b16 %v7366
      %v8430 = vunpack.c.l.b16 %v7367
      %v8431 = vunpack.c.h.b16 %v7367
      %v8432 = vunpack.c.l.b16 %v7368
      %v8433 = vunpack.c.h.b16 %v7368
      %v8434 = vunpack.c.l.b16 %v7369
      %v8435 = vunpack.c.l.b16 %v7370
      %v8436 = vunpack.c.h.b16 %v7370
      %v8437 = vunpack.c.l.b16 %v7371
      %v8438 = vunpack.c.h.b16 %v7371
      %v8439 = vunpack.c.l.b16 %v7372
      %v8440 = vunpack.c.h.b16 %v7372
      %v8441 = vunpack.c.l.b16 %v7373
      %v8442 = vunpack.c.h.b16 %v7373
      %v8443 = vunpack.c.l.b16 %v7374
      %v8444 = vunpack.c.h.b16 %v7374
      %v8445 = vunpack.c.l.b16 %v7375
      %v8446 = vunpack.c.l.b16 %v7376
      %v8447 = vunpack.c.h.b16 %v7376
      %v8448 = vunpack.c.l.b16 %v7377
      %v8449 = vunpack.c.h.b16 %v7377
      %v8450 = vunpack.c.l.b16 %v7378
      %v8451 = vunpack.c.h.b16 %v7378
      %v8452 = vunpack.c.l.b16 %v7379
      %v8453 = vunpack.c.h.b16 %v7379
      %v8454 = vunpack.c.l.b16 %v7380
      %v8455 = vunpack.c.h.b16 %v7380
      %v8456 = vunpack.c.l.b16 %v7381
      %v8457 = vunpack.c.l.b16 %v7382
      %v8458 = vunpack.c.h.b16 %v7382
      %v8459 = vunpack.c.l.b16 %v7383
      %v8460 = vunpack.c.h.b16 %v7383
      %v8461 = vunpack.c.l.b16 %v7384
      %v8462 = vunpack.c.h.b16 %v7384
      %v8463 = vunpack.c.l.b16 %v7385
      %v8464 = vunpack.c.h.b16 %v7385
      %v8465 = vunpack.c.l.b16 %v7386
      %v8466 = vunpack.c.h.b16 %v7386
      %v8467 = vunpack.c.l.b16 %v7387
      %v8468 = vunpack.c.l.b16 %v7388
      %v8469 = vunpack.c.h.b16 %v7388
      %v8470 = vunpack.c.l.b16 %v7389
      %v8471 = vunpack.c.h.b16 %v7389
      %v8472 = vunpack.c.l.b16 %v7390
      %v8473 = vunpack.c.h.b16 %v7390
      %v8474 = vunpack.c.l.b16 %v7391
      %v8475 = vunpack.c.h.b16 %v7391
      %v8476 = vunpack.c.l.b16 %v7392
      %v8477 = vunpack.c.h.b16 %v7392
      %v8478 = vunpack.c.l.b16 %v7393
      %v8479 = vunpack.c.l.b16 %v7394
      %v8480 = vunpack.c.h.b16 %v7394
      %v8481 = vunpack.c.l.b16 %v7395
      %v8482 = vunpack.c.h.b16 %v7395
      %v8483 = vunpack.c.l.b16 %v7396
      %v8484 = vunpack.c.h.b16 %v7396
      %v8485 = vunpack.c.l.b16 %v7397
      %v8486 = vunpack.c.h.b16 %v7397
      %v8487 = vunpack.c.l.b16 %v7398
      %v8488 = vunpack.c.h.b16 %v7398
      %v8489 = vunpack.c.l.b16 %v7399
      %v8490 = vunpack.c.l.b16 %v7400
      %v8491 = vunpack.c.h.b16 %v7400
      %v8492 = vunpack.c.l.b16 %v7401
      %v8493 = vunpack.c.h.b16 %v7401
      %v8494 = vunpack.c.l.b16 %v7402
      %v8495 = vunpack.c.h.b16 %v7402
      %v8496 = vunpack.c.l.b16 %v7403
      %v8497 = vunpack.c.h.b16 %v7403
      %v8498 = vunpack.c.l.b16 %v7404
      %v8499 = vunpack.c.h.b16 %v7404
      %v8500 = vunpack.c.l.b16 %v7405
      %v8501 = vunpack.c.l.b16 %v7406
      %v8502 = vunpack.c.h.b16 %v7406
      %v8503 = vunpack.c.l.b16 %v7407
      %v8504 = vunpack.c.h.b16 %v7407
      %v8505 = vunpack.c.l.b16 %v7408
      %v8506 = vunpack.c.h.b16 %v7408
      %v8507 = vunpack.c.l.b16 %v7409
      %v8508 = vunpack.c.h.b16 %v7409
      %v8509 = vunpack.c.l.b16 %v7410
      %v8510 = vunpack.c.h.b16 %v7410
      %v8511 = vunpack.c.l.b16 %v7411
      %v8512 = vunpack.c.l.b16 %v7412
      %v8513 = vunpack.c.h.b16 %v7412
      %v8514 = vunpack.c.l.b16 %v7413
      %v8515 = vunpack.c.h.b16 %v7413
      %v8516 = vunpack.c.l.b16 %v7414
      %v8517 = vunpack.c.h.b16 %v7414
      %v8518 = vunpack.c.l.b16 %v7415
      %v8519 = vunpack.c.h.b16 %v7415
      %v8520 = vunpack.c.l.b16 %v7416
      %v8521 = vunpack.c.h.b16 %v7416
      %v8522 = vunpack.c.l.b16 %v7417
      %v8523 = vunpack.c.l.b16 %v7418
      %v8524 = vunpack.c.h.b16 %v7418
      %v8525 = vunpack.c.l.b16 %v7419
      %v8526 = vunpack.c.h.b16 %v7419
      %v8527 = vunpack.c.l.b16 %v7420
      %v8528 = vunpack.c.h.b16 %v7420
      %v8529 = vunpack.c.l.b16 %v7421
      %v8530 = vunpack.c.h.b16 %v7421
      %v8531 = vunpack.c.l.b16 %v7422
      %v8532 = vunpack.c.h.b16 %v7422
      %v8533 = vunpack.c.l.b16 %v7423
      %v8534 = vunpack.c.l.b16 %v7424
      %v8535 = vunpack.c.h.b16 %v7424
      %v8536 = vunpack.c.l.b16 %v7425
      %v8537 = vunpack.c.h.b16 %v7425
      %v8538 = vunpack.c.l.b16 %v7426
      %v8539 = vunpack.c.h.b16 %v7426
      %v8540 = vunpack.c.l.b16 %v7427
      %v8541 = vunpack.c.h.b16 %v7427
      %v8542 = vunpack.c.l.b16 %v7428
      %v8543 = vunpack.c.h.b16 %v7428
      %v8544 = vunpack.c.l.b16 %v7429
      %v8545 = vunpack.c.l.b16 %v7430
      %v8546 = vunpack.c.h.b16 %v7430
      %v8547 = vunpack.c.l.b16 %v7431
      %v8548 = vunpack.c.h.b16 %v7431
      %v8549 = vunpack.c.l.b16 %v7432
      %v8550 = vunpack.c.h.b16 %v7432
      %v8551 = vunpack.c.l.b16 %v7433
      %v8552 = vunpack.c.h.b16 %v7433
      %v8553 = vunpack.c.l.b16 %v7434
      %v8554 = vunpack.c.h.b16 %v7434
      %v8555 = vunpack.c.l.b16 %v7435
      %v8556 = vpack.c.b16 %v7951, %v7940
      %v8557 = vpack.c.b16 %v7952, %v7941
      %v8558 = vpack.c.b16 %v7953, %v7942
      %v8559 = vpack.c.b16 %v7954, %v7943
      %v8560 = vpack.c.b16 %v7955, %v7944
      %v8561 = vpack.c.b16 %v7956, %v7945
      %v8562 = vpack.c.b16 %v7957, %v7946
      %v8563 = vpack.c.b16 %v7958, %v7947
      %v8564 = vpack.c.b16 %v7959, %v7948
      %v8565 = vpack.c.b16 %v7960, %v7949
      %v8566 = vpack.c.b16 %v7961, %v7950
      %v8567 = vpack.c.b16 %v7973, %v7962
      %v8568 = vpack.c.b16 %v7974, %v7963
      %v8569 = vpack.c.b16 %v7975, %v7964
      %v8570 = vpack.c.b16 %v7976, %v7965
      %v8571 = vpack.c.b16 %v7977, %v7966
      %v8572 = vpack.c.b16 %v7978, %v7967
      %v8573 = vpack.c.b16 %v7979, %v7968
      %v8574 = vpack.c.b16 %v7980, %v7969
      %v8575 = vpack.c.b16 %v7981, %v7970
      %v8576 = vpack.c.b16 %v7982, %v7971
      %v8577 = vpack.c.b16 %v7983, %v7972
      %v8578 = vpack.c.b16 %v7995, %v7984
      %v8579 = vpack.c.b16 %v7996, %v7985
      %v8580 = vpack.c.b16 %v7997, %v7986
      %v8581 = vpack.c.b16 %v7998, %v7987
      %v8582 = vpack.c.b16 %v7999, %v7988
      %v8583 = vpack.c.b16 %v8000, %v7989
      %v8584 = vpack.c.b16 %v8001, %v7990
      %v8585 = vpack.c.b16 %v8002, %v7991
      %v8586 = vpack.c.b16 %v8003, %v7992
      %v8587 = vpack.c.b16 %v8004, %v7993
      %v8588 = vpack.c.b16 %v8005, %v7994
      %v8589 = vpack.c.b16 %v8017, %v8006
      %v8590 = vpack.c.b16 %v8018, %v8007
      %v8591 = vpack.c.b16 %v8019, %v8008
      %v8592 = vpack.c.b16 %v8020, %v8009
      %v8593 = vpack.c.b16 %v8021, %v8010
      %v8594 = vpack.c.b16 %v8022, %v8011
      %v8595 = vpack.c.b16 %v8023, %v8012
      %v8596 = vpack.c.b16 %v8024, %v8013
      %v8597 = vpack.c.b16 %v8025, %v8014
      %v8598 = vpack.c.b16 %v8026, %v8015
      %v8599 = vpack.c.b16 %v8027, %v8016
      %v8600 = vpack.c.b16 %v8039, %v8028
      %v8601 = vpack.c.b16 %v8040, %v8029
      %v8602 = vpack.c.b16 %v8041, %v8030
      %v8603 = vpack.c.b16 %v8042, %v8031
      %v8604 = vpack.c.b16 %v8043, %v8032
      %v8605 = vpack.c.b16 %v8044, %v8033
      %v8606 = vpack.c.b16 %v8045, %v8034
      %v8607 = vpack.c.b16 %v8046, %v8035
      %v8608 = vpack.c.b16 %v8047, %v8036
      %v8609 = vpack.c.b16 %v8048, %v8037
      %v8610 = vpack.c.b16 %v8049, %v8038
      %v8611 = vpack.c.b16 %v8061, %v8050
      %v8612 = vpack.c.b16 %v8062, %v8051
      %v8613 = vpack.c.b16 %v8063, %v8052
      %v8614 = vpack.c.b16 %v8064, %v8053
      %v8615 = vpack.c.b16 %v8065, %v8054
      %v8616 = vpack.c.b16 %v8066, %v8055
      %v8617 = vpack.c.b16 %v8067, %v8056
      %v8618 = vpack.c.b16 %v8068, %v8057
      %v8619 = vpack.c.b16 %v8069, %v8058
      %v8620 = vpack.c.b16 %v8070, %v8059
      %v8621 = vpack.c.b16 %v8071, %v8060
      %v8622 = vpack.c.b16 %v8083, %v8072
      %v8623 = vpack.c.b16 %v8084, %v8073
      %v8624 = vpack.c.b16 %v8085, %v8074
      %v8625 = vpack.c.b16 %v8086, %v8075
      %v8626 = vpack.c.b16 %v8087, %v8076
      %v8627 = vpack.c.b16 %v8088, %v8077
      %v8628 = vpack.c.b16 %v8089, %v8078
      %v8629 = vpack.c.b16 %v8090, %v8079
      %v8630 = vpack.c.b16 %v8091, %v8080
      %v8631 = vpack.c.b16 %v8092, %v8081
      %v8632 = vpack.c.b16 %v8093, %v8082
      %v8633 = vpack.c.b16 %v8105, %v8094
      %v8634 = vpack.c.b16 %v8106, %v8095
      %v8635 = vpack.c.b16 %v8107, %v8096
      %v8636 = vpack.c.b16 %v8108, %v8097
      %v8637 = vpack.c.b16 %v8109, %v8098
      %v8638 = vpack.c.b16 %v8110, %v8099
      %v8639 = vpack.c.b16 %v8111, %v8100
      %v8640 = vpack.c.b16 %v8112, %v8101
      %v8641 = vpack.c.b16 %v8113, %v8102
      %v8642 = vpack.c.b16 %v8114, %v8103
      %v8643 = vpack.c.b16 %v8115, %v8104
      %v8644 = vpack.c.b16 %v8127, %v8116
      %v8645 = vpack.c.b16 %v8128, %v8117
      %v8646 = vpack.c.b16 %v8129, %v8118
      %v8647 = vpack.c.b16 %v8130, %v8119
      %v8648 = vpack.c.b16 %v8131, %v8120
      %v8649 = vpack.c.b16 %v8132, %v8121
      %v8650 = vpack.c.b16 %v8133, %v8122
      %v8651 = vpack.c.b16 %v8134, %v8123
      %v8652 = vpack.c.b16 %v8135, %v8124
      %v8653 = vpack.c.b16 %v8136, %v8125
      %v8654 = vpack.c.b16 %v8137, %v8126
      %v8655 = vpack.c.b16 %v8149, %v8138
      %v8656 = vpack.c.b16 %v8150, %v8139
      %v8657 = vpack.c.b16 %v8151, %v8140
      %v8658 = vpack.c.b16 %v8152, %v8141
      %v8659 = vpack.c.b16 %v8153, %v8142
      %v8660 = vpack.c.b16 %v8154, %v8143
      %v8661 = vpack.c.b16 %v8155, %v8144
      %v8662 = vpack.c.b16 %v8156, %v8145
      %v8663 = vpack.c.b16 %v8157, %v8146
      %v8664 = vpack.c.b16 %v8158, %v8147
      %v8665 = vpack.c.b16 %v8159, %v8148
      %v8666 = vpack.c.b16 %v8171, %v8160
      %v8667 = vpack.c.b16 %v8172, %v8161
      %v8668 = vpack.c.b16 %v8173, %v8162
      %v8669 = vpack.c.b16 %v8174, %v8163
      %v8670 = vpack.c.b16 %v8175, %v8164
      %v8671 = vpack.c.b16 %v8176, %v8165
      %v8672 = vpack.c.b16 %v8177, %v8166
      %v8673 = vpack.c.b16 %v8178, %v8167
      %v8674 = vpack.c.b16 %v8179, %v8168
      %v8675 = vpack.c.b16 %v8180, %v8169
      %v8676 = vpack.c.b16 %v8181, %v8170
      %v8677 = vpack.c.b16 %v8193, %v8182
      %v8678 = vpack.c.b16 %v8194, %v8183
      %v8679 = vpack.c.b16 %v8195, %v8184
      %v8680 = vpack.c.b16 %v8196, %v8185
      %v8681 = vpack.c.b16 %v8197, %v8186
      %v8682 = vpack.c.b16 %v8198, %v8187
      %v8683 = vpack.c.b16 %v8199, %v8188
      %v8684 = vpack.c.b16 %v8200, %v8189
      %v8685 = vpack.c.b16 %v8201, %v8190
      %v8686 = vpack.c.b16 %v8202, %v8191
      %v8687 = vpack.c.b16 %v8203, %v8192
      %v8688 = vpack.c.b16 %v8215, %v8204
      %v8689 = vpack.c.b16 %v8216, %v8205
      %v8690 = vpack.c.b16 %v8217, %v8206
      %v8691 = vpack.c.b16 %v8218, %v8207
      %v8692 = vpack.c.b16 %v8219, %v8208
      %v8693 = vpack.c.b16 %v8220, %v8209
      %v8694 = vpack.c.b16 %v8221, %v8210
      %v8695 = vpack.c.b16 %v8222, %v8211
      %v8696 = vpack.c.b16 %v8223, %v8212
      %v8697 = vpack.c.b16 %v8224, %v8213
      %v8698 = vpack.c.b16 %v8225, %v8214
      %v8699 = vpack.c.b16 %v8237, %v8226
      %v8700 = vpack.c.b16 %v8238, %v8227
      %v8701 = vpack.c.b16 %v8239, %v8228
      %v8702 = vpack.c.b16 %v8240, %v8229
      %v8703 = vpack.c.b16 %v8241, %v8230
      %v8704 = vpack.c.b16 %v8242, %v8231
      %v8705 = vpack.c.b16 %v8243, %v8232
      %v8706 = vpack.c.b16 %v8244, %v8233
      %v8707 = vpack.c.b16 %v8245, %v8234
      %v8708 = vpack.c.b16 %v8246, %v8235
      %v8709 = vpack.c.b16 %v8247, %v8236
      %v8710 = vpack.c.b16 %v8259, %v8248
      %v8711 = vpack.c.b16 %v8260, %v8249
      %v8712 = vpack.c.b16 %v8261, %v8250
      %v8713 = vpack.c.b16 %v8262, %v8251
      %v8714 = vpack.c.b16 %v8263, %v8252
      %v8715 = vpack.c.b16 %v8264, %v8253
      %v8716 = vpack.c.b16 %v8265, %v8254
      %v8717 = vpack.c.b16 %v8266, %v8255
      %v8718 = vpack.c.b16 %v8267, %v8256
      %v8719 = vpack.c.b16 %v8268, %v8257
      %v8720 = vpack.c.b16 %v8269, %v8258
      %v8721 = vpack.c.b16 %v8281, %v8270
      %v8722 = vpack.c.b16 %v8282, %v8271
      %v8723 = vpack.c.b16 %v8283, %v8272
      %v8724 = vpack.c.b16 %v8284, %v8273
      %v8725 = vpack.c.b16 %v8285, %v8274
      %v8726 = vpack.c.b16 %v8286, %v8275
      %v8727 = vpack.c.b16 %v8287, %v8276
      %v8728 = vpack.c.b16 %v8288, %v8277
      %v8729 = vpack.c.b16 %v8289, %v8278
      %v8730 = vpack.c.b16 %v8290, %v8279
      %v8731 = vpack.c.b16 %v8291, %v8280
      %v8732 = vpack.c.b16 %v8303, %v8292
      %v8733 = vpack.c.b16 %v8304, %v8293
      %v8734 = vpack.c.b16 %v8305, %v8294
      %v8735 = vpack.c.b16 %v8306, %v8295
      %v8736 = vpack.c.b16 %v8307, %v8296
      %v8737 = vpack.c.b16 %v8308, %v8297
      %v8738 = vpack.c.b16 %v8309, %v8298
      %v8739 = vpack.c.b16 %v8310, %v8299
      %v8740 = vpack.c.b16 %v8311, %v8300
      %v8741 = vpack.c.b16 %v8312, %v8301
      %v8742 = vpack.c.b16 %v8313, %v8302
      %v8743 = vpack.c.b16 %v8325, %v8314
      %v8744 = vpack.c.b16 %v8326, %v8315
      %v8745 = vpack.c.b16 %v8327, %v8316
      %v8746 = vpack.c.b16 %v8328, %v8317
      %v8747 = vpack.c.b16 %v8329, %v8318
      %v8748 = vpack.c.b16 %v8330, %v8319
      %v8749 = vpack.c.b16 %v8331, %v8320
      %v8750 = vpack.c.b16 %v8332, %v8321
      %v8751 = vpack.c.b16 %v8333, %v8322
      %v8752 = vpack.c.b16 %v8334, %v8323
      %v8753 = vpack.c.b16 %v8335, %v8324
      %v8754 = vpack.c.b16 %v8347, %v8336
      %v8755 = vpack.c.b16 %v8348, %v8337
      %v8756 = vpack.c.b16 %v8349, %v8338
      %v8757 = vpack.c.b16 %v8350, %v8339
      %v8758 = vpack.c.b16 %v8351, %v8340
      %v8759 = vpack.c.b16 %v8352, %v8341
      %v8760 = vpack.c.b16 %v8353, %v8342
      %v8761 = vpack.c.b16 %v8354, %v8343
      %v8762 = vpack.c.b16 %v8355, %v8344
      %v8763 = vpack.c.b16 %v8356, %v8345
      %v8764 = vpack.c.b16 %v8357, %v8346
      %v8765 = vpack.c.b16 %v8369, %v8358
      %v8766 = vpack.c.b16 %v8370, %v8359
      %v8767 = vpack.c.b16 %v8371, %v8360
      %v8768 = vpack.c.b16 %v8372, %v8361
      %v8769 = vpack.c.b16 %v8373, %v8362
      %v8770 = vpack.c.b16 %v8374, %v8363
      %v8771 = vpack.c.b16 %v8375, %v8364
      %v8772 = vpack.c.b16 %v8376, %v8365
      %v8773 = vpack.c.b16 %v8377, %v8366
      %v8774 = vpack.c.b16 %v8378, %v8367
      %v8775 = vpack.c.b16 %v8379, %v8368
      %v8776 = vpack.c.b16 %v8391, %v8380
      %v8777 = vpack.c.b16 %v8392, %v8381
      %v8778 = vpack.c.b16 %v8393, %v8382
      %v8779 = vpack.c.b16 %v8394, %v8383
      %v8780 = vpack.c.b16 %v8395, %v8384
      %v8781 = vpack.c.b16 %v8396, %v8385
      %v8782 = vpack.c.b16 %v8397, %v8386
      %v8783 = vpack.c.b16 %v8398, %v8387
      %v8784 = vpack.c.b16 %v8399, %v8388
      %v8785 = vpack.c.b16 %v8400, %v8389
      %v8786 = vpack.c.b16 %v8401, %v8390
      %v8787 = vpack.c.b16 %v8413, %v8402
      %v8788 = vpack.c.b16 %v8414, %v8403
      %v8789 = vpack.c.b16 %v8415, %v8404
      %v8790 = vpack.c.b16 %v8416, %v8405
      %v8791 = vpack.c.b16 %v8417, %v8406
      %v8792 = vpack.c.b16 %v8418, %v8407
      %v8793 = vpack.c.b16 %v8419, %v8408
      %v8794 = vpack.c.b16 %v8420, %v8409
      %v8795 = vpack.c.b16 %v8421, %v8410
      %v8796 = vpack.c.b16 %v8422, %v8411
      %v8797 = vpack.c.b16 %v8423, %v8412
      %v8798 = vpack.c.b16 %v8435, %v8424
      %v8799 = vpack.c.b16 %v8436, %v8425
      %v8800 = vpack.c.b16 %v8437, %v8426
      %v8801 = vpack.c.b16 %v8438, %v8427
      %v8802 = vpack.c.b16 %v8439, %v8428
      %v8803 = vpack.c.b16 %v8440, %v8429
      %v8804 = vpack.c.b16 %v8441, %v8430
      %v8805 = vpack.c.b16 %v8442, %v8431
      %v8806 = vpack.c.b16 %v8443, %v8432
      %v8807 = vpack.c.b16 %v8444, %v8433
      %v8808 = vpack.c.b16 %v8445, %v8434
      %v8809 = vpack.c.b16 %v8457, %v8446
      %v8810 = vpack.c.b16 %v8458, %v8447
      %v8811 = vpack.c.b16 %v8459, %v8448
      %v8812 = vpack.c.b16 %v8460, %v8449
      %v8813 = vpack.c.b16 %v8461, %v8450
      %v8814 = vpack.c.b16 %v8462, %v8451
      %v8815 = vpack.c.b16 %v8463, %v8452
      %v8816 = vpack.c.b16 %v8464, %v8453
      %v8817 = vpack.c.b16 %v8465, %v8454
      %v8818 = vpack.c.b16 %v8466, %v8455
      %v8819 = vpack.c.b16 %v8467, %v8456
      %v8820 = vpack.c.b16 %v8479, %v8468
      %v8821 = vpack.c.b16 %v8480, %v8469
      %v8822 = vpack.c.b16 %v8481, %v8470
      %v8823 = vpack.c.b16 %v8482, %v8471
      %v8824 = vpack.c.b16 %v8483, %v8472
      %v8825 = vpack.c.b16 %v8484, %v8473
      %v8826 = vpack.c.b16 %v8485, %v8474
      %v8827 = vpack.c.b16 %v8486, %v8475
      %v8828 = vpack.c.b16 %v8487, %v8476
      %v8829 = vpack.c.b16 %v8488, %v8477
      %v8830 = vpack.c.b16 %v8489, %v8478
      %v8831 = vpack.c.b16 %v8501, %v8490
      %v8832 = vpack.c.b16 %v8502, %v8491
      %v8833 = vpack.c.b16 %v8503, %v8492
      %v8834 = vpack.c.b16 %v8504, %v8493
      %v8835 = vpack.c.b16 %v8505, %v8494
      %v8836 = vpack.c.b16 %v8506, %v8495
      %v8837 = vpack.c.b16 %v8507, %v8496
      %v8838 = vpack.c.b16 %v8508, %v8497
      %v8839 = vpack.c.b16 %v8509, %v8498
      %v8840 = vpack.c.b16 %v8510, %v8499
      %v8841 = vpack.c.b16 %v8511, %v8500
      %v8842 = vpack.c.b16 %v8523, %v8512
      %v8843 = vpack.c.b16 %v8524, %v8513
      %v8844 = vpack.c.b16 %v8525, %v8514
      %v8845 = vpack.c.b16 %v8526, %v8515
      %v8846 = vpack.c.b16 %v8527, %v8516
      %v8847 = vpack.c.b16 %v8528, %v8517
      %v8848 = vpack.c.b16 %v8529, %v8518
      %v8849 = vpack.c.b16 %v8530, %v8519
      %v8850 = vpack.c.b16 %v8531, %v8520
      %v8851 = vpack.c.b16 %v8532, %v8521
      %v8852 = vpack.c.b16 %v8533, %v8522
      %v8853 = vpack.c.b16 %v8545, %v8534
      %v8854 = vpack.c.b16 %v8546, %v8535
      %v8855 = vpack.c.b16 %v8547, %v8536
      %v8856 = vpack.c.b16 %v8548, %v8537
      %v8857 = vpack.c.b16 %v8549, %v8538
      %v8858 = vpack.c.b16 %v8550, %v8539
      %v8859 = vpack.c.b16 %v8551, %v8540
      %v8860 = vpack.c.b16 %v8552, %v8541
      %v8861 = vpack.c.b16 %v8553, %v8542
      %v8862 = vpack.c.b16 %v8554, %v8543
      %v8863 = vpack.c.b16 %v8555, %v8544
      %vm9144 = vcmask 523264
      %v9146 = vsel %vm9144, %v8566, 0
      %v9149 = vsel %vm9144, %v8577, 0
      %v9152 = vsel %vm9144, %v8588, 0
      %v9155 = vsel %vm9144, %v8599, 0
      %v9158 = vsel %vm9144, %v8610, 0
      %v9161 = vsel %vm9144, %v8621, 0
      %v9164 = vsel %vm9144, %v8632, 0
      %v9167 = vsel %vm9144, %v8643, 0
      %v9170 = vsel %vm9144, %v8654, 0
      %v9173 = vsel %vm9144, %v8665, 0
      %v9176 = vsel %vm9144, %v8676, 0
      %v9179 = vsel %vm9144, %v8687, 0
      %v9182 = vsel %vm9144, %v8698, 0
      %v9185 = vsel %vm9144, %v8709, 0
      %v9188 = vsel %vm9144, %v8720, 0
      %v9191 = vsel %vm9144, %v8731, 0
      %v9194 = vsel %vm9144, %v8742, 0
      %v9197 = vsel %vm9144, %v8753, 0
      %v9200 = vsel %vm9144, %v8764, 0
      %v9203 = vsel %vm9144, %v8775, 0
      %v9206 = vsel %vm9144, %v8786, 0
      %v9209 = vsel %vm9144, %v8797, 0
      %v9212 = vsel %vm9144, %v8808, 0
      %v9215 = vsel %vm9144, %v8819, 0
      %v9218 = vsel %vm9144, %v8830, 0
      %v9221 = vsel %vm9144, %v8841, 0
      %v9224 = vsel %vm9144, %v8852, 0
      %v9227 = vsel %vm9144, %v8863, 0
      %9229 = vmatprep.subr.bf16.mxu0 %v7437
      %9230 = vmatpush1.bf16.msra.mxu0 %v7436
      %9231 = vmatprep.subr.bf16.mxu0 %v7439
      %9232 = vmatpush1.bf16.msra.mxu0 %v7438
      %9233 = vmatprep.subr.bf16.mxu0 %v7441
      %9234 = vmatpush1.bf16.msra.mxu0 %v7440
      %9235 = vmatprep.subr.bf16.mxu0 %v7443
      %9236 = vmatpush1.bf16.msra.mxu0 %v7442
      %9237 = vmatprep.subr.bf16.mxu0 %v7445
      %9238 = vmatpush1.bf16.msra.mxu0 %v7444
      %9239 = vmatprep.subr.bf16.mxu0 %v7447
      %9240 = vmatpush1.bf16.msra.mxu0 %v7446
      %9241 = vmatprep.subr.bf16.mxu0 %v7449
      %9242 = vmatpush1.bf16.msra.mxu0 %v7448
      %9243 = vmatprep.subr.bf16.mxu0 %v7451
      %9244 = vmatpush1.bf16.msra.mxu0 %v7450
      %9245 = vmatprep.subr.bf16.mxu0 %v7453
      %9246 = vmatpush1.bf16.msra.mxu0 %v7452
      %9247 = vmatprep.subr.bf16.mxu0 %v7455
      %9248 = vmatpush1.bf16.msra.mxu0 %v7454
      %9249 = vmatprep.subr.bf16.mxu0 %v7457
      %9250 = vmatpush1.bf16.msra.mxu0 %v7456
      %9251 = vmatprep.subr.bf16.mxu0 %v7459
      %9252 = vmatpush1.bf16.msra.mxu0 %v7458
      %9253 = vmatprep.subr.bf16.mxu0 %v7461
      %9254 = vmatpush1.bf16.msra.mxu0 %v7460
      %9255 = vmatprep.subr.bf16.mxu0 %v7463
      %9256 = vmatpush1.bf16.msra.mxu0 %v7462
      %9257 = vmatprep.subr.bf16.mxu0 %v7465
      %9258 = vmatpush1.bf16.msra.mxu0 %v7464
      %9259 = vmatprep.subr.bf16.mxu0 %v7467
      %9260 = vmatpush1.bf16.msra.mxu0 %v7466
      %9261 = vmatprep.mubr.bf16.mxu0 %v8557
      %9262 = vmatmul.mubr.bf16.gmra.mrb[0].mxu0 %v8556
      %v9263 = vpop.f32.mrb[0].mxu0
      %v9264 = vadd.f32 0.0, %v9263
      %v9265 = vpop.f32.mrb[0].mxu0
      %v9266 = vadd.f32 0.0, %v9265
      %v9267 = vpop.f32.mrb[0].mxu0
      %v9268 = vadd.f32 0.0, %v9267
      %v9269 = vpop.f32.mrb[0].mxu0
      %v9270 = vadd.f32 0.0, %v9269
      %9271 = vmatprep.mubr.bf16.mxu0 %v8568
      %9272 = vmatmul.mubr.bf16.gmra.mrb[0].mxu0 %v8567
      %v9273 = vpop.f32.mrb[0].mxu0
      %v9274 = vadd.f32 0.0, %v9273
      %v9275 = vpop.f32.mrb[0].mxu0
      %v9276 = vadd.f32 0.0, %v9275
      %v9277 = vpop.f32.mrb[0].mxu0
      %v9278 = vadd.f32 0.0, %v9277
      %v9279 = vpop.f32.mrb[0].mxu0
      %v9280 = vadd.f32 0.0, %v9279
      %9281 = vmatprep.mubr.bf16.mxu0 %v8579
      %9282 = vmatmul.mubr.bf16.gmra.mrb[0].mxu0 %v8578
      %v9283 = vpop.f32.mrb[0].mxu0
      %v9284 = vadd.f32 0.0, %v9283
      %v9285 = vpop.f32.mrb[0].mxu0
      %v9286 = vadd.f32 0.0, %v9285
      %v9287 = vpop.f32.mrb[0].mxu0
      %v9288 = vadd.f32 0.0, %v9287
      %v9289 = vpop.f32.mrb[0].mxu0
      %v9290 = vadd.f32 0.0, %v9289
      %9291 = vmatprep.mubr.bf16.mxu0 %v8590
      %9292 = vmatmul.mubr.bf16.gmra.mrb[0].mxu0 %v8589
      %v9293 = vpop.f32.mrb[0].mxu0
      %v9294 = vadd.f32 0.0, %v9293
      %v9295 = vpop.f32.mrb[0].mxu0
      %v9296 = vadd.f32 0.0, %v9295
      %v9297 = vpop.f32.mrb[0].mxu0
      %v9298 = vadd.f32 0.0, %v9297
      %v9299 = vpop.f32.mrb[0].mxu0
      %v9300 = vadd.f32 0.0, %v9299
      %9301 = vmatprep.mubr.bf16.mxu0 %v8601
      %9302 = vmatmul.mubr.bf16.gmra.mrb[0].mxu0 %v8600
      %v9303 = vpop.f32.mrb[0].mxu0
      %v9304 = vadd.f32 0.0, %v9303
      %v9305 = vpop.f32.mrb[0].mxu0
      %v9306 = vadd.f32 0.0, %v9305
      %v9307 = vpop.f32.mrb[0].mxu0
      %v9308 = vadd.f32 0.0, %v9307
      %v9309 = vpop.f32.mrb[0].mxu0
      %v9310 = vadd.f32 0.0, %v9309
      %9311 = vmatprep.mubr.bf16.mxu0 %v8612
      %9312 = vmatmul.mubr.bf16.gmra.mrb[0].mxu0 %v8611
      %v9313 = vpop.f32.mrb[0].mxu0
      %v9314 = vadd.f32 0.0, %v9313
      %v9315 = vpop.f32.mrb[0].mxu0
      %v9316 = vadd.f32 0.0, %v9315
      %v9317 = vpop.f32.mrb[0].mxu0
      %v9318 = vadd.f32 0.0, %v9317
      %v9319 = vpop.f32.mrb[0].mxu0
      %v9320 = vadd.f32 0.0, %v9319
      %9321 = vmatprep.mubr.bf16.mxu0 %v8623
      %9322 = vmatmul.mubr.bf16.gmra.mrb[0].mxu0 %v8622
      %v9323 = vpop.f32.mrb[0].mxu0
      %v9324 = vadd.f32 0.0, %v9323
      %v9325 = vpop.f32.mrb[0].mxu0
      %v9326 = vadd.f32 0.0, %v9325
      %v9327 = vpop.f32.mrb[0].mxu0
      %v9328 = vadd.f32 0.0, %v9327
      %v9329 = vpop.f32.mrb[0].mxu0
      %v9330 = vadd.f32 0.0, %v9329
      %9331 = vmatprep.mubr.bf16.mxu0 %v8634
      %9332 = vmatmul.mubr.bf16.gmra.mrb[0].mxu0 %v8633
      %v9333 = vpop.f32.mrb[0].mxu0
      %v9334 = vadd.f32 0.0, %v9333
      %v9335 = vpop.f32.mrb[0].mxu0
      %v9336 = vadd.f32 0.0, %v9335
      %v9337 = vpop.f32.mrb[0].mxu0
      %v9338 = vadd.f32 0.0, %v9337
      %v9339 = vpop.f32.mrb[0].mxu0
      %v9340 = vadd.f32 0.0, %v9339
      %9341 = vmatprep.mubr.bf16.mxu0 %v8645
      %9342 = vmatmul.mubr.bf16.gmra.mrb[0].mxu0 %v8644
      %v9343 = vpop.f32.mrb[0].mxu0
      %v9344 = vadd.f32 0.0, %v9343
      %v9345 = vpop.f32.mrb[0].mxu0
      %v9346 = vadd.f32 0.0, %v9345
      %v9347 = vpop.f32.mrb[0].mxu0
      %v9348 = vadd.f32 0.0, %v9347
      %v9349 = vpop.f32.mrb[0].mxu0
      %v9350 = vadd.f32 0.0, %v9349
      %9351 = vmatprep.mubr.bf16.mxu0 %v8656
      %9352 = vmatmul.mubr.bf16.gmra.mrb[0].mxu0 %v8655
      %v9353 = vpop.f32.mrb[0].mxu0
      %v9354 = vadd.f32 0.0, %v9353
      %v9355 = vpop.f32.mrb[0].mxu0
      %v9356 = vadd.f32 0.0, %v9355
      %v9357 = vpop.f32.mrb[0].mxu0
      %v9358 = vadd.f32 0.0, %v9357
      %v9359 = vpop.f32.mrb[0].mxu0
      %v9360 = vadd.f32 0.0, %v9359
      %9361 = vmatprep.mubr.bf16.mxu0 %v8667
      %9362 = vmatmul.mubr.bf16.gmra.mrb[0].mxu0 %v8666
      %v9363 = vpop.f32.mrb[0].mxu0
      %v9364 = vadd.f32 0.0, %v9363
      %v9365 = vpop.f32.mrb[0].mxu0
      %v9366 = vadd.f32 0.0, %v9365
      %v9367 = vpop.f32.mrb[0].mxu0
      %v9368 = vadd.f32 0.0, %v9367
      %v9369 = vpop.f32.mrb[0].mxu0
      %v9370 = vadd.f32 0.0, %v9369
      %9371 = vmatprep.mubr.bf16.mxu0 %v8678
      %9372 = vmatmul.mubr.bf16.gmra.mrb[0].mxu0 %v8677
      %v9373 = vpop.f32.mrb[0].mxu0
      %v9374 = vadd.f32 0.0, %v9373
      %v9375 = vpop.f32.mrb[0].mxu0
      %v9376 = vadd.f32 0.0, %v9375
      %v9377 = vpop.f32.mrb[0].mxu0
      %v9378 = vadd.f32 0.0, %v9377
      %v9379 = vpop.f32.mrb[0].mxu0
      %v9380 = vadd.f32 0.0, %v9379
      %9381 = vmatprep.mubr.bf16.mxu0 %v8689
      %9382 = vmatmul.mubr.bf16.gmra.mrb[0].mxu0 %v8688
      %v9383 = vpop.f32.mrb[0].mxu0
      %v9384 = vadd.f32 0.0, %v9383
      %v9385 = vpop.f32.mrb[0].mxu0
      %v9386 = vadd.f32 0.0, %v9385
      %v9387 = vpop.f32.mrb[0].mxu0
      %v9388 = vadd.f32 0.0, %v9387
      %v9389 = vpop.f32.mrb[0].mxu0
      %v9390 = vadd.f32 0.0, %v9389
      %9391 = vmatprep.mubr.bf16.mxu0 %v8700
      %9392 = vmatmul.mubr.bf16.gmra.mrb[0].mxu0 %v8699
      %v9393 = vpop.f32.mrb[0].mxu0
      %v9394 = vadd.f32 0.0, %v9393
      %v9395 = vpop.f32.mrb[0].mxu0
      %v9396 = vadd.f32 0.0, %v9395
      %v9397 = vpop.f32.mrb[0].mxu0
      %v9398 = vadd.f32 0.0, %v9397
      %v9399 = vpop.f32.mrb[0].mxu0
      %v9400 = vadd.f32 0.0, %v9399
      %9401 = vmatprep.mubr.bf16.mxu0 %v8711
      %9402 = vmatmul.mubr.bf16.gmra.mrb[0].mxu0 %v8710
      %v9403 = vpop.f32.mrb[0].mxu0
      %v9404 = vadd.f32 0.0, %v9403
      %v9405 = vpop.f32.mrb[0].mxu0
      %v9406 = vadd.f32 0.0, %v9405
      %v9407 = vpop.f32.mrb[0].mxu0
      %v9408 = vadd.f32 0.0, %v9407
      %v9409 = vpop.f32.mrb[0].mxu0
      %v9410 = vadd.f32 0.0, %v9409
      %9411 = vmatprep.mubr.bf16.mxu0 %v8722
      %9412 = vmatmul.mubr.bf16.gmra.mrb[0].mxu0 %v8721
      %v9413 = vpop.f32.mrb[0].mxu0
      %v9414 = vadd.f32 0.0, %v9413
      %v9415 = vpop.f32.mrb[0].mxu0
      %v9416 = vadd.f32 0.0, %v9415
      %v9417 = vpop.f32.mrb[0].mxu0
      %v9418 = vadd.f32 0.0, %v9417
      %v9419 = vpop.f32.mrb[0].mxu0
      %v9420 = vadd.f32 0.0, %v9419
      %9421 = vmatprep.mubr.bf16.mxu0 %v8733
      %9422 = vmatmul.mubr.bf16.gmra.mrb[0].mxu0 %v8732
      %v9423 = vpop.f32.mrb[0].mxu0
      %v9424 = vadd.f32 0.0, %v9423
      %v9425 = vpop.f32.mrb[0].mxu0
      %v9426 = vadd.f32 0.0, %v9425
      %v9427 = vpop.f32.mrb[0].mxu0
      %v9428 = vadd.f32 0.0, %v9427
      %v9429 = vpop.f32.mrb[0].mxu0
      %v9430 = vadd.f32 0.0, %v9429
      %9431 = vmatprep.mubr.bf16.mxu0 %v8744
      %9432 = vmatmul.mubr.bf16.gmra.mrb[0].mxu0 %v8743
      %v9433 = vpop.f32.mrb[0].mxu0
      %v9434 = vadd.f32 0.0, %v9433
      %v9435 = vpop.f32.mrb[0].mxu0
      %v9436 = vadd.f32 0.0, %v9435
      %v9437 = vpop.f32.mrb[0].mxu0
      %v9438 = vadd.f32 0.0, %v9437
      %v9439 = vpop.f32.mrb[0].mxu0
      %v9440 = vadd.f32 0.0, %v9439
      %9441 = vmatprep.mubr.bf16.mxu0 %v8755
      %9442 = vmatmul.mubr.bf16.gmra.mrb[0].mxu0 %v8754
      %v9443 = vpop.f32.mrb[0].mxu0
      %v9444 = vadd.f32 0.0, %v9443
      %v9445 = vpop.f32.mrb[0].mxu0
      %v9446 = vadd.f32 0.0, %v9445
      %v9447 = vpop.f32.mrb[0].mxu0
      %v9448 = vadd.f32 0.0, %v9447
      %v9449 = vpop.f32.mrb[0].mxu0
      %v9450 = vadd.f32 0.0, %v9449
      %9451 = vmatprep.mubr.bf16.mxu0 %v8766
      %9452 = vmatmul.mubr.bf16.gmra.mrb[0].mxu0 %v8765
      %v9453 = vpop.f32.mrb[0].mxu0
      %v9454 = vadd.f32 0.0, %v9453
      %v9455 = vpop.f32.mrb[0].mxu0
      %v9456 = vadd.f32 0.0, %v9455
      %v9457 = vpop.f32.mrb[0].mxu0
      %v9458 = vadd.f32 0.0, %v9457
      %v9459 = vpop.f32.mrb[0].mxu0
      %v9460 = vadd.f32 0.0, %v9459
      %9461 = vmatprep.mubr.bf16.mxu0 %v8777
      %9462 = vmatmul.mubr.bf16.gmra.mrb[0].mxu0 %v8776
      %v9463 = vpop.f32.mrb[0].mxu0
      %v9464 = vadd.f32 0.0, %v9463
      %v9465 = vpop.f32.mrb[0].mxu0
      %v9466 = vadd.f32 0.0, %v9465
      %v9467 = vpop.f32.mrb[0].mxu0
      %v9468 = vadd.f32 0.0, %v9467
      %v9469 = vpop.f32.mrb[0].mxu0
      %v9470 = vadd.f32 0.0, %v9469
      %9471 = vmatprep.mubr.bf16.mxu0 %v8788
      %9472 = vmatmul.mubr.bf16.gmra.mrb[0].mxu0 %v8787
      %v9473 = vpop.f32.mrb[0].mxu0
      %v9474 = vadd.f32 0.0, %v9473
      %v9475 = vpop.f32.mrb[0].mxu0
      %v9476 = vadd.f32 0.0, %v9475
      %v9477 = vpop.f32.mrb[0].mxu0
      %v9478 = vadd.f32 0.0, %v9477
      %v9479 = vpop.f32.mrb[0].mxu0
      %v9480 = vadd.f32 0.0, %v9479
      %9481 = vmatprep.mubr.bf16.mxu0 %v8799
      %9482 = vmatmul.mubr.bf16.gmra.mrb[0].mxu0 %v8798
      %v9483 = vpop.f32.mrb[0].mxu0
      %v9484 = vadd.f32 0.0, %v9483
      %v9485 = vpop.f32.mrb[0].mxu0
      %v9486 = vadd.f32 0.0, %v9485
      %v9487 = vpop.f32.mrb[0].mxu0
      %v9488 = vadd.f32 0.0, %v9487
      %v9489 = vpop.f32.mrb[0].mxu0
      %v9490 = vadd.f32 0.0, %v9489
      %9491 = vmatprep.mubr.bf16.mxu0 %v8810
      %9492 = vmatmul.mubr.bf16.gmra.mrb[0].mxu0 %v8809
      %v9493 = vpop.f32.mrb[0].mxu0
      %v9494 = vadd.f32 0.0, %v9493
      %v9495 = vpop.f32.mrb[0].mxu0
      %v9496 = vadd.f32 0.0, %v9495
      %v9497 = vpop.f32.mrb[0].mxu0
      %v9498 = vadd.f32 0.0, %v9497
      %v9499 = vpop.f32.mrb[0].mxu0
      %v9500 = vadd.f32 0.0, %v9499
      %9501 = vmatprep.mubr.bf16.mxu0 %v8821
      %9502 = vmatmul.mubr.bf16.gmra.mrb[0].mxu0 %v8820
      %v9503 = vpop.f32.mrb[0].mxu0
      %v9504 = vadd.f32 0.0, %v9503
      %v9505 = vpop.f32.mrb[0].mxu0
      %v9506 = vadd.f32 0.0, %v9505
      %v9507 = vpop.f32.mrb[0].mxu0
      %v9508 = vadd.f32 0.0, %v9507
      %v9509 = vpop.f32.mrb[0].mxu0
      %v9510 = vadd.f32 0.0, %v9509
      %9511 = vmatprep.mubr.bf16.mxu0 %v8832
      %9512 = vmatmul.mubr.bf16.gmra.mrb[0].mxu0 %v8831
      %v9513 = vpop.f32.mrb[0].mxu0
      %v9514 = vadd.f32 0.0, %v9513
      %v9515 = vpop.f32.mrb[0].mxu0
      %v9516 = vadd.f32 0.0, %v9515
      %v9517 = vpop.f32.mrb[0].mxu0
      %v9518 = vadd.f32 0.0, %v9517
      %v9519 = vpop.f32.mrb[0].mxu0
      %v9520 = vadd.f32 0.0, %v9519
      %9521 = vmatprep.mubr.bf16.mxu0 %v8843
      %9522 = vmatmul.mubr.bf16.gmra.mrb[0].mxu0 %v8842
      %v9523 = vpop.f32.mrb[0].mxu0
      %v9524 = vadd.f32 0.0, %v9523
      %v9525 = vpop.f32.mrb[0].mxu0
      %v9526 = vadd.f32 0.0, %v9525
      %v9527 = vpop.f32.mrb[0].mxu0
      %v9528 = vadd.f32 0.0, %v9527
      %v9529 = vpop.f32.mrb[0].mxu0
      %v9530 = vadd.f32 0.0, %v9529
      %9531 = vmatprep.mubr.bf16.mxu0 %v8854
      %9532 = vmatmul.mubr.bf16.gmra.mrb[0].mxu0 %v8853
      %v9533 = vpop.f32.mrb[0].mxu0
      %v9534 = vadd.f32 0.0, %v9533
      %v9535 = vpop.f32.mrb[0].mxu0
      %v9536 = vadd.f32 0.0, %v9535
      %v9537 = vpop.f32.mrb[0].mxu0
      %v9538 = vadd.f32 0.0, %v9537
      %v9539 = vpop.f32.mrb[0].mxu0
      %v9540 = vadd.f32 0.0, %v9539
      %9541 = vdwg.mxu0
      %9542 = vmatprep.subr.bf16.mxu0 %v7469
      %9543 = vmatpush1.bf16.msra.mxu0 %v7468
      %9544 = vmatprep.subr.bf16.mxu0 %v7471
      %9545 = vmatpush1.bf16.msra.mxu0 %v7470
      %9546 = vmatprep.subr.bf16.mxu0 %v7473
      %9547 = vmatpush1.bf16.msra.mxu0 %v7472
      %9548 = vmatprep.subr.bf16.mxu0 %v7475
      %9549 = vmatpush1.bf16.msra.mxu0 %v7474
      %9550 = vmatprep.subr.bf16.mxu0 %v7477
      %9551 = vmatpush1.bf16.msra.mxu0 %v7476
      %9552 = vmatprep.subr.bf16.mxu0 %v7479
      %9553 = vmatpush1.bf16.msra.mxu0 %v7478
      %9554 = vmatprep.subr.bf16.mxu0 %v7481
      %9555 = vmatpush1.bf16.msra.mxu0 %v7480
      %9556 = vmatprep.subr.bf16.mxu0 %v7483
      %9557 = vmatpush1.bf16.msra.mxu0 %v7482
      %9558 = vmatprep.subr.bf16.mxu0 %v7485
      %9559 = vmatpush1.bf16.msra.mxu0 %v7484
      %9560 = vmatprep.subr.bf16.mxu0 %v7487
      %9561 = vmatpush1.bf16.msra.mxu0 %v7486
      %9562 = vmatprep.subr.bf16.mxu0 %v7489
      %9563 = vmatpush1.bf16.msra.mxu0 %v7488
      %9564 = vmatprep.subr.bf16.mxu0 %v7491
      %9565 = vmatpush1.bf16.msra.mxu0 %v7490
      %9566 = vmatprep.subr.bf16.mxu0 %v7493
      %9567 = vmatpush1.bf16.msra.mxu0 %v7492
      %9568 = vmatprep.subr.bf16.mxu0 %v7495
      %9569 = vmatpush1.bf16.msra.mxu0 %v7494
      %9570 = vmatprep.subr.bf16.mxu0 %v7497
      %9571 = vmatpush1.bf16.msra.mxu0 %v7496
      %9572 = vmatprep.subr.bf16.mxu0 %v7499
      %9573 = vmatpush1.bf16.msra.mxu0 %v7498
      %9574 = vmatprep.mubr.bf16.mxu0 %v8559
      %9575 = vmatmul.mubr.bf16.gmra.mrb[0].mxu0 %v8558
      %v9576 = vpop.f32.mrb[0].mxu0
      %v9577 = vadd.f32 %v9264, %v9576
      %v9578 = vpop.f32.mrb[0].mxu0
      %v9579 = vadd.f32 %v9266, %v9578
      %v9580 = vpop.f32.mrb[0].mxu0
      %v9581 = vadd.f32 %v9268, %v9580
      %v9582 = vpop.f32.mrb[0].mxu0
      %v9583 = vadd.f32 %v9270, %v9582
      %9584 = vmatprep.mubr.bf16.mxu0 %v8570
      %9585 = vmatmul.mubr.bf16.gmra.mrb[0].mxu0 %v8569
      %v9586 = vpop.f32.mrb[0].mxu0
      %v9587 = vadd.f32 %v9274, %v9586
      %v9588 = vpop.f32.mrb[0].mxu0
      %v9589 = vadd.f32 %v9276, %v9588
      %v9590 = vpop.f32.mrb[0].mxu0
      %v9591 = vadd.f32 %v9278, %v9590
      %v9592 = vpop.f32.mrb[0].mxu0
      %v9593 = vadd.f32 %v9280, %v9592
      %9594 = vmatprep.mubr.bf16.mxu0 %v8581
      %9595 = vmatmul.mubr.bf16.gmra.mrb[0].mxu0 %v8580
      %v9596 = vpop.f32.mrb[0].mxu0
      %v9597 = vadd.f32 %v9284, %v9596
      %v9598 = vpop.f32.mrb[0].mxu0
      %v9599 = vadd.f32 %v9286, %v9598
      %v9600 = vpop.f32.mrb[0].mxu0
      %v9601 = vadd.f32 %v9288, %v9600
      %v9602 = vpop.f32.mrb[0].mxu0
      %v9603 = vadd.f32 %v9290, %v9602
      %9604 = vmatprep.mubr.bf16.mxu0 %v8592
      %9605 = vmatmul.mubr.bf16.gmra.mrb[0].mxu0 %v8591
      %v9606 = vpop.f32.mrb[0].mxu0
      %v9607 = vadd.f32 %v9294, %v9606
      %v9608 = vpop.f32.mrb[0].mxu0
      %v9609 = vadd.f32 %v9296, %v9608
      %v9610 = vpop.f32.mrb[0].mxu0
      %v9611 = vadd.f32 %v9298, %v9610
      %v9612 = vpop.f32.mrb[0].mxu0
      %v9613 = vadd.f32 %v9300, %v9612
      %9614 = vmatprep.mubr.bf16.mxu0 %v8603
      %9615 = vmatmul.mubr.bf16.gmra.mrb[0].mxu0 %v8602
      %v9616 = vpop.f32.mrb[0].mxu0
      %v9617 = vadd.f32 %v9304, %v9616
      %v9618 = vpop.f32.mrb[0].mxu0
      %v9619 = vadd.f32 %v9306, %v9618
      %v9620 = vpop.f32.mrb[0].mxu0
      %v9621 = vadd.f32 %v9308, %v9620
      %v9622 = vpop.f32.mrb[0].mxu0
      %v9623 = vadd.f32 %v9310, %v9622
      %9624 = vmatprep.mubr.bf16.mxu0 %v8614
      %9625 = vmatmul.mubr.bf16.gmra.mrb[0].mxu0 %v8613
      %v9626 = vpop.f32.mrb[0].mxu0
      %v9627 = vadd.f32 %v9314, %v9626
      %v9628 = vpop.f32.mrb[0].mxu0
      %v9629 = vadd.f32 %v9316, %v9628
      %v9630 = vpop.f32.mrb[0].mxu0
      %v9631 = vadd.f32 %v9318, %v9630
      %v9632 = vpop.f32.mrb[0].mxu0
      %v9633 = vadd.f32 %v9320, %v9632
      %9634 = vmatprep.mubr.bf16.mxu0 %v8625
      %9635 = vmatmul.mubr.bf16.gmra.mrb[0].mxu0 %v8624
      %v9636 = vpop.f32.mrb[0].mxu0
      %v9637 = vadd.f32 %v9324, %v9636
      %v9638 = vpop.f32.mrb[0].mxu0
      %v9639 = vadd.f32 %v9326, %v9638
      %v9640 = vpop.f32.mrb[0].mxu0
      %v9641 = vadd.f32 %v9328, %v9640
      %v9642 = vpop.f32.mrb[0].mxu0
      %v9643 = vadd.f32 %v9330, %v9642
      %9644 = vmatprep.mubr.bf16.mxu0 %v8636
      %9645 = vmatmul.mubr.bf16.gmra.mrb[0].mxu0 %v8635
      %v9646 = vpop.f32.mrb[0].mxu0
      %v9647 = vadd.f32 %v9334, %v9646
      %v9648 = vpop.f32.mrb[0].mxu0
      %v9649 = vadd.f32 %v9336, %v9648
      %v9650 = vpop.f32.mrb[0].mxu0
      %v9651 = vadd.f32 %v9338, %v9650
      %v9652 = vpop.f32.mrb[0].mxu0
      %v9653 = vadd.f32 %v9340, %v9652
      %9654 = vmatprep.mubr.bf16.mxu0 %v8647
      %9655 = vmatmul.mubr.bf16.gmra.mrb[0].mxu0 %v8646
      %v9656 = vpop.f32.mrb[0].mxu0
      %v9657 = vadd.f32 %v9344, %v9656
      %v9658 = vpop.f32.mrb[0].mxu0
      %v9659 = vadd.f32 %v9346, %v9658
      %v9660 = vpop.f32.mrb[0].mxu0
      %v9661 = vadd.f32 %v9348, %v9660
      %v9662 = vpop.f32.mrb[0].mxu0
      %v9663 = vadd.f32 %v9350, %v9662
      %9664 = vmatprep.mubr.bf16.mxu0 %v8658
      %9665 = vmatmul.mubr.bf16.gmra.mrb[0].mxu0 %v8657
      %v9666 = vpop.f32.mrb[0].mxu0
      %v9667 = vadd.f32 %v9354, %v9666
      %v9668 = vpop.f32.mrb[0].mxu0
      %v9669 = vadd.f32 %v9356, %v9668
      %v9670 = vpop.f32.mrb[0].mxu0
      %v9671 = vadd.f32 %v9358, %v9670
      %v9672 = vpop.f32.mrb[0].mxu0
      %v9673 = vadd.f32 %v9360, %v9672
      %9674 = vmatprep.mubr.bf16.mxu0 %v8669
      %9675 = vmatmul.mubr.bf16.gmra.mrb[0].mxu0 %v8668
      %v9676 = vpop.f32.mrb[0].mxu0
      %v9677 = vadd.f32 %v9364, %v9676
      %v9678 = vpop.f32.mrb[0].mxu0
      %v9679 = vadd.f32 %v9366, %v9678
      %v9680 = vpop.f32.mrb[0].mxu0
      %v9681 = vadd.f32 %v9368, %v9680
      %v9682 = vpop.f32.mrb[0].mxu0
      %v9683 = vadd.f32 %v9370, %v9682
      %9684 = vmatprep.mubr.bf16.mxu0 %v8680
      %9685 = vmatmul.mubr.bf16.gmra.mrb[0].mxu0 %v8679
      %v9686 = vpop.f32.mrb[0].mxu0
      %v9687 = vadd.f32 %v9374, %v9686
      %v9688 = vpop.f32.mrb[0].mxu0
      %v9689 = vadd.f32 %v9376, %v9688
      %v9690 = vpop.f32.mrb[0].mxu0
      %v9691 = vadd.f32 %v9378, %v9690
      %v9692 = vpop.f32.mrb[0].mxu0
      %v9693 = vadd.f32 %v9380, %v9692
      %9694 = vmatprep.mubr.bf16.mxu0 %v8691
      %9695 = vmatmul.mubr.bf16.gmra.mrb[0].mxu0 %v8690
      %v9696 = vpop.f32.mrb[0].mxu0
      %v9697 = vadd.f32 %v9384, %v9696
      %v9698 = vpop.f32.mrb[0].mxu0
      %v9699 = vadd.f32 %v9386, %v9698
      %v9700 = vpop.f32.mrb[0].mxu0
      %v9701 = vadd.f32 %v9388, %v9700
      %v9702 = vpop.f32.mrb[0].mxu0
      %v9703 = vadd.f32 %v9390, %v9702
      %9704 = vmatprep.mubr.bf16.mxu0 %v8702
      %9705 = vmatmul.mubr.bf16.gmra.mrb[0].mxu0 %v8701
      %v9706 = vpop.f32.mrb[0].mxu0
      %v9707 = vadd.f32 %v9394, %v9706
      %v9708 = vpop.f32.mrb[0].mxu0
      %v9709 = vadd.f32 %v9396, %v9708
      %v9710 = vpop.f32.mrb[0].mxu0
      %v9711 = vadd.f32 %v9398, %v9710
      %v9712 = vpop.f32.mrb[0].mxu0
      %v9713 = vadd.f32 %v9400, %v9712
      %9714 = vmatprep.mubr.bf16.mxu0 %v8713
      %9715 = vmatmul.mubr.bf16.gmra.mrb[0].mxu0 %v8712
      %v9716 = vpop.f32.mrb[0].mxu0
      %v9717 = vadd.f32 %v9404, %v9716
      %v9718 = vpop.f32.mrb[0].mxu0
      %v9719 = vadd.f32 %v9406, %v9718
      %v9720 = vpop.f32.mrb[0].mxu0
      %v9721 = vadd.f32 %v9408, %v9720
      %v9722 = vpop.f32.mrb[0].mxu0
      %v9723 = vadd.f32 %v9410, %v9722
      %9724 = vmatprep.mubr.bf16.mxu0 %v8724
      %9725 = vmatmul.mubr.bf16.gmra.mrb[0].mxu0 %v8723
      %v9726 = vpop.f32.mrb[0].mxu0
      %v9727 = vadd.f32 %v9414, %v9726
      %v9728 = vpop.f32.mrb[0].mxu0
      %v9729 = vadd.f32 %v9416, %v9728
      %v9730 = vpop.f32.mrb[0].mxu0
      %v9731 = vadd.f32 %v9418, %v9730
      %v9732 = vpop.f32.mrb[0].mxu0
      %v9733 = vadd.f32 %v9420, %v9732
      %9734 = vmatprep.mubr.bf16.mxu0 %v8735
      %9735 = vmatmul.mubr.bf16.gmra.mrb[0].mxu0 %v8734
      %v9736 = vpop.f32.mrb[0].mxu0
      %v9737 = vadd.f32 %v9424, %v9736
      %v9738 = vpop.f32.mrb[0].mxu0
      %v9739 = vadd.f32 %v9426, %v9738
      %v9740 = vpop.f32.mrb[0].mxu0
      %v9741 = vadd.f32 %v9428, %v9740
      %v9742 = vpop.f32.mrb[0].mxu0
      %v9743 = vadd.f32 %v9430, %v9742
      %9744 = vmatprep.mubr.bf16.mxu0 %v8746
      %9745 = vmatmul.mubr.bf16.gmra.mrb[0].mxu0 %v8745
      %v9746 = vpop.f32.mrb[0].mxu0
      %v9747 = vadd.f32 %v9434, %v9746
      %v9748 = vpop.f32.mrb[0].mxu0
      %v9749 = vadd.f32 %v9436, %v9748
      %v9750 = vpop.f32.mrb[0].mxu0
      %v9751 = vadd.f32 %v9438, %v9750
      %v9752 = vpop.f32.mrb[0].mxu0
      %v9753 = vadd.f32 %v9440, %v9752
      %9754 = vmatprep.mubr.bf16.mxu0 %v8757
      %9755 = vmatmul.mubr.bf16.gmra.mrb[0].mxu0 %v8756
      %v9756 = vpop.f32.mrb[0].mxu0
      %v9757 = vadd.f32 %v9444, %v9756
      %v9758 = vpop.f32.mrb[0].mxu0
      %v9759 = vadd.f32 %v9446, %v9758
      %v9760 = vpop.f32.mrb[0].mxu0
      %v9761 = vadd.f32 %v9448, %v9760
      %v9762 = vpop.f32.mrb[0].mxu0
      %v9763 = vadd.f32 %v9450, %v9762
      %9764 = vmatprep.mubr.bf16.mxu0 %v8768
      %9765 = vmatmul.mubr.bf16.gmra.mrb[0].mxu0 %v8767
      %v9766 = vpop.f32.mrb[0].mxu0
      %v9767 = vadd.f32 %v9454, %v9766
      %v9768 = vpop.f32.mrb[0].mxu0
      %v9769 = vadd.f32 %v9456, %v9768
      %v9770 = vpop.f32.mrb[0].mxu0
      %v9771 = vadd.f32 %v9458, %v9770
      %v9772 = vpop.f32.mrb[0].mxu0
      %v9773 = vadd.f32 %v9460, %v9772
      %9774 = vmatprep.mubr.bf16.mxu0 %v8779
      %9775 = vmatmul.mubr.bf16.gmra.mrb[0].mxu0 %v8778
      %v9776 = vpop.f32.mrb[0].mxu0
      %v9777 = vadd.f32 %v9464, %v9776
      %v9778 = vpop.f32.mrb[0].mxu0
      %v9779 = vadd.f32 %v9466, %v9778
      %v9780 = vpop.f32.mrb[0].mxu0
      %v9781 = vadd.f32 %v9468, %v9780
      %v9782 = vpop.f32.mrb[0].mxu0
      %v9783 = vadd.f32 %v9470, %v9782
      %9784 = vmatprep.mubr.bf16.mxu0 %v8790
      %9785 = vmatmul.mubr.bf16.gmra.mrb[0].mxu0 %v8789
      %v9786 = vpop.f32.mrb[0].mxu0
      %v9787 = vadd.f32 %v9474, %v9786
      %v9788 = vpop.f32.mrb[0].mxu0
      %v9789 = vadd.f32 %v9476, %v9788
      %v9790 = vpop.f32.mrb[0].mxu0
      %v9791 = vadd.f32 %v9478, %v9790
      %v9792 = vpop.f32.mrb[0].mxu0
      %v9793 = vadd.f32 %v9480, %v9792
      %9794 = vmatprep.mubr.bf16.mxu0 %v8801
      %9795 = vmatmul.mubr.bf16.gmra.mrb[0].mxu0 %v8800
      %v9796 = vpop.f32.mrb[0].mxu0
      %v9797 = vadd.f32 %v9484, %v9796
      %v9798 = vpop.f32.mrb[0].mxu0
      %v9799 = vadd.f32 %v9486, %v9798
      %v9800 = vpop.f32.mrb[0].mxu0
      %v9801 = vadd.f32 %v9488, %v9800
      %v9802 = vpop.f32.mrb[0].mxu0
      %v9803 = vadd.f32 %v9490, %v9802
      %9804 = vmatprep.mubr.bf16.mxu0 %v8812
      %9805 = vmatmul.mubr.bf16.gmra.mrb[0].mxu0 %v8811
      %v9806 = vpop.f32.mrb[0].mxu0
      %v9807 = vadd.f32 %v9494, %v9806
      %v9808 = vpop.f32.mrb[0].mxu0
      %v9809 = vadd.f32 %v9496, %v9808
      %v9810 = vpop.f32.mrb[0].mxu0
      %v9811 = vadd.f32 %v9498, %v9810
      %v9812 = vpop.f32.mrb[0].mxu0
      %v9813 = vadd.f32 %v9500, %v9812
      %9814 = vmatprep.mubr.bf16.mxu0 %v8823
      %9815 = vmatmul.mubr.bf16.gmra.mrb[0].mxu0 %v8822
      %v9816 = vpop.f32.mrb[0].mxu0
      %v9817 = vadd.f32 %v9504, %v9816
      %v9818 = vpop.f32.mrb[0].mxu0
      %v9819 = vadd.f32 %v9506, %v9818
      %v9820 = vpop.f32.mrb[0].mxu0
      %v9821 = vadd.f32 %v9508, %v9820
      %v9822 = vpop.f32.mrb[0].mxu0
      %v9823 = vadd.f32 %v9510, %v9822
      %9824 = vmatprep.mubr.bf16.mxu0 %v8834
      %9825 = vmatmul.mubr.bf16.gmra.mrb[0].mxu0 %v8833
      %v9826 = vpop.f32.mrb[0].mxu0
      %v9827 = vadd.f32 %v9514, %v9826
      %v9828 = vpop.f32.mrb[0].mxu0
      %v9829 = vadd.f32 %v9516, %v9828
      %v9830 = vpop.f32.mrb[0].mxu0
      %v9831 = vadd.f32 %v9518, %v9830
      %v9832 = vpop.f32.mrb[0].mxu0
      %v9833 = vadd.f32 %v9520, %v9832
      %9834 = vmatprep.mubr.bf16.mxu0 %v8845
      %9835 = vmatmul.mubr.bf16.gmra.mrb[0].mxu0 %v8844
      %v9836 = vpop.f32.mrb[0].mxu0
      %v9837 = vadd.f32 %v9524, %v9836
      %v9838 = vpop.f32.mrb[0].mxu0
      %v9839 = vadd.f32 %v9526, %v9838
      %v9840 = vpop.f32.mrb[0].mxu0
      %v9841 = vadd.f32 %v9528, %v9840
      %v9842 = vpop.f32.mrb[0].mxu0
      %v9843 = vadd.f32 %v9530, %v9842
      %9844 = vmatprep.mubr.bf16.mxu0 %v8856
      %9845 = vmatmul.mubr.bf16.gmra.mrb[0].mxu0 %v8855
      %v9846 = vpop.f32.mrb[0].mxu0
      %v9847 = vadd.f32 %v9534, %v9846
      %v9848 = vpop.f32.mrb[0].mxu0
      %v9849 = vadd.f32 %v9536, %v9848
      %v9850 = vpop.f32.mrb[0].mxu0
      %v9851 = vadd.f32 %v9538, %v9850
      %v9852 = vpop.f32.mrb[0].mxu0
      %v9853 = vadd.f32 %v9540, %v9852
      %9854 = vdwg.mxu0
      %9855 = vmatprep.subr.bf16.mxu0 %v7501
      %9856 = vmatpush1.bf16.msra.mxu0 %v7500
      %9857 = vmatprep.subr.bf16.mxu0 %v7503
      %9858 = vmatpush1.bf16.msra.mxu0 %v7502
      %9859 = vmatprep.subr.bf16.mxu0 %v7505
      %9860 = vmatpush1.bf16.msra.mxu0 %v7504
      %9861 = vmatprep.subr.bf16.mxu0 %v7507
      %9862 = vmatpush1.bf16.msra.mxu0 %v7506
      %9863 = vmatprep.subr.bf16.mxu0 %v7509
      %9864 = vmatpush1.bf16.msra.mxu0 %v7508
      %9865 = vmatprep.subr.bf16.mxu0 %v7511
      %9866 = vmatpush1.bf16.msra.mxu0 %v7510
      %9867 = vmatprep.subr.bf16.mxu0 %v7513
      %9868 = vmatpush1.bf16.msra.mxu0 %v7512
      %9869 = vmatprep.subr.bf16.mxu0 %v7515
      %9870 = vmatpush1.bf16.msra.mxu0 %v7514
      %9871 = vmatprep.subr.bf16.mxu0 %v7517
      %9872 = vmatpush1.bf16.msra.mxu0 %v7516
      %9873 = vmatprep.subr.bf16.mxu0 %v7519
      %9874 = vmatpush1.bf16.msra.mxu0 %v7518
      %9875 = vmatprep.subr.bf16.mxu0 %v7521
      %9876 = vmatpush1.bf16.msra.mxu0 %v7520
      %9877 = vmatprep.subr.bf16.mxu0 %v7523
      %9878 = vmatpush1.bf16.msra.mxu0 %v7522
      %9879 = vmatprep.subr.bf16.mxu0 %v7525
      %9880 = vmatpush1.bf16.msra.mxu0 %v7524
      %9881 = vmatprep.subr.bf16.mxu0 %v7527
      %9882 = vmatpush1.bf16.msra.mxu0 %v7526
      %9883 = vmatprep.subr.bf16.mxu0 %v7529
      %9884 = vmatpush1.bf16.msra.mxu0 %v7528
      %9885 = vmatprep.subr.bf16.mxu0 %v7531
      %9886 = vmatpush1.bf16.msra.mxu0 %v7530
      %9887 = vmatprep.mubr.bf16.mxu0 %v8561
      %9888 = vmatmul.mubr.bf16.gmra.mrb[0].mxu0 %v8560
      %v9889 = vpop.f32.mrb[0].mxu0
      %v9890 = vadd.f32 %v9577, %v9889
      %v9891 = vpop.f32.mrb[0].mxu0
      %v9892 = vadd.f32 %v9579, %v9891
      %v9893 = vpop.f32.mrb[0].mxu0
      %v9894 = vadd.f32 %v9581, %v9893
      %v9895 = vpop.f32.mrb[0].mxu0
      %v9896 = vadd.f32 %v9583, %v9895
      %9897 = vmatprep.mubr.bf16.mxu0 %v8572
      %9898 = vmatmul.mubr.bf16.gmra.mrb[0].mxu0 %v8571
      %v9899 = vpop.f32.mrb[0].mxu0
      %v9900 = vadd.f32 %v9587, %v9899
      %v9901 = vpop.f32.mrb[0].mxu0
      %v9902 = vadd.f32 %v9589, %v9901
      %v9903 = vpop.f32.mrb[0].mxu0
      %v9904 = vadd.f32 %v9591, %v9903
      %v9905 = vpop.f32.mrb[0].mxu0
      %v9906 = vadd.f32 %v9593, %v9905
      %9907 = vmatprep.mubr.bf16.mxu0 %v8583
      %9908 = vmatmul.mubr.bf16.gmra.mrb[0].mxu0 %v8582
      %v9909 = vpop.f32.mrb[0].mxu0
      %v9910 = vadd.f32 %v9597, %v9909
      %v9911 = vpop.f32.mrb[0].mxu0
      %v9912 = vadd.f32 %v9599, %v9911
      %v9913 = vpop.f32.mrb[0].mxu0
      %v9914 = vadd.f32 %v9601, %v9913
      %v9915 = vpop.f32.mrb[0].mxu0
      %v9916 = vadd.f32 %v9603, %v9915
      %9917 = vmatprep.mubr.bf16.mxu0 %v8594
      %9918 = vmatmul.mubr.bf16.gmra.mrb[0].mxu0 %v8593
      %v9919 = vpop.f32.mrb[0].mxu0
      %v9920 = vadd.f32 %v9607, %v9919
      %v9921 = vpop.f32.mrb[0].mxu0
      %v9922 = vadd.f32 %v9609, %v9921
      %v9923 = vpop.f32.mrb[0].mxu0
      %v9924 = vadd.f32 %v9611, %v9923
      %v9925 = vpop.f32.mrb[0].mxu0
      %v9926 = vadd.f32 %v9613, %v9925
      %9927 = vmatprep.mubr.bf16.mxu0 %v8605
      %9928 = vmatmul.mubr.bf16.gmra.mrb[0].mxu0 %v8604
      %v9929 = vpop.f32.mrb[0].mxu0
      %v9930 = vadd.f32 %v9617, %v9929
      %v9931 = vpop.f32.mrb[0].mxu0
      %v9932 = vadd.f32 %v9619, %v9931
      %v9933 = vpop.f32.mrb[0].mxu0
      %v9934 = vadd.f32 %v9621, %v9933
      %v9935 = vpop.f32.mrb[0].mxu0
      %v9936 = vadd.f32 %v9623, %v9935
      %9937 = vmatprep.mubr.bf16.mxu0 %v8616
      %9938 = vmatmul.mubr.bf16.gmra.mrb[0].mxu0 %v8615
      %v9939 = vpop.f32.mrb[0].mxu0
      %v9940 = vadd.f32 %v9627, %v9939
      %v9941 = vpop.f32.mrb[0].mxu0
      %v9942 = vadd.f32 %v9629, %v9941
      %v9943 = vpop.f32.mrb[0].mxu0
      %v9944 = vadd.f32 %v9631, %v9943
      %v9945 = vpop.f32.mrb[0].mxu0
      %v9946 = vadd.f32 %v9633, %v9945
      %9947 = vmatprep.mubr.bf16.mxu0 %v8627
      %9948 = vmatmul.mubr.bf16.gmra.mrb[0].mxu0 %v8626
      %v9949 = vpop.f32.mrb[0].mxu0
      %v9950 = vadd.f32 %v9637, %v9949
      %v9951 = vpop.f32.mrb[0].mxu0
      %v9952 = vadd.f32 %v9639, %v9951
      %v9953 = vpop.f32.mrb[0].mxu0
      %v9954 = vadd.f32 %v9641, %v9953
      %v9955 = vpop.f32.mrb[0].mxu0
      %v9956 = vadd.f32 %v9643, %v9955
      %9957 = vmatprep.mubr.bf16.mxu0 %v8638
      %9958 = vmatmul.mubr.bf16.gmra.mrb[0].mxu0 %v8637
      %v9959 = vpop.f32.mrb[0].mxu0
      %v9960 = vadd.f32 %v9647, %v9959
      %v9961 = vpop.f32.mrb[0].mxu0
      %v9962 = vadd.f32 %v9649, %v9961
      %v9963 = vpop.f32.mrb[0].mxu0
      %v9964 = vadd.f32 %v9651, %v9963
      %v9965 = vpop.f32.mrb[0].mxu0
      %v9966 = vadd.f32 %v9653, %v9965
      %9967 = vmatprep.mubr.bf16.mxu0 %v8649
      %9968 = vmatmul.mubr.bf16.gmra.mrb[0].mxu0 %v8648
      %v9969 = vpop.f32.mrb[0].mxu0
      %v9970 = vadd.f32 %v9657, %v9969
      %v9971 = vpop.f32.mrb[0].mxu0
      %v9972 = vadd.f32 %v9659, %v9971
      %v9973 = vpop.f32.mrb[0].mxu0
      %v9974 = vadd.f32 %v9661, %v9973
      %v9975 = vpop.f32.mrb[0].mxu0
      %v9976 = vadd.f32 %v9663, %v9975
      %9977 = vmatprep.mubr.bf16.mxu0 %v8660
      %9978 = vmatmul.mubr.bf16.gmra.mrb[0].mxu0 %v8659
      %v9979 = vpop.f32.mrb[0].mxu0
      %v9980 = vadd.f32 %v9667, %v9979
      %v9981 = vpop.f32.mrb[0].mxu0
      %v9982 = vadd.f32 %v9669, %v9981
      %v9983 = vpop.f32.mrb[0].mxu0
      %v9984 = vadd.f32 %v9671, %v9983
      %v9985 = vpop.f32.mrb[0].mxu0
      %v9986 = vadd.f32 %v9673, %v9985
      %9987 = vmatprep.mubr.bf16.mxu0 %v8671
      %9988 = vmatmul.mubr.bf16.gmra.mrb[0].mxu0 %v8670
      %v9989 = vpop.f32.mrb[0].mxu0
      %v9990 = vadd.f32 %v9677, %v9989
      %v9991 = vpop.f32.mrb[0].mxu0
      %v9992 = vadd.f32 %v9679, %v9991
      %v9993 = vpop.f32.mrb[0].mxu0
      %v9994 = vadd.f32 %v9681, %v9993
      %v9995 = vpop.f32.mrb[0].mxu0
      %v9996 = vadd.f32 %v9683, %v9995
      %9997 = vmatprep.mubr.bf16.mxu0 %v8682
      %9998 = vmatmul.mubr.bf16.gmra.mrb[0].mxu0 %v8681
      %v9999 = vpop.f32.mrb[0].mxu0
      %v10000 = vadd.f32 %v9687, %v9999
      %v10001 = vpop.f32.mrb[0].mxu0
      %v10002 = vadd.f32 %v9689, %v10001
      %v10003 = vpop.f32.mrb[0].mxu0
      %v10004 = vadd.f32 %v9691, %v10003
      %v10005 = vpop.f32.mrb[0].mxu0
      %v10006 = vadd.f32 %v9693, %v10005
      %10007 = vmatprep.mubr.bf16.mxu0 %v8693
      %10008 = vmatmul.mubr.bf16.gmra.mrb[0].mxu0 %v8692
      %v10009 = vpop.f32.mrb[0].mxu0
      %v10010 = vadd.f32 %v9697, %v10009
      %v10011 = vpop.f32.mrb[0].mxu0
      %v10012 = vadd.f32 %v9699, %v10011
      %v10013 = vpop.f32.mrb[0].mxu0
      %v10014 = vadd.f32 %v9701, %v10013
      %v10015 = vpop.f32.mrb[0].mxu0
      %v10016 = vadd.f32 %v9703, %v10015
      %10017 = vmatprep.mubr.bf16.mxu0 %v8704
      %10018 = vmatmul.mubr.bf16.gmra.mrb[0].mxu0 %v8703
      %v10019 = vpop.f32.mrb[0].mxu0
      %v10020 = vadd.f32 %v9707, %v10019
      %v10021 = vpop.f32.mrb[0].mxu0
      %v10022 = vadd.f32 %v9709, %v10021
      %v10023 = vpop.f32.mrb[0].mxu0
      %v10024 = vadd.f32 %v9711, %v10023
      %v10025 = vpop.f32.mrb[0].mxu0
      %v10026 = vadd.f32 %v9713, %v10025
      %10027 = vmatprep.mubr.bf16.mxu0 %v8715
      %10028 = vmatmul.mubr.bf16.gmra.mrb[0].mxu0 %v8714
      %v10029 = vpop.f32.mrb[0].mxu0
      %v10030 = vadd.f32 %v9717, %v10029
      %v10031 = vpop.f32.mrb[0].mxu0
      %v10032 = vadd.f32 %v9719, %v10031
      %v10033 = vpop.f32.mrb[0].mxu0
      %v10034 = vadd.f32 %v9721, %v10033
      %v10035 = vpop.f32.mrb[0].mxu0
      %v10036 = vadd.f32 %v9723, %v10035
      %10037 = vmatprep.mubr.bf16.mxu0 %v8726
      %10038 = vmatmul.mubr.bf16.gmra.mrb[0].mxu0 %v8725
      %v10039 = vpop.f32.mrb[0].mxu0
      %v10040 = vadd.f32 %v9727, %v10039
      %v10041 = vpop.f32.mrb[0].mxu0
      %v10042 = vadd.f32 %v9729, %v10041
      %v10043 = vpop.f32.mrb[0].mxu0
      %v10044 = vadd.f32 %v9731, %v10043
      %v10045 = vpop.f32.mrb[0].mxu0
      %v10046 = vadd.f32 %v9733, %v10045
      %10047 = vmatprep.mubr.bf16.mxu0 %v8737
      %10048 = vmatmul.mubr.bf16.gmra.mrb[0].mxu0 %v8736
      %v10049 = vpop.f32.mrb[0].mxu0
      %v10050 = vadd.f32 %v9737, %v10049
      %v10051 = vpop.f32.mrb[0].mxu0
      %v10052 = vadd.f32 %v9739, %v10051
      %v10053 = vpop.f32.mrb[0].mxu0
      %v10054 = vadd.f32 %v9741, %v10053
      %v10055 = vpop.f32.mrb[0].mxu0
      %v10056 = vadd.f32 %v9743, %v10055
      %10057 = vmatprep.mubr.bf16.mxu0 %v8748
      %10058 = vmatmul.mubr.bf16.gmra.mrb[0].mxu0 %v8747
      %v10059 = vpop.f32.mrb[0].mxu0
      %v10060 = vadd.f32 %v9747, %v10059
      %v10061 = vpop.f32.mrb[0].mxu0
      %v10062 = vadd.f32 %v9749, %v10061
      %v10063 = vpop.f32.mrb[0].mxu0
      %v10064 = vadd.f32 %v9751, %v10063
      %v10065 = vpop.f32.mrb[0].mxu0
      %v10066 = vadd.f32 %v9753, %v10065
      %10067 = vmatprep.mubr.bf16.mxu0 %v8759
      %10068 = vmatmul.mubr.bf16.gmra.mrb[0].mxu0 %v8758
      %v10069 = vpop.f32.mrb[0].mxu0
      %v10070 = vadd.f32 %v9757, %v10069
      %v10071 = vpop.f32.mrb[0].mxu0
      %v10072 = vadd.f32 %v9759, %v10071
      %v10073 = vpop.f32.mrb[0].mxu0
      %v10074 = vadd.f32 %v9761, %v10073
      %v10075 = vpop.f32.mrb[0].mxu0
      %v10076 = vadd.f32 %v9763, %v10075
      %10077 = vmatprep.mubr.bf16.mxu0 %v8770
      %10078 = vmatmul.mubr.bf16.gmra.mrb[0].mxu0 %v8769
      %v10079 = vpop.f32.mrb[0].mxu0
      %v10080 = vadd.f32 %v9767, %v10079
      %v10081 = vpop.f32.mrb[0].mxu0
      %v10082 = vadd.f32 %v9769, %v10081
      %v10083 = vpop.f32.mrb[0].mxu0
      %v10084 = vadd.f32 %v9771, %v10083
      %v10085 = vpop.f32.mrb[0].mxu0
      %v10086 = vadd.f32 %v9773, %v10085
      %10087 = vmatprep.mubr.bf16.mxu0 %v8781
      %10088 = vmatmul.mubr.bf16.gmra.mrb[0].mxu0 %v8780
      %v10089 = vpop.f32.mrb[0].mxu0
      %v10090 = vadd.f32 %v9777, %v10089
      %v10091 = vpop.f32.mrb[0].mxu0
      %v10092 = vadd.f32 %v9779, %v10091
      %v10093 = vpop.f32.mrb[0].mxu0
      %v10094 = vadd.f32 %v9781, %v10093
      %v10095 = vpop.f32.mrb[0].mxu0
      %v10096 = vadd.f32 %v9783, %v10095
      %10097 = vmatprep.mubr.bf16.mxu0 %v8792
      %10098 = vmatmul.mubr.bf16.gmra.mrb[0].mxu0 %v8791
      %v10099 = vpop.f32.mrb[0].mxu0
      %v10100 = vadd.f32 %v9787, %v10099
      %v10101 = vpop.f32.mrb[0].mxu0
      %v10102 = vadd.f32 %v9789, %v10101
      %v10103 = vpop.f32.mrb[0].mxu0
      %v10104 = vadd.f32 %v9791, %v10103
      %v10105 = vpop.f32.mrb[0].mxu0
      %v10106 = vadd.f32 %v9793, %v10105
      %10107 = vmatprep.mubr.bf16.mxu0 %v8803
      %10108 = vmatmul.mubr.bf16.gmra.mrb[0].mxu0 %v8802
      %v10109 = vpop.f32.mrb[0].mxu0
      %v10110 = vadd.f32 %v9797, %v10109
      %v10111 = vpop.f32.mrb[0].mxu0
      %v10112 = vadd.f32 %v9799, %v10111
      %v10113 = vpop.f32.mrb[0].mxu0
      %v10114 = vadd.f32 %v9801, %v10113
      %v10115 = vpop.f32.mrb[0].mxu0
      %v10116 = vadd.f32 %v9803, %v10115
      %10117 = vmatprep.mubr.bf16.mxu0 %v8814
      %10118 = vmatmul.mubr.bf16.gmra.mrb[0].mxu0 %v8813
      %v10119 = vpop.f32.mrb[0].mxu0
      %v10120 = vadd.f32 %v9807, %v10119
      %v10121 = vpop.f32.mrb[0].mxu0
      %v10122 = vadd.f32 %v9809, %v10121
      %v10123 = vpop.f32.mrb[0].mxu0
      %v10124 = vadd.f32 %v9811, %v10123
      %v10125 = vpop.f32.mrb[0].mxu0
      %v10126 = vadd.f32 %v9813, %v10125
      %10127 = vmatprep.mubr.bf16.mxu0 %v8825
      %10128 = vmatmul.mubr.bf16.gmra.mrb[0].mxu0 %v8824
      %v10129 = vpop.f32.mrb[0].mxu0
      %v10130 = vadd.f32 %v9817, %v10129
      %v10131 = vpop.f32.mrb[0].mxu0
      %v10132 = vadd.f32 %v9819, %v10131
      %v10133 = vpop.f32.mrb[0].mxu0
      %v10134 = vadd.f32 %v9821, %v10133
      %v10135 = vpop.f32.mrb[0].mxu0
      %v10136 = vadd.f32 %v9823, %v10135
      %10137 = vmatprep.mubr.bf16.mxu0 %v8836
      %10138 = vmatmul.mubr.bf16.gmra.mrb[0].mxu0 %v8835
      %v10139 = vpop.f32.mrb[0].mxu0
      %v10140 = vadd.f32 %v9827, %v10139
      %v10141 = vpop.f32.mrb[0].mxu0
      %v10142 = vadd.f32 %v9829, %v10141
      %v10143 = vpop.f32.mrb[0].mxu0
      %v10144 = vadd.f32 %v9831, %v10143
      %v10145 = vpop.f32.mrb[0].mxu0
      %v10146 = vadd.f32 %v9833, %v10145
      %10147 = vmatprep.mubr.bf16.mxu0 %v8847
      %10148 = vmatmul.mubr.bf16.gmra.mrb[0].mxu0 %v8846
      %v10149 = vpop.f32.mrb[0].mxu0
      %v10150 = vadd.f32 %v9837, %v10149
      %v10151 = vpop.f32.mrb[0].mxu0
      %v10152 = vadd.f32 %v9839, %v10151
      %v10153 = vpop.f32.mrb[0].mxu0
      %v10154 = vadd.f32 %v9841, %v10153
      %v10155 = vpop.f32.mrb[0].mxu0
      %v10156 = vadd.f32 %v9843, %v10155
      %10157 = vmatprep.mubr.bf16.mxu0 %v8858
      %10158 = vmatmul.mubr.bf16.gmra.mrb[0].mxu0 %v8857
      %v10159 = vpop.f32.mrb[0].mxu0
      %v10160 = vadd.f32 %v9847, %v10159
      %v10161 = vpop.f32.mrb[0].mxu0
      %v10162 = vadd.f32 %v9849, %v10161
      %v10163 = vpop.f32.mrb[0].mxu0
      %v10164 = vadd.f32 %v9851, %v10163
      %v10165 = vpop.f32.mrb[0].mxu0
      %v10166 = vadd.f32 %v9853, %v10165
      %10167 = vdwg.mxu0
      %10168 = vmatprep.subr.bf16.mxu0 %v7533
      %10169 = vmatpush1.bf16.msra.mxu0 %v7532
      %10170 = vmatprep.subr.bf16.mxu0 %v7535
      %10171 = vmatpush1.bf16.msra.mxu0 %v7534
      %10172 = vmatprep.subr.bf16.mxu0 %v7537
      %10173 = vmatpush1.bf16.msra.mxu0 %v7536
      %10174 = vmatprep.subr.bf16.mxu0 %v7539
      %10175 = vmatpush1.bf16.msra.mxu0 %v7538
      %10176 = vmatprep.subr.bf16.mxu0 %v7541
      %10177 = vmatpush1.bf16.msra.mxu0 %v7540
      %10178 = vmatprep.subr.bf16.mxu0 %v7543
      %10179 = vmatpush1.bf16.msra.mxu0 %v7542
      %10180 = vmatprep.subr.bf16.mxu0 %v7545
      %10181 = vmatpush1.bf16.msra.mxu0 %v7544
      %10182 = vmatprep.subr.bf16.mxu0 %v7547
      %10183 = vmatpush1.bf16.msra.mxu0 %v7546
      %10184 = vmatprep.subr.bf16.mxu0 %v7549
      %10185 = vmatpush1.bf16.msra.mxu0 %v7548
      %10186 = vmatprep.subr.bf16.mxu0 %v7551
      %10187 = vmatpush1.bf16.msra.mxu0 %v7550
      %10188 = vmatprep.subr.bf16.mxu0 %v7553
      %10189 = vmatpush1.bf16.msra.mxu0 %v7552
      %10190 = vmatprep.subr.bf16.mxu0 %v7555
      %10191 = vmatpush1.bf16.msra.mxu0 %v7554
      %10192 = vmatprep.subr.bf16.mxu0 %v7557
      %10193 = vmatpush1.bf16.msra.mxu0 %v7556
      %10194 = vmatprep.subr.bf16.mxu0 %v7559
      %10195 = vmatpush1.bf16.msra.mxu0 %v7558
      %10196 = vmatprep.subr.bf16.mxu0 %v7561
      %10197 = vmatpush1.bf16.msra.mxu0 %v7560
      %10198 = vmatprep.subr.bf16.mxu0 %v7563
      %10199 = vmatpush1.bf16.msra.mxu0 %v7562
      %10200 = vmatprep.mubr.bf16.mxu0 %v8563
      %10201 = vmatmul.mubr.bf16.gmra.mrb[0].mxu0 %v8562
      %v10202 = vpop.f32.mrb[0].mxu0
      %v10203 = vadd.f32 %v9890, %v10202
      %v10204 = vpop.f32.mrb[0].mxu0
      %v10205 = vadd.f32 %v9892, %v10204
      %v10206 = vpop.f32.mrb[0].mxu0
      %v10207 = vadd.f32 %v9894, %v10206
      %v10208 = vpop.f32.mrb[0].mxu0
      %v10209 = vadd.f32 %v9896, %v10208
      %10210 = vmatprep.mubr.bf16.mxu0 %v8574
      %10211 = vmatmul.mubr.bf16.gmra.mrb[0].mxu0 %v8573
      %v10212 = vpop.f32.mrb[0].mxu0
      %v10213 = vadd.f32 %v9900, %v10212
      %v10214 = vpop.f32.mrb[0].mxu0
      %v10215 = vadd.f32 %v9902, %v10214
      %v10216 = vpop.f32.mrb[0].mxu0
      %v10217 = vadd.f32 %v9904, %v10216
      %v10218 = vpop.f32.mrb[0].mxu0
      %v10219 = vadd.f32 %v9906, %v10218
      %10220 = vmatprep.mubr.bf16.mxu0 %v8585
      %10221 = vmatmul.mubr.bf16.gmra.mrb[0].mxu0 %v8584
      %v10222 = vpop.f32.mrb[0].mxu0
      %v10223 = vadd.f32 %v9910, %v10222
      %v10224 = vpop.f32.mrb[0].mxu0
      %v10225 = vadd.f32 %v9912, %v10224
      %v10226 = vpop.f32.mrb[0].mxu0
      %v10227 = vadd.f32 %v9914, %v10226
      %v10228 = vpop.f32.mrb[0].mxu0
      %v10229 = vadd.f32 %v9916, %v10228
      %10230 = vmatprep.mubr.bf16.mxu0 %v8596
      %10231 = vmatmul.mubr.bf16.gmra.mrb[0].mxu0 %v8595
      %v10232 = vpop.f32.mrb[0].mxu0
      %v10233 = vadd.f32 %v9920, %v10232
      %v10234 = vpop.f32.mrb[0].mxu0
      %v10235 = vadd.f32 %v9922, %v10234
      %v10236 = vpop.f32.mrb[0].mxu0
      %v10237 = vadd.f32 %v9924, %v10236
      %v10238 = vpop.f32.mrb[0].mxu0
      %v10239 = vadd.f32 %v9926, %v10238
      %10240 = vmatprep.mubr.bf16.mxu0 %v8607
      %10241 = vmatmul.mubr.bf16.gmra.mrb[0].mxu0 %v8606
      %v10242 = vpop.f32.mrb[0].mxu0
      %v10243 = vadd.f32 %v9930, %v10242
      %v10244 = vpop.f32.mrb[0].mxu0
      %v10245 = vadd.f32 %v9932, %v10244
      %v10246 = vpop.f32.mrb[0].mxu0
      %v10247 = vadd.f32 %v9934, %v10246
      %v10248 = vpop.f32.mrb[0].mxu0
      %v10249 = vadd.f32 %v9936, %v10248
      %10250 = vmatprep.mubr.bf16.mxu0 %v8618
      %10251 = vmatmul.mubr.bf16.gmra.mrb[0].mxu0 %v8617
      %v10252 = vpop.f32.mrb[0].mxu0
      %v10253 = vadd.f32 %v9940, %v10252
      %v10254 = vpop.f32.mrb[0].mxu0
      %v10255 = vadd.f32 %v9942, %v10254
      %v10256 = vpop.f32.mrb[0].mxu0
      %v10257 = vadd.f32 %v9944, %v10256
      %v10258 = vpop.f32.mrb[0].mxu0
      %v10259 = vadd.f32 %v9946, %v10258
      %10260 = vmatprep.mubr.bf16.mxu0 %v8629
      %10261 = vmatmul.mubr.bf16.gmra.mrb[0].mxu0 %v8628
      %v10262 = vpop.f32.mrb[0].mxu0
      %v10263 = vadd.f32 %v9950, %v10262
      %v10264 = vpop.f32.mrb[0].mxu0
      %v10265 = vadd.f32 %v9952, %v10264
      %v10266 = vpop.f32.mrb[0].mxu0
      %v10267 = vadd.f32 %v9954, %v10266
      %v10268 = vpop.f32.mrb[0].mxu0
      %v10269 = vadd.f32 %v9956, %v10268
      %10270 = vmatprep.mubr.bf16.mxu0 %v8640
      %10271 = vmatmul.mubr.bf16.gmra.mrb[0].mxu0 %v8639
      %v10272 = vpop.f32.mrb[0].mxu0
      %v10273 = vadd.f32 %v9960, %v10272
      %v10274 = vpop.f32.mrb[0].mxu0
      %v10275 = vadd.f32 %v9962, %v10274
      %v10276 = vpop.f32.mrb[0].mxu0
      %v10277 = vadd.f32 %v9964, %v10276
      %v10278 = vpop.f32.mrb[0].mxu0
      %v10279 = vadd.f32 %v9966, %v10278
      %10280 = vmatprep.mubr.bf16.mxu0 %v8651
      %10281 = vmatmul.mubr.bf16.gmra.mrb[0].mxu0 %v8650
      %v10282 = vpop.f32.mrb[0].mxu0
      %v10283 = vadd.f32 %v9970, %v10282
      %v10284 = vpop.f32.mrb[0].mxu0
      %v10285 = vadd.f32 %v9972, %v10284
      %v10286 = vpop.f32.mrb[0].mxu0
      %v10287 = vadd.f32 %v9974, %v10286
      %v10288 = vpop.f32.mrb[0].mxu0
      %v10289 = vadd.f32 %v9976, %v10288
      %10290 = vmatprep.mubr.bf16.mxu0 %v8662
      %10291 = vmatmul.mubr.bf16.gmra.mrb[0].mxu0 %v8661
      %v10292 = vpop.f32.mrb[0].mxu0
      %v10293 = vadd.f32 %v9980, %v10292
      %v10294 = vpop.f32.mrb[0].mxu0
      %v10295 = vadd.f32 %v9982, %v10294
      %v10296 = vpop.f32.mrb[0].mxu0
      %v10297 = vadd.f32 %v9984, %v10296
      %v10298 = vpop.f32.mrb[0].mxu0
      %v10299 = vadd.f32 %v9986, %v10298
      %10300 = vmatprep.mubr.bf16.mxu0 %v8673
      %10301 = vmatmul.mubr.bf16.gmra.mrb[0].mxu0 %v8672
      %v10302 = vpop.f32.mrb[0].mxu0
      %v10303 = vadd.f32 %v9990, %v10302
      %v10304 = vpop.f32.mrb[0].mxu0
      %v10305 = vadd.f32 %v9992, %v10304
      %v10306 = vpop.f32.mrb[0].mxu0
      %v10307 = vadd.f32 %v9994, %v10306
      %v10308 = vpop.f32.mrb[0].mxu0
      %v10309 = vadd.f32 %v9996, %v10308
      %10310 = vmatprep.mubr.bf16.mxu0 %v8684
      %10311 = vmatmul.mubr.bf16.gmra.mrb[0].mxu0 %v8683
      %v10312 = vpop.f32.mrb[0].mxu0
      %v10313 = vadd.f32 %v10000, %v10312
      %v10314 = vpop.f32.mrb[0].mxu0
      %v10315 = vadd.f32 %v10002, %v10314
      %v10316 = vpop.f32.mrb[0].mxu0
      %v10317 = vadd.f32 %v10004, %v10316
      %v10318 = vpop.f32.mrb[0].mxu0
      %v10319 = vadd.f32 %v10006, %v10318
      %10320 = vmatprep.mubr.bf16.mxu0 %v8695
      %10321 = vmatmul.mubr.bf16.gmra.mrb[0].mxu0 %v8694
      %v10322 = vpop.f32.mrb[0].mxu0
      %v10323 = vadd.f32 %v10010, %v10322
      %v10324 = vpop.f32.mrb[0].mxu0
      %v10325 = vadd.f32 %v10012, %v10324
      %v10326 = vpop.f32.mrb[0].mxu0
      %v10327 = vadd.f32 %v10014, %v10326
      %v10328 = vpop.f32.mrb[0].mxu0
      %v10329 = vadd.f32 %v10016, %v10328
      %10330 = vmatprep.mubr.bf16.mxu0 %v8706
      %10331 = vmatmul.mubr.bf16.gmra.mrb[0].mxu0 %v8705
      %v10332 = vpop.f32.mrb[0].mxu0
      %v10333 = vadd.f32 %v10020, %v10332
      %v10334 = vpop.f32.mrb[0].mxu0
      %v10335 = vadd.f32 %v10022, %v10334
      %v10336 = vpop.f32.mrb[0].mxu0
      %v10337 = vadd.f32 %v10024, %v10336
      %v10338 = vpop.f32.mrb[0].mxu0
      %v10339 = vadd.f32 %v10026, %v10338
      %10340 = vmatprep.mubr.bf16.mxu0 %v8717
      %10341 = vmatmul.mubr.bf16.gmra.mrb[0].mxu0 %v8716
      %v10342 = vpop.f32.mrb[0].mxu0
      %v10343 = vadd.f32 %v10030, %v10342
      %v10344 = vpop.f32.mrb[0].mxu0
      %v10345 = vadd.f32 %v10032, %v10344
      %v10346 = vpop.f32.mrb[0].mxu0
      %v10347 = vadd.f32 %v10034, %v10346
      %v10348 = vpop.f32.mrb[0].mxu0
      %v10349 = vadd.f32 %v10036, %v10348
      %10350 = vmatprep.mubr.bf16.mxu0 %v8728
      %10351 = vmatmul.mubr.bf16.gmra.mrb[0].mxu0 %v8727
      %v10352 = vpop.f32.mrb[0].mxu0
      %v10353 = vadd.f32 %v10040, %v10352
      %v10354 = vpop.f32.mrb[0].mxu0
      %v10355 = vadd.f32 %v10042, %v10354
      %v10356 = vpop.f32.mrb[0].mxu0
      %v10357 = vadd.f32 %v10044, %v10356
      %v10358 = vpop.f32.mrb[0].mxu0
      %v10359 = vadd.f32 %v10046, %v10358
      %10360 = vmatprep.mubr.bf16.mxu0 %v8739
      %10361 = vmatmul.mubr.bf16.gmra.mrb[0].mxu0 %v8738
      %v10362 = vpop.f32.mrb[0].mxu0
      %v10363 = vadd.f32 %v10050, %v10362
      %v10364 = vpop.f32.mrb[0].mxu0
      %v10365 = vadd.f32 %v10052, %v10364
      %v10366 = vpop.f32.mrb[0].mxu0
      %v10367 = vadd.f32 %v10054, %v10366
      %v10368 = vpop.f32.mrb[0].mxu0
      %v10369 = vadd.f32 %v10056, %v10368
      %10370 = vmatprep.mubr.bf16.mxu0 %v8750
      %10371 = vmatmul.mubr.bf16.gmra.mrb[0].mxu0 %v8749
      %v10372 = vpop.f32.mrb[0].mxu0
      %v10373 = vadd.f32 %v10060, %v10372
      %v10374 = vpop.f32.mrb[0].mxu0
      %v10375 = vadd.f32 %v10062, %v10374
      %v10376 = vpop.f32.mrb[0].mxu0
      %v10377 = vadd.f32 %v10064, %v10376
      %v10378 = vpop.f32.mrb[0].mxu0
      %v10379 = vadd.f32 %v10066, %v10378
      %10380 = vmatprep.mubr.bf16.mxu0 %v8761
      %10381 = vmatmul.mubr.bf16.gmra.mrb[0].mxu0 %v8760
      %v10382 = vpop.f32.mrb[0].mxu0
      %v10383 = vadd.f32 %v10070, %v10382
      %v10384 = vpop.f32.mrb[0].mxu0
      %v10385 = vadd.f32 %v10072, %v10384
      %v10386 = vpop.f32.mrb[0].mxu0
      %v10387 = vadd.f32 %v10074, %v10386
      %v10388 = vpop.f32.mrb[0].mxu0
      %v10389 = vadd.f32 %v10076, %v10388
      %10390 = vmatprep.mubr.bf16.mxu0 %v8772
      %10391 = vmatmul.mubr.bf16.gmra.mrb[0].mxu0 %v8771
      %v10392 = vpop.f32.mrb[0].mxu0
      %v10393 = vadd.f32 %v10080, %v10392
      %v10394 = vpop.f32.mrb[0].mxu0
      %v10395 = vadd.f32 %v10082, %v10394
      %v10396 = vpop.f32.mrb[0].mxu0
      %v10397 = vadd.f32 %v10084, %v10396
      %v10398 = vpop.f32.mrb[0].mxu0
      %v10399 = vadd.f32 %v10086, %v10398
      %10400 = vmatprep.mubr.bf16.mxu0 %v8783
      %10401 = vmatmul.mubr.bf16.gmra.mrb[0].mxu0 %v8782
      %v10402 = vpop.f32.mrb[0].mxu0
      %v10403 = vadd.f32 %v10090, %v10402
      %v10404 = vpop.f32.mrb[0].mxu0
      %v10405 = vadd.f32 %v10092, %v10404
      %v10406 = vpop.f32.mrb[0].mxu0
      %v10407 = vadd.f32 %v10094, %v10406
      %v10408 = vpop.f32.mrb[0].mxu0
      %v10409 = vadd.f32 %v10096, %v10408
      %10410 = vmatprep.mubr.bf16.mxu0 %v8794
      %10411 = vmatmul.mubr.bf16.gmra.mrb[0].mxu0 %v8793
      %v10412 = vpop.f32.mrb[0].mxu0
      %v10413 = vadd.f32 %v10100, %v10412
      %v10414 = vpop.f32.mrb[0].mxu0
      %v10415 = vadd.f32 %v10102, %v10414
      %v10416 = vpop.f32.mrb[0].mxu0
      %v10417 = vadd.f32 %v10104, %v10416
      %v10418 = vpop.f32.mrb[0].mxu0
      %v10419 = vadd.f32 %v10106, %v10418
      %10420 = vmatprep.mubr.bf16.mxu0 %v8805
      %10421 = vmatmul.mubr.bf16.gmra.mrb[0].mxu0 %v8804
      %v10422 = vpop.f32.mrb[0].mxu0
      %v10423 = vadd.f32 %v10110, %v10422
      %v10424 = vpop.f32.mrb[0].mxu0
      %v10425 = vadd.f32 %v10112, %v10424
      %v10426 = vpop.f32.mrb[0].mxu0
      %v10427 = vadd.f32 %v10114, %v10426
      %v10428 = vpop.f32.mrb[0].mxu0
      %v10429 = vadd.f32 %v10116, %v10428
      %10430 = vmatprep.mubr.bf16.mxu0 %v8816
      %10431 = vmatmul.mubr.bf16.gmra.mrb[0].mxu0 %v8815
      %v10432 = vpop.f32.mrb[0].mxu0
      %v10433 = vadd.f32 %v10120, %v10432
      %v10434 = vpop.f32.mrb[0].mxu0
      %v10435 = vadd.f32 %v10122, %v10434
      %v10436 = vpop.f32.mrb[0].mxu0
      %v10437 = vadd.f32 %v10124, %v10436
      %v10438 = vpop.f32.mrb[0].mxu0
      %v10439 = vadd.f32 %v10126, %v10438
      %10440 = vmatprep.mubr.bf16.mxu0 %v8827
      %10441 = vmatmul.mubr.bf16.gmra.mrb[0].mxu0 %v8826
      %v10442 = vpop.f32.mrb[0].mxu0
      %v10443 = vadd.f32 %v10130, %v10442
      %v10444 = vpop.f32.mrb[0].mxu0
      %v10445 = vadd.f32 %v10132, %v10444
      %v10446 = vpop.f32.mrb[0].mxu0
      %v10447 = vadd.f32 %v10134, %v10446
      %v10448 = vpop.f32.mrb[0].mxu0
      %v10449 = vadd.f32 %v10136, %v10448
      %10450 = vmatprep.mubr.bf16.mxu0 %v8838
      %10451 = vmatmul.mubr.bf16.gmra.mrb[0].mxu0 %v8837
      %v10452 = vpop.f32.mrb[0].mxu0
      %v10453 = vadd.f32 %v10140, %v10452
      %v10454 = vpop.f32.mrb[0].mxu0
      %v10455 = vadd.f32 %v10142, %v10454
      %v10456 = vpop.f32.mrb[0].mxu0
      %v10457 = vadd.f32 %v10144, %v10456
      %v10458 = vpop.f32.mrb[0].mxu0
      %v10459 = vadd.f32 %v10146, %v10458
      %10460 = vmatprep.mubr.bf16.mxu0 %v8849
      %10461 = vmatmul.mubr.bf16.gmra.mrb[0].mxu0 %v8848
      %v10462 = vpop.f32.mrb[0].mxu0
      %v10463 = vadd.f32 %v10150, %v10462
      %v10464 = vpop.f32.mrb[0].mxu0
      %v10465 = vadd.f32 %v10152, %v10464
      %v10466 = vpop.f32.mrb[0].mxu0
      %v10467 = vadd.f32 %v10154, %v10466
      %v10468 = vpop.f32.mrb[0].mxu0
      %v10469 = vadd.f32 %v10156, %v10468
      %10470 = vmatprep.mubr.bf16.mxu0 %v8860
      %10471 = vmatmul.mubr.bf16.gmra.mrb[0].mxu0 %v8859
      %v10472 = vpop.f32.mrb[0].mxu0
      %v10473 = vadd.f32 %v10160, %v10472
      %v10474 = vpop.f32.mrb[0].mxu0
      %v10475 = vadd.f32 %v10162, %v10474
      %v10476 = vpop.f32.mrb[0].mxu0
      %v10477 = vadd.f32 %v10164, %v10476
      %v10478 = vpop.f32.mrb[0].mxu0
      %v10479 = vadd.f32 %v10166, %v10478
      %10480 = vdwg.mxu0
      %10481 = vmatprep.subr.bf16.mxu0 %v7565
      %10482 = vmatpush1.bf16.msra.mxu0 %v7564
      %10483 = vmatprep.subr.bf16.mxu0 %v7567
      %10484 = vmatpush1.bf16.msra.mxu0 %v7566
      %10485 = vmatprep.subr.bf16.mxu0 %v7569
      %10486 = vmatpush1.bf16.msra.mxu0 %v7568
      %10487 = vmatprep.subr.bf16.mxu0 %v7571
      %10488 = vmatpush1.bf16.msra.mxu0 %v7570
      %10489 = vmatprep.subr.bf16.mxu0 %v7573
      %10490 = vmatpush1.bf16.msra.mxu0 %v7572
      %10491 = vmatprep.subr.bf16.mxu0 %v7575
      %10492 = vmatpush1.bf16.msra.mxu0 %v7574
      %10493 = vmatprep.subr.bf16.mxu0 %v7577
      %10494 = vmatpush1.bf16.msra.mxu0 %v7576
      %10495 = vmatprep.subr.bf16.mxu0 %v7579
      %10496 = vmatpush1.bf16.msra.mxu0 %v7578
      %10497 = vmatprep.subr.bf16.mxu0 %v7581
      %10498 = vmatpush1.bf16.msra.mxu0 %v7580
      %10499 = vmatprep.subr.bf16.mxu0 %v7583
      %10500 = vmatpush1.bf16.msra.mxu0 %v7582
      %10501 = vmatprep.subr.bf16.mxu0 %v7585
      %10502 = vmatpush1.bf16.msra.mxu0 %v7584
      %10503 = vmatprep.subr.bf16.mxu0 %v7587
      %10504 = vmatpush1.bf16.msra.mxu0 %v7586
      %10505 = vmatprep.subr.bf16.mxu0 %v7589
      %10506 = vmatpush1.bf16.msra.mxu0 %v7588
      %10507 = vmatprep.subr.bf16.mxu0 %v7591
      %10508 = vmatpush1.bf16.msra.mxu0 %v7590
      %10509 = vmatprep.subr.bf16.mxu0 %v7593
      %10510 = vmatpush1.bf16.msra.mxu0 %v7592
      %10511 = vmatprep.subr.bf16.mxu0 %v7595
      %10512 = vmatpush1.bf16.msra.mxu0 %v7594
      %10513 = vmatprep.mubr.bf16.mxu0 %v8565
      %10514 = vmatmul.mubr.bf16.gmra.mrb[0].mxu0 %v8564
      %v10515 = vpop.f32.mrb[0].mxu0
      %v10516 = vadd.f32 %v10203, %v10515
      %v10517 = vpop.f32.mrb[0].mxu0
      %v10518 = vadd.f32 %v10205, %v10517
      %v10519 = vpop.f32.mrb[0].mxu0
      %v10520 = vadd.f32 %v10207, %v10519
      %v10521 = vpop.f32.mrb[0].mxu0
      %v10522 = vadd.f32 %v10209, %v10521
      %10523 = vmatprep.mubr.bf16.mxu0 %v8576
      %10524 = vmatmul.mubr.bf16.gmra.mrb[0].mxu0 %v8575
      %v10525 = vpop.f32.mrb[0].mxu0
      %v10526 = vadd.f32 %v10213, %v10525
      %v10527 = vpop.f32.mrb[0].mxu0
      %v10528 = vadd.f32 %v10215, %v10527
      %v10529 = vpop.f32.mrb[0].mxu0
      %v10530 = vadd.f32 %v10217, %v10529
      %v10531 = vpop.f32.mrb[0].mxu0
      %v10532 = vadd.f32 %v10219, %v10531
      %10533 = vmatprep.mubr.bf16.mxu0 %v8587
      %10534 = vmatmul.mubr.bf16.gmra.mrb[0].mxu0 %v8586
      %v10535 = vpop.f32.mrb[0].mxu0
      %v10536 = vadd.f32 %v10223, %v10535
      %v10537 = vpop.f32.mrb[0].mxu0
      %v10538 = vadd.f32 %v10225, %v10537
      %v10539 = vpop.f32.mrb[0].mxu0
      %v10540 = vadd.f32 %v10227, %v10539
      %v10541 = vpop.f32.mrb[0].mxu0
      %v10542 = vadd.f32 %v10229, %v10541
      %10543 = vmatprep.mubr.bf16.mxu0 %v8598
      %10544 = vmatmul.mubr.bf16.gmra.mrb[0].mxu0 %v8597
      %v10545 = vpop.f32.mrb[0].mxu0
      %v10546 = vadd.f32 %v10233, %v10545
      %v10547 = vpop.f32.mrb[0].mxu0
      %v10548 = vadd.f32 %v10235, %v10547
      %v10549 = vpop.f32.mrb[0].mxu0
      %v10550 = vadd.f32 %v10237, %v10549
      %v10551 = vpop.f32.mrb[0].mxu0
      %v10552 = vadd.f32 %v10239, %v10551
      %10553 = vmatprep.mubr.bf16.mxu0 %v8609
      %10554 = vmatmul.mubr.bf16.gmra.mrb[0].mxu0 %v8608
      %v10555 = vpop.f32.mrb[0].mxu0
      %v10556 = vadd.f32 %v10243, %v10555
      %v10557 = vpop.f32.mrb[0].mxu0
      %v10558 = vadd.f32 %v10245, %v10557
      %v10559 = vpop.f32.mrb[0].mxu0
      %v10560 = vadd.f32 %v10247, %v10559
      %v10561 = vpop.f32.mrb[0].mxu0
      %v10562 = vadd.f32 %v10249, %v10561
      %10563 = vmatprep.mubr.bf16.mxu0 %v8620
      %10564 = vmatmul.mubr.bf16.gmra.mrb[0].mxu0 %v8619
      %v10565 = vpop.f32.mrb[0].mxu0
      %v10566 = vadd.f32 %v10253, %v10565
      %v10567 = vpop.f32.mrb[0].mxu0
      %v10568 = vadd.f32 %v10255, %v10567
      %v10569 = vpop.f32.mrb[0].mxu0
      %v10570 = vadd.f32 %v10257, %v10569
      %v10571 = vpop.f32.mrb[0].mxu0
      %v10572 = vadd.f32 %v10259, %v10571
      %10573 = vmatprep.mubr.bf16.mxu0 %v8631
      %10574 = vmatmul.mubr.bf16.gmra.mrb[0].mxu0 %v8630
      %v10575 = vpop.f32.mrb[0].mxu0
      %v10576 = vadd.f32 %v10263, %v10575
      %v10577 = vpop.f32.mrb[0].mxu0
      %v10578 = vadd.f32 %v10265, %v10577
      %v10579 = vpop.f32.mrb[0].mxu0
      %v10580 = vadd.f32 %v10267, %v10579
      %v10581 = vpop.f32.mrb[0].mxu0
      %v10582 = vadd.f32 %v10269, %v10581
      %10583 = vmatprep.mubr.bf16.mxu0 %v8642
      %10584 = vmatmul.mubr.bf16.gmra.mrb[0].mxu0 %v8641
      %v10585 = vpop.f32.mrb[0].mxu0
      %v10586 = vadd.f32 %v10273, %v10585
      %v10587 = vpop.f32.mrb[0].mxu0
      %v10588 = vadd.f32 %v10275, %v10587
      %v10589 = vpop.f32.mrb[0].mxu0
      %v10590 = vadd.f32 %v10277, %v10589
      %v10591 = vpop.f32.mrb[0].mxu0
      %v10592 = vadd.f32 %v10279, %v10591
      %10593 = vmatprep.mubr.bf16.mxu0 %v8653
      %10594 = vmatmul.mubr.bf16.gmra.mrb[0].mxu0 %v8652
      %v10595 = vpop.f32.mrb[0].mxu0
      %v10596 = vadd.f32 %v10283, %v10595
      %v10597 = vpop.f32.mrb[0].mxu0
      %v10598 = vadd.f32 %v10285, %v10597
      %v10599 = vpop.f32.mrb[0].mxu0
      %v10600 = vadd.f32 %v10287, %v10599
      %v10601 = vpop.f32.mrb[0].mxu0
      %v10602 = vadd.f32 %v10289, %v10601
      %10603 = vmatprep.mubr.bf16.mxu0 %v8664
      %10604 = vmatmul.mubr.bf16.gmra.mrb[0].mxu0 %v8663
      %v10605 = vpop.f32.mrb[0].mxu0
      %v10606 = vadd.f32 %v10293, %v10605
      %v10607 = vpop.f32.mrb[0].mxu0
      %v10608 = vadd.f32 %v10295, %v10607
      %v10609 = vpop.f32.mrb[0].mxu0
      %v10610 = vadd.f32 %v10297, %v10609
      %v10611 = vpop.f32.mrb[0].mxu0
      %v10612 = vadd.f32 %v10299, %v10611
      %10613 = vmatprep.mubr.bf16.mxu0 %v8675
      %10614 = vmatmul.mubr.bf16.gmra.mrb[0].mxu0 %v8674
      %v10615 = vpop.f32.mrb[0].mxu0
      %v10616 = vadd.f32 %v10303, %v10615
      %v10617 = vpop.f32.mrb[0].mxu0
      %v10618 = vadd.f32 %v10305, %v10617
      %v10619 = vpop.f32.mrb[0].mxu0
      %v10620 = vadd.f32 %v10307, %v10619
      %v10621 = vpop.f32.mrb[0].mxu0
      %v10622 = vadd.f32 %v10309, %v10621
      %10623 = vmatprep.mubr.bf16.mxu0 %v8686
      %10624 = vmatmul.mubr.bf16.gmra.mrb[0].mxu0 %v8685
      %v10625 = vpop.f32.mrb[0].mxu0
      %v10626 = vadd.f32 %v10313, %v10625
      %v10627 = vpop.f32.mrb[0].mxu0
      %v10628 = vadd.f32 %v10315, %v10627
      %v10629 = vpop.f32.mrb[0].mxu0
      %v10630 = vadd.f32 %v10317, %v10629
      %v10631 = vpop.f32.mrb[0].mxu0
      %v10632 = vadd.f32 %v10319, %v10631
      %10633 = vmatprep.mubr.bf16.mxu0 %v8697
      %10634 = vmatmul.mubr.bf16.gmra.mrb[0].mxu0 %v8696
      %v10635 = vpop.f32.mrb[0].mxu0
      %v10636 = vadd.f32 %v10323, %v10635
      %v10637 = vpop.f32.mrb[0].mxu0
      %v10638 = vadd.f32 %v10325, %v10637
      %v10639 = vpop.f32.mrb[0].mxu0
      %v10640 = vadd.f32 %v10327, %v10639
      %v10641 = vpop.f32.mrb[0].mxu0
      %v10642 = vadd.f32 %v10329, %v10641
      %10643 = vmatprep.mubr.bf16.mxu0 %v8708
      %10644 = vmatmul.mubr.bf16.gmra.mrb[0].mxu0 %v8707
      %v10645 = vpop.f32.mrb[0].mxu0
      %v10646 = vadd.f32 %v10333, %v10645
      %v10647 = vpop.f32.mrb[0].mxu0
      %v10648 = vadd.f32 %v10335, %v10647
      %v10649 = vpop.f32.mrb[0].mxu0
      %v10650 = vadd.f32 %v10337, %v10649
      %v10651 = vpop.f32.mrb[0].mxu0
      %v10652 = vadd.f32 %v10339, %v10651
      %10653 = vmatprep.mubr.bf16.mxu0 %v8719
      %10654 = vmatmul.mubr.bf16.gmra.mrb[0].mxu0 %v8718
      %v10655 = vpop.f32.mrb[0].mxu0
      %v10656 = vadd.f32 %v10343, %v10655
      %v10657 = vpop.f32.mrb[0].mxu0
      %v10658 = vadd.f32 %v10345, %v10657
      %v10659 = vpop.f32.mrb[0].mxu0
      %v10660 = vadd.f32 %v10347, %v10659
      %v10661 = vpop.f32.mrb[0].mxu0
      %v10662 = vadd.f32 %v10349, %v10661
      %10663 = vmatprep.mubr.bf16.mxu0 %v8730
      %10664 = vmatmul.mubr.bf16.gmra.mrb[0].mxu0 %v8729
      %v10665 = vpop.f32.mrb[0].mxu0
      %v10666 = vadd.f32 %v10353, %v10665
      %v10667 = vpop.f32.mrb[0].mxu0
      %v10668 = vadd.f32 %v10355, %v10667
      %v10669 = vpop.f32.mrb[0].mxu0
      %v10670 = vadd.f32 %v10357, %v10669
      %v10671 = vpop.f32.mrb[0].mxu0
      %v10672 = vadd.f32 %v10359, %v10671
      %10673 = vmatprep.mubr.bf16.mxu0 %v8741
      %10674 = vmatmul.mubr.bf16.gmra.mrb[0].mxu0 %v8740
      %v10675 = vpop.f32.mrb[0].mxu0
      %v10676 = vadd.f32 %v10363, %v10675
      %v10677 = vpop.f32.mrb[0].mxu0
      %v10678 = vadd.f32 %v10365, %v10677
      %v10679 = vpop.f32.mrb[0].mxu0
      %v10680 = vadd.f32 %v10367, %v10679
      %v10681 = vpop.f32.mrb[0].mxu0
      %v10682 = vadd.f32 %v10369, %v10681
      %10683 = vmatprep.mubr.bf16.mxu0 %v8752
      %10684 = vmatmul.mubr.bf16.gmra.mrb[0].mxu0 %v8751
      %v10685 = vpop.f32.mrb[0].mxu0
      %v10686 = vadd.f32 %v10373, %v10685
      %v10687 = vpop.f32.mrb[0].mxu0
      %v10688 = vadd.f32 %v10375, %v10687
      %v10689 = vpop.f32.mrb[0].mxu0
      %v10690 = vadd.f32 %v10377, %v10689
      %v10691 = vpop.f32.mrb[0].mxu0
      %v10692 = vadd.f32 %v10379, %v10691
      %10693 = vmatprep.mubr.bf16.mxu0 %v8763
      %10694 = vmatmul.mubr.bf16.gmra.mrb[0].mxu0 %v8762
      %v10695 = vpop.f32.mrb[0].mxu0
      %v10696 = vadd.f32 %v10383, %v10695
      %v10697 = vpop.f32.mrb[0].mxu0
      %v10698 = vadd.f32 %v10385, %v10697
      %v10699 = vpop.f32.mrb[0].mxu0
      %v10700 = vadd.f32 %v10387, %v10699
      %v10701 = vpop.f32.mrb[0].mxu0
      %v10702 = vadd.f32 %v10389, %v10701
      %10703 = vmatprep.mubr.bf16.mxu0 %v8774
      %10704 = vmatmul.mubr.bf16.gmra.mrb[0].mxu0 %v8773
      %v10705 = vpop.f32.mrb[0].mxu0
      %v10706 = vadd.f32 %v10393, %v10705
      %v10707 = vpop.f32.mrb[0].mxu0
      %v10708 = vadd.f32 %v10395, %v10707
      %v10709 = vpop.f32.mrb[0].mxu0
      %v10710 = vadd.f32 %v10397, %v10709
      %v10711 = vpop.f32.mrb[0].mxu0
      %v10712 = vadd.f32 %v10399, %v10711
      %10713 = vmatprep.mubr.bf16.mxu0 %v8785
      %10714 = vmatmul.mubr.bf16.gmra.mrb[0].mxu0 %v8784
      %v10715 = vpop.f32.mrb[0].mxu0
      %v10716 = vadd.f32 %v10403, %v10715
      %v10717 = vpop.f32.mrb[0].mxu0
      %v10718 = vadd.f32 %v10405, %v10717
      %v10719 = vpop.f32.mrb[0].mxu0
      %v10720 = vadd.f32 %v10407, %v10719
      %v10721 = vpop.f32.mrb[0].mxu0
      %v10722 = vadd.f32 %v10409, %v10721
      %10723 = vmatprep.mubr.bf16.mxu0 %v8796
      %10724 = vmatmul.mubr.bf16.gmra.mrb[0].mxu0 %v8795
      %v10725 = vpop.f32.mrb[0].mxu0
      %v10726 = vadd.f32 %v10413, %v10725
      %v10727 = vpop.f32.mrb[0].mxu0
      %v10728 = vadd.f32 %v10415, %v10727
      %v10729 = vpop.f32.mrb[0].mxu0
      %v10730 = vadd.f32 %v10417, %v10729
      %v10731 = vpop.f32.mrb[0].mxu0
      %v10732 = vadd.f32 %v10419, %v10731
      %10733 = vmatprep.mubr.bf16.mxu0 %v8807
      %10734 = vmatmul.mubr.bf16.gmra.mrb[0].mxu0 %v8806
      %v10735 = vpop.f32.mrb[0].mxu0
      %v10736 = vadd.f32 %v10423, %v10735
      %v10737 = vpop.f32.mrb[0].mxu0
      %v10738 = vadd.f32 %v10425, %v10737
      %v10739 = vpop.f32.mrb[0].mxu0
      %v10740 = vadd.f32 %v10427, %v10739
      %v10741 = vpop.f32.mrb[0].mxu0
      %v10742 = vadd.f32 %v10429, %v10741
      %10743 = vmatprep.mubr.bf16.mxu0 %v8818
      %10744 = vmatmul.mubr.bf16.gmra.mrb[0].mxu0 %v8817
      %v10745 = vpop.f32.mrb[0].mxu0
      %v10746 = vadd.f32 %v10433, %v10745
      %v10747 = vpop.f32.mrb[0].mxu0
      %v10748 = vadd.f32 %v10435, %v10747
      %v10749 = vpop.f32.mrb[0].mxu0
      %v10750 = vadd.f32 %v10437, %v10749
      %v10751 = vpop.f32.mrb[0].mxu0
      %v10752 = vadd.f32 %v10439, %v10751
      %10753 = vmatprep.mubr.bf16.mxu0 %v8829
      %10754 = vmatmul.mubr.bf16.gmra.mrb[0].mxu0 %v8828
      %v10755 = vpop.f32.mrb[0].mxu0
      %v10756 = vadd.f32 %v10443, %v10755
      %v10757 = vpop.f32.mrb[0].mxu0
      %v10758 = vadd.f32 %v10445, %v10757
      %v10759 = vpop.f32.mrb[0].mxu0
      %v10760 = vadd.f32 %v10447, %v10759
      %v10761 = vpop.f32.mrb[0].mxu0
      %v10762 = vadd.f32 %v10449, %v10761
      %10763 = vmatprep.mubr.bf16.mxu0 %v8840
      %10764 = vmatmul.mubr.bf16.gmra.mrb[0].mxu0 %v8839
      %v10765 = vpop.f32.mrb[0].mxu0
      %v10766 = vadd.f32 %v10453, %v10765
      %v10767 = vpop.f32.mrb[0].mxu0
      %v10768 = vadd.f32 %v10455, %v10767
      %v10769 = vpop.f32.mrb[0].mxu0
      %v10770 = vadd.f32 %v10457, %v10769
      %v10771 = vpop.f32.mrb[0].mxu0
      %v10772 = vadd.f32 %v10459, %v10771
      %10773 = vmatprep.mubr.bf16.mxu0 %v8851
      %10774 = vmatmul.mubr.bf16.gmra.mrb[0].mxu0 %v8850
      %v10775 = vpop.f32.mrb[0].mxu0
      %v10776 = vadd.f32 %v10463, %v10775
      %v10777 = vpop.f32.mrb[0].mxu0
      %v10778 = vadd.f32 %v10465, %v10777
      %v10779 = vpop.f32.mrb[0].mxu0
      %v10780 = vadd.f32 %v10467, %v10779
      %v10781 = vpop.f32.mrb[0].mxu0
      %v10782 = vadd.f32 %v10469, %v10781
      %10783 = vmatprep.mubr.bf16.mxu0 %v8862
      %10784 = vmatmul.mubr.bf16.gmra.mrb[0].mxu0 %v8861
      %v10785 = vpop.f32.mrb[0].mxu0
      %v10786 = vadd.f32 %v10473, %v10785
      %v10787 = vpop.f32.mrb[0].mxu0
      %v10788 = vadd.f32 %v10475, %v10787
      %v10789 = vpop.f32.mrb[0].mxu0
      %v10790 = vadd.f32 %v10477, %v10789
      %v10791 = vpop.f32.mrb[0].mxu0
      %v10792 = vadd.f32 %v10479, %v10791
      %10793 = vdwg.mxu0
      %10794 = vmatprep.subr.bf16.mxu0 %v7597
      %10795 = vmatpush1.bf16.msra.mxu0 %v7596
      %10796 = vmatprep.subr.bf16.mxu0 %v7599
      %10797 = vmatpush1.bf16.msra.mxu0 %v7598
      %10798 = vmatprep.subr.bf16.mxu0 %v7601
      %10799 = vmatpush1.bf16.msra.mxu0 %v7600
      %10800 = vmatprep.subr.bf16.mxu0 %v7603
      %10801 = vmatpush1.bf16.msra.mxu0 %v7602
      %10802 = vmatprep.subr.bf16.mxu0 0
      %10803 = vmatpush1.bf16.msra.mxu0 0
      %10804 = vmatprep.subr.bf16.mxu0 0
      %10805 = vmatpush1.bf16.msra.mxu0 0
      %10806 = vmatprep.subr.bf16.mxu0 0
      %10807 = vmatpush1.bf16.msra.mxu0 0
      %10808 = vmatprep.subr.bf16.mxu0 0
      %10809 = vmatpush1.bf16.msra.mxu0 0
      %10810 = vmatprep.subr.bf16.mxu0 0
      %10811 = vmatpush1.bf16.msra.mxu0 0
      %10812 = vmatprep.subr.bf16.mxu0 0
      %10813 = vmatpush1.bf16.msra.mxu0 0
      %10814 = vmatprep.subr.bf16.mxu0 0
      %10815 = vmatpush1.bf16.msra.mxu0 0
      %10816 = vmatprep.subr.bf16.mxu0 0
      %10817 = vmatpush1.bf16.msra.mxu0 0
      %10818 = vmatprep.subr.bf16.mxu0 0
      %10819 = vmatpush1.bf16.msra.mxu0 0
      %10820 = vmatprep.subr.bf16.mxu0 0
      %10821 = vmatpush1.bf16.msra.mxu0 0
      %10822 = vmatprep.subr.bf16.mxu0 0
      %10823 = vmatpush1.bf16.msra.mxu0 0
      %10824 = vmatprep.subr.bf16.mxu0 0
      %10825 = vmatpush1.bf16.msra.mxu0 0
      %10826 = vmatprep.mubr.bf16.mxu0 0
      %10827 = vmatmul.mubr.bf16.gmra.mrb[0].mxu0 %v9146
      %v10828 = vpop.f32.mrb[0].mxu0
      %v10829 = vadd.f32 %v10516, %v10828
      %v10830 = vpop.f32.mrb[0].mxu0
      %v10831 = vadd.f32 %v10518, %v10830
      %v10832 = vpop.f32.mrb[0].mxu0
      %v10833 = vadd.f32 %v10520, %v10832
      %v10834 = vpop.f32.mrb[0].mxu0
      %v10835 = vadd.f32 %v10522, %v10834
      %10836 = vmatprep.mubr.bf16.mxu0 0
      %10837 = vmatmul.mubr.bf16.gmra.mrb[0].mxu0 %v9149
      %v10838 = vpop.f32.mrb[0].mxu0
      %v10839 = vadd.f32 %v10526, %v10838
      %v10840 = vpop.f32.mrb[0].mxu0
      %v10841 = vadd.f32 %v10528, %v10840
      %v10842 = vpop.f32.mrb[0].mxu0
      %v10843 = vadd.f32 %v10530, %v10842
      %v10844 = vpop.f32.mrb[0].mxu0
      %v10845 = vadd.f32 %v10532, %v10844
      %10846 = vmatprep.mubr.bf16.mxu0 0
      %10847 = vmatmul.mubr.bf16.gmra.mrb[0].mxu0 %v9152
      %v10848 = vpop.f32.mrb[0].mxu0
      %v10849 = vadd.f32 %v10536, %v10848
      %v10850 = vpop.f32.mrb[0].mxu0
      %v10851 = vadd.f32 %v10538, %v10850
      %v10852 = vpop.f32.mrb[0].mxu0
      %v10853 = vadd.f32 %v10540, %v10852
      %v10854 = vpop.f32.mrb[0].mxu0
      %v10855 = vadd.f32 %v10542, %v10854
      %10856 = vmatprep.mubr.bf16.mxu0 0
      %10857 = vmatmul.mubr.bf16.gmra.mrb[0].mxu0 %v9155
      %v10858 = vpop.f32.mrb[0].mxu0
      %v10859 = vadd.f32 %v10546, %v10858
      %v10860 = vpop.f32.mrb[0].mxu0
      %v10861 = vadd.f32 %v10548, %v10860
      %v10862 = vpop.f32.mrb[0].mxu0
      %v10863 = vadd.f32 %v10550, %v10862
      %v10864 = vpop.f32.mrb[0].mxu0
      %v10865 = vadd.f32 %v10552, %v10864
      %10866 = vmatprep.mubr.bf16.mxu0 0
      %10867 = vmatmul.mubr.bf16.gmra.mrb[0].mxu0 %v9158
      %v10868 = vpop.f32.mrb[0].mxu0
      %v10869 = vadd.f32 %v10556, %v10868
      %v10870 = vpop.f32.mrb[0].mxu0
      %v10871 = vadd.f32 %v10558, %v10870
      %v10872 = vpop.f32.mrb[0].mxu0
      %v10873 = vadd.f32 %v10560, %v10872
      %v10874 = vpop.f32.mrb[0].mxu0
      %v10875 = vadd.f32 %v10562, %v10874
      %10876 = vmatprep.mubr.bf16.mxu0 0
      %10877 = vmatmul.mubr.bf16.gmra.mrb[0].mxu0 %v9161
      %v10878 = vpop.f32.mrb[0].mxu0
      %v10879 = vadd.f32 %v10566, %v10878
      %v10880 = vpop.f32.mrb[0].mxu0
      %v10881 = vadd.f32 %v10568, %v10880
      %v10882 = vpop.f32.mrb[0].mxu0
      %v10883 = vadd.f32 %v10570, %v10882
      %v10884 = vpop.f32.mrb[0].mxu0
      %v10885 = vadd.f32 %v10572, %v10884
      %10886 = vmatprep.mubr.bf16.mxu0 0
      %10887 = vmatmul.mubr.bf16.gmra.mrb[0].mxu0 %v9164
      %v10888 = vpop.f32.mrb[0].mxu0
      %v10889 = vadd.f32 %v10576, %v10888
      %v10890 = vpop.f32.mrb[0].mxu0
      %v10891 = vadd.f32 %v10578, %v10890
      %v10892 = vpop.f32.mrb[0].mxu0
      %v10893 = vadd.f32 %v10580, %v10892
      %v10894 = vpop.f32.mrb[0].mxu0
      %v10895 = vadd.f32 %v10582, %v10894
      %10896 = vmatprep.mubr.bf16.mxu0 0
      %10897 = vmatmul.mubr.bf16.gmra.mrb[0].mxu0 %v9167
      %v10898 = vpop.f32.mrb[0].mxu0
      %v10899 = vadd.f32 %v10586, %v10898
      %v10900 = vpop.f32.mrb[0].mxu0
      %v10901 = vadd.f32 %v10588, %v10900
      %v10902 = vpop.f32.mrb[0].mxu0
      %v10903 = vadd.f32 %v10590, %v10902
      %v10904 = vpop.f32.mrb[0].mxu0
      %v10905 = vadd.f32 %v10592, %v10904
      %10906 = vmatprep.mubr.bf16.mxu0 0
      %10907 = vmatmul.mubr.bf16.gmra.mrb[0].mxu0 %v9170
      %v10908 = vpop.f32.mrb[0].mxu0
      %v10909 = vadd.f32 %v10596, %v10908
      %v10910 = vpop.f32.mrb[0].mxu0
      %v10911 = vadd.f32 %v10598, %v10910
      %v10912 = vpop.f32.mrb[0].mxu0
      %v10913 = vadd.f32 %v10600, %v10912
      %v10914 = vpop.f32.mrb[0].mxu0
      %v10915 = vadd.f32 %v10602, %v10914
      %10916 = vmatprep.mubr.bf16.mxu0 0
      %10917 = vmatmul.mubr.bf16.gmra.mrb[0].mxu0 %v9173
      %v10918 = vpop.f32.mrb[0].mxu0
      %v10919 = vadd.f32 %v10606, %v10918
      %v10920 = vpop.f32.mrb[0].mxu0
      %v10921 = vadd.f32 %v10608, %v10920
      %v10922 = vpop.f32.mrb[0].mxu0
      %v10923 = vadd.f32 %v10610, %v10922
      %v10924 = vpop.f32.mrb[0].mxu0
      %v10925 = vadd.f32 %v10612, %v10924
      %10926 = vmatprep.mubr.bf16.mxu0 0
      %10927 = vmatmul.mubr.bf16.gmra.mrb[0].mxu0 %v9176
      %v10928 = vpop.f32.mrb[0].mxu0
      %v10929 = vadd.f32 %v10616, %v10928
      %v10930 = vpop.f32.mrb[0].mxu0
      %v10931 = vadd.f32 %v10618, %v10930
      %v10932 = vpop.f32.mrb[0].mxu0
      %v10933 = vadd.f32 %v10620, %v10932
      %v10934 = vpop.f32.mrb[0].mxu0
      %v10935 = vadd.f32 %v10622, %v10934
      %10936 = vmatprep.mubr.bf16.mxu0 0
      %10937 = vmatmul.mubr.bf16.gmra.mrb[0].mxu0 %v9179
      %v10938 = vpop.f32.mrb[0].mxu0
      %v10939 = vadd.f32 %v10626, %v10938
      %v10940 = vpop.f32.mrb[0].mxu0
      %v10941 = vadd.f32 %v10628, %v10940
      %v10942 = vpop.f32.mrb[0].mxu0
      %v10943 = vadd.f32 %v10630, %v10942
      %v10944 = vpop.f32.mrb[0].mxu0
      %v10945 = vadd.f32 %v10632, %v10944
      %10946 = vmatprep.mubr.bf16.mxu0 0
      %10947 = vmatmul.mubr.bf16.gmra.mrb[0].mxu0 %v9182
      %v10948 = vpop.f32.mrb[0].mxu0
      %v10949 = vadd.f32 %v10636, %v10948
      %v10950 = vpop.f32.mrb[0].mxu0
      %v10951 = vadd.f32 %v10638, %v10950
      %v10952 = vpop.f32.mrb[0].mxu0
      %v10953 = vadd.f32 %v10640, %v10952
      %v10954 = vpop.f32.mrb[0].mxu0
      %v10955 = vadd.f32 %v10642, %v10954
      %10956 = vmatprep.mubr.bf16.mxu0 0
      %10957 = vmatmul.mubr.bf16.gmra.mrb[0].mxu0 %v9185
      %v10958 = vpop.f32.mrb[0].mxu0
      %v10959 = vadd.f32 %v10646, %v10958
      %v10960 = vpop.f32.mrb[0].mxu0
      %v10961 = vadd.f32 %v10648, %v10960
      %v10962 = vpop.f32.mrb[0].mxu0
      %v10963 = vadd.f32 %v10650, %v10962
      %v10964 = vpop.f32.mrb[0].mxu0
      %v10965 = vadd.f32 %v10652, %v10964
      %10966 = vmatprep.mubr.bf16.mxu0 0
      %10967 = vmatmul.mubr.bf16.gmra.mrb[0].mxu0 %v9188
      %v10968 = vpop.f32.mrb[0].mxu0
      %v10969 = vadd.f32 %v10656, %v10968
      %v10970 = vpop.f32.mrb[0].mxu0
      %v10971 = vadd.f32 %v10658, %v10970
      %v10972 = vpop.f32.mrb[0].mxu0
      %v10973 = vadd.f32 %v10660, %v10972
      %v10974 = vpop.f32.mrb[0].mxu0
      %v10975 = vadd.f32 %v10662, %v10974
      %10976 = vmatprep.mubr.bf16.mxu0 0
      %10977 = vmatmul.mubr.bf16.gmra.mrb[0].mxu0 %v9191
      %v10978 = vpop.f32.mrb[0].mxu0
      %v10979 = vadd.f32 %v10666, %v10978
      %v10980 = vpop.f32.mrb[0].mxu0
      %v10981 = vadd.f32 %v10668, %v10980
      %v10982 = vpop.f32.mrb[0].mxu0
      %v10983 = vadd.f32 %v10670, %v10982
      %v10984 = vpop.f32.mrb[0].mxu0
      %v10985 = vadd.f32 %v10672, %v10984
      %10986 = vmatprep.mubr.bf16.mxu0 0
      %10987 = vmatmul.mubr.bf16.gmra.mrb[0].mxu0 %v9194
      %v10988 = vpop.f32.mrb[0].mxu0
      %v10989 = vadd.f32 %v10676, %v10988
      %v10990 = vpop.f32.mrb[0].mxu0
      %v10991 = vadd.f32 %v10678, %v10990
      %v10992 = vpop.f32.mrb[0].mxu0
      %v10993 = vadd.f32 %v10680, %v10992
      %v10994 = vpop.f32.mrb[0].mxu0
      %v10995 = vadd.f32 %v10682, %v10994
      %10996 = vmatprep.mubr.bf16.mxu0 0
      %10997 = vmatmul.mubr.bf16.gmra.mrb[0].mxu0 %v9197
      %v10998 = vpop.f32.mrb[0].mxu0
      %v10999 = vadd.f32 %v10686, %v10998
      %v11000 = vpop.f32.mrb[0].mxu0
      %v11001 = vadd.f32 %v10688, %v11000
      %v11002 = vpop.f32.mrb[0].mxu0
      %v11003 = vadd.f32 %v10690, %v11002
      %v11004 = vpop.f32.mrb[0].mxu0
      %v11005 = vadd.f32 %v10692, %v11004
      %11006 = vmatprep.mubr.bf16.mxu0 0
      %11007 = vmatmul.mubr.bf16.gmra.mrb[0].mxu0 %v9200
      %v11008 = vpop.f32.mrb[0].mxu0
      %v11009 = vadd.f32 %v10696, %v11008
      %v11010 = vpop.f32.mrb[0].mxu0
      %v11011 = vadd.f32 %v10698, %v11010
      %v11012 = vpop.f32.mrb[0].mxu0
      %v11013 = vadd.f32 %v10700, %v11012
      %v11014 = vpop.f32.mrb[0].mxu0
      %v11015 = vadd.f32 %v10702, %v11014
      %11016 = vmatprep.mubr.bf16.mxu0 0
      %11017 = vmatmul.mubr.bf16.gmra.mrb[0].mxu0 %v9203
      %v11018 = vpop.f32.mrb[0].mxu0
      %v11019 = vadd.f32 %v10706, %v11018
      %v11020 = vpop.f32.mrb[0].mxu0
      %v11021 = vadd.f32 %v10708, %v11020
      %v11022 = vpop.f32.mrb[0].mxu0
      %v11023 = vadd.f32 %v10710, %v11022
      %v11024 = vpop.f32.mrb[0].mxu0
      %v11025 = vadd.f32 %v10712, %v11024
      %11026 = vmatprep.mubr.bf16.mxu0 0
      %11027 = vmatmul.mubr.bf16.gmra.mrb[0].mxu0 %v9206
      %v11028 = vpop.f32.mrb[0].mxu0
      %v11029 = vadd.f32 %v10716, %v11028
      %v11030 = vpop.f32.mrb[0].mxu0
      %v11031 = vadd.f32 %v10718, %v11030
      %v11032 = vpop.f32.mrb[0].mxu0
      %v11033 = vadd.f32 %v10720, %v11032
      %v11034 = vpop.f32.mrb[0].mxu0
      %v11035 = vadd.f32 %v10722, %v11034
      %11036 = vmatprep.mubr.bf16.mxu0 0
      %11037 = vmatmul.mubr.bf16.gmra.mrb[0].mxu0 %v9209
      %v11038 = vpop.f32.mrb[0].mxu0
      %v11039 = vadd.f32 %v10726, %v11038
      %v11040 = vpop.f32.mrb[0].mxu0
      %v11041 = vadd.f32 %v10728, %v11040
      %v11042 = vpop.f32.mrb[0].mxu0
      %v11043 = vadd.f32 %v10730, %v11042
      %v11044 = vpop.f32.mrb[0].mxu0
      %v11045 = vadd.f32 %v10732, %v11044
      %11046 = vmatprep.mubr.bf16.mxu0 0
      %11047 = vmatmul.mubr.bf16.gmra.mrb[0].mxu0 %v9212
      %v11048 = vpop.f32.mrb[0].mxu0
      %v11049 = vadd.f32 %v10736, %v11048
      %v11050 = vpop.f32.mrb[0].mxu0
      %v11051 = vadd.f32 %v10738, %v11050
      %v11052 = vpop.f32.mrb[0].mxu0
      %v11053 = vadd.f32 %v10740, %v11052
      %v11054 = vpop.f32.mrb[0].mxu0
      %v11055 = vadd.f32 %v10742, %v11054
      %11056 = vmatprep.mubr.bf16.mxu0 0
      %11057 = vmatmul.mubr.bf16.gmra.mrb[0].mxu0 %v9215
      %v11058 = vpop.f32.mrb[0].mxu0
      %v11059 = vadd.f32 %v10746, %v11058
      %v11060 = vpop.f32.mrb[0].mxu0
      %v11061 = vadd.f32 %v10748, %v11060
      %v11062 = vpop.f32.mrb[0].mxu0
      %v11063 = vadd.f32 %v10750, %v11062
      %v11064 = vpop.f32.mrb[0].mxu0
      %v11065 = vadd.f32 %v10752, %v11064
      %11066 = vmatprep.mubr.bf16.mxu0 0
      %11067 = vmatmul.mubr.bf16.gmra.mrb[0].mxu0 %v9218
      %v11068 = vpop.f32.mrb[0].mxu0
      %v11069 = vadd.f32 %v10756, %v11068
      %v11070 = vpop.f32.mrb[0].mxu0
      %v11071 = vadd.f32 %v10758, %v11070
      %v11072 = vpop.f32.mrb[0].mxu0
      %v11073 = vadd.f32 %v10760, %v11072
      %v11074 = vpop.f32.mrb[0].mxu0
      %v11075 = vadd.f32 %v10762, %v11074
      %11076 = vmatprep.mubr.bf16.mxu0 0
      %11077 = vmatmul.mubr.bf16.gmra.mrb[0].mxu0 %v9221
      %v11078 = vpop.f32.mrb[0].mxu0
      %v11079 = vadd.f32 %v10766, %v11078
      %v11080 = vpop.f32.mrb[0].mxu0
      %v11081 = vadd.f32 %v10768, %v11080
      %v11082 = vpop.f32.mrb[0].mxu0
      %v11083 = vadd.f32 %v10770, %v11082
      %v11084 = vpop.f32.mrb[0].mxu0
      %v11085 = vadd.f32 %v10772, %v11084
      %11086 = vmatprep.mubr.bf16.mxu0 0
      %11087 = vmatmul.mubr.bf16.gmra.mrb[0].mxu0 %v9224
      %v11088 = vpop.f32.mrb[0].mxu0
      %v11089 = vadd.f32 %v10776, %v11088
      %v11090 = vpop.f32.mrb[0].mxu0
      %v11091 = vadd.f32 %v10778, %v11090
      %v11092 = vpop.f32.mrb[0].mxu0
      %v11093 = vadd.f32 %v10780, %v11092
      %v11094 = vpop.f32.mrb[0].mxu0
      %v11095 = vadd.f32 %v10782, %v11094
      %11096 = vmatprep.mubr.bf16.mxu0 0
      %11097 = vmatmul.mubr.bf16.gmra.mrb[0].mxu0 %v9227
      %v11098 = vpop.f32.mrb[0].mxu0
      %v11099 = vadd.f32 %v10786, %v11098
      %v11100 = vpop.f32.mrb[0].mxu0
      %v11101 = vadd.f32 %v10788, %v11100
      %v11102 = vpop.f32.mrb[0].mxu0
      %v11103 = vadd.f32 %v10790, %v11102
      %v11104 = vpop.f32.mrb[0].mxu0
      %v11105 = vadd.f32 %v10792, %v11104
      %11106 = vdwg.mxu0
      %11107 = vst [vmem:[%s204] sm:$0xff] %v10829
      %vm11108 = vcmask 556032
      %11109 = vst.msk [vmem:[%s204 + $0x8] sm:$0xff] %vm11108, %v10831
      %11110 = vst [vmem:[%s204 + $0x10] sm:$0xff] %v10833
      %11111 = vst.msk [vmem:[%s204 + $0x18] sm:$0xff] %vm11108, %v10835
      %11112 = vst [vmem:[%s204 + $0x20] sm:$0xff] %v10839
      %11113 = vst.msk [vmem:[%s204 + $0x28] sm:$0xff] %vm11108, %v10841
      %11114 = vst [vmem:[%s204 + $0x30] sm:$0xff] %v10843
      %11115 = vst.msk [vmem:[%s204 + $0x38] sm:$0xff] %vm11108, %v10845
      %11116 = vst [vmem:[%s204 + $0x40] sm:$0xff] %v10849
      %11117 = vst.msk [vmem:[%s204 + $0x48] sm:$0xff] %vm11108, %v10851
      %11118 = vst [vmem:[%s204 + $0x50] sm:$0xff] %v10853
      %11119 = vst.msk [vmem:[%s204 + $0x58] sm:$0xff] %vm11108, %v10855
      %11120 = vst [vmem:[%s204 + $0x60] sm:$0xff] %v10859
      %11121 = vst.msk [vmem:[%s204 + $0x68] sm:$0xff] %vm11108, %v10861
      %11122 = vst [vmem:[%s204 + $0x70] sm:$0xff] %v10863
      %11123 = vst.msk [vmem:[%s204 + $0x78] sm:$0xff] %vm11108, %v10865
      %11124 = vst [vmem:[%s204 + $0x80] sm:$0xff] %v10869
      %11125 = vst.msk [vmem:[%s204 + $0x88] sm:$0xff] %vm11108, %v10871
      %11126 = vst [vmem:[%s204 + $0x90] sm:$0xff] %v10873
      %11127 = vst.msk [vmem:[%s204 + $0x98] sm:$0xff] %vm11108, %v10875
      %11128 = vst [vmem:[%s204 + $0xa0] sm:$0xff] %v10879
      %11129 = vst.msk [vmem:[%s204 + $0xa8] sm:$0xff] %vm11108, %v10881
      %11130 = vst [vmem:[%s204 + $0xb0] sm:$0xff] %v10883
      %11131 = vst.msk [vmem:[%s204 + $0xb8] sm:$0xff] %vm11108, %v10885
      %11132 = vst [vmem:[%s204 + $0xc0] sm:$0xff] %v10889
      %11133 = vst.msk [vmem:[%s204 + $0xc8] sm:$0xff] %vm11108, %v10891
      %11134 = vst [vmem:[%s204 + $0xd0] sm:$0xff] %v10893
      %11135 = vst.msk [vmem:[%s204 + $0xd8] sm:$0xff] %vm11108, %v10895
      %11136 = vst [vmem:[%s204 + $0xe0] sm:$0xff] %v10899
      %11137 = vst.msk [vmem:[%s204 + $0xe8] sm:$0xff] %vm11108, %v10901
      %11138 = vst [vmem:[%s204 + $0xf0] sm:$0xff] %v10903
      %11139 = vst.msk [vmem:[%s204 + $0xf8] sm:$0xff] %vm11108, %v10905
      %11140 = vst [vmem:[%s204 + $0x100] sm:$0xff] %v10909
      %11141 = vst.msk [vmem:[%s204 + $0x108] sm:$0xff] %vm11108, %v10911
      %11142 = vst [vmem:[%s204 + $0x110] sm:$0xff] %v10913
      %11143 = vst.msk [vmem:[%s204 + $0x118] sm:$0xff] %vm11108, %v10915
      %11144 = vst [vmem:[%s204 + $0x120] sm:$0xff] %v10919
      %11145 = vst.msk [vmem:[%s204 + $0x128] sm:$0xff] %vm11108, %v10921
      %11146 = vst [vmem:[%s204 + $0x130] sm:$0xff] %v10923
      %11147 = vst.msk [vmem:[%s204 + $0x138] sm:$0xff] %vm11108, %v10925
      %11148 = vst [vmem:[%s204 + $0x140] sm:$0xff] %v10929
      %11149 = vst.msk [vmem:[%s204 + $0x148] sm:$0xff] %vm11108, %v10931
      %11150 = vst [vmem:[%s204 + $0x150] sm:$0xff] %v10933
      %11151 = vst.msk [vmem:[%s204 + $0x158] sm:$0xff] %vm11108, %v10935
      %11152 = vst [vmem:[%s204 + $0x160] sm:$0xff] %v10939
      %11153 = vst.msk [vmem:[%s204 + $0x168] sm:$0xff] %vm11108, %v10941
      %11154 = vst [vmem:[%s204 + $0x170] sm:$0xff] %v10943
      %11155 = vst.msk [vmem:[%s204 + $0x178] sm:$0xff] %vm11108, %v10945
      %11156 = vst [vmem:[%s204 + $0x180] sm:$0xff] %v10949
      %11157 = vst.msk [vmem:[%s204 + $0x188] sm:$0xff] %vm11108, %v10951
      %11158 = vst [vmem:[%s204 + $0x190] sm:$0xff] %v10953
      %11159 = vst.msk [vmem:[%s204 + $0x198] sm:$0xff] %vm11108, %v10955
      %11160 = vst [vmem:[%s204 + $0x1a0] sm:$0xff] %v10959
      %11161 = vst.msk [vmem:[%s204 + $0x1a8] sm:$0xff] %vm11108, %v10961
      %11162 = vst [vmem:[%s204 + $0x1b0] sm:$0xff] %v10963
      %11163 = vst.msk [vmem:[%s204 + $0x1b8] sm:$0xff] %vm11108, %v10965
      %11164 = vst [vmem:[%s204 + $0x1c0] sm:$0xff] %v10969
      %11165 = vst.msk [vmem:[%s204 + $0x1c8] sm:$0xff] %vm11108, %v10971
      %11166 = vst [vmem:[%s204 + $0x1d0] sm:$0xff] %v10973
      %11167 = vst.msk [vmem:[%s204 + $0x1d8] sm:$0xff] %vm11108, %v10975
      %11168 = vst [vmem:[%s204 + $0x1e0] sm:$0xff] %v10979
      %11169 = vst.msk [vmem:[%s204 + $0x1e8] sm:$0xff] %vm11108, %v10981
      %11170 = vst [vmem:[%s204 + $0x1f0] sm:$0xff] %v10983
      %11171 = vst.msk [vmem:[%s204 + $0x1f8] sm:$0xff] %vm11108, %v10985
      %11172 = vst [vmem:[%s204 + $0x200] sm:$0xff] %v10989
      %11173 = vst.msk [vmem:[%s204 + $0x208] sm:$0xff] %vm11108, %v10991
      %11174 = vst [vmem:[%s204 + $0x210] sm:$0xff] %v10993
      %11175 = vst.msk [vmem:[%s204 + $0x218] sm:$0xff] %vm11108, %v10995
      %11176 = vst [vmem:[%s204 + $0x220] sm:$0xff] %v10999
      %11177 = vst.msk [vmem:[%s204 + $0x228] sm:$0xff] %vm11108, %v11001
      %11178 = vst [vmem:[%s204 + $0x230] sm:$0xff] %v11003
      %11179 = vst.msk [vmem:[%s204 + $0x238] sm:$0xff] %vm11108, %v11005
      %11180 = vst [vmem:[%s204 + $0x240] sm:$0xff] %v11009
      %11181 = vst.msk [vmem:[%s204 + $0x248] sm:$0xff] %vm11108, %v11011
      %11182 = vst [vmem:[%s204 + $0x250] sm:$0xff] %v11013
      %11183 = vst.msk [vmem:[%s204 + $0x258] sm:$0xff] %vm11108, %v11015
      %11184 = vst [vmem:[%s204 + $0x260] sm:$0xff] %v11019
      %11185 = vst.msk [vmem:[%s204 + $0x268] sm:$0xff] %vm11108, %v11021
      %11186 = vst [vmem:[%s204 + $0x270] sm:$0xff] %v11023
      %11187 = vst.msk [vmem:[%s204 + $0x278] sm:$0xff] %vm11108, %v11025
      %11188 = vst [vmem:[%s204 + $0x280] sm:$0xff] %v11029
      %11189 = vst.msk [vmem:[%s204 + $0x288] sm:$0xff] %vm11108, %v11031
      %11190 = vst [vmem:[%s204 + $0x290] sm:$0xff] %v11033
      %11191 = vst.msk [vmem:[%s204 + $0x298] sm:$0xff] %vm11108, %v11035
      %11192 = vst [vmem:[%s204 + $0x2a0] sm:$0xff] %v11039
      %11193 = vst.msk [vmem:[%s204 + $0x2a8] sm:$0xff] %vm11108, %v11041
      %11194 = vst [vmem:[%s204 + $0x2b0] sm:$0xff] %v11043
      %11195 = vst.msk [vmem:[%s204 + $0x2b8] sm:$0xff] %vm11108, %v11045
      %11196 = vst [vmem:[%s204 + $0x2c0] sm:$0xff] %v11049
      %11197 = vst.msk [vmem:[%s204 + $0x2c8] sm:$0xff] %vm11108, %v11051
      %11198 = vst [vmem:[%s204 + $0x2d0] sm:$0xff] %v11053
      %11199 = vst.msk [vmem:[%s204 + $0x2d8] sm:$0xff] %vm11108, %v11055
      %11200 = vst [vmem:[%s204 + $0x2e0] sm:$0xff] %v11059
      %11201 = vst.msk [vmem:[%s204 + $0x2e8] sm:$0xff] %vm11108, %v11061
      %11202 = vst [vmem:[%s204 + $0x2f0] sm:$0xff] %v11063
      %11203 = vst.msk [vmem:[%s204 + $0x2f8] sm:$0xff] %vm11108, %v11065
      %11204 = vst [vmem:[%s204 + $0x300] sm:$0xff] %v11069
      %11205 = vst.msk [vmem:[%s204 + $0x308] sm:$0xff] %vm11108, %v11071
      %11206 = vst [vmem:[%s204 + $0x310] sm:$0xff] %v11073
      %11207 = vst.msk [vmem:[%s204 + $0x318] sm:$0xff] %vm11108, %v11075
      %11208 = vst [vmem:[%s204 + $0x320] sm:$0xff] %v11079
      %11209 = vst.msk [vmem:[%s204 + $0x328] sm:$0xff] %vm11108, %v11081
      %11210 = vst [vmem:[%s204 + $0x330] sm:$0xff] %v11083
      %11211 = vst.msk [vmem:[%s204 + $0x338] sm:$0xff] %vm11108, %v11085
      %11212 = vst [vmem:[%s204 + $0x340] sm:$0xff] %v11089
      %11213 = vst.msk [vmem:[%s204 + $0x348] sm:$0xff] %vm11108, %v11091
      %11214 = vst [vmem:[%s204 + $0x350] sm:$0xff] %v11093
      %11215 = vst.msk [vmem:[%s204 + $0x358] sm:$0xff] %vm11108, %v11095
      %11216 = vst [vmem:[%s204 + $0x360] sm:$0xff] %v11099
      %11217 = vst.msk [vmem:[%s204 + $0x368] sm:$0xff] %vm11108, %v11101
      %11218 = vst [vmem:[%s204 + $0x370] sm:$0xff] %v11103
      %11219 = vst.msk [vmem:[%s204 + $0x378] sm:$0xff] %vm11108, %v11105
      %s11220 = smul.u32 56, %s15
      %p11221 = scmp.lt.s32.totalorder %s11220, 167
      %s11222 = scalar_select %p11221, %s11220, 167
      %s11223 = smul.addr %s11222, 2
      %s11224 = smul.addr %s11223, 8
      %s11225 = scalar_lea.vmem %s4, %s11224
      // Predicated region
      $region41: #{bn_relu_conv1x1.1} parent=35 // pred_check
        %p11226 = pneg %p122
      $region42: #{bn_relu_conv1x1.1} parent=35 // pred_check_branch
        %11228 = sbr.rel (%p11226) target = $region44
      $region43: #{bn_relu_conv1x1.1} parent=35 // pred_region
        %s11229 = smul.u32 56, %s15
      $region44: #{bn_relu_conv1x1.1} parent=35 // pred_fallthru
        _
    $region36: #{bn_relu_conv1x1.1} parent=5 // pred_fallthru
      _
    %p11230 = scmp.le.s32.totalorder 2, %s10
    // Predicated region
    $region45: #{bn_relu_conv1x1.1} parent=5 // pred_check
      %p11231 = pneg %p11230
    $region46: #{bn_relu_conv1x1.1} parent=5 // pred_check_branch
      %11233 = sbr.rel (%p11231) target = $region48
    $region47: #{bn_relu_conv1x1.1} parent=5 // pred_region
      %s11234 = ssub.s32 %s10, 2
      // Predicated region
      $region49: #{bn_relu_conv1x1.1} parent=47 // pred_check
        %p11235 = pneg %p128
      $region50: #{bn_relu_conv1x1.1} parent=47 // pred_check_branch
        %11237 = sbr.rel (%p11235) target = $region52
      $region51: #{bn_relu_conv1x1.1} parent=47 // pred_region
        %s11238 = smul.u32 56, %s16
        %p11239 = scmp.lt.s32.totalorder %s11238, 167
        %s11240 = scalar_select %p11239, %s11238, 167
        %s11241 = smul.addr %s11240, 2
        %s11242 = smul.addr %s11241, 8
        %s11243 = scalar_lea.vmem %s4, %s11242
      $region52: #{bn_relu_conv1x1.1} parent=47 // pred_fallthru
        _
    $region48: #{bn_relu_conv1x1.1} parent=5 // pred_fallthru
      _
  $region6: #{bn_relu_conv1x1.1} parent=0 // loop_footer
    %s14 = sadd.s32 1, %s10
  $region7: #{bn_relu_conv1x1.1} parent=0 // loop_footer_branch
    %9 = sbr.rel target = $region3
  $region8: #{bn_relu_conv1x1.1} parent=0 // loop_exit
    _

</llo_original>
